<compile_context>
chip_gen: v7x
topology: tpu7x:2x2x1
jax: 0.10.0
libtpu: 0.0.40
codegen_flags: <defaults>
</compile_context>

<pallas_src>
import jax
import jax.numpy as jnp
import numpy as np
from jax.experimental import pallas as pl
from jax.experimental.pallas import tpu as pltpu

DILATION = 2   # stands in for cfg.CONTRASTED_CONTEXT.DILATION_SIZE
SUBLANE = 8


def _round_up(x, m):
    return (x + m - 1) // m * m


def _vmem_budget_and_limit():
    """(tile budget, scoped vmem limit) in bytes, per TPU generation."""
    try:
        kind = jax.devices()[0].device_kind.lower()
    except Exception:  # pragma: no cover - defensive default
        kind = ""
    if "v6" in kind:      # 128 MiB physical VMEM
        return 72 * 2**20, 96 * 2**20
    if "v5" in kind:      # 128 MiB physical, 16 MiB default scoped limit
        return 48 * 2**20, 64 * 2**20
    # v7x (64 MiB physical per core) / unknown: stay conservative.
    return 36 * 2**20, 48 * 2**20


def _estimate_vmem(TH, W, Cin, Cout, d):
    """Rough per-step VMEM footprint for a (TH x W) tile (bytes)."""
    Wp = W + 2 * d
    in_blk = (TH + 2 * d) * Wp * Cin * 2      # bf16 input tile
    out_blk = TH * W * Cout * 2               # bf16 output tile
    w_blk = 18 * Cin * Cout * 2               # bf16 weight slab
    work = (TH * W * Cout * 4                 # f32 accumulator
            + (TH + 2 * d) * Wp * Cin * 2     # live tap windows
            + TH * W * Cin * 2)
    # Inputs/outputs/weights are double-buffered by the pipeline.
    return 2 * (in_blk + out_blk + w_blk) + work


def _pick_tile_rows(N, H, W, Cin, Cout, d, budget):
    """Largest divisor of H whose tile fits the VMEM budget; keep >=2 grid
    steps when possible so both TensorCores (megacore / v7x) get work."""
    for TH in range(H, 0, -1):
        if H % TH:
            continue
        if N * (H // TH) < 2 and TH > 1:
            continue
        if _estimate_vmem(TH, W, Cin, Cout, d) <= budget:
            return TH
    return 1


def _make_kernel(TH, W, Cin, Cout, d):
    def kernel(x_ref, w_ref, o_ref):
        """One (batch, H-tile) grid point.

        x_ref: (1, 1, TH+2d, Wp, Cin) bf16  halo-inclusive input window
        w_ref: (18, Cin, Cout)        bf16  [9 local taps ; 9 NEGATED context taps]
        o_ref: (1, 1, TH*W, Cout)     bf16  ReLU(local - context)
        """
        acc = jnp.zeros((TH * W, Cout), dtype=jnp.float32)

        # 9 local taps: padding 1, dilation 1 (window starts at d-1).
        for k in range(9):
            ki, kj = divmod(k, 3)
            tap = x_ref[0, 0,
                        d - 1 + ki: d - 1 + ki + TH,
                        d - 1 + kj: d - 1 + kj + W, :]
            acc += jnp.dot(tap.reshape(TH * W, Cin), w_ref[k],
                           preferred_element_type=jnp.float32)

        # 9 context taps: padding d, dilation d (weights pre-negated).
        for k in range(9):
            ki, kj = divmod(k, 3)
            tap = x_ref[0, 0,
                        d * ki: d * ki + TH,
                        d * kj: d * kj + W, :]
            acc += jnp.dot(tap.reshape(TH * W, Cin), w_ref[9 + k],
                           preferred_element_type=jnp.float32)

        o_ref[0, 0] = jnp.maximum(acc, 0.0).astype(o_ref.dtype)

    return kernel


@jax.jit
def ccnet_forward(x_nchw, w_local, w_context):
    """x_nchw: (N, Cin, H, W) f32; weights: (Cout, Cin, 3, 3) PyTorch layout."""
    N, Cin, H, W = x_nchw.shape
    Cout = w_local.shape[0]
    d = DILATION
    Cinp = _round_up(Cin, SUBLANE)            # sublane-align the contraction dim
    Wp = W + 2 * d

    budget, vmem_limit = _vmem_budget_and_limit()
    TH = _pick_tile_rows(N, H, W, Cinp, Cout, d, budget)
    nT = H // TH

    # ---- glue (fused by XLA under jit): layout + pad + bf16 + window gather ----
    x = jnp.transpose(x_nchw, (0, 2, 3, 1))                        # NHWC
    xp = jnp.pad(x, ((0, 0), (d, d), (d, d), (0, Cinp - Cin))).astype(jnp.bfloat16)

    # Overlapping (TH + 2d)-row windows, one per H-tile: tile t covers padded
    # rows [t*TH, t*TH + TH + 2d).  Single XLA gather; no in-kernel halo work.
    rows = jnp.arange(nT)[:, None] * TH + jnp.arange(TH + 2 * d)[None, :]
    x_tiles = xp[:, rows]                                          # (N,nT,TH+2d,Wp,Cinp)

    # Weight slab (18, Cinp, Cout): 9 local taps then 9 NEGATED context taps,
    # zero rows for the Cin->Cinp padding.
    wl = jnp.transpose(w_local, (2, 3, 1, 0)).reshape(9, Cin, Cout)
    wc = jnp.transpose(w_context, (2, 3, 1, 0)).reshape(9, Cin, Cout)
    w_all = jnp.concatenate([wl, -wc], axis=0)                     # (18, Cin, Cout)
    w_all = jnp.pad(w_all, ((0, 0), (0, Cinp - Cin), (0, 0))).astype(jnp.bfloat16)

    cost = pl.CostEstimate(
        flops=2 * N * H * W * 18 * Cin * Cout,
        transcendentals=0,
        bytes_accessed=x_tiles.size * 2 + w_all.size * 2 + N * H * W * Cout * 2)

    kernel = _make_kernel(TH, W, Cinp, Cout, d)

    out = pl.pallas_call(
        kernel,
        out_shape=jax.ShapeDtypeStruct((N, nT, TH * W, Cout), jnp.bfloat16),
        grid=(N, nT),
        in_specs=[
            pl.BlockSpec((1, 1, TH + 2 * d, Wp, Cinp),
                         lambda n, t: (n, t, 0, 0, 0)),
            # Constant block index -> Pallas DMAs the weight slab exactly once.
            pl.BlockSpec((18, Cinp, Cout), lambda n, t: (0, 0, 0)),
        ],
        out_specs=pl.BlockSpec((1, 1, TH * W, Cout),
                               lambda n, t: (n, t, 0, 0)),
        compiler_params=pltpu.CompilerParams(
            dimension_semantics=("parallel", "parallel"),
            vmem_limit_bytes=vmem_limit),
        cost_estimate=cost,
    )(x_tiles, w_all)

    # (N, nT, TH*W, Cout) -> (N, H, W, Cout) -> NCHW f32 (module returns f32).
    out = out.reshape(N, H, W, Cout).astype(jnp.float32)
    return jnp.transpose(out, (0, 3, 1, 2))


def ccnet_reference(x_nchw, w_local, w_context):
    """Pure-JAX reference (lax conv) mirroring the kernel's bf16 input cast."""
    d = DILATION
    xb = x_nchw.astype(jnp.bfloat16).astype(jnp.float32)
    wl = w_local.astype(jnp.bfloat16).astype(jnp.float32)
    wc = w_context.astype(jnp.bfloat16).astype(jnp.float32)
    local = jax.lax.conv_general_dilated(
        xb, wl, window_strides=(1, 1), padding=[(1, 1), (1, 1)],
        dimension_numbers=("NCHW", "OIHW", "NCHW"),
        precision=jax.lax.Precision.HIGHEST)
    ctx = jax.lax.conv_general_dilated(
        xb, wc, window_strides=(1, 1), padding=[(d, d), (d, d)],
        rhs_dilation=(d, d), dimension_numbers=("NCHW", "OIHW", "NCHW"),
        precision=jax.lax.Precision.HIGHEST)
    return jnp.maximum(local - ctx, 0.0)


if __name__ == "__main__":
    N, Cin, Cout, H, W = 2, 4, 8, 16, 16

    key = jax.random.PRNGKey(0)
    kx, kl, kc = jax.random.split(key, 3)
    x = jax.random.normal(kx, (N, Cin, H, W), dtype=jnp.float32)
    # PyTorch Conv2d weight shape: (Cout, Cin, 3, 3)
    w_local = jax.random.normal(kl, (Cout, Cin, 3, 3), dtype=jnp.float32) * 0.1
    w_context = jax.random.normal(kc, (Cout, Cin, 3, 3), dtype=jnp.float32) * 0.1

    out = jax.block_until_ready(ccnet_forward(x, w_local, w_context))
    ref = jax.block_until_ready(ccnet_reference(x, w_local, w_context))

    assert out.shape == (N, Cout, H, W)
    # Kernel emits bf16 (per perf review); tolerance covers the bf16 rounding.
    np.testing.assert_allclose(np.asarray(out), np.asarray(ref),
                               rtol=2e-2, atol=2e-2)
    print("KERNEL_OK")
</pallas_src>

<mosaic_0001>
module attributes {stable_mosaic.version = 11 : i64} {
  func.func @kernel(%arg0: i32, %arg1: i32, %arg2: memref<1x1x20x20x8xbf16, #tpu.memory_space<vmem>>, %arg3: memref<18x8x8xbf16, #tpu.memory_space<vmem>>, %arg4: memref<1x1x256x8xbf16, #tpu.memory_space<vmem>>) attributes {dimension_semantics = [#tpu.dimension_semantics<parallel>, #tpu.dimension_semantics<parallel>], iteration_bounds = array<i64: 2, 1>, scalar_prefetch = 0 : i64, scratch_operands = 0 : i64, tpu.core_type = #tpu.core_type<tc>, window_params = [{transform_indices = @transform_0, window_bounds = array<i64: 1, 1, 20, 20, 8>}, {pipeline_mode = #tpu.pipeline_mode<synchronous>, transform_indices = @transform_1, window_bounds = array<i64: 18, 8, 8>}, {transform_indices = @transform_2, window_bounds = array<i64: 1, 1, 256, 8>}]} {
    %cst = arith.constant 0.000000e+00 : f32
    %0 = vector.broadcast %cst : f32 to vector<256x8xf32>
    %c0 = arith.constant 0 : index
    %c0_0 = arith.constant 0 : index
    %c1 = arith.constant 1 : index
    %c1_1 = arith.constant 1 : index
    %c0_2 = arith.constant 0 : index
    %1 = vector.load %arg2[%c0, %c0_0, %c1, %c1_1, %c0_2] : memref<1x1x20x20x8xbf16, #tpu.memory_space<vmem>>, vector<1x1x16x16x8xbf16>
    %2 = vector.shape_cast %1 : vector<1x1x16x16x8xbf16> to vector<16x16x8xbf16>
    %3 = vector.shape_cast %2 : vector<16x16x8xbf16> to vector<256x8xbf16>
    %c0_3 = arith.constant 0 : index
    %c0_4 = arith.constant 0 : index
    %c0_5 = arith.constant 0 : index
    %4 = vector.load %arg3[%c0_3, %c0_4, %c0_5] : memref<18x8x8xbf16, #tpu.memory_space<vmem>>, vector<1x8x8xbf16>
    %5 = vector.shape_cast %4 : vector<1x8x8xbf16> to vector<8x8xbf16>
    %cst_6 = arith.constant dense<0.000000e+00> : vector<256x8xf32>
    %6 = tpu.matmul %3, %5, %cst_6 {dimension_numbers = #tpu.dot_dimension_numbers<[1], [0], [0], [1], [0, 0, 1, 1], [], []>} : vector<256x8xbf16>, vector<8x8xbf16>, vector<256x8xf32> -> vector<256x8xf32>
    %7 = arith.addf %0, %6 : vector<256x8xf32>
    %c0_7 = arith.constant 0 : index
    %c0_8 = arith.constant 0 : index
    %c1_9 = arith.constant 1 : index
    %c2 = arith.constant 2 : index
    %c0_10 = arith.constant 0 : index
    %8 = vector.load %arg2[%c0_7, %c0_8, %c1_9, %c2, %c0_10] : memref<1x1x20x20x8xbf16, #tpu.memory_space<vmem>>, vector<1x1x16x16x8xbf16>
    %9 = vector.shape_cast %8 : vector<1x1x16x16x8xbf16> to vector<16x16x8xbf16>
    %10 = vector.shape_cast %9 : vector<16x16x8xbf16> to vector<256x8xbf16>
    %c1_11 = arith.constant 1 : index
    %c0_12 = arith.constant 0 : index
    %c0_13 = arith.constant 0 : index
    %11 = vector.load %arg3[%c1_11, %c0_12, %c0_13] : memref<18x8x8xbf16, #tpu.memory_space<vmem>>, vector<1x8x8xbf16>
    %12 = vector.shape_cast %11 : vector<1x8x8xbf16> to vector<8x8xbf16>
    %cst_14 = arith.constant dense<0.000000e+00> : vector<256x8xf32>
    %13 = tpu.matmul %10, %12, %cst_14 {dimension_numbers = #tpu.dot_dimension_numbers<[1], [0], [0], [1], [0, 0, 1, 1], [], []>} : vector<256x8xbf16>, vector<8x8xbf16>, vector<256x8xf32> -> vector<256x8xf32>
    %14 = arith.addf %7, %13 : vector<256x8xf32>
    %c0_15 = arith.constant 0 : index
    %c0_16 = arith.constant 0 : index
    %c1_17 = arith.constant 1 : index
    %c3 = arith.constant 3 : index
    %c0_18 = arith.constant 0 : index
    %15 = vector.load %arg2[%c0_15, %c0_16, %c1_17, %c3, %c0_18] : memref<1x1x20x20x8xbf16, #tpu.memory_space<vmem>>, vector<1x1x16x16x8xbf16>
    %16 = vector.shape_cast %15 : vector<1x1x16x16x8xbf16> to vector<16x16x8xbf16>
    %17 = vector.shape_cast %16 : vector<16x16x8xbf16> to vector<256x8xbf16>
    %c2_19 = arith.constant 2 : index
    %c0_20 = arith.constant 0 : index
    %c0_21 = arith.constant 0 : index
    %18 = vector.load %arg3[%c2_19, %c0_20, %c0_21] : memref<18x8x8xbf16, #tpu.memory_space<vmem>>, vector<1x8x8xbf16>
    %19 = vector.shape_cast %18 : vector<1x8x8xbf16> to vector<8x8xbf16>
    %cst_22 = arith.constant dense<0.000000e+00> : vector<256x8xf32>
    %20 = tpu.matmul %17, %19, %cst_22 {dimension_numbers = #tpu.dot_dimension_numbers<[1], [0], [0], [1], [0, 0, 1, 1], [], []>} : vector<256x8xbf16>, vector<8x8xbf16>, vector<256x8xf32> -> vector<256x8xf32>
    %21 = arith.addf %14, %20 : vector<256x8xf32>
    %c0_23 = arith.constant 0 : index
    %c0_24 = arith.constant 0 : index
    %c2_25 = arith.constant 2 : index
    %c1_26 = arith.constant 1 : index
    %c0_27 = arith.constant 0 : index
    %22 = vector.load %arg2[%c0_23, %c0_24, %c2_25, %c1_26, %c0_27] : memref<1x1x20x20x8xbf16, #tpu.memory_space<vmem>>, vector<1x1x16x16x8xbf16>
    %23 = vector.shape_cast %22 : vector<1x1x16x16x8xbf16> to vector<16x16x8xbf16>
    %24 = vector.shape_cast %23 : vector<16x16x8xbf16> to vector<256x8xbf16>
    %c3_28 = arith.constant 3 : index
    %c0_29 = arith.constant 0 : index
    %c0_30 = arith.constant 0 : index
    %25 = vector.load %arg3[%c3_28, %c0_29, %c0_30] : memref<18x8x8xbf16, #tpu.memory_space<vmem>>, vector<1x8x8xbf16>
    %26 = vector.shape_cast %25 : vector<1x8x8xbf16> to vector<8x8xbf16>
    %cst_31 = arith.constant dense<0.000000e+00> : vector<256x8xf32>
    %27 = tpu.matmul %24, %26, %cst_31 {dimension_numbers = #tpu.dot_dimension_numbers<[1], [0], [0], [1], [0, 0, 1, 1], [], []>} : vector<256x8xbf16>, vector<8x8xbf16>, vector<256x8xf32> -> vector<256x8xf32>
    %28 = arith.addf %21, %27 : vector<256x8xf32>
    %c0_32 = arith.constant 0 : index
    %c0_33 = arith.constant 0 : index
    %c2_34 = arith.constant 2 : index
    %c2_35 = arith.constant 2 : index
    %c0_36 = arith.constant 0 : index
    %29 = vector.load %arg2[%c0_32, %c0_33, %c2_34, %c2_35, %c0_36] : memref<1x1x20x20x8xbf16, #tpu.memory_space<vmem>>, vector<1x1x16x16x8xbf16>
    %30 = vector.shape_cast %29 : vector<1x1x16x16x8xbf16> to vector<16x16x8xbf16>
    %31 = vector.shape_cast %30 : vector<16x16x8xbf16> to vector<256x8xbf16>
    %c4 = arith.constant 4 : index
    %c0_37 = arith.constant 0 : index
    %c0_38 = arith.constant 0 : index
    %32 = vector.load %arg3[%c4, %c0_37, %c0_38] : memref<18x8x8xbf16, #tpu.memory_space<vmem>>, vector<1x8x8xbf16>
    %33 = vector.shape_cast %32 : vector<1x8x8xbf16> to vector<8x8xbf16>
    %cst_39 = arith.constant dense<0.000000e+00> : vector<256x8xf32>
    %34 = tpu.matmul %31, %33, %cst_39 {dimension_numbers = #tpu.dot_dimension_numbers<[1], [0], [0], [1], [0, 0, 1, 1], [], []>} : vector<256x8xbf16>, vector<8x8xbf16>, vector<256x8xf32> -> vector<256x8xf32>
    %35 = arith.addf %28, %34 : vector<256x8xf32>
    %c0_40 = arith.constant 0 : index
    %c0_41 = arith.constant 0 : index
    %c2_42 = arith.constant 2 : index
    %c3_43 = arith.constant 3 : index
    %c0_44 = arith.constant 0 : index
    %36 = vector.load %arg2[%c0_40, %c0_41, %c2_42, %c3_43, %c0_44] : memref<1x1x20x20x8xbf16, #tpu.memory_space<vmem>>, vector<1x1x16x16x8xbf16>
    %37 = vector.shape_cast %36 : vector<1x1x16x16x8xbf16> to vector<16x16x8xbf16>
    %38 = vector.shape_cast %37 : vector<16x16x8xbf16> to vector<256x8xbf16>
    %c5 = arith.constant 5 : index
    %c0_45 = arith.constant 0 : index
    %c0_46 = arith.constant 0 : index
    %39 = vector.load %arg3[%c5, %c0_45, %c0_46] : memref<18x8x8xbf16, #tpu.memory_space<vmem>>, vector<1x8x8xbf16>
    %40 = vector.shape_cast %39 : vector<1x8x8xbf16> to vector<8x8xbf16>
    %cst_47 = arith.constant dense<0.000000e+00> : vector<256x8xf32>
    %41 = tpu.matmul %38, %40, %cst_47 {dimension_numbers = #tpu.dot_dimension_numbers<[1], [0], [0], [1], [0, 0, 1, 1], [], []>} : vector<256x8xbf16>, vector<8x8xbf16>, vector<256x8xf32> -> vector<256x8xf32>
    %42 = arith.addf %35, %41 : vector<256x8xf32>
    %c0_48 = arith.constant 0 : index
    %c0_49 = arith.constant 0 : index
    %c3_50 = arith.constant 3 : index
    %c1_51 = arith.constant 1 : index
    %c0_52 = arith.constant 0 : index
    %43 = vector.load %arg2[%c0_48, %c0_49, %c3_50, %c1_51, %c0_52] : memref<1x1x20x20x8xbf16, #tpu.memory_space<vmem>>, vector<1x1x16x16x8xbf16>
    %44 = vector.shape_cast %43 : vector<1x1x16x16x8xbf16> to vector<16x16x8xbf16>
    %45 = vector.shape_cast %44 : vector<16x16x8xbf16> to vector<256x8xbf16>
    %c6 = arith.constant 6 : index
    %c0_53 = arith.constant 0 : index
    %c0_54 = arith.constant 0 : index
    %46 = vector.load %arg3[%c6, %c0_53, %c0_54] : memref<18x8x8xbf16, #tpu.memory_space<vmem>>, vector<1x8x8xbf16>
    %47 = vector.shape_cast %46 : vector<1x8x8xbf16> to vector<8x8xbf16>
    %cst_55 = arith.constant dense<0.000000e+00> : vector<256x8xf32>
    %48 = tpu.matmul %45, %47, %cst_55 {dimension_numbers = #tpu.dot_dimension_numbers<[1], [0], [0], [1], [0, 0, 1, 1], [], []>} : vector<256x8xbf16>, vector<8x8xbf16>, vector<256x8xf32> -> vector<256x8xf32>
    %49 = arith.addf %42, %48 : vector<256x8xf32>
    %c0_56 = arith.constant 0 : index
    %c0_57 = arith.constant 0 : index
    %c3_58 = arith.constant 3 : index
    %c2_59 = arith.constant 2 : index
    %c0_60 = arith.constant 0 : index
    %50 = vector.load %arg2[%c0_56, %c0_57, %c3_58, %c2_59, %c0_60] : memref<1x1x20x20x8xbf16, #tpu.memory_space<vmem>>, vector<1x1x16x16x8xbf16>
    %51 = vector.shape_cast %50 : vector<1x1x16x16x8xbf16> to vector<16x16x8xbf16>
    %52 = vector.shape_cast %51 : vector<16x16x8xbf16> to vector<256x8xbf16>
    %c7 = arith.constant 7 : index
    %c0_61 = arith.constant 0 : index
    %c0_62 = arith.constant 0 : index
    %53 = vector.load %arg3[%c7, %c0_61, %c0_62] : memref<18x8x8xbf16, #tpu.memory_space<vmem>>, vector<1x8x8xbf16>
    %54 = vector.shape_cast %53 : vector<1x8x8xbf16> to vector<8x8xbf16>
    %cst_63 = arith.constant dense<0.000000e+00> : vector<256x8xf32>
    %55 = tpu.matmul %52, %54, %cst_63 {dimension_numbers = #tpu.dot_dimension_numbers<[1], [0], [0], [1], [0, 0, 1, 1], [], []>} : vector<256x8xbf16>, vector<8x8xbf16>, vector<256x8xf32> -> vector<256x8xf32>
    %56 = arith.addf %49, %55 : vector<256x8xf32>
    %c0_64 = arith.constant 0 : index
    %c0_65 = arith.constant 0 : index
    %c3_66 = arith.constant 3 : index
    %c3_67 = arith.constant 3 : index
    %c0_68 = arith.constant 0 : index
    %57 = vector.load %arg2[%c0_64, %c0_65, %c3_66, %c3_67, %c0_68] : memref<1x1x20x20x8xbf16, #tpu.memory_space<vmem>>, vector<1x1x16x16x8xbf16>
    %58 = vector.shape_cast %57 : vector<1x1x16x16x8xbf16> to vector<16x16x8xbf16>
    %59 = vector.shape_cast %58 : vector<16x16x8xbf16> to vector<256x8xbf16>
    %c8 = arith.constant 8 : index
    %c0_69 = arith.constant 0 : index
    %c0_70 = arith.constant 0 : index
    %60 = vector.load %arg3[%c8, %c0_69, %c0_70] : memref<18x8x8xbf16, #tpu.memory_space<vmem>>, vector<1x8x8xbf16>
    %61 = vector.shape_cast %60 : vector<1x8x8xbf16> to vector<8x8xbf16>
    %cst_71 = arith.constant dense<0.000000e+00> : vector<256x8xf32>
    %62 = tpu.matmul %59, %61, %cst_71 {dimension_numbers = #tpu.dot_dimension_numbers<[1], [0], [0], [1], [0, 0, 1, 1], [], []>} : vector<256x8xbf16>, vector<8x8xbf16>, vector<256x8xf32> -> vector<256x8xf32>
    %63 = arith.addf %56, %62 : vector<256x8xf32>
    %c0_72 = arith.constant 0 : index
    %c0_73 = arith.constant 0 : index
    %c0_74 = arith.constant 0 : index
    %c0_75 = arith.constant 0 : index
    %c0_76 = arith.constant 0 : index
    %64 = vector.load %arg2[%c0_72, %c0_73, %c0_74, %c0_75, %c0_76] : memref<1x1x20x20x8xbf16, #tpu.memory_space<vmem>>, vector<1x1x16x16x8xbf16>
    %65 = vector.shape_cast %64 : vector<1x1x16x16x8xbf16> to vector<16x16x8xbf16>
    %66 = vector.shape_cast %65 : vector<16x16x8xbf16> to vector<256x8xbf16>
    %c9 = arith.constant 9 : index
    %c0_77 = arith.constant 0 : index
    %c0_78 = arith.constant 0 : index
    %67 = vector.load %arg3[%c9, %c0_77, %c0_78] : memref<18x8x8xbf16, #tpu.memory_space<vmem>>, vector<1x8x8xbf16>
    %68 = vector.shape_cast %67 : vector<1x8x8xbf16> to vector<8x8xbf16>
    %cst_79 = arith.constant dense<0.000000e+00> : vector<256x8xf32>
    %69 = tpu.matmul %66, %68, %cst_79 {dimension_numbers = #tpu.dot_dimension_numbers<[1], [0], [0], [1], [0, 0, 1, 1], [], []>} : vector<256x8xbf16>, vector<8x8xbf16>, vector<256x8xf32> -> vector<256x8xf32>
    %70 = arith.addf %63, %69 : vector<256x8xf32>
    %c0_80 = arith.constant 0 : index
    %c0_81 = arith.constant 0 : index
    %c0_82 = arith.constant 0 : index
    %c2_83 = arith.constant 2 : index
    %c0_84 = arith.constant 0 : index
    %71 = vector.load %arg2[%c0_80, %c0_81, %c0_82, %c2_83, %c0_84] : memref<1x1x20x20x8xbf16, #tpu.memory_space<vmem>>, vector<1x1x16x16x8xbf16>
    %72 = vector.shape_cast %71 : vector<1x1x16x16x8xbf16> to vector<16x16x8xbf16>
    %73 = vector.shape_cast %72 : vector<16x16x8xbf16> to vector<256x8xbf16>
    %c10 = arith.constant 10 : index
    %c0_85 = arith.constant 0 : index
    %c0_86 = arith.constant 0 : index
    %74 = vector.load %arg3[%c10, %c0_85, %c0_86] : memref<18x8x8xbf16, #tpu.memory_space<vmem>>, vector<1x8x8xbf16>
    %75 = vector.shape_cast %74 : vector<1x8x8xbf16> to vector<8x8xbf16>
    %cst_87 = arith.constant dense<0.000000e+00> : vector<256x8xf32>
    %76 = tpu.matmul %73, %75, %cst_87 {dimension_numbers = #tpu.dot_dimension_numbers<[1], [0], [0], [1], [0, 0, 1, 1], [], []>} : vector<256x8xbf16>, vector<8x8xbf16>, vector<256x8xf32> -> vector<256x8xf32>
    %77 = arith.addf %70, %76 : vector<256x8xf32>
    %c0_88 = arith.constant 0 : index
    %c0_89 = arith.constant 0 : index
    %c0_90 = arith.constant 0 : index
    %c4_91 = arith.constant 4 : index
    %c0_92 = arith.constant 0 : index
    %78 = vector.load %arg2[%c0_88, %c0_89, %c0_90, %c4_91, %c0_92] : memref<1x1x20x20x8xbf16, #tpu.memory_space<vmem>>, vector<1x1x16x16x8xbf16>
    %79 = vector.shape_cast %78 : vector<1x1x16x16x8xbf16> to vector<16x16x8xbf16>
    %80 = vector.shape_cast %79 : vector<16x16x8xbf16> to vector<256x8xbf16>
    %c11 = arith.constant 11 : index
    %c0_93 = arith.constant 0 : index
    %c0_94 = arith.constant 0 : index
    %81 = vector.load %arg3[%c11, %c0_93, %c0_94] : memref<18x8x8xbf16, #tpu.memory_space<vmem>>, vector<1x8x8xbf16>
    %82 = vector.shape_cast %81 : vector<1x8x8xbf16> to vector<8x8xbf16>
    %cst_95 = arith.constant dense<0.000000e+00> : vector<256x8xf32>
    %83 = tpu.matmul %80, %82, %cst_95 {dimension_numbers = #tpu.dot_dimension_numbers<[1], [0], [0], [1], [0, 0, 1, 1], [], []>} : vector<256x8xbf16>, vector<8x8xbf16>, vector<256x8xf32> -> vector<256x8xf32>
    %84 = arith.addf %77, %83 : vector<256x8xf32>
    %c0_96 = arith.constant 0 : index
    %c0_97 = arith.constant 0 : index
    %c2_98 = arith.constant 2 : index
    %c0_99 = arith.constant 0 : index
    %c0_100 = arith.constant 0 : index
    %85 = vector.load %arg2[%c0_96, %c0_97, %c2_98, %c0_99, %c0_100] : memref<1x1x20x20x8xbf16, #tpu.memory_space<vmem>>, vector<1x1x16x16x8xbf16>
    %86 = vector.shape_cast %85 : vector<1x1x16x16x8xbf16> to vector<16x16x8xbf16>
    %87 = vector.shape_cast %86 : vector<16x16x8xbf16> to vector<256x8xbf16>
    %c12 = arith.constant 12 : index
    %c0_101 = arith.constant 0 : index
    %c0_102 = arith.constant 0 : index
    %88 = vector.load %arg3[%c12, %c0_101, %c0_102] : memref<18x8x8xbf16, #tpu.memory_space<vmem>>, vector<1x8x8xbf16>
    %89 = vector.shape_cast %88 : vector<1x8x8xbf16> to vector<8x8xbf16>
    %cst_103 = arith.constant dense<0.000000e+00> : vector<256x8xf32>
    %90 = tpu.matmul %87, %89, %cst_103 {dimension_numbers = #tpu.dot_dimension_numbers<[1], [0], [0], [1], [0, 0, 1, 1], [], []>} : vector<256x8xbf16>, vector<8x8xbf16>, vector<256x8xf32> -> vector<256x8xf32>
    %91 = arith.addf %84, %90 : vector<256x8xf32>
    %c0_104 = arith.constant 0 : index
    %c0_105 = arith.constant 0 : index
    %c2_106 = arith.constant 2 : index
    %c2_107 = arith.constant 2 : index
    %c0_108 = arith.constant 0 : index
    %92 = vector.load %arg2[%c0_104, %c0_105, %c2_106, %c2_107, %c0_108] : memref<1x1x20x20x8xbf16, #tpu.memory_space<vmem>>, vector<1x1x16x16x8xbf16>
    %93 = vector.shape_cast %92 : vector<1x1x16x16x8xbf16> to vector<16x16x8xbf16>
    %94 = vector.shape_cast %93 : vector<16x16x8xbf16> to vector<256x8xbf16>
    %c13 = arith.constant 13 : index
    %c0_109 = arith.constant 0 : index
    %c0_110 = arith.constant 0 : index
    %95 = vector.load %arg3[%c13, %c0_109, %c0_110] : memref<18x8x8xbf16, #tpu.memory_space<vmem>>, vector<1x8x8xbf16>
    %96 = vector.shape_cast %95 : vector<1x8x8xbf16> to vector<8x8xbf16>
    %cst_111 = arith.constant dense<0.000000e+00> : vector<256x8xf32>
    %97 = tpu.matmul %94, %96, %cst_111 {dimension_numbers = #tpu.dot_dimension_numbers<[1], [0], [0], [1], [0, 0, 1, 1], [], []>} : vector<256x8xbf16>, vector<8x8xbf16>, vector<256x8xf32> -> vector<256x8xf32>
    %98 = arith.addf %91, %97 : vector<256x8xf32>
    %c0_112 = arith.constant 0 : index
    %c0_113 = arith.constant 0 : index
    %c2_114 = arith.constant 2 : index
    %c4_115 = arith.constant 4 : index
    %c0_116 = arith.constant 0 : index
    %99 = vector.load %arg2[%c0_112, %c0_113, %c2_114, %c4_115, %c0_116] : memref<1x1x20x20x8xbf16, #tpu.memory_space<vmem>>, vector<1x1x16x16x8xbf16>
    %100 = vector.shape_cast %99 : vector<1x1x16x16x8xbf16> to vector<16x16x8xbf16>
    %101 = vector.shape_cast %100 : vector<16x16x8xbf16> to vector<256x8xbf16>
    %c14 = arith.constant 14 : index
    %c0_117 = arith.constant 0 : index
    %c0_118 = arith.constant 0 : index
    %102 = vector.load %arg3[%c14, %c0_117, %c0_118] : memref<18x8x8xbf16, #tpu.memory_space<vmem>>, vector<1x8x8xbf16>
    %103 = vector.shape_cast %102 : vector<1x8x8xbf16> to vector<8x8xbf16>
    %cst_119 = arith.constant dense<0.000000e+00> : vector<256x8xf32>
    %104 = tpu.matmul %101, %103, %cst_119 {dimension_numbers = #tpu.dot_dimension_numbers<[1], [0], [0], [1], [0, 0, 1, 1], [], []>} : vector<256x8xbf16>, vector<8x8xbf16>, vector<256x8xf32> -> vector<256x8xf32>
    %105 = arith.addf %98, %104 : vector<256x8xf32>
    %c0_120 = arith.constant 0 : index
    %c0_121 = arith.constant 0 : index
    %c4_122 = arith.constant 4 : index
    %c0_123 = arith.constant 0 : index
    %c0_124 = arith.constant 0 : index
    %106 = vector.load %arg2[%c0_120, %c0_121, %c4_122, %c0_123, %c0_124] : memref<1x1x20x20x8xbf16, #tpu.memory_space<vmem>>, vector<1x1x16x16x8xbf16>
    %107 = vector.shape_cast %106 : vector<1x1x16x16x8xbf16> to vector<16x16x8xbf16>
    %108 = vector.shape_cast %107 : vector<16x16x8xbf16> to vector<256x8xbf16>
    %c15 = arith.constant 15 : index
    %c0_125 = arith.constant 0 : index
    %c0_126 = arith.constant 0 : index
    %109 = vector.load %arg3[%c15, %c0_125, %c0_126] : memref<18x8x8xbf16, #tpu.memory_space<vmem>>, vector<1x8x8xbf16>
    %110 = vector.shape_cast %109 : vector<1x8x8xbf16> to vector<8x8xbf16>
    %cst_127 = arith.constant dense<0.000000e+00> : vector<256x8xf32>
    %111 = tpu.matmul %108, %110, %cst_127 {dimension_numbers = #tpu.dot_dimension_numbers<[1], [0], [0], [1], [0, 0, 1, 1], [], []>} : vector<256x8xbf16>, vector<8x8xbf16>, vector<256x8xf32> -> vector<256x8xf32>
    %112 = arith.addf %105, %111 : vector<256x8xf32>
    %c0_128 = arith.constant 0 : index
    %c0_129 = arith.constant 0 : index
    %c4_130 = arith.constant 4 : index
    %c2_131 = arith.constant 2 : index
    %c0_132 = arith.constant 0 : index
    %113 = vector.load %arg2[%c0_128, %c0_129, %c4_130, %c2_131, %c0_132] : memref<1x1x20x20x8xbf16, #tpu.memory_space<vmem>>, vector<1x1x16x16x8xbf16>
    %114 = vector.shape_cast %113 : vector<1x1x16x16x8xbf16> to vector<16x16x8xbf16>
    %115 = vector.shape_cast %114 : vector<16x16x8xbf16> to vector<256x8xbf16>
    %c16 = arith.constant 16 : index
    %c0_133 = arith.constant 0 : index
    %c0_134 = arith.constant 0 : index
    %116 = vector.load %arg3[%c16, %c0_133, %c0_134] : memref<18x8x8xbf16, #tpu.memory_space<vmem>>, vector<1x8x8xbf16>
    %117 = vector.shape_cast %116 : vector<1x8x8xbf16> to vector<8x8xbf16>
    %cst_135 = arith.constant dense<0.000000e+00> : vector<256x8xf32>
    %118 = tpu.matmul %115, %117, %cst_135 {dimension_numbers = #tpu.dot_dimension_numbers<[1], [0], [0], [1], [0, 0, 1, 1], [], []>} : vector<256x8xbf16>, vector<8x8xbf16>, vector<256x8xf32> -> vector<256x8xf32>
    %119 = arith.addf %112, %118 : vector<256x8xf32>
    %c0_136 = arith.constant 0 : index
    %c0_137 = arith.constant 0 : index
    %c4_138 = arith.constant 4 : index
    %c4_139 = arith.constant 4 : index
    %c0_140 = arith.constant 0 : index
    %120 = vector.load %arg2[%c0_136, %c0_137, %c4_138, %c4_139, %c0_140] : memref<1x1x20x20x8xbf16, #tpu.memory_space<vmem>>, vector<1x1x16x16x8xbf16>
    %121 = vector.shape_cast %120 : vector<1x1x16x16x8xbf16> to vector<16x16x8xbf16>
    %122 = vector.shape_cast %121 : vector<16x16x8xbf16> to vector<256x8xbf16>
    %c17 = arith.constant 17 : index
    %c0_141 = arith.constant 0 : index
    %c0_142 = arith.constant 0 : index
    %123 = vector.load %arg3[%c17, %c0_141, %c0_142] : memref<18x8x8xbf16, #tpu.memory_space<vmem>>, vector<1x8x8xbf16>
    %124 = vector.shape_cast %123 : vector<1x8x8xbf16> to vector<8x8xbf16>
    %cst_143 = arith.constant dense<0.000000e+00> : vector<256x8xf32>
    %125 = tpu.matmul %122, %124, %cst_143 {dimension_numbers = #tpu.dot_dimension_numbers<[1], [0], [0], [1], [0, 0, 1, 1], [], []>} : vector<256x8xbf16>, vector<8x8xbf16>, vector<256x8xf32> -> vector<256x8xf32>
    %126 = arith.addf %119, %125 : vector<256x8xf32>
    %cst_144 = arith.constant 0.000000e+00 : f32
    %127 = vector.broadcast %cst_144 : f32 to vector<256x8xf32>
    %128 = arith.maximumf %126, %127 : vector<256x8xf32>
    %129 = arith.truncf %128 : vector<256x8xf32> to vector<256x8xbf16>
    %c0_145 = arith.constant 0 : index
    %c0_146 = arith.constant 0 : index
    %c0_147 = arith.constant 0 : index
    %c0_148 = arith.constant 0 : index
    %130 = vector.load %arg4[%c0_145, %c0_146, %c0_147, %c0_148] : memref<1x1x256x8xbf16, #tpu.memory_space<vmem>>, vector<1x1x256x8xbf16>
    %131 = vector.shape_cast %130 : vector<1x1x256x8xbf16> to vector<256x8xbf16>
    %132 = vector.shape_cast %129 : vector<256x8xbf16> to vector<1x1x256x8xbf16>
    tpu.vector_store %arg4[%c0_145, %c0_146, %c0_147, %c0_148], %132 {strides = array<i32>} : memref<1x1x256x8xbf16, #tpu.memory_space<vmem>>, vector<1x1x256x8xbf16>,
    return
  }
  func.func @transform_0(%arg0: i32, %arg1: i32) -> (i32, i32, i32, i32, i32) {
    %c0_i32 = arith.constant 0 : i32
    %c0_i32_0 = arith.constant 0 : i32
    %c0_i32_1 = arith.constant 0 : i32
    %c0_i32_2 = arith.constant 0 : i32
    return %arg0, %arg1, %c0_i32, %c0_i32_0, %c0_i32_1 : i32, i32, i32, i32, i32
  }
  func.func @transform_1(%arg0: i32, %arg1: i32) -> (i32, i32, i32) {
    %c0_i32 = arith.constant 0 : i32
    %c0_i32_0 = arith.constant 0 : i32
    %c0_i32_1 = arith.constant 0 : i32
    %c0_i32_2 = arith.constant 0 : i32
    return %c0_i32, %c0_i32_0, %c0_i32_1 : i32, i32, i32
  }
  func.func @transform_2(%arg0: i32, %arg1: i32) -> (i32, i32, i32, i32) {
    %c0_i32 = arith.constant 0 : i32
    %c0_i32_0 = arith.constant 0 : i32
    %c0_i32_1 = arith.constant 0 : i32
    return %arg0, %arg1, %c0_i32, %c0_i32_0 : i32, i32, i32, i32
  }
}

</mosaic_0001>

<llo_original>
// kernel: ccnet_forward.1
$region0: #{ccnet_forward.1}
  #allocation0 [shape = 'u32[]', space=smem, size = 0x4, offset = 0x4, fixed_abs, tag = 'smem constant byte address 0x4 - core index']
  #allocation1 [shape = 'u32[144,128]{1,0:T(1,128)}', space=vmem, size = 0x12000, scoped, tag = 'internal scratch']
  %s0 = inlined_call_operand.vmem [shape: bf16[2,1,20,20,8], index: 0, kind: input, shape index: {}]
  %s1 = inlined_call_operand.vmem [shape: bf16[18,8,8], index: 1, kind: input, shape index: {}]
  %s2 = inlined_call_operand.vmem [shape: bf16[2,1,256,8], index: 2, kind: output, shape index: {}]
  %s3 = sld [smem:[#allocation0]]
  $region41: #{ccnet_forward.1} parent=0
    _
  %s5 = ssub.s32 1, %s3
  %s6 = scalar_select 0, %s5, %s3
  loop: start=0, step=1, limit=4
  $region2: #{ccnet_forward.1} parent=0 // loop_pre_header
    _
  $region3: #{ccnet_forward.1} parent=0 // loop_header
    %s8 = sphi 0, %s12
    %p9 = scmp.ge.s32.totalorder %s8, 4
    %s15 = sphi 0, %s27
    %s16 = sphi 0, %s23
    %s17 = sphi 0, %s15
    %s18 = sphi 0, %s16
    %s19 = sphi 0, %s17
    %s20 = sphi 0, %s18
    %s32 = sphi 0, %s34
    %s35 = sphi 0, %s32
    %s36 = sphi 0, %s35
    %s52 = sphi 0, %s36
    %s56 = sphi 0, %s56
    %s58 = sphi 0, %s56
    %s59 = sphi 0, %s58
    %s73 = sphi 0, %s59
    %s81 = sphi 0, %s83
    %s84 = sphi 0, %s81
    %s85 = sphi 0, %s84
    %s101 = sphi 0, %s85
  $region4: #{ccnet_forward.1} parent=0 // loop_header_branch
    %11 = sbr.rel (%p9) target = $region8
  $region5: #{ccnet_forward.1} parent=0 // loop_body
    %s13 = ssub.s32 %s8, 1
    %s14 = ssub.s32 %s8, 2
    %s21 = sadd.s32 1, %s16
    %p22 = scmp.ge.s32.totalorder %s21, 1
    %s23 = scalar_select %p22, 0, %s21
    %s24 = sadd.s32 1, %s15
    %s25 = scalar_select %p22, %s24, %s15
    %p26 = scmp.ge.s32.totalorder %s25, 2
    %s27 = scalar_select %p26, 0, %s25
    %s28 = ssub.s32 %s15, %s27
    %s29 = ssub.s32 %s16, %s23
    %s30 = sor.u32 %s28, %s29
    %p31 = scmp.eq.s32.totalorder %s30, 0
    %s33 = sadd.s32 %s32, 1
    %s34 = scalar_select %p31, %s32, %s33
    %p37 = pneg %p31
    %p38 = scmp.eq.s32.totalorder %s8, 1
    %p39 = por %p37, %p38
    %p40 = scmp.ne.s32.totalorder %s32, %s35
    %p41 = scmp.eq.s32.totalorder %s8, 0
    %p42 = por %p40, %p41
    %p43 = scmp.ne.s32.totalorder %s32, %s35
    %p44 = scmp.eq.s32.totalorder %s13, 1
    %p45 = por %p43, %p44
    %p46 = scmp.ne.s32.totalorder %s35, %s36
    %p47 = scmp.eq.s32.totalorder %s13, 0
    %p48 = por %p46, %p47
    %p49 = scmp.ne.s32.totalorder %s35, %s36
    %p50 = scmp.eq.s32.totalorder %s14, 1
    %p51 = por %p49, %p50
    %p53 = scmp.ne.s32.totalorder %s36, %s52
    %p54 = scmp.eq.s32.totalorder %s14, 0
    %p55 = por %p53, %p54
    %s57 = sadd.s32 %s56, 1
    %p60 = scmp.eq.s32.totalorder %s8, 1
    %p61 = scmp.ne.s32.totalorder %s56, %s58
    %p62 = scmp.eq.s32.totalorder %s8, 0
    %p63 = por %p61, %p62
    %p64 = scmp.ne.s32.totalorder %s56, %s58
    %p65 = scmp.eq.s32.totalorder %s13, 1
    %p66 = por %p64, %p65
    %p67 = scmp.ne.s32.totalorder %s58, %s59
    %p68 = scmp.eq.s32.totalorder %s13, 0
    %p69 = por %p67, %p68
    %p70 = scmp.ne.s32.totalorder %s58, %s59
    %p71 = scmp.eq.s32.totalorder %s14, 1
    %p72 = por %p70, %p71
    %p74 = scmp.ne.s32.totalorder %s59, %s73
    %p75 = scmp.eq.s32.totalorder %s14, 0
    %p76 = por %p74, %p75
    %s77 = ssub.s32 %s15, %s27
    %s78 = ssub.s32 %s16, %s23
    %s79 = sor.u32 %s77, %s78
    %p80 = scmp.eq.s32.totalorder %s79, 0
    %s82 = sadd.s32 %s81, 1
    %s83 = scalar_select %p80, %s81, %s82
    %p86 = pneg %p80
    %p87 = scmp.eq.s32.totalorder %s8, 1
    %p88 = por %p86, %p87
    %p89 = scmp.ne.s32.totalorder %s81, %s84
    %p90 = scmp.eq.s32.totalorder %s8, 0
    %p91 = por %p89, %p90
    %p92 = scmp.ne.s32.totalorder %s81, %s84
    %p93 = scmp.eq.s32.totalorder %s13, 1
    %p94 = por %p92, %p93
    %p95 = scmp.ne.s32.totalorder %s84, %s85
    %p96 = scmp.eq.s32.totalorder %s13, 0
    %p97 = por %p95, %p96
    %p98 = scmp.ne.s32.totalorder %s84, %s85
    %p99 = scmp.eq.s32.totalorder %s14, 1
    %p100 = por %p98, %p99
    %p102 = scmp.ne.s32.totalorder %s85, %s101
    %p103 = scmp.eq.s32.totalorder %s14, 0
    %p104 = por %p102, %p103
    %p105 = scmp.le.s32.totalorder 1, %s8
    %p106 = scmp.lt.s32.totalorder %s8, 3
    %p107 = pnand %p105, %p106
    %p108 = pneg %p107
    // Predicated region
    $region9: #{ccnet_forward.1} parent=5 // pred_check
      _
    $region10: #{ccnet_forward.1} parent=5 // pred_check_branch
      %110 = sbr.rel (%p107) target = $region12
    $region11: #{ccnet_forward.1} parent=5 // pred_region
      %s111 = ssub.s32 %s8, 1
      // Predicated region
      $region13: #{ccnet_forward.1} parent=11 // pred_check
        %p112 = pneg %p69
      $region14: #{ccnet_forward.1} parent=11 // pred_check_branch
        %114 = sbr.rel (%p112) target = $region16
      $region15: #{ccnet_forward.1} parent=11 // pred_region
        _
      $region16: #{ccnet_forward.1} parent=11 // pred_fallthru
        _
    $region12: #{ccnet_forward.1} parent=5 // pred_fallthru
      _
    %p115 = scmp.lt.s32.totalorder %s8, 2
    // Predicated region
    $region17: #{ccnet_forward.1} parent=5 // pred_check
      %p116 = pneg %p115
    $region18: #{ccnet_forward.1} parent=5 // pred_check_branch
      %118 = sbr.rel (%p116) target = $region20
    $region19: #{ccnet_forward.1} parent=5 // pred_region
      // Predicated region
      $region21: #{ccnet_forward.1} parent=19 // pred_check
        %p119 = pneg %p42
      $region22: #{ccnet_forward.1} parent=19 // pred_check_branch
        %121 = sbr.rel (%p119) target = $region24
      $region23: #{ccnet_forward.1} parent=19 // pred_region
        %p122 = scmp.lt.s32.totalorder %s15, 1
        %s123 = scalar_select %p122, %s15, 1
        %p124 = scmp.lt.s32.totalorder %s16, 0
        %s125 = scalar_select %p124, %s16, 0
        %s126 = smul.addr %s125, 60
        %s127 = smul.addr %s123, 60
        %s128 = sadd.s32 %s126, %s127
        %s129 = smul.addr %s128, 4
        %s130 = scalar_lea.vmem %s0, %s129
      $region24: #{ccnet_forward.1} parent=19 // pred_fallthru
        _
    $region20: #{ccnet_forward.1} parent=5 // pred_fallthru
      _
    %p131 = scmp.le.s32.totalorder 1, %s8
    %p132 = scmp.lt.s32.totalorder %s8, 3
    %p133 = pnand %p131, %p132
    %p134 = pneg %p133
    // Predicated region
    $region25: #{ccnet_forward.1} parent=5 // pred_check
      _
    $region26: #{ccnet_forward.1} parent=5 // pred_check_branch
      %136 = sbr.rel (%p133) target = $region28
    $region27: #{ccnet_forward.1} parent=5 // pred_region
      %s137 = ssub.s32 %s8, 1
      %p138 = scmp.lt.s32.totalorder %s17, 1
      %s139 = scalar_select %p138, %s17, 1
      %p140 = scmp.lt.s32.totalorder %s18, 0
      %s141 = scalar_select %p140, %s18, 0
      %s142 = smul.addr %s141, 60
      %s143 = smul.addr %s139, 60
      %s144 = sadd.s32 %s142, %s143
      %s145 = smul.addr %s144, 4
      %s146 = scalar_lea.vmem %s0, %s145
      %p147 = pneg %p48
      %p148 = pneg %p45
      %p149 = pneg %p69
      %p150 = pneg %p66
      %p151 = pneg %p97
      %p152 = pneg %p94
      %p153 = scmp.lt.s32.totalorder %s17, 1
      %s154 = scalar_select %p153, %s17, 1
      %p155 = scmp.lt.s32.totalorder %s18, 0
      %s156 = scalar_select %p155, %s18, 0
      %s157 = smul.addr %s156, 32
      %s158 = smul.addr %s154, 32
      %s159 = sadd.s32 %s157, %s158
      %s160 = smul.addr %s159, 4
      %s161 = scalar_lea.vmem %s2, %s160
      %p162 = scmp.lt.s32.totalorder %s17, 1
      %s163 = scalar_select %p162, %s17, 1
      %p164 = scmp.lt.s32.totalorder %s18, 0
      %s165 = scalar_select %p164, %s18, 0
      %s166 = smul.addr %s165, 60
      %s167 = smul.addr %s163, 60
      %s168 = sadd.s32 %s166, %s167
      %s169 = smul.addr %s168, 4
      %s170 = scalar_lea.vmem %s0, %s169
      %p171 = scmp.lt.s32.totalorder %s17, 1
      %s172 = scalar_select %p171, %s17, 1
      %p173 = scmp.lt.s32.totalorder %s18, 0
      %s174 = scalar_select %p173, %s18, 0
      %s175 = smul.addr %s174, 32
      %s176 = smul.addr %s172, 32
      %s177 = sadd.s32 %s175, %s176
      %s178 = smul.addr %s177, 4
      %s179 = scalar_lea.vmem %s2, %s178
      %s181 = scalar_lea.vmem %s170, 12
      %v182 = vld [vmem:[%s181] sm:$0xf]
      %v183 = vld [vmem:[%s181 + $0x4] sm:$0xf]
      %v184 = vld [vmem:[%s181 + $0x8] sm:$0x1]
      %v185 = vld [vmem:[%s181 + $0xc] sm:$0xf]
      %v186 = vld [vmem:[%s181 + $0x10] sm:$0xf]
      %v187 = vld [vmem:[%s181 + $0x14] sm:$0x1]
      %v188 = vld [vmem:[%s181 + $0x18] sm:$0xf]
      %v189 = vld [vmem:[%s181 + $0x1c] sm:$0xf]
      %v190 = vld [vmem:[%s181 + $0x20] sm:$0x1]
      %v191 = vld [vmem:[%s181 + $0x24] sm:$0xf]
      %v192 = vld [vmem:[%s181 + $0x28] sm:$0xf]
      %v193 = vld [vmem:[%s181 + $0x2c] sm:$0x1]
      %v194 = vld [vmem:[%s181 + $0x30] sm:$0xf]
      %v195 = vld [vmem:[%s181 + $0x34] sm:$0xf]
      %v196 = vld [vmem:[%s181 + $0x38] sm:$0x1]
      %v197 = vld [vmem:[%s181 + $0x3c] sm:$0xf]
      %v198 = vld [vmem:[%s181 + $0x40] sm:$0xf]
      %v199 = vld [vmem:[%s181 + $0x44] sm:$0x1]
      %v200 = vld [vmem:[%s181 + $0x48] sm:$0xf]
      %v201 = vld [vmem:[%s181 + $0x4c] sm:$0xf]
      %v202 = vld [vmem:[%s181 + $0x50] sm:$0x1]
      %v203 = vld [vmem:[%s181 + $0x54] sm:$0xf]
      %v204 = vld [vmem:[%s181 + $0x58] sm:$0xf]
      %v205 = vld [vmem:[%s181 + $0x5c] sm:$0x1]
      %v206 = vld [vmem:[%s181 + $0x60] sm:$0xf]
      %v207 = vld [vmem:[%s181 + $0x64] sm:$0xf]
      %v208 = vld [vmem:[%s181 + $0x68] sm:$0x1]
      %v209 = vld [vmem:[%s181 + $0x6c] sm:$0xf]
      %v210 = vld [vmem:[%s181 + $0x70] sm:$0xf]
      %v211 = vld [vmem:[%s181 + $0x74] sm:$0x1]
      %v212 = vld [vmem:[%s181 + $0x78] sm:$0xf]
      %v213 = vld [vmem:[%s181 + $0x7c] sm:$0xf]
      %v214 = vld [vmem:[%s181 + $0x80] sm:$0x1]
      %v215 = vld [vmem:[%s181 + $0x84] sm:$0xf]
      %v216 = vld [vmem:[%s181 + $0x88] sm:$0xf]
      %v217 = vld [vmem:[%s181 + $0x8c] sm:$0x1]
      %v218 = vld [vmem:[%s181 + $0x90] sm:$0xf]
      %v219 = vld [vmem:[%s181 + $0x94] sm:$0xf]
      %v220 = vld [vmem:[%s181 + $0x98] sm:$0x1]
      %v221 = vld [vmem:[%s181 + $0x9c] sm:$0xf]
      %v222 = vld [vmem:[%s181 + $0xa0] sm:$0xf]
      %v223 = vld [vmem:[%s181 + $0xa4] sm:$0x1]
      %v224 = vld [vmem:[%s181 + $0xa8] sm:$0xf]
      %v225 = vld [vmem:[%s181 + $0xac] sm:$0xf]
      %v226 = vld [vmem:[%s181 + $0xb0] sm:$0x1]
      %v227 = vld [vmem:[%s181 + $0xb4] sm:$0xf]
      %v228 = vld [vmem:[%s181 + $0xb8] sm:$0xf]
      %v229 = vld [vmem:[%s181 + $0xbc] sm:$0x1]
      %vm230 = vsmask.f32 3328
      %vm231 = vsmask.f32 7440
      %vm232 = vmor %vm230, %vm231
      %v234 = vshrl.u32 %v182, 16
      %v236 = vrot.slane %v234, 4
      %v237 = vshll.u32 %v182, 16
      %v239 = vrot.slane %v237, 5
      %v240 = vor.u32 %v236, %v239
      %v241 = vrot.slane %v240, 4
      %v243 = vshll.u32 %v183, 16
      %v245 = vrot.slane %v243, 5
      %v246 = vsel %vm232, %v241, %v245
      %v247 = vshrl.u32 %v183, 16
      %v249 = vrot.slane %v247, 4
      %v250 = vor.u32 %v249, %v245
      %v251 = vrot.slane %v250, 4
      %v253 = vshll.u32 %v184, 16
      %v255 = vrot.slane %v253, 5
      %v256 = vsel %vm232, %v251, %v255
      %v258 = vshrl.u32 %v185, 16
      %v260 = vrot.slane %v258, 4
      %v261 = vshll.u32 %v185, 16
      %v263 = vrot.slane %v261, 5
      %v264 = vor.u32 %v260, %v263
      %v265 = vrot.slane %v264, 4
      %v267 = vshll.u32 %v186, 16
      %v269 = vrot.slane %v267, 5
      %v270 = vsel %vm232, %v265, %v269
      %v271 = vshrl.u32 %v186, 16
      %v273 = vrot.slane %v271, 4
      %v274 = vor.u32 %v273, %v269
      %v275 = vrot.slane %v274, 4
      %v277 = vshll.u32 %v187, 16
      %v279 = vrot.slane %v277, 5
      %v280 = vsel %vm232, %v275, %v279
      %v282 = vshrl.u32 %v188, 16
      %v284 = vrot.slane %v282, 4
      %v285 = vshll.u32 %v188, 16
      %v287 = vrot.slane %v285, 5
      %v288 = vor.u32 %v284, %v287
      %v289 = vrot.slane %v288, 4
      %v291 = vshll.u32 %v189, 16
      %v293 = vrot.slane %v291, 5
      %v294 = vsel %vm232, %v289, %v293
      %v295 = vshrl.u32 %v189, 16
      %v297 = vrot.slane %v295, 4
      %v298 = vor.u32 %v297, %v293
      %v299 = vrot.slane %v298, 4
      %v301 = vshll.u32 %v190, 16
      %v303 = vrot.slane %v301, 5
      %v304 = vsel %vm232, %v299, %v303
      %v306 = vshrl.u32 %v191, 16
      %v308 = vrot.slane %v306, 4
      %v309 = vshll.u32 %v191, 16
      %v311 = vrot.slane %v309, 5
      %v312 = vor.u32 %v308, %v311
      %v313 = vrot.slane %v312, 4
      %v315 = vshll.u32 %v192, 16
      %v317 = vrot.slane %v315, 5
      %v318 = vsel %vm232, %v313, %v317
      %v319 = vshrl.u32 %v192, 16
      %v321 = vrot.slane %v319, 4
      %v322 = vor.u32 %v321, %v317
      %v323 = vrot.slane %v322, 4
      %v325 = vshll.u32 %v193, 16
      %v327 = vrot.slane %v325, 5
      %v328 = vsel %vm232, %v323, %v327
      %v330 = vshrl.u32 %v194, 16
      %v332 = vrot.slane %v330, 4
      %v333 = vshll.u32 %v194, 16
      %v335 = vrot.slane %v333, 5
      %v336 = vor.u32 %v332, %v335
      %v337 = vrot.slane %v336, 4
      %v339 = vshll.u32 %v195, 16
      %v341 = vrot.slane %v339, 5
      %v342 = vsel %vm232, %v337, %v341
      %v343 = vshrl.u32 %v195, 16
      %v345 = vrot.slane %v343, 4
      %v346 = vor.u32 %v345, %v341
      %v347 = vrot.slane %v346, 4
      %v349 = vshll.u32 %v196, 16
      %v351 = vrot.slane %v349, 5
      %v352 = vsel %vm232, %v347, %v351
      %v354 = vshrl.u32 %v197, 16
      %v356 = vrot.slane %v354, 4
      %v357 = vshll.u32 %v197, 16
      %v359 = vrot.slane %v357, 5
      %v360 = vor.u32 %v356, %v359
      %v361 = vrot.slane %v360, 4
      %v363 = vshll.u32 %v198, 16
      %v365 = vrot.slane %v363, 5
      %v366 = vsel %vm232, %v361, %v365
      %v367 = vshrl.u32 %v198, 16
      %v369 = vrot.slane %v367, 4
      %v370 = vor.u32 %v369, %v365
      %v371 = vrot.slane %v370, 4
      %v373 = vshll.u32 %v199, 16
      %v375 = vrot.slane %v373, 5
      %v376 = vsel %vm232, %v371, %v375
      %v378 = vshrl.u32 %v200, 16
      %v380 = vrot.slane %v378, 4
      %v381 = vshll.u32 %v200, 16
      %v383 = vrot.slane %v381, 5
      %v384 = vor.u32 %v380, %v383
      %v385 = vrot.slane %v384, 4
      %v387 = vshll.u32 %v201, 16
      %v389 = vrot.slane %v387, 5
      %v390 = vsel %vm232, %v385, %v389
      %v391 = vshrl.u32 %v201, 16
      %v393 = vrot.slane %v391, 4
      %v394 = vor.u32 %v393, %v389
      %v395 = vrot.slane %v394, 4
      %v397 = vshll.u32 %v202, 16
      %v399 = vrot.slane %v397, 5
      %v400 = vsel %vm232, %v395, %v399
      %v402 = vshrl.u32 %v203, 16
      %v404 = vrot.slane %v402, 4
      %v405 = vshll.u32 %v203, 16
      %v407 = vrot.slane %v405, 5
      %v408 = vor.u32 %v404, %v407
      %v409 = vrot.slane %v408, 4
      %v411 = vshll.u32 %v204, 16
      %v413 = vrot.slane %v411, 5
      %v414 = vsel %vm232, %v409, %v413
      %v415 = vshrl.u32 %v204, 16
      %v417 = vrot.slane %v415, 4
      %v418 = vor.u32 %v417, %v413
      %v419 = vrot.slane %v418, 4
      %v421 = vshll.u32 %v205, 16
      %v423 = vrot.slane %v421, 5
      %v424 = vsel %vm232, %v419, %v423
      %v426 = vshrl.u32 %v206, 16
      %v428 = vrot.slane %v426, 4
      %v429 = vshll.u32 %v206, 16
      %v431 = vrot.slane %v429, 5
      %v432 = vor.u32 %v428, %v431
      %v433 = vrot.slane %v432, 4
      %v435 = vshll.u32 %v207, 16
      %v437 = vrot.slane %v435, 5
      %v438 = vsel %vm232, %v433, %v437
      %v439 = vshrl.u32 %v207, 16
      %v441 = vrot.slane %v439, 4
      %v442 = vor.u32 %v441, %v437
      %v443 = vrot.slane %v442, 4
      %v445 = vshll.u32 %v208, 16
      %v447 = vrot.slane %v445, 5
      %v448 = vsel %vm232, %v443, %v447
      %v450 = vshrl.u32 %v209, 16
      %v452 = vrot.slane %v450, 4
      %v453 = vshll.u32 %v209, 16
      %v455 = vrot.slane %v453, 5
      %v456 = vor.u32 %v452, %v455
      %v457 = vrot.slane %v456, 4
      %v459 = vshll.u32 %v210, 16
      %v461 = vrot.slane %v459, 5
      %v462 = vsel %vm232, %v457, %v461
      %v463 = vshrl.u32 %v210, 16
      %v465 = vrot.slane %v463, 4
      %v466 = vor.u32 %v465, %v461
      %v467 = vrot.slane %v466, 4
      %v469 = vshll.u32 %v211, 16
      %v471 = vrot.slane %v469, 5
      %v472 = vsel %vm232, %v467, %v471
      %v474 = vshrl.u32 %v212, 16
      %v476 = vrot.slane %v474, 4
      %v477 = vshll.u32 %v212, 16
      %v479 = vrot.slane %v477, 5
      %v480 = vor.u32 %v476, %v479
      %v481 = vrot.slane %v480, 4
      %v483 = vshll.u32 %v213, 16
      %v485 = vrot.slane %v483, 5
      %v486 = vsel %vm232, %v481, %v485
      %v487 = vshrl.u32 %v213, 16
      %v489 = vrot.slane %v487, 4
      %v490 = vor.u32 %v489, %v485
      %v491 = vrot.slane %v490, 4
      %v493 = vshll.u32 %v214, 16
      %v495 = vrot.slane %v493, 5
      %v496 = vsel %vm232, %v491, %v495
      %v498 = vshrl.u32 %v215, 16
      %v500 = vrot.slane %v498, 4
      %v501 = vshll.u32 %v215, 16
      %v503 = vrot.slane %v501, 5
      %v504 = vor.u32 %v500, %v503
      %v505 = vrot.slane %v504, 4
      %v507 = vshll.u32 %v216, 16
      %v509 = vrot.slane %v507, 5
      %v510 = vsel %vm232, %v505, %v509
      %v511 = vshrl.u32 %v216, 16
      %v513 = vrot.slane %v511, 4
      %v514 = vor.u32 %v513, %v509
      %v515 = vrot.slane %v514, 4
      %v517 = vshll.u32 %v217, 16
      %v519 = vrot.slane %v517, 5
      %v520 = vsel %vm232, %v515, %v519
      %v522 = vshrl.u32 %v218, 16
      %v524 = vrot.slane %v522, 4
      %v525 = vshll.u32 %v218, 16
      %v527 = vrot.slane %v525, 5
      %v528 = vor.u32 %v524, %v527
      %v529 = vrot.slane %v528, 4
      %v531 = vshll.u32 %v219, 16
      %v533 = vrot.slane %v531, 5
      %v534 = vsel %vm232, %v529, %v533
      %v535 = vshrl.u32 %v219, 16
      %v537 = vrot.slane %v535, 4
      %v538 = vor.u32 %v537, %v533
      %v539 = vrot.slane %v538, 4
      %v541 = vshll.u32 %v220, 16
      %v543 = vrot.slane %v541, 5
      %v544 = vsel %vm232, %v539, %v543
      %v546 = vshrl.u32 %v221, 16
      %v548 = vrot.slane %v546, 4
      %v549 = vshll.u32 %v221, 16
      %v551 = vrot.slane %v549, 5
      %v552 = vor.u32 %v548, %v551
      %v553 = vrot.slane %v552, 4
      %v555 = vshll.u32 %v222, 16
      %v557 = vrot.slane %v555, 5
      %v558 = vsel %vm232, %v553, %v557
      %v559 = vshrl.u32 %v222, 16
      %v561 = vrot.slane %v559, 4
      %v562 = vor.u32 %v561, %v557
      %v563 = vrot.slane %v562, 4
      %v565 = vshll.u32 %v223, 16
      %v567 = vrot.slane %v565, 5
      %v568 = vsel %vm232, %v563, %v567
      %v570 = vshrl.u32 %v224, 16
      %v572 = vrot.slane %v570, 4
      %v573 = vshll.u32 %v224, 16
      %v575 = vrot.slane %v573, 5
      %v576 = vor.u32 %v572, %v575
      %v577 = vrot.slane %v576, 4
      %v579 = vshll.u32 %v225, 16
      %v581 = vrot.slane %v579, 5
      %v582 = vsel %vm232, %v577, %v581
      %v583 = vshrl.u32 %v225, 16
      %v585 = vrot.slane %v583, 4
      %v586 = vor.u32 %v585, %v581
      %v587 = vrot.slane %v586, 4
      %v589 = vshll.u32 %v226, 16
      %v591 = vrot.slane %v589, 5
      %v592 = vsel %vm232, %v587, %v591
      %v594 = vshrl.u32 %v227, 16
      %v596 = vrot.slane %v594, 4
      %v597 = vshll.u32 %v227, 16
      %v599 = vrot.slane %v597, 5
      %v600 = vor.u32 %v596, %v599
      %v601 = vrot.slane %v600, 4
      %v603 = vshll.u32 %v228, 16
      %v605 = vrot.slane %v603, 5
      %v606 = vsel %vm232, %v601, %v605
      %v607 = vshrl.u32 %v228, 16
      %v609 = vrot.slane %v607, 4
      %v610 = vor.u32 %v609, %v605
      %v611 = vrot.slane %v610, 4
      %v613 = vshll.u32 %v229, 16
      %v615 = vrot.slane %v613, 5
      %v616 = vsel %vm232, %v611, %v615
      %v617 = vld [vmem:[%s1] sm:$0xf]
      %v618 = vld [vmem:[%s181] sm:$0xe]
      %v619 = vld [vmem:[%s181 + $0xc] sm:$0xe]
      %v620 = vld [vmem:[%s181 + $0x18] sm:$0xe]
      %v621 = vld [vmem:[%s181 + $0x24] sm:$0xe]
      %v622 = vld [vmem:[%s181 + $0x30] sm:$0xe]
      %v623 = vld [vmem:[%s181 + $0x3c] sm:$0xe]
      %v624 = vld [vmem:[%s181 + $0x48] sm:$0xe]
      %v625 = vld [vmem:[%s181 + $0x54] sm:$0xe]
      %v626 = vld [vmem:[%s181 + $0x60] sm:$0xe]
      %v627 = vld [vmem:[%s181 + $0x6c] sm:$0xe]
      %v628 = vld [vmem:[%s181 + $0x78] sm:$0xe]
      %v629 = vld [vmem:[%s181 + $0x84] sm:$0xe]
      %v630 = vld [vmem:[%s181 + $0x90] sm:$0xe]
      %v631 = vld [vmem:[%s181 + $0x9c] sm:$0xe]
      %v632 = vld [vmem:[%s181 + $0xa8] sm:$0xe]
      %v633 = vld [vmem:[%s181 + $0xb4] sm:$0xe]
      %vm682 = vcmask 1042432
      %vm683 = vcmask 1046532
      %vm684 = vmor %vm682, %vm683
      %v685 = vrot.slane %v618, 5
      %v686 = vrot.slane %v685, 4
      %v687 = vrot.slane %v183, 5
      %v688 = vsel %vm684, %v686, %v687
      %v689 = vrot.slane %v687, 4
      %v690 = vrot.slane %v184, 5
      %v691 = vsel %vm684, %v689, %v690
      %v692 = vrot.slane %v619, 5
      %v693 = vrot.slane %v692, 4
      %v694 = vrot.slane %v186, 5
      %v695 = vsel %vm684, %v693, %v694
      %v696 = vrot.slane %v694, 4
      %v697 = vrot.slane %v187, 5
      %v698 = vsel %vm684, %v696, %v697
      %v699 = vrot.slane %v620, 5
      %v700 = vrot.slane %v699, 4
      %v701 = vrot.slane %v189, 5
      %v702 = vsel %vm684, %v700, %v701
      %v703 = vrot.slane %v701, 4
      %v704 = vrot.slane %v190, 5
      %v705 = vsel %vm684, %v703, %v704
      %v706 = vrot.slane %v621, 5
      %v707 = vrot.slane %v706, 4
      %v708 = vrot.slane %v192, 5
      %v709 = vsel %vm684, %v707, %v708
      %v710 = vrot.slane %v708, 4
      %v711 = vrot.slane %v193, 5
      %v712 = vsel %vm684, %v710, %v711
      %v713 = vrot.slane %v622, 5
      %v714 = vrot.slane %v713, 4
      %v715 = vrot.slane %v195, 5
      %v716 = vsel %vm684, %v714, %v715
      %v717 = vrot.slane %v715, 4
      %v718 = vrot.slane %v196, 5
      %v719 = vsel %vm684, %v717, %v718
      %v720 = vrot.slane %v623, 5
      %v721 = vrot.slane %v720, 4
      %v722 = vrot.slane %v198, 5
      %v723 = vsel %vm684, %v721, %v722
      %v724 = vrot.slane %v722, 4
      %v725 = vrot.slane %v199, 5
      %v726 = vsel %vm684, %v724, %v725
      %v727 = vrot.slane %v624, 5
      %v728 = vrot.slane %v727, 4
      %v729 = vrot.slane %v201, 5
      %v730 = vsel %vm684, %v728, %v729
      %v731 = vrot.slane %v729, 4
      %v732 = vrot.slane %v202, 5
      %v733 = vsel %vm684, %v731, %v732
      %v734 = vrot.slane %v625, 5
      %v735 = vrot.slane %v734, 4
      %v736 = vrot.slane %v204, 5
      %v737 = vsel %vm684, %v735, %v736
      %v738 = vrot.slane %v736, 4
      %v739 = vrot.slane %v205, 5
      %v740 = vsel %vm684, %v738, %v739
      %v741 = vrot.slane %v626, 5
      %v742 = vrot.slane %v741, 4
      %v743 = vrot.slane %v207, 5
      %v744 = vsel %vm684, %v742, %v743
      %v745 = vrot.slane %v743, 4
      %v746 = vrot.slane %v208, 5
      %v747 = vsel %vm684, %v745, %v746
      %v748 = vrot.slane %v627, 5
      %v749 = vrot.slane %v748, 4
      %v750 = vrot.slane %v210, 5
      %v751 = vsel %vm684, %v749, %v750
      %v752 = vrot.slane %v750, 4
      %v753 = vrot.slane %v211, 5
      %v754 = vsel %vm684, %v752, %v753
      %v755 = vrot.slane %v628, 5
      %v756 = vrot.slane %v755, 4
      %v757 = vrot.slane %v213, 5
      %v758 = vsel %vm684, %v756, %v757
      %v759 = vrot.slane %v757, 4
      %v760 = vrot.slane %v214, 5
      %v761 = vsel %vm684, %v759, %v760
      %v762 = vrot.slane %v629, 5
      %v763 = vrot.slane %v762, 4
      %v764 = vrot.slane %v216, 5
      %v765 = vsel %vm684, %v763, %v764
      %v766 = vrot.slane %v764, 4
      %v767 = vrot.slane %v217, 5
      %v768 = vsel %vm684, %v766, %v767
      %v769 = vrot.slane %v630, 5
      %v770 = vrot.slane %v769, 4
      %v771 = vrot.slane %v219, 5
      %v772 = vsel %vm684, %v770, %v771
      %v773 = vrot.slane %v771, 4
      %v774 = vrot.slane %v220, 5
      %v775 = vsel %vm684, %v773, %v774
      %v776 = vrot.slane %v631, 5
      %v777 = vrot.slane %v776, 4
      %v778 = vrot.slane %v222, 5
      %v779 = vsel %vm684, %v777, %v778
      %v780 = vrot.slane %v778, 4
      %v781 = vrot.slane %v223, 5
      %v782 = vsel %vm684, %v780, %v781
      %v783 = vrot.slane %v632, 5
      %v784 = vrot.slane %v783, 4
      %v785 = vrot.slane %v225, 5
      %v786 = vsel %vm684, %v784, %v785
      %v787 = vrot.slane %v785, 4
      %v788 = vrot.slane %v226, 5
      %v789 = vsel %vm684, %v787, %v788
      %v790 = vrot.slane %v633, 5
      %v791 = vrot.slane %v790, 4
      %v792 = vrot.slane %v228, 5
      %v793 = vsel %vm684, %v791, %v792
      %v794 = vrot.slane %v792, 4
      %v795 = vrot.slane %v229, 5
      %v796 = vsel %vm684, %v794, %v795
      %s797 = scalar_lea.vmem %s1, 4
      %v798 = vld [vmem:[%s797] sm:$0xf]
      %v799 = vunpack.c.l.b16 %v688
      %v800 = vunpack.c.l.b16 %v691
      %v801 = vunpack.c.l.b16 %v695
      %v802 = vunpack.c.l.b16 %v698
      %v803 = vunpack.c.l.b16 %v702
      %v804 = vunpack.c.l.b16 %v705
      %v805 = vunpack.c.l.b16 %v709
      %v806 = vunpack.c.l.b16 %v712
      %v807 = vunpack.c.l.b16 %v716
      %v808 = vunpack.c.l.b16 %v719
      %v809 = vunpack.c.l.b16 %v723
      %v810 = vunpack.c.l.b16 %v726
      %v811 = vunpack.c.l.b16 %v730
      %v812 = vunpack.c.l.b16 %v733
      %v813 = vunpack.c.l.b16 %v737
      %v814 = vunpack.c.l.b16 %v740
      %v815 = vunpack.c.l.b16 %v744
      %v816 = vunpack.c.l.b16 %v747
      %v817 = vunpack.c.l.b16 %v751
      %v818 = vunpack.c.l.b16 %v754
      %v819 = vunpack.c.l.b16 %v758
      %v820 = vunpack.c.l.b16 %v761
      %v821 = vunpack.c.l.b16 %v765
      %v822 = vunpack.c.l.b16 %v768
      %v823 = vunpack.c.l.b16 %v772
      %v824 = vunpack.c.l.b16 %v775
      %v825 = vunpack.c.l.b16 %v779
      %v826 = vunpack.c.l.b16 %v782
      %v827 = vunpack.c.l.b16 %v786
      %v828 = vunpack.c.l.b16 %v789
      %v829 = vunpack.c.l.b16 %v793
      %v830 = vunpack.c.l.b16 %v796
      %v831 = vpack.c.b16 %v800, %v799
      %v832 = vpack.c.b16 %v802, %v801
      %v833 = vpack.c.b16 %v804, %v803
      %v834 = vpack.c.b16 %v806, %v805
      %v835 = vpack.c.b16 %v808, %v807
      %v836 = vpack.c.b16 %v810, %v809
      %v837 = vpack.c.b16 %v812, %v811
      %v838 = vpack.c.b16 %v814, %v813
      %v839 = vpack.c.b16 %v816, %v815
      %v840 = vpack.c.b16 %v818, %v817
      %v841 = vpack.c.b16 %v820, %v819
      %v842 = vpack.c.b16 %v822, %v821
      %v843 = vpack.c.b16 %v824, %v823
      %v844 = vpack.c.b16 %v826, %v825
      %v845 = vpack.c.b16 %v828, %v827
      %v846 = vpack.c.b16 %v830, %v829
      %vm847 = vcmask 64512
      %v849 = vsel %vm847, %v831, 0
      %v852 = vsel %vm847, %v832, 0
      %v855 = vsel %vm847, %v833, 0
      %v858 = vsel %vm847, %v834, 0
      %v861 = vsel %vm847, %v835, 0
      %v864 = vsel %vm847, %v836, 0
      %v867 = vsel %vm847, %v837, 0
      %v870 = vsel %vm847, %v838, 0
      %v873 = vsel %vm847, %v839, 0
      %v876 = vsel %vm847, %v840, 0
      %v879 = vsel %vm847, %v841, 0
      %v882 = vsel %vm847, %v842, 0
      %v885 = vsel %vm847, %v843, 0
      %v888 = vsel %vm847, %v844, 0
      %v891 = vsel %vm847, %v845, 0
      %v894 = vsel %vm847, %v846, 0
      %vm896 = vcmask 1043456
      %v898 = vsel %vm896, %v798, 0
      %900 = vmatprep.subr.bf16.mxu0 0
      %901 = vmatpush1.bf16.msra.mxu0 %v898
      %902 = vmatprep.subr.bf16.mxu0 0
      %903 = vmatpush1.bf16.msra.mxu0 0
      %904 = vmatprep.subr.bf16.mxu0 0
      %905 = vmatpush1.bf16.msra.mxu0 0
      %906 = vmatprep.subr.bf16.mxu0 0
      %907 = vmatpush1.bf16.msra.mxu0 0
      %908 = vmatprep.subr.bf16.mxu0 0
      %909 = vmatpush1.bf16.msra.mxu0 0
      %910 = vmatprep.subr.bf16.mxu0 0
      %911 = vmatpush1.bf16.msra.mxu0 0
      %912 = vmatprep.subr.bf16.mxu0 0
      %913 = vmatpush1.bf16.msra.mxu0 0
      %914 = vmatprep.subr.bf16.mxu0 0
      %915 = vmatpush1.bf16.msra.mxu0 0
      %916 = vmatprep.subr.bf16.mxu0 0
      %917 = vmatpush1.bf16.msra.mxu0 0
      %918 = vmatprep.subr.bf16.mxu0 0
      %919 = vmatpush1.bf16.msra.mxu0 0
      %920 = vmatprep.subr.bf16.mxu0 0
      %921 = vmatpush1.bf16.msra.mxu0 0
      %922 = vmatprep.subr.bf16.mxu0 0
      %923 = vmatpush1.bf16.msra.mxu0 0
      %924 = vmatprep.subr.bf16.mxu0 0
      %925 = vmatpush1.bf16.msra.mxu0 0
      %926 = vmatprep.subr.bf16.mxu0 0
      %927 = vmatpush1.bf16.msra.mxu0 0
      %928 = vmatprep.subr.bf16.mxu0 0
      %929 = vmatpush1.bf16.msra.mxu0 0
      %930 = vmatprep.subr.bf16.mxu0 0
      %931 = vmatpush1.bf16.msra.mxu0 0
      %932 = vmatprep.mubr.bf16.mxu0 0
      %933 = vmatmul.mubr.bf16.gmra.mrb[0].mxu0 %v849
      %v934 = vpop.f32.mrb[0].mxu0
      %v935 = vadd.f32 0.0, %v934
      %v936 = vpop.f32.mrb[0].mxu0
      %v937 = vpop.f32.mrb[0].mxu0
      %v938 = vadd.f32 0.0, %v937
      %v939 = vpop.f32.mrb[0].mxu0
      %940 = vmatprep.mubr.bf16.mxu0 0
      %941 = vmatmul.mubr.bf16.gmra.mrb[0].mxu0 %v852
      %v942 = vpop.f32.mrb[0].mxu0
      %v943 = vadd.f32 0.0, %v942
      %v944 = vpop.f32.mrb[0].mxu0
      %v945 = vpop.f32.mrb[0].mxu0
      %v946 = vadd.f32 0.0, %v945
      %v947 = vpop.f32.mrb[0].mxu0
      %948 = vmatprep.mubr.bf16.mxu0 0
      %949 = vmatmul.mubr.bf16.gmra.mrb[0].mxu0 %v855
      %v950 = vpop.f32.mrb[0].mxu0
      %v951 = vadd.f32 0.0, %v950
      %v952 = vpop.f32.mrb[0].mxu0
      %v953 = vpop.f32.mrb[0].mxu0
      %v954 = vadd.f32 0.0, %v953
      %v955 = vpop.f32.mrb[0].mxu0
      %956 = vmatprep.mubr.bf16.mxu0 0
      %957 = vmatmul.mubr.bf16.gmra.mrb[0].mxu0 %v858
      %v958 = vpop.f32.mrb[0].mxu0
      %v959 = vadd.f32 0.0, %v958
      %v960 = vpop.f32.mrb[0].mxu0
      %v961 = vpop.f32.mrb[0].mxu0
      %v962 = vadd.f32 0.0, %v961
      %v963 = vpop.f32.mrb[0].mxu0
      %964 = vmatprep.mubr.bf16.mxu0 0
      %965 = vmatmul.mubr.bf16.gmra.mrb[0].mxu0 %v861
      %v966 = vpop.f32.mrb[0].mxu0
      %v967 = vadd.f32 0.0, %v966
      %v968 = vpop.f32.mrb[0].mxu0
      %v969 = vpop.f32.mrb[0].mxu0
      %v970 = vadd.f32 0.0, %v969
      %v971 = vpop.f32.mrb[0].mxu0
      %972 = vmatprep.mubr.bf16.mxu0 0
      %973 = vmatmul.mubr.bf16.gmra.mrb[0].mxu0 %v864
      %v974 = vpop.f32.mrb[0].mxu0
      %v975 = vadd.f32 0.0, %v974
      %v976 = vpop.f32.mrb[0].mxu0
      %v977 = vpop.f32.mrb[0].mxu0
      %v978 = vadd.f32 0.0, %v977
      %v979 = vpop.f32.mrb[0].mxu0
      %980 = vmatprep.mubr.bf16.mxu0 0
      %981 = vmatmul.mubr.bf16.gmra.mrb[0].mxu0 %v867
      %v982 = vpop.f32.mrb[0].mxu0
      %v983 = vadd.f32 0.0, %v982
      %v984 = vpop.f32.mrb[0].mxu0
      %v985 = vpop.f32.mrb[0].mxu0
      %v986 = vadd.f32 0.0, %v985
      %v987 = vpop.f32.mrb[0].mxu0
      %988 = vmatprep.mubr.bf16.mxu0 0
      %989 = vmatmul.mubr.bf16.gmra.mrb[0].mxu0 %v870
      %v990 = vpop.f32.mrb[0].mxu0
      %v991 = vadd.f32 0.0, %v990
      %v992 = vpop.f32.mrb[0].mxu0
      %v993 = vpop.f32.mrb[0].mxu0
      %v994 = vadd.f32 0.0, %v993
      %v995 = vpop.f32.mrb[0].mxu0
      %996 = vmatprep.mubr.bf16.mxu0 0
      %997 = vmatmul.mubr.bf16.gmra.mrb[0].mxu0 %v873
      %v998 = vpop.f32.mrb[0].mxu0
      %v999 = vadd.f32 0.0, %v998
      %v1000 = vpop.f32.mrb[0].mxu0
      %v1001 = vpop.f32.mrb[0].mxu0
      %v1002 = vadd.f32 0.0, %v1001
      %v1003 = vpop.f32.mrb[0].mxu0
      %1004 = vmatprep.mubr.bf16.mxu0 0
      %1005 = vmatmul.mubr.bf16.gmra.mrb[0].mxu0 %v876
      %v1006 = vpop.f32.mrb[0].mxu0
      %v1007 = vadd.f32 0.0, %v1006
      %v1008 = vpop.f32.mrb[0].mxu0
      %v1009 = vpop.f32.mrb[0].mxu0
      %v1010 = vadd.f32 0.0, %v1009
      %v1011 = vpop.f32.mrb[0].mxu0
      %1012 = vmatprep.mubr.bf16.mxu0 0
      %1013 = vmatmul.mubr.bf16.gmra.mrb[0].mxu0 %v879
      %v1014 = vpop.f32.mrb[0].mxu0
      %v1015 = vadd.f32 0.0, %v1014
      %v1016 = vpop.f32.mrb[0].mxu0
      %v1017 = vpop.f32.mrb[0].mxu0
      %v1018 = vadd.f32 0.0, %v1017
      %v1019 = vpop.f32.mrb[0].mxu0
      %1020 = vmatprep.mubr.bf16.mxu0 0
      %1021 = vmatmul.mubr.bf16.gmra.mrb[0].mxu0 %v882
      %v1022 = vpop.f32.mrb[0].mxu0
      %v1023 = vadd.f32 0.0, %v1022
      %v1024 = vpop.f32.mrb[0].mxu0
      %v1025 = vpop.f32.mrb[0].mxu0
      %v1026 = vadd.f32 0.0, %v1025
      %v1027 = vpop.f32.mrb[0].mxu0
      %1028 = vmatprep.mubr.bf16.mxu0 0
      %1029 = vmatmul.mubr.bf16.gmra.mrb[0].mxu0 %v885
      %v1030 = vpop.f32.mrb[0].mxu0
      %v1031 = vadd.f32 0.0, %v1030
      %v1032 = vpop.f32.mrb[0].mxu0
      %v1033 = vpop.f32.mrb[0].mxu0
      %v1034 = vadd.f32 0.0, %v1033
      %v1035 = vpop.f32.mrb[0].mxu0
      %1036 = vmatprep.mubr.bf16.mxu0 0
      %1037 = vmatmul.mubr.bf16.gmra.mrb[0].mxu0 %v888
      %v1038 = vpop.f32.mrb[0].mxu0
      %v1039 = vadd.f32 0.0, %v1038
      %v1040 = vpop.f32.mrb[0].mxu0
      %v1041 = vpop.f32.mrb[0].mxu0
      %v1042 = vadd.f32 0.0, %v1041
      %v1043 = vpop.f32.mrb[0].mxu0
      %1044 = vmatprep.mubr.bf16.mxu0 0
      %1045 = vmatmul.mubr.bf16.gmra.mrb[0].mxu0 %v891
      %v1046 = vpop.f32.mrb[0].mxu0
      %v1047 = vadd.f32 0.0, %v1046
      %v1048 = vpop.f32.mrb[0].mxu0
      %v1049 = vpop.f32.mrb[0].mxu0
      %v1050 = vadd.f32 0.0, %v1049
      %v1051 = vpop.f32.mrb[0].mxu0
      %1052 = vmatprep.mubr.bf16.mxu0 0
      %1053 = vmatmul.mubr.bf16.gmra.mrb[0].mxu0 %v894
      %v1054 = vpop.f32.mrb[0].mxu0
      %v1055 = vadd.f32 0.0, %v1054
      %v1056 = vpop.f32.mrb[0].mxu0
      %v1057 = vpop.f32.mrb[0].mxu0
      %v1058 = vadd.f32 0.0, %v1057
      %v1059 = vpop.f32.mrb[0].mxu0
      %1060 = vdwg.mxu0
      %v1061 = vunpack.c.l.b16 %v246
      %v1062 = vunpack.c.l.b16 %v256
      %v1063 = vunpack.c.l.b16 %v270
      %v1064 = vunpack.c.l.b16 %v280
      %v1065 = vunpack.c.l.b16 %v294
      %v1066 = vunpack.c.l.b16 %v304
      %v1067 = vunpack.c.l.b16 %v318
      %v1068 = vunpack.c.l.b16 %v328
      %v1069 = vunpack.c.l.b16 %v342
      %v1070 = vunpack.c.l.b16 %v352
      %v1071 = vunpack.c.l.b16 %v366
      %v1072 = vunpack.c.l.b16 %v376
      %v1073 = vunpack.c.l.b16 %v390
      %v1074 = vunpack.c.l.b16 %v400
      %v1075 = vunpack.c.l.b16 %v414
      %v1076 = vunpack.c.l.b16 %v424
      %v1077 = vunpack.c.l.b16 %v438
      %v1078 = vunpack.c.l.b16 %v448
      %v1079 = vunpack.c.l.b16 %v462
      %v1080 = vunpack.c.l.b16 %v472
      %v1081 = vunpack.c.l.b16 %v486
      %v1082 = vunpack.c.l.b16 %v496
      %v1083 = vunpack.c.l.b16 %v510
      %v1084 = vunpack.c.l.b16 %v520
      %v1085 = vunpack.c.l.b16 %v534
      %v1086 = vunpack.c.l.b16 %v544
      %v1087 = vunpack.c.l.b16 %v558
      %v1088 = vunpack.c.l.b16 %v568
      %v1089 = vunpack.c.l.b16 %v582
      %v1090 = vunpack.c.l.b16 %v592
      %v1091 = vunpack.c.l.b16 %v606
      %v1092 = vunpack.c.l.b16 %v616
      %v1093 = vpack.c.b16 %v1062, %v1061
      %v1094 = vpack.c.b16 %v1064, %v1063
      %v1095 = vpack.c.b16 %v1066, %v1065
      %v1096 = vpack.c.b16 %v1068, %v1067
      %v1097 = vpack.c.b16 %v1070, %v1069
      %v1098 = vpack.c.b16 %v1072, %v1071
      %v1099 = vpack.c.b16 %v1074, %v1073
      %v1100 = vpack.c.b16 %v1076, %v1075
      %v1101 = vpack.c.b16 %v1078, %v1077
      %v1102 = vpack.c.b16 %v1080, %v1079
      %v1103 = vpack.c.b16 %v1082, %v1081
      %v1104 = vpack.c.b16 %v1084, %v1083
      %v1105 = vpack.c.b16 %v1086, %v1085
      %v1106 = vpack.c.b16 %v1088, %v1087
      %v1107 = vpack.c.b16 %v1090, %v1089
      %v1108 = vpack.c.b16 %v1092, %v1091
      %v1110 = vsel %vm847, %v1093, 0
      %v1113 = vsel %vm847, %v1094, 0
      %v1116 = vsel %vm847, %v1095, 0
      %v1119 = vsel %vm847, %v1096, 0
      %v1122 = vsel %vm847, %v1097, 0
      %v1125 = vsel %vm847, %v1098, 0
      %v1128 = vsel %vm847, %v1099, 0
      %v1131 = vsel %vm847, %v1100, 0
      %v1134 = vsel %vm847, %v1101, 0
      %v1137 = vsel %vm847, %v1102, 0
      %v1140 = vsel %vm847, %v1103, 0
      %v1143 = vsel %vm847, %v1104, 0
      %v1146 = vsel %vm847, %v1105, 0
      %v1149 = vsel %vm847, %v1106, 0
      %v1152 = vsel %vm847, %v1107, 0
      %v1155 = vsel %vm847, %v1108, 0
      %v1158 = vsel %vm896, %v617, 0
      %1160 = vmatprep.subr.bf16.mxu0 0
      %1161 = vmatpush1.bf16.msra.mxu0 %v1158
      %1162 = vmatprep.subr.bf16.mxu0 0
      %1163 = vmatpush1.bf16.msra.mxu0 0
      %1164 = vmatprep.subr.bf16.mxu0 0
      %1165 = vmatpush1.bf16.msra.mxu0 0
      %1166 = vmatprep.subr.bf16.mxu0 0
      %1167 = vmatpush1.bf16.msra.mxu0 0
      %1168 = vmatprep.subr.bf16.mxu0 0
      %1169 = vmatpush1.bf16.msra.mxu0 0
      %1170 = vmatprep.subr.bf16.mxu0 0
      %1171 = vmatpush1.bf16.msra.mxu0 0
      %1172 = vmatprep.subr.bf16.mxu0 0
      %1173 = vmatpush1.bf16.msra.mxu0 0
      %1174 = vmatprep.subr.bf16.mxu0 0
      %1175 = vmatpush1.bf16.msra.mxu0 0
      %1176 = vmatprep.subr.bf16.mxu0 0
      %1177 = vmatpush1.bf16.msra.mxu0 0
      %1178 = vmatprep.subr.bf16.mxu0 0
      %1179 = vmatpush1.bf16.msra.mxu0 0
      %1180 = vmatprep.subr.bf16.mxu0 0
      %1181 = vmatpush1.bf16.msra.mxu0 0
      %1182 = vmatprep.subr.bf16.mxu0 0
      %1183 = vmatpush1.bf16.msra.mxu0 0
      %1184 = vmatprep.subr.bf16.mxu0 0
      %1185 = vmatpush1.bf16.msra.mxu0 0
      %1186 = vmatprep.subr.bf16.mxu0 0
      %1187 = vmatpush1.bf16.msra.mxu0 0
      %1188 = vmatprep.subr.bf16.mxu0 0
      %1189 = vmatpush1.bf16.msra.mxu0 0
      %1190 = vmatprep.subr.bf16.mxu0 0
      %1191 = vmatpush1.bf16.msra.mxu0 0
      %1192 = vmatprep.mubr.bf16.mxu0 0
      %1193 = vmatmul.mubr.bf16.gmra.mrb[0].mxu0 %v1110
      %v1194 = vpop.f32.mrb[0].mxu0
      %v1195 = vadd.f32 %v935, %v1194
      %v1196 = vpop.f32.mrb[0].mxu0
      %v1197 = vpop.f32.mrb[0].mxu0
      %v1198 = vadd.f32 %v938, %v1197
      %v1199 = vpop.f32.mrb[0].mxu0
      %1200 = vmatprep.mubr.bf16.mxu0 0
      %1201 = vmatmul.mubr.bf16.gmra.mrb[0].mxu0 %v1113
      %v1202 = vpop.f32.mrb[0].mxu0
      %v1203 = vadd.f32 %v943, %v1202
      %v1204 = vpop.f32.mrb[0].mxu0
      %v1205 = vpop.f32.mrb[0].mxu0
      %v1206 = vadd.f32 %v946, %v1205
      %v1207 = vpop.f32.mrb[0].mxu0
      %1208 = vmatprep.mubr.bf16.mxu0 0
      %1209 = vmatmul.mubr.bf16.gmra.mrb[0].mxu0 %v1116
      %v1210 = vpop.f32.mrb[0].mxu0
      %v1211 = vadd.f32 %v951, %v1210
      %v1212 = vpop.f32.mrb[0].mxu0
      %v1213 = vpop.f32.mrb[0].mxu0
      %v1214 = vadd.f32 %v954, %v1213
      %v1215 = vpop.f32.mrb[0].mxu0
      %1216 = vmatprep.mubr.bf16.mxu0 0
      %1217 = vmatmul.mubr.bf16.gmra.mrb[0].mxu0 %v1119
      %v1218 = vpop.f32.mrb[0].mxu0
      %v1219 = vadd.f32 %v959, %v1218
      %v1220 = vpop.f32.mrb[0].mxu0
      %v1221 = vpop.f32.mrb[0].mxu0
      %v1222 = vadd.f32 %v962, %v1221
      %v1223 = vpop.f32.mrb[0].mxu0
      %1224 = vmatprep.mubr.bf16.mxu0 0
      %1225 = vmatmul.mubr.bf16.gmra.mrb[0].mxu0 %v1122
      %v1226 = vpop.f32.mrb[0].mxu0
      %v1227 = vadd.f32 %v967, %v1226
      %v1228 = vpop.f32.mrb[0].mxu0
      %v1229 = vpop.f32.mrb[0].mxu0
      %v1230 = vadd.f32 %v970, %v1229
      %v1231 = vpop.f32.mrb[0].mxu0
      %1232 = vmatprep.mubr.bf16.mxu0 0
      %1233 = vmatmul.mubr.bf16.gmra.mrb[0].mxu0 %v1125
      %v1234 = vpop.f32.mrb[0].mxu0
      %v1235 = vadd.f32 %v975, %v1234
      %v1236 = vpop.f32.mrb[0].mxu0
      %v1237 = vpop.f32.mrb[0].mxu0
      %v1238 = vadd.f32 %v978, %v1237
      %v1239 = vpop.f32.mrb[0].mxu0
      %1240 = vmatprep.mubr.bf16.mxu0 0
      %1241 = vmatmul.mubr.bf16.gmra.mrb[0].mxu0 %v1128
      %v1242 = vpop.f32.mrb[0].mxu0
      %v1243 = vadd.f32 %v983, %v1242
      %v1244 = vpop.f32.mrb[0].mxu0
      %v1245 = vpop.f32.mrb[0].mxu0
      %v1246 = vadd.f32 %v986, %v1245
      %v1247 = vpop.f32.mrb[0].mxu0
      %1248 = vmatprep.mubr.bf16.mxu0 0
      %1249 = vmatmul.mubr.bf16.gmra.mrb[0].mxu0 %v1131
      %v1250 = vpop.f32.mrb[0].mxu0
      %v1251 = vadd.f32 %v991, %v1250
      %v1252 = vpop.f32.mrb[0].mxu0
      %v1253 = vpop.f32.mrb[0].mxu0
      %v1254 = vadd.f32 %v994, %v1253
      %v1255 = vpop.f32.mrb[0].mxu0
      %1256 = vmatprep.mubr.bf16.mxu0 0
      %1257 = vmatmul.mubr.bf16.gmra.mrb[0].mxu0 %v1134
      %v1258 = vpop.f32.mrb[0].mxu0
      %v1259 = vadd.f32 %v999, %v1258
      %v1260 = vpop.f32.mrb[0].mxu0
      %v1261 = vpop.f32.mrb[0].mxu0
      %v1262 = vadd.f32 %v1002, %v1261
      %v1263 = vpop.f32.mrb[0].mxu0
      %1264 = vmatprep.mubr.bf16.mxu0 0
      %1265 = vmatmul.mubr.bf16.gmra.mrb[0].mxu0 %v1137
      %v1266 = vpop.f32.mrb[0].mxu0
      %v1267 = vadd.f32 %v1007, %v1266
      %v1268 = vpop.f32.mrb[0].mxu0
      %v1269 = vpop.f32.mrb[0].mxu0
      %v1270 = vadd.f32 %v1010, %v1269
      %v1271 = vpop.f32.mrb[0].mxu0
      %1272 = vmatprep.mubr.bf16.mxu0 0
      %1273 = vmatmul.mubr.bf16.gmra.mrb[0].mxu0 %v1140
      %v1274 = vpop.f32.mrb[0].mxu0
      %v1275 = vadd.f32 %v1015, %v1274
      %v1276 = vpop.f32.mrb[0].mxu0
      %v1277 = vpop.f32.mrb[0].mxu0
      %v1278 = vadd.f32 %v1018, %v1277
      %v1279 = vpop.f32.mrb[0].mxu0
      %1280 = vmatprep.mubr.bf16.mxu0 0
      %1281 = vmatmul.mubr.bf16.gmra.mrb[0].mxu0 %v1143
      %v1282 = vpop.f32.mrb[0].mxu0
      %v1283 = vadd.f32 %v1023, %v1282
      %v1284 = vpop.f32.mrb[0].mxu0
      %v1285 = vpop.f32.mrb[0].mxu0
      %v1286 = vadd.f32 %v1026, %v1285
      %v1287 = vpop.f32.mrb[0].mxu0
      %1288 = vmatprep.mubr.bf16.mxu0 0
      %1289 = vmatmul.mubr.bf16.gmra.mrb[0].mxu0 %v1146
      %v1290 = vpop.f32.mrb[0].mxu0
      %v1291 = vadd.f32 %v1031, %v1290
      %v1292 = vpop.f32.mrb[0].mxu0
      %v1293 = vpop.f32.mrb[0].mxu0
      %v1294 = vadd.f32 %v1034, %v1293
      %v1295 = vpop.f32.mrb[0].mxu0
      %1296 = vmatprep.mubr.bf16.mxu0 0
      %1297 = vmatmul.mubr.bf16.gmra.mrb[0].mxu0 %v1149
      %v1298 = vpop.f32.mrb[0].mxu0
      %v1299 = vadd.f32 %v1039, %v1298
      %v1300 = vpop.f32.mrb[0].mxu0
      %v1301 = vpop.f32.mrb[0].mxu0
      %v1302 = vadd.f32 %v1042, %v1301
      %v1303 = vpop.f32.mrb[0].mxu0
      %1304 = vmatprep.mubr.bf16.mxu0 0
      %1305 = vmatmul.mubr.bf16.gmra.mrb[0].mxu0 %v1152
      %v1306 = vpop.f32.mrb[0].mxu0
      %v1307 = vadd.f32 %v1047, %v1306
      %v1308 = vpop.f32.mrb[0].mxu0
      %v1309 = vpop.f32.mrb[0].mxu0
      %v1310 = vadd.f32 %v1050, %v1309
      %v1311 = vpop.f32.mrb[0].mxu0
      %1312 = vmatprep.mubr.bf16.mxu0 0
      %1313 = vmatmul.mubr.bf16.gmra.mrb[0].mxu0 %v1155
      %v1314 = vpop.f32.mrb[0].mxu0
      %v1315 = vadd.f32 %v1055, %v1314
      %v1316 = vpop.f32.mrb[0].mxu0
      %v1317 = vpop.f32.mrb[0].mxu0
      %v1318 = vadd.f32 %v1058, %v1317
      %v1319 = vpop.f32.mrb[0].mxu0
      %1320 = vdwg.mxu0
      %v1321 = vld [vmem:[%s181 + $0x8] sm:$0x3]
      %v1322 = vld [vmem:[%s181 + $0x14] sm:$0x3]
      %v1323 = vld [vmem:[%s181 + $0x20] sm:$0x3]
      %v1324 = vld [vmem:[%s181 + $0x2c] sm:$0x3]
      %v1325 = vld [vmem:[%s181 + $0x38] sm:$0x3]
      %v1326 = vld [vmem:[%s181 + $0x44] sm:$0x3]
      %v1327 = vld [vmem:[%s181 + $0x50] sm:$0x3]
      %v1328 = vld [vmem:[%s181 + $0x5c] sm:$0x3]
      %v1329 = vld [vmem:[%s181 + $0x68] sm:$0x3]
      %v1330 = vld [vmem:[%s181 + $0x74] sm:$0x3]
      %v1331 = vld [vmem:[%s181 + $0x80] sm:$0x3]
      %v1332 = vld [vmem:[%s181 + $0x8c] sm:$0x3]
      %v1333 = vld [vmem:[%s181 + $0x98] sm:$0x3]
      %v1334 = vld [vmem:[%s181 + $0xa4] sm:$0x3]
      %v1335 = vld [vmem:[%s181 + $0xb0] sm:$0x3]
      %v1336 = vld [vmem:[%s181 + $0xbc] sm:$0x3]
      %vm1337 = vsmask.f32 2304
      %vm1338 = vsmask.f32 6416
      %vm1339 = vmor %vm1337, %vm1338
      %v1341 = vshrl.u32 %v618, 16
      %v1343 = vrot.slane %v1341, 5
      %v1344 = vshll.u32 %v618, 16
      %v1346 = vrot.slane %v1344, 6
      %v1347 = vor.u32 %v1343, %v1346
      %v1348 = vrot.slane %v1347, 4
      %v1349 = vrot.slane %v247, 5
      %v1350 = vrot.slane %v243, 6
      %v1351 = vor.u32 %v1349, %v1350
      %v1352 = vsel %vm1339, %v1348, %v1351
      %v1353 = vrot.slane %v1351, 4
      %v1355 = vshrl.u32 %v1321, 16
      %v1357 = vrot.slane %v1355, 5
      %v1358 = vshll.u32 %v1321, 16
      %v1360 = vrot.slane %v1358, 6
      %v1361 = vor.u32 %v1357, %v1360
      %v1362 = vsel %vm1339, %v1353, %v1361
      %v1364 = vshrl.u32 %v619, 16
      %v1366 = vrot.slane %v1364, 5
      %v1367 = vshll.u32 %v619, 16
      %v1369 = vrot.slane %v1367, 6
      %v1370 = vor.u32 %v1366, %v1369
      %v1371 = vrot.slane %v1370, 4
      %v1372 = vrot.slane %v271, 5
      %v1373 = vrot.slane %v267, 6
      %v1374 = vor.u32 %v1372, %v1373
      %v1375 = vsel %vm1339, %v1371, %v1374
      %v1376 = vrot.slane %v1374, 4
      %v1378 = vshrl.u32 %v1322, 16
      %v1380 = vrot.slane %v1378, 5
      %v1381 = vshll.u32 %v1322, 16
      %v1383 = vrot.slane %v1381, 6
      %v1384 = vor.u32 %v1380, %v1383
      %v1385 = vsel %vm1339, %v1376, %v1384
      %v1387 = vshrl.u32 %v620, 16
      %v1389 = vrot.slane %v1387, 5
      %v1390 = vshll.u32 %v620, 16
      %v1392 = vrot.slane %v1390, 6
      %v1393 = vor.u32 %v1389, %v1392
      %v1394 = vrot.slane %v1393, 4
      %v1395 = vrot.slane %v295, 5
      %v1396 = vrot.slane %v291, 6
      %v1397 = vor.u32 %v1395, %v1396
      %v1398 = vsel %vm1339, %v1394, %v1397
      %v1399 = vrot.slane %v1397, 4
      %v1401 = vshrl.u32 %v1323, 16
      %v1403 = vrot.slane %v1401, 5
      %v1404 = vshll.u32 %v1323, 16
      %v1406 = vrot.slane %v1404, 6
      %v1407 = vor.u32 %v1403, %v1406
      %v1408 = vsel %vm1339, %v1399, %v1407
      %v1410 = vshrl.u32 %v621, 16
      %v1412 = vrot.slane %v1410, 5
      %v1413 = vshll.u32 %v621, 16
      %v1415 = vrot.slane %v1413, 6
      %v1416 = vor.u32 %v1412, %v1415
      %v1417 = vrot.slane %v1416, 4
      %v1418 = vrot.slane %v319, 5
      %v1419 = vrot.slane %v315, 6
      %v1420 = vor.u32 %v1418, %v1419
      %v1421 = vsel %vm1339, %v1417, %v1420
      %v1422 = vrot.slane %v1420, 4
      %v1424 = vshrl.u32 %v1324, 16
      %v1426 = vrot.slane %v1424, 5
      %v1427 = vshll.u32 %v1324, 16
      %v1429 = vrot.slane %v1427, 6
      %v1430 = vor.u32 %v1426, %v1429
      %v1431 = vsel %vm1339, %v1422, %v1430
      %v1433 = vshrl.u32 %v622, 16
      %v1435 = vrot.slane %v1433, 5
      %v1436 = vshll.u32 %v622, 16
      %v1438 = vrot.slane %v1436, 6
      %v1439 = vor.u32 %v1435, %v1438
      %v1440 = vrot.slane %v1439, 4
      %v1441 = vrot.slane %v343, 5
      %v1442 = vrot.slane %v339, 6
      %v1443 = vor.u32 %v1441, %v1442
      %v1444 = vsel %vm1339, %v1440, %v1443
      %v1445 = vrot.slane %v1443, 4
      %v1447 = vshrl.u32 %v1325, 16
      %v1449 = vrot.slane %v1447, 5
      %v1450 = vshll.u32 %v1325, 16
      %v1452 = vrot.slane %v1450, 6
      %v1453 = vor.u32 %v1449, %v1452
      %v1454 = vsel %vm1339, %v1445, %v1453
      %v1456 = vshrl.u32 %v623, 16
      %v1458 = vrot.slane %v1456, 5
      %v1459 = vshll.u32 %v623, 16
      %v1461 = vrot.slane %v1459, 6
      %v1462 = vor.u32 %v1458, %v1461
      %v1463 = vrot.slane %v1462, 4
      %v1464 = vrot.slane %v367, 5
      %v1465 = vrot.slane %v363, 6
      %v1466 = vor.u32 %v1464, %v1465
      %v1467 = vsel %vm1339, %v1463, %v1466
      %v1468 = vrot.slane %v1466, 4
      %v1470 = vshrl.u32 %v1326, 16
      %v1472 = vrot.slane %v1470, 5
      %v1473 = vshll.u32 %v1326, 16
      %v1475 = vrot.slane %v1473, 6
      %v1476 = vor.u32 %v1472, %v1475
      %v1477 = vsel %vm1339, %v1468, %v1476
      %v1479 = vshrl.u32 %v624, 16
      %v1481 = vrot.slane %v1479, 5
      %v1482 = vshll.u32 %v624, 16
      %v1484 = vrot.slane %v1482, 6
      %v1485 = vor.u32 %v1481, %v1484
      %v1486 = vrot.slane %v1485, 4
      %v1487 = vrot.slane %v391, 5
      %v1488 = vrot.slane %v387, 6
      %v1489 = vor.u32 %v1487, %v1488
      %v1490 = vsel %vm1339, %v1486, %v1489
      %v1491 = vrot.slane %v1489, 4
      %v1493 = vshrl.u32 %v1327, 16
      %v1495 = vrot.slane %v1493, 5
      %v1496 = vshll.u32 %v1327, 16
      %v1498 = vrot.slane %v1496, 6
      %v1499 = vor.u32 %v1495, %v1498
      %v1500 = vsel %vm1339, %v1491, %v1499
      %v1502 = vshrl.u32 %v625, 16
      %v1504 = vrot.slane %v1502, 5
      %v1505 = vshll.u32 %v625, 16
      %v1507 = vrot.slane %v1505, 6
      %v1508 = vor.u32 %v1504, %v1507
      %v1509 = vrot.slane %v1508, 4
      %v1510 = vrot.slane %v415, 5
      %v1511 = vrot.slane %v411, 6
      %v1512 = vor.u32 %v1510, %v1511
      %v1513 = vsel %vm1339, %v1509, %v1512
      %v1514 = vrot.slane %v1512, 4
      %v1516 = vshrl.u32 %v1328, 16
      %v1518 = vrot.slane %v1516, 5
      %v1519 = vshll.u32 %v1328, 16
      %v1521 = vrot.slane %v1519, 6
      %v1522 = vor.u32 %v1518, %v1521
      %v1523 = vsel %vm1339, %v1514, %v1522
      %v1525 = vshrl.u32 %v626, 16
      %v1527 = vrot.slane %v1525, 5
      %v1528 = vshll.u32 %v626, 16
      %v1530 = vrot.slane %v1528, 6
      %v1531 = vor.u32 %v1527, %v1530
      %v1532 = vrot.slane %v1531, 4
      %v1533 = vrot.slane %v439, 5
      %v1534 = vrot.slane %v435, 6
      %v1535 = vor.u32 %v1533, %v1534
      %v1536 = vsel %vm1339, %v1532, %v1535
      %v1537 = vrot.slane %v1535, 4
      %v1539 = vshrl.u32 %v1329, 16
      %v1541 = vrot.slane %v1539, 5
      %v1542 = vshll.u32 %v1329, 16
      %v1544 = vrot.slane %v1542, 6
      %v1545 = vor.u32 %v1541, %v1544
      %v1546 = vsel %vm1339, %v1537, %v1545
      %v1548 = vshrl.u32 %v627, 16
      %v1550 = vrot.slane %v1548, 5
      %v1551 = vshll.u32 %v627, 16
      %v1553 = vrot.slane %v1551, 6
      %v1554 = vor.u32 %v1550, %v1553
      %v1555 = vrot.slane %v1554, 4
      %v1556 = vrot.slane %v463, 5
      %v1557 = vrot.slane %v459, 6
      %v1558 = vor.u32 %v1556, %v1557
      %v1559 = vsel %vm1339, %v1555, %v1558
      %v1560 = vrot.slane %v1558, 4
      %v1562 = vshrl.u32 %v1330, 16
      %v1564 = vrot.slane %v1562, 5
      %v1565 = vshll.u32 %v1330, 16
      %v1567 = vrot.slane %v1565, 6
      %v1568 = vor.u32 %v1564, %v1567
      %v1569 = vsel %vm1339, %v1560, %v1568
      %v1571 = vshrl.u32 %v628, 16
      %v1573 = vrot.slane %v1571, 5
      %v1574 = vshll.u32 %v628, 16
      %v1576 = vrot.slane %v1574, 6
      %v1577 = vor.u32 %v1573, %v1576
      %v1578 = vrot.slane %v1577, 4
      %v1579 = vrot.slane %v487, 5
      %v1580 = vrot.slane %v483, 6
      %v1581 = vor.u32 %v1579, %v1580
      %v1582 = vsel %vm1339, %v1578, %v1581
      %v1583 = vrot.slane %v1581, 4
      %v1585 = vshrl.u32 %v1331, 16
      %v1587 = vrot.slane %v1585, 5
      %v1588 = vshll.u32 %v1331, 16
      %v1590 = vrot.slane %v1588, 6
      %v1591 = vor.u32 %v1587, %v1590
      %v1592 = vsel %vm1339, %v1583, %v1591
      %v1594 = vshrl.u32 %v629, 16
      %v1596 = vrot.slane %v1594, 5
      %v1597 = vshll.u32 %v629, 16
      %v1599 = vrot.slane %v1597, 6
      %v1600 = vor.u32 %v1596, %v1599
      %v1601 = vrot.slane %v1600, 4
      %v1602 = vrot.slane %v511, 5
      %v1603 = vrot.slane %v507, 6
      %v1604 = vor.u32 %v1602, %v1603
      %v1605 = vsel %vm1339, %v1601, %v1604
      %v1606 = vrot.slane %v1604, 4
      %v1608 = vshrl.u32 %v1332, 16
      %v1610 = vrot.slane %v1608, 5
      %v1611 = vshll.u32 %v1332, 16
      %v1613 = vrot.slane %v1611, 6
      %v1614 = vor.u32 %v1610, %v1613
      %v1615 = vsel %vm1339, %v1606, %v1614
      %v1617 = vshrl.u32 %v630, 16
      %v1619 = vrot.slane %v1617, 5
      %v1620 = vshll.u32 %v630, 16
      %v1622 = vrot.slane %v1620, 6
      %v1623 = vor.u32 %v1619, %v1622
      %v1624 = vrot.slane %v1623, 4
      %v1625 = vrot.slane %v535, 5
      %v1626 = vrot.slane %v531, 6
      %v1627 = vor.u32 %v1625, %v1626
      %v1628 = vsel %vm1339, %v1624, %v1627
      %v1629 = vrot.slane %v1627, 4
      %v1631 = vshrl.u32 %v1333, 16
      %v1633 = vrot.slane %v1631, 5
      %v1634 = vshll.u32 %v1333, 16
      %v1636 = vrot.slane %v1634, 6
      %v1637 = vor.u32 %v1633, %v1636
      %v1638 = vsel %vm1339, %v1629, %v1637
      %v1640 = vshrl.u32 %v631, 16
      %v1642 = vrot.slane %v1640, 5
      %v1643 = vshll.u32 %v631, 16
      %v1645 = vrot.slane %v1643, 6
      %v1646 = vor.u32 %v1642, %v1645
      %v1647 = vrot.slane %v1646, 4
      %v1648 = vrot.slane %v559, 5
      %v1649 = vrot.slane %v555, 6
      %v1650 = vor.u32 %v1648, %v1649
      %v1651 = vsel %vm1339, %v1647, %v1650
      %v1652 = vrot.slane %v1650, 4
      %v1654 = vshrl.u32 %v1334, 16
      %v1656 = vrot.slane %v1654, 5
      %v1657 = vshll.u32 %v1334, 16
      %v1659 = vrot.slane %v1657, 6
      %v1660 = vor.u32 %v1656, %v1659
      %v1661 = vsel %vm1339, %v1652, %v1660
      %v1663 = vshrl.u32 %v632, 16
      %v1665 = vrot.slane %v1663, 5
      %v1666 = vshll.u32 %v632, 16
      %v1668 = vrot.slane %v1666, 6
      %v1669 = vor.u32 %v1665, %v1668
      %v1670 = vrot.slane %v1669, 4
      %v1671 = vrot.slane %v583, 5
      %v1672 = vrot.slane %v579, 6
      %v1673 = vor.u32 %v1671, %v1672
      %v1674 = vsel %vm1339, %v1670, %v1673
      %v1675 = vrot.slane %v1673, 4
      %v1677 = vshrl.u32 %v1335, 16
      %v1679 = vrot.slane %v1677, 5
      %v1680 = vshll.u32 %v1335, 16
      %v1682 = vrot.slane %v1680, 6
      %v1683 = vor.u32 %v1679, %v1682
      %v1684 = vsel %vm1339, %v1675, %v1683
      %v1686 = vshrl.u32 %v633, 16
      %v1688 = vrot.slane %v1686, 5
      %v1689 = vshll.u32 %v633, 16
      %v1691 = vrot.slane %v1689, 6
      %v1692 = vor.u32 %v1688, %v1691
      %v1693 = vrot.slane %v1692, 4
      %v1694 = vrot.slane %v607, 5
      %v1695 = vrot.slane %v603, 6
      %v1696 = vor.u32 %v1694, %v1695
      %v1697 = vsel %vm1339, %v1693, %v1696
      %v1698 = vrot.slane %v1696, 4
      %v1700 = vshrl.u32 %v1336, 16
      %v1702 = vrot.slane %v1700, 5
      %v1703 = vshll.u32 %v1336, 16
      %v1705 = vrot.slane %v1703, 6
      %v1706 = vor.u32 %v1702, %v1705
      %v1707 = vsel %vm1339, %v1698, %v1706
      %s1708 = scalar_lea.vmem %s1, 8
      %v1709 = vld [vmem:[%s1708] sm:$0xf]
      %v1710 = vunpack.c.l.b16 %v1352
      %v1711 = vunpack.c.l.b16 %v1362
      %v1712 = vunpack.c.l.b16 %v1375
      %v1713 = vunpack.c.l.b16 %v1385
      %v1714 = vunpack.c.l.b16 %v1398
      %v1715 = vunpack.c.l.b16 %v1408
      %v1716 = vunpack.c.l.b16 %v1421
      %v1717 = vunpack.c.l.b16 %v1431
      %v1718 = vunpack.c.l.b16 %v1444
      %v1719 = vunpack.c.l.b16 %v1454
      %v1720 = vunpack.c.l.b16 %v1467
      %v1721 = vunpack.c.l.b16 %v1477
      %v1722 = vunpack.c.l.b16 %v1490
      %v1723 = vunpack.c.l.b16 %v1500
      %v1724 = vunpack.c.l.b16 %v1513
      %v1725 = vunpack.c.l.b16 %v1523
      %v1726 = vunpack.c.l.b16 %v1536
      %v1727 = vunpack.c.l.b16 %v1546
      %v1728 = vunpack.c.l.b16 %v1559
      %v1729 = vunpack.c.l.b16 %v1569
      %v1730 = vunpack.c.l.b16 %v1582
      %v1731 = vunpack.c.l.b16 %v1592
      %v1732 = vunpack.c.l.b16 %v1605
      %v1733 = vunpack.c.l.b16 %v1615
      %v1734 = vunpack.c.l.b16 %v1628
      %v1735 = vunpack.c.l.b16 %v1638
      %v1736 = vunpack.c.l.b16 %v1651
      %v1737 = vunpack.c.l.b16 %v1661
      %v1738 = vunpack.c.l.b16 %v1674
      %v1739 = vunpack.c.l.b16 %v1684
      %v1740 = vunpack.c.l.b16 %v1697
      %v1741 = vunpack.c.l.b16 %v1707
      %v1742 = vpack.c.b16 %v1711, %v1710
      %v1743 = vpack.c.b16 %v1713, %v1712
      %v1744 = vpack.c.b16 %v1715, %v1714
      %v1745 = vpack.c.b16 %v1717, %v1716
      %v1746 = vpack.c.b16 %v1719, %v1718
      %v1747 = vpack.c.b16 %v1721, %v1720
      %v1748 = vpack.c.b16 %v1723, %v1722
      %v1749 = vpack.c.b16 %v1725, %v1724
      %v1750 = vpack.c.b16 %v1727, %v1726
      %v1751 = vpack.c.b16 %v1729, %v1728
      %v1752 = vpack.c.b16 %v1731, %v1730
      %v1753 = vpack.c.b16 %v1733, %v1732
      %v1754 = vpack.c.b16 %v1735, %v1734
      %v1755 = vpack.c.b16 %v1737, %v1736
      %v1756 = vpack.c.b16 %v1739, %v1738
      %v1757 = vpack.c.b16 %v1741, %v1740
      %v1759 = vsel %vm847, %v1742, 0
      %v1762 = vsel %vm847, %v1743, 0
      %v1765 = vsel %vm847, %v1744, 0
      %v1768 = vsel %vm847, %v1745, 0
      %v1771 = vsel %vm847, %v1746, 0
      %v1774 = vsel %vm847, %v1747, 0
      %v1777 = vsel %vm847, %v1748, 0
      %v1780 = vsel %vm847, %v1749, 0
      %v1783 = vsel %vm847, %v1750, 0
      %v1786 = vsel %vm847, %v1751, 0
      %v1789 = vsel %vm847, %v1752, 0
      %v1792 = vsel %vm847, %v1753, 0
      %v1795 = vsel %vm847, %v1754, 0
      %v1798 = vsel %vm847, %v1755, 0
      %v1801 = vsel %vm847, %v1756, 0
      %v1804 = vsel %vm847, %v1757, 0
      %v1807 = vsel %vm896, %v1709, 0
      %1809 = vmatprep.subr.bf16.mxu0 0
      %1810 = vmatpush1.bf16.msra.mxu0 %v1807
      %1811 = vmatprep.subr.bf16.mxu0 0
      %1812 = vmatpush1.bf16.msra.mxu0 0
      %1813 = vmatprep.subr.bf16.mxu0 0
      %1814 = vmatpush1.bf16.msra.mxu0 0
      %1815 = vmatprep.subr.bf16.mxu0 0
      %1816 = vmatpush1.bf16.msra.mxu0 0
      %1817 = vmatprep.subr.bf16.mxu0 0
      %1818 = vmatpush1.bf16.msra.mxu0 0
      %1819 = vmatprep.subr.bf16.mxu0 0
      %1820 = vmatpush1.bf16.msra.mxu0 0
      %1821 = vmatprep.subr.bf16.mxu0 0
      %1822 = vmatpush1.bf16.msra.mxu0 0
      %1823 = vmatprep.subr.bf16.mxu0 0
      %1824 = vmatpush1.bf16.msra.mxu0 0
      %1825 = vmatprep.subr.bf16.mxu0 0
      %1826 = vmatpush1.bf16.msra.mxu0 0
      %1827 = vmatprep.subr.bf16.mxu0 0
      %1828 = vmatpush1.bf16.msra.mxu0 0
      %1829 = vmatprep.subr.bf16.mxu0 0
      %1830 = vmatpush1.bf16.msra.mxu0 0
      %1831 = vmatprep.subr.bf16.mxu0 0
      %1832 = vmatpush1.bf16.msra.mxu0 0
      %1833 = vmatprep.subr.bf16.mxu0 0
      %1834 = vmatpush1.bf16.msra.mxu0 0
      %1835 = vmatprep.subr.bf16.mxu0 0
      %1836 = vmatpush1.bf16.msra.mxu0 0
      %1837 = vmatprep.subr.bf16.mxu0 0
      %1838 = vmatpush1.bf16.msra.mxu0 0
      %1839 = vmatprep.subr.bf16.mxu0 0
      %1840 = vmatpush1.bf16.msra.mxu0 0
      %1841 = vmatprep.mubr.bf16.mxu0 0
      %1842 = vmatmul.mubr.bf16.gmra.mrb[0].mxu0 %v1759
      %v1843 = vpop.f32.mrb[0].mxu0
      %v1844 = vadd.f32 0.0, %v1843
      %v1845 = vpop.f32.mrb[0].mxu0
      %v1846 = vpop.f32.mrb[0].mxu0
      %v1847 = vadd.f32 0.0, %v1846
      %v1848 = vpop.f32.mrb[0].mxu0
      %1849 = vmatprep.mubr.bf16.mxu0 0
      %1850 = vmatmul.mubr.bf16.gmra.mrb[0].mxu0 %v1762
      %v1851 = vpop.f32.mrb[0].mxu0
      %v1852 = vadd.f32 0.0, %v1851
      %v1853 = vpop.f32.mrb[0].mxu0
      %v1854 = vpop.f32.mrb[0].mxu0
      %v1855 = vadd.f32 0.0, %v1854
      %v1856 = vpop.f32.mrb[0].mxu0
      %1857 = vmatprep.mubr.bf16.mxu0 0
      %1858 = vmatmul.mubr.bf16.gmra.mrb[0].mxu0 %v1765
      %v1859 = vpop.f32.mrb[0].mxu0
      %v1860 = vadd.f32 0.0, %v1859
      %v1861 = vpop.f32.mrb[0].mxu0
      %v1862 = vpop.f32.mrb[0].mxu0
      %v1863 = vadd.f32 0.0, %v1862
      %v1864 = vpop.f32.mrb[0].mxu0
      %1865 = vmatprep.mubr.bf16.mxu0 0
      %1866 = vmatmul.mubr.bf16.gmra.mrb[0].mxu0 %v1768
      %v1867 = vpop.f32.mrb[0].mxu0
      %v1868 = vadd.f32 0.0, %v1867
      %v1869 = vpop.f32.mrb[0].mxu0
      %v1870 = vpop.f32.mrb[0].mxu0
      %v1871 = vadd.f32 0.0, %v1870
      %v1872 = vpop.f32.mrb[0].mxu0
      %1873 = vmatprep.mubr.bf16.mxu0 0
      %1874 = vmatmul.mubr.bf16.gmra.mrb[0].mxu0 %v1771
      %v1875 = vpop.f32.mrb[0].mxu0
      %v1876 = vadd.f32 0.0, %v1875
      %v1877 = vpop.f32.mrb[0].mxu0
      %v1878 = vpop.f32.mrb[0].mxu0
      %v1879 = vadd.f32 0.0, %v1878
      %v1880 = vpop.f32.mrb[0].mxu0
      %1881 = vmatprep.mubr.bf16.mxu0 0
      %1882 = vmatmul.mubr.bf16.gmra.mrb[0].mxu0 %v1774
      %v1883 = vpop.f32.mrb[0].mxu0
      %v1884 = vadd.f32 0.0, %v1883
      %v1885 = vpop.f32.mrb[0].mxu0
      %v1886 = vpop.f32.mrb[0].mxu0
      %v1887 = vadd.f32 0.0, %v1886
      %v1888 = vpop.f32.mrb[0].mxu0
      %1889 = vmatprep.mubr.bf16.mxu0 0
      %1890 = vmatmul.mubr.bf16.gmra.mrb[0].mxu0 %v1777
      %v1891 = vpop.f32.mrb[0].mxu0
      %v1892 = vadd.f32 0.0, %v1891
      %v1893 = vpop.f32.mrb[0].mxu0
      %v1894 = vpop.f32.mrb[0].mxu0
      %v1895 = vadd.f32 0.0, %v1894
      %v1896 = vpop.f32.mrb[0].mxu0
      %1897 = vmatprep.mubr.bf16.mxu0 0
      %1898 = vmatmul.mubr.bf16.gmra.mrb[0].mxu0 %v1780
      %v1899 = vpop.f32.mrb[0].mxu0
      %v1900 = vadd.f32 0.0, %v1899
      %v1901 = vpop.f32.mrb[0].mxu0
      %v1902 = vpop.f32.mrb[0].mxu0
      %v1903 = vadd.f32 0.0, %v1902
      %v1904 = vpop.f32.mrb[0].mxu0
      %1905 = vmatprep.mubr.bf16.mxu0 0
      %1906 = vmatmul.mubr.bf16.gmra.mrb[0].mxu0 %v1783
      %v1907 = vpop.f32.mrb[0].mxu0
      %v1908 = vadd.f32 0.0, %v1907
      %v1909 = vpop.f32.mrb[0].mxu0
      %v1910 = vpop.f32.mrb[0].mxu0
      %v1911 = vadd.f32 0.0, %v1910
      %v1912 = vpop.f32.mrb[0].mxu0
      %1913 = vmatprep.mubr.bf16.mxu0 0
      %1914 = vmatmul.mubr.bf16.gmra.mrb[0].mxu0 %v1786
      %v1915 = vpop.f32.mrb[0].mxu0
      %v1916 = vadd.f32 0.0, %v1915
      %v1917 = vpop.f32.mrb[0].mxu0
      %v1918 = vpop.f32.mrb[0].mxu0
      %v1919 = vadd.f32 0.0, %v1918
      %v1920 = vpop.f32.mrb[0].mxu0
      %1921 = vmatprep.mubr.bf16.mxu0 0
      %1922 = vmatmul.mubr.bf16.gmra.mrb[0].mxu0 %v1789
      %v1923 = vpop.f32.mrb[0].mxu0
      %v1924 = vadd.f32 0.0, %v1923
      %v1925 = vpop.f32.mrb[0].mxu0
      %v1926 = vpop.f32.mrb[0].mxu0
      %v1927 = vadd.f32 0.0, %v1926
      %v1928 = vpop.f32.mrb[0].mxu0
      %1929 = vmatprep.mubr.bf16.mxu0 0
      %1930 = vmatmul.mubr.bf16.gmra.mrb[0].mxu0 %v1792
      %v1931 = vpop.f32.mrb[0].mxu0
      %v1932 = vadd.f32 0.0, %v1931
      %v1933 = vpop.f32.mrb[0].mxu0
      %v1934 = vpop.f32.mrb[0].mxu0
      %v1935 = vadd.f32 0.0, %v1934
      %v1936 = vpop.f32.mrb[0].mxu0
      %1937 = vmatprep.mubr.bf16.mxu0 0
      %1938 = vmatmul.mubr.bf16.gmra.mrb[0].mxu0 %v1795
      %v1939 = vpop.f32.mrb[0].mxu0
      %v1940 = vadd.f32 0.0, %v1939
      %v1941 = vpop.f32.mrb[0].mxu0
      %v1942 = vpop.f32.mrb[0].mxu0
      %v1943 = vadd.f32 0.0, %v1942
      %v1944 = vpop.f32.mrb[0].mxu0
      %1945 = vmatprep.mubr.bf16.mxu0 0
      %1946 = vmatmul.mubr.bf16.gmra.mrb[0].mxu0 %v1798
      %v1947 = vpop.f32.mrb[0].mxu0
      %v1948 = vadd.f32 0.0, %v1947
      %v1949 = vpop.f32.mrb[0].mxu0
      %v1950 = vpop.f32.mrb[0].mxu0
      %v1951 = vadd.f32 0.0, %v1950
      %v1952 = vpop.f32.mrb[0].mxu0
      %1953 = vmatprep.mubr.bf16.mxu0 0
      %1954 = vmatmul.mubr.bf16.gmra.mrb[0].mxu0 %v1801
      %v1955 = vpop.f32.mrb[0].mxu0
      %v1956 = vadd.f32 0.0, %v1955
      %v1957 = vpop.f32.mrb[0].mxu0
      %v1958 = vpop.f32.mrb[0].mxu0
      %v1959 = vadd.f32 0.0, %v1958
      %v1960 = vpop.f32.mrb[0].mxu0
      %1961 = vmatprep.mubr.bf16.mxu0 0
      %1962 = vmatmul.mubr.bf16.gmra.mrb[0].mxu0 %v1804
      %v1963 = vpop.f32.mrb[0].mxu0
      %v1964 = vadd.f32 0.0, %v1963
      %v1965 = vpop.f32.mrb[0].mxu0
      %v1966 = vpop.f32.mrb[0].mxu0
      %v1967 = vadd.f32 0.0, %v1966
      %v1968 = vpop.f32.mrb[0].mxu0
      %1969 = vdwg.mxu0
      %v1970 = vadd.f32 %v1195, %v1844
      %v1971 = vadd.f32 %v1198, %v1847
      %v1972 = vadd.f32 %v1203, %v1852
      %v1973 = vadd.f32 %v1206, %v1855
      %v1974 = vadd.f32 %v1211, %v1860
      %v1975 = vadd.f32 %v1214, %v1863
      %v1976 = vadd.f32 %v1219, %v1868
      %v1977 = vadd.f32 %v1222, %v1871
      %v1978 = vadd.f32 %v1227, %v1876
      %v1979 = vadd.f32 %v1230, %v1879
      %v1980 = vadd.f32 %v1235, %v1884
      %v1981 = vadd.f32 %v1238, %v1887
      %v1982 = vadd.f32 %v1243, %v1892
      %v1983 = vadd.f32 %v1246, %v1895
      %v1984 = vadd.f32 %v1251, %v1900
      %v1985 = vadd.f32 %v1254, %v1903
      %v1986 = vadd.f32 %v1259, %v1908
      %v1987 = vadd.f32 %v1262, %v1911
      %v1988 = vadd.f32 %v1267, %v1916
      %v1989 = vadd.f32 %v1270, %v1919
      %v1990 = vadd.f32 %v1275, %v1924
      %v1991 = vadd.f32 %v1278, %v1927
      %v1992 = vadd.f32 %v1283, %v1932
      %v1993 = vadd.f32 %v1286, %v1935
      %v1994 = vadd.f32 %v1291, %v1940
      %v1995 = vadd.f32 %v1294, %v1943
      %v1996 = vadd.f32 %v1299, %v1948
      %v1997 = vadd.f32 %v1302, %v1951
      %v1998 = vadd.f32 %v1307, %v1956
      %v1999 = vadd.f32 %v1310, %v1959
      %v2000 = vadd.f32 %v1315, %v1964
      %v2001 = vadd.f32 %v1318, %v1967
      %s2002 = scalar_lea.vmem %s170, 24
      %v2003 = vld [vmem:[%s2002] sm:$0xf]
      %v2004 = vld [vmem:[%s2002 + $0x4] sm:$0xf]
      %v2005 = vld [vmem:[%s2002 + $0x8] sm:$0x1]
      %v2006 = vld [vmem:[%s2002 + $0xc] sm:$0xf]
      %v2007 = vld [vmem:[%s2002 + $0x10] sm:$0xf]
      %v2008 = vld [vmem:[%s2002 + $0x14] sm:$0x1]
      %v2009 = vld [vmem:[%s2002 + $0x18] sm:$0xf]
      %v2010 = vld [vmem:[%s2002 + $0x1c] sm:$0xf]
      %v2011 = vld [vmem:[%s2002 + $0x20] sm:$0x1]
      %v2012 = vld [vmem:[%s2002 + $0x24] sm:$0xf]
      %v2013 = vld [vmem:[%s2002 + $0x28] sm:$0xf]
      %v2014 = vld [vmem:[%s2002 + $0x2c] sm:$0x1]
      %v2015 = vld [vmem:[%s2002 + $0x30] sm:$0xf]
      %v2016 = vld [vmem:[%s2002 + $0x34] sm:$0xf]
      %v2017 = vld [vmem:[%s2002 + $0x38] sm:$0x1]
      %v2018 = vld [vmem:[%s2002 + $0x3c] sm:$0xf]
      %v2019 = vld [vmem:[%s2002 + $0x40] sm:$0xf]
      %v2020 = vld [vmem:[%s2002 + $0x44] sm:$0x1]
      %v2021 = vld [vmem:[%s2002 + $0x48] sm:$0xf]
      %v2022 = vld [vmem:[%s2002 + $0x4c] sm:$0xf]
      %v2023 = vld [vmem:[%s2002 + $0x50] sm:$0x1]
      %v2024 = vld [vmem:[%s2002 + $0x54] sm:$0xf]
      %v2025 = vld [vmem:[%s2002 + $0x58] sm:$0xf]
      %v2026 = vld [vmem:[%s2002 + $0x5c] sm:$0x1]
      %v2027 = vld [vmem:[%s2002 + $0x60] sm:$0xf]
      %v2028 = vld [vmem:[%s2002 + $0x64] sm:$0xf]
      %v2029 = vld [vmem:[%s2002 + $0x68] sm:$0x1]
      %v2030 = vld [vmem:[%s2002 + $0x6c] sm:$0xf]
      %v2031 = vld [vmem:[%s2002 + $0x70] sm:$0xf]
      %v2032 = vld [vmem:[%s2002 + $0x74] sm:$0x1]
      %v2033 = vld [vmem:[%s2002 + $0x78] sm:$0xf]
      %v2034 = vld [vmem:[%s2002 + $0x7c] sm:$0xf]
      %v2035 = vld [vmem:[%s2002 + $0x80] sm:$0x1]
      %v2036 = vld [vmem:[%s2002 + $0x84] sm:$0xf]
      %v2037 = vld [vmem:[%s2002 + $0x88] sm:$0xf]
      %v2038 = vld [vmem:[%s2002 + $0x8c] sm:$0x1]
      %v2039 = vld [vmem:[%s2002 + $0x90] sm:$0xf]
      %v2040 = vld [vmem:[%s2002 + $0x94] sm:$0xf]
      %v2041 = vld [vmem:[%s2002 + $0x98] sm:$0x1]
      %v2042 = vld [vmem:[%s2002 + $0x9c] sm:$0xf]
      %v2043 = vld [vmem:[%s2002 + $0xa0] sm:$0xf]
      %v2044 = vld [vmem:[%s2002 + $0xa4] sm:$0x1]
      %v2045 = vld [vmem:[%s2002 + $0xa8] sm:$0xf]
      %v2046 = vld [vmem:[%s2002 + $0xac] sm:$0xf]
      %v2047 = vld [vmem:[%s2002 + $0xb0] sm:$0x1]
      %v2048 = vld [vmem:[%s2002 + $0xb4] sm:$0xf]
      %v2049 = vld [vmem:[%s2002 + $0xb8] sm:$0xf]
      %v2050 = vld [vmem:[%s2002 + $0xbc] sm:$0x1]
      %v2052 = vshrl.u32 %v2003, 16
      %v2054 = vrot.slane %v2052, 4
      %v2055 = vshll.u32 %v2003, 16
      %v2057 = vrot.slane %v2055, 5
      %v2058 = vor.u32 %v2054, %v2057
      %v2059 = vrot.slane %v2058, 4
      %v2061 = vshll.u32 %v2004, 16
      %v2063 = vrot.slane %v2061, 5
      %v2064 = vsel %vm232, %v2059, %v2063
      %v2065 = vshrl.u32 %v2004, 16
      %v2067 = vrot.slane %v2065, 4
      %v2068 = vor.u32 %v2067, %v2063
      %v2069 = vrot.slane %v2068, 4
      %v2071 = vshll.u32 %v2005, 16
      %v2073 = vrot.slane %v2071, 5
      %v2074 = vsel %vm232, %v2069, %v2073
      %v2076 = vshrl.u32 %v2006, 16
      %v2078 = vrot.slane %v2076, 4
      %v2079 = vshll.u32 %v2006, 16
      %v2081 = vrot.slane %v2079, 5
      %v2082 = vor.u32 %v2078, %v2081
      %v2083 = vrot.slane %v2082, 4
      %v2085 = vshll.u32 %v2007, 16
      %v2087 = vrot.slane %v2085, 5
      %v2088 = vsel %vm232, %v2083, %v2087
      %v2089 = vshrl.u32 %v2007, 16
      %v2091 = vrot.slane %v2089, 4
      %v2092 = vor.u32 %v2091, %v2087
      %v2093 = vrot.slane %v2092, 4
      %v2095 = vshll.u32 %v2008, 16
      %v2097 = vrot.slane %v2095, 5
      %v2098 = vsel %vm232, %v2093, %v2097
      %v2100 = vshrl.u32 %v2009, 16
      %v2102 = vrot.slane %v2100, 4
      %v2103 = vshll.u32 %v2009, 16
      %v2105 = vrot.slane %v2103, 5
      %v2106 = vor.u32 %v2102, %v2105
      %v2107 = vrot.slane %v2106, 4
      %v2109 = vshll.u32 %v2010, 16
      %v2111 = vrot.slane %v2109, 5
      %v2112 = vsel %vm232, %v2107, %v2111
      %v2113 = vshrl.u32 %v2010, 16
      %v2115 = vrot.slane %v2113, 4
      %v2116 = vor.u32 %v2115, %v2111
      %v2117 = vrot.slane %v2116, 4
      %v2119 = vshll.u32 %v2011, 16
      %v2121 = vrot.slane %v2119, 5
      %v2122 = vsel %vm232, %v2117, %v2121
      %v2124 = vshrl.u32 %v2012, 16
      %v2126 = vrot.slane %v2124, 4
      %v2127 = vshll.u32 %v2012, 16
      %v2129 = vrot.slane %v2127, 5
      %v2130 = vor.u32 %v2126, %v2129
      %v2131 = vrot.slane %v2130, 4
      %v2133 = vshll.u32 %v2013, 16
      %v2135 = vrot.slane %v2133, 5
      %v2136 = vsel %vm232, %v2131, %v2135
      %v2137 = vshrl.u32 %v2013, 16
      %v2139 = vrot.slane %v2137, 4
      %v2140 = vor.u32 %v2139, %v2135
      %v2141 = vrot.slane %v2140, 4
      %v2143 = vshll.u32 %v2014, 16
      %v2145 = vrot.slane %v2143, 5
      %v2146 = vsel %vm232, %v2141, %v2145
      %v2148 = vshrl.u32 %v2015, 16
      %v2150 = vrot.slane %v2148, 4
      %v2151 = vshll.u32 %v2015, 16
      %v2153 = vrot.slane %v2151, 5
      %v2154 = vor.u32 %v2150, %v2153
      %v2155 = vrot.slane %v2154, 4
      %v2157 = vshll.u32 %v2016, 16
      %v2159 = vrot.slane %v2157, 5
      %v2160 = vsel %vm232, %v2155, %v2159
      %v2161 = vshrl.u32 %v2016, 16
      %v2163 = vrot.slane %v2161, 4
      %v2164 = vor.u32 %v2163, %v2159
      %v2165 = vrot.slane %v2164, 4
      %v2167 = vshll.u32 %v2017, 16
      %v2169 = vrot.slane %v2167, 5
      %v2170 = vsel %vm232, %v2165, %v2169
      %v2172 = vshrl.u32 %v2018, 16
      %v2174 = vrot.slane %v2172, 4
      %v2175 = vshll.u32 %v2018, 16
      %v2177 = vrot.slane %v2175, 5
      %v2178 = vor.u32 %v2174, %v2177
      %v2179 = vrot.slane %v2178, 4
      %v2181 = vshll.u32 %v2019, 16
      %v2183 = vrot.slane %v2181, 5
      %v2184 = vsel %vm232, %v2179, %v2183
      %v2185 = vshrl.u32 %v2019, 16
      %v2187 = vrot.slane %v2185, 4
      %v2188 = vor.u32 %v2187, %v2183
      %v2189 = vrot.slane %v2188, 4
      %v2191 = vshll.u32 %v2020, 16
      %v2193 = vrot.slane %v2191, 5
      %v2194 = vsel %vm232, %v2189, %v2193
      %v2196 = vshrl.u32 %v2021, 16
      %v2198 = vrot.slane %v2196, 4
      %v2199 = vshll.u32 %v2021, 16
      %v2201 = vrot.slane %v2199, 5
      %v2202 = vor.u32 %v2198, %v2201
      %v2203 = vrot.slane %v2202, 4
      %v2205 = vshll.u32 %v2022, 16
      %v2207 = vrot.slane %v2205, 5
      %v2208 = vsel %vm232, %v2203, %v2207
      %v2209 = vshrl.u32 %v2022, 16
      %v2211 = vrot.slane %v2209, 4
      %v2212 = vor.u32 %v2211, %v2207
      %v2213 = vrot.slane %v2212, 4
      %v2215 = vshll.u32 %v2023, 16
      %v2217 = vrot.slane %v2215, 5
      %v2218 = vsel %vm232, %v2213, %v2217
      %v2220 = vshrl.u32 %v2024, 16
      %v2222 = vrot.slane %v2220, 4
      %v2223 = vshll.u32 %v2024, 16
      %v2225 = vrot.slane %v2223, 5
      %v2226 = vor.u32 %v2222, %v2225
      %v2227 = vrot.slane %v2226, 4
      %v2229 = vshll.u32 %v2025, 16
      %v2231 = vrot.slane %v2229, 5
      %v2232 = vsel %vm232, %v2227, %v2231
      %v2233 = vshrl.u32 %v2025, 16
      %v2235 = vrot.slane %v2233, 4
      %v2236 = vor.u32 %v2235, %v2231
      %v2237 = vrot.slane %v2236, 4
      %v2239 = vshll.u32 %v2026, 16
      %v2241 = vrot.slane %v2239, 5
      %v2242 = vsel %vm232, %v2237, %v2241
      %v2244 = vshrl.u32 %v2027, 16
      %v2246 = vrot.slane %v2244, 4
      %v2247 = vshll.u32 %v2027, 16
      %v2249 = vrot.slane %v2247, 5
      %v2250 = vor.u32 %v2246, %v2249
      %v2251 = vrot.slane %v2250, 4
      %v2253 = vshll.u32 %v2028, 16
      %v2255 = vrot.slane %v2253, 5
      %v2256 = vsel %vm232, %v2251, %v2255
      %v2257 = vshrl.u32 %v2028, 16
      %v2259 = vrot.slane %v2257, 4
      %v2260 = vor.u32 %v2259, %v2255
      %v2261 = vrot.slane %v2260, 4
      %v2263 = vshll.u32 %v2029, 16
      %v2265 = vrot.slane %v2263, 5
      %v2266 = vsel %vm232, %v2261, %v2265
      %v2268 = vshrl.u32 %v2030, 16
      %v2270 = vrot.slane %v2268, 4
      %v2271 = vshll.u32 %v2030, 16
      %v2273 = vrot.slane %v2271, 5
      %v2274 = vor.u32 %v2270, %v2273
      %v2275 = vrot.slane %v2274, 4
      %v2277 = vshll.u32 %v2031, 16
      %v2279 = vrot.slane %v2277, 5
      %v2280 = vsel %vm232, %v2275, %v2279
      %v2281 = vshrl.u32 %v2031, 16
      %v2283 = vrot.slane %v2281, 4
      %v2284 = vor.u32 %v2283, %v2279
      %v2285 = vrot.slane %v2284, 4
      %v2287 = vshll.u32 %v2032, 16
      %v2289 = vrot.slane %v2287, 5
      %v2290 = vsel %vm232, %v2285, %v2289
      %v2292 = vshrl.u32 %v2033, 16
      %v2294 = vrot.slane %v2292, 4
      %v2295 = vshll.u32 %v2033, 16
      %v2297 = vrot.slane %v2295, 5
      %v2298 = vor.u32 %v2294, %v2297
      %v2299 = vrot.slane %v2298, 4
      %v2301 = vshll.u32 %v2034, 16
      %v2303 = vrot.slane %v2301, 5
      %v2304 = vsel %vm232, %v2299, %v2303
      %v2305 = vshrl.u32 %v2034, 16
      %v2307 = vrot.slane %v2305, 4
      %v2308 = vor.u32 %v2307, %v2303
      %v2309 = vrot.slane %v2308, 4
      %v2311 = vshll.u32 %v2035, 16
      %v2313 = vrot.slane %v2311, 5
      %v2314 = vsel %vm232, %v2309, %v2313
      %v2316 = vshrl.u32 %v2036, 16
      %v2318 = vrot.slane %v2316, 4
      %v2319 = vshll.u32 %v2036, 16
      %v2321 = vrot.slane %v2319, 5
      %v2322 = vor.u32 %v2318, %v2321
      %v2323 = vrot.slane %v2322, 4
      %v2325 = vshll.u32 %v2037, 16
      %v2327 = vrot.slane %v2325, 5
      %v2328 = vsel %vm232, %v2323, %v2327
      %v2329 = vshrl.u32 %v2037, 16
      %v2331 = vrot.slane %v2329, 4
      %v2332 = vor.u32 %v2331, %v2327
      %v2333 = vrot.slane %v2332, 4
      %v2335 = vshll.u32 %v2038, 16
      %v2337 = vrot.slane %v2335, 5
      %v2338 = vsel %vm232, %v2333, %v2337
      %v2340 = vshrl.u32 %v2039, 16
      %v2342 = vrot.slane %v2340, 4
      %v2343 = vshll.u32 %v2039, 16
      %v2345 = vrot.slane %v2343, 5
      %v2346 = vor.u32 %v2342, %v2345
      %v2347 = vrot.slane %v2346, 4
      %v2349 = vshll.u32 %v2040, 16
      %v2351 = vrot.slane %v2349, 5
      %v2352 = vsel %vm232, %v2347, %v2351
      %v2353 = vshrl.u32 %v2040, 16
      %v2355 = vrot.slane %v2353, 4
      %v2356 = vor.u32 %v2355, %v2351
      %v2357 = vrot.slane %v2356, 4
      %v2359 = vshll.u32 %v2041, 16
      %v2361 = vrot.slane %v2359, 5
      %v2362 = vsel %vm232, %v2357, %v2361
      %v2364 = vshrl.u32 %v2042, 16
      %v2366 = vrot.slane %v2364, 4
      %v2367 = vshll.u32 %v2042, 16
      %v2369 = vrot.slane %v2367, 5
      %v2370 = vor.u32 %v2366, %v2369
      %v2371 = vrot.slane %v2370, 4
      %v2373 = vshll.u32 %v2043, 16
      %v2375 = vrot.slane %v2373, 5
      %v2376 = vsel %vm232, %v2371, %v2375
      %v2377 = vshrl.u32 %v2043, 16
      %v2379 = vrot.slane %v2377, 4
      %v2380 = vor.u32 %v2379, %v2375
      %v2381 = vrot.slane %v2380, 4
      %v2383 = vshll.u32 %v2044, 16
      %v2385 = vrot.slane %v2383, 5
      %v2386 = vsel %vm232, %v2381, %v2385
      %v2388 = vshrl.u32 %v2045, 16
      %v2390 = vrot.slane %v2388, 4
      %v2391 = vshll.u32 %v2045, 16
      %v2393 = vrot.slane %v2391, 5
      %v2394 = vor.u32 %v2390, %v2393
      %v2395 = vrot.slane %v2394, 4
      %v2397 = vshll.u32 %v2046, 16
      %v2399 = vrot.slane %v2397, 5
      %v2400 = vsel %vm232, %v2395, %v2399
      %v2401 = vshrl.u32 %v2046, 16
      %v2403 = vrot.slane %v2401, 4
      %v2404 = vor.u32 %v2403, %v2399
      %v2405 = vrot.slane %v2404, 4
      %v2407 = vshll.u32 %v2047, 16
      %v2409 = vrot.slane %v2407, 5
      %v2410 = vsel %vm232, %v2405, %v2409
      %v2412 = vshrl.u32 %v2048, 16
      %v2414 = vrot.slane %v2412, 4
      %v2415 = vshll.u32 %v2048, 16
      %v2417 = vrot.slane %v2415, 5
      %v2418 = vor.u32 %v2414, %v2417
      %v2419 = vrot.slane %v2418, 4
      %v2421 = vshll.u32 %v2049, 16
      %v2423 = vrot.slane %v2421, 5
      %v2424 = vsel %vm232, %v2419, %v2423
      %v2425 = vshrl.u32 %v2049, 16
      %v2427 = vrot.slane %v2425, 4
      %v2428 = vor.u32 %v2427, %v2423
      %v2429 = vrot.slane %v2428, 4
      %v2431 = vshll.u32 %v2050, 16
      %v2433 = vrot.slane %v2431, 5
      %v2434 = vsel %vm232, %v2429, %v2433
      %s2435 = scalar_lea.vmem %s1, 12
      %v2436 = vld [vmem:[%s2435] sm:$0xf]
      %v2437 = vunpack.c.l.b16 %v2064
      %v2438 = vunpack.c.l.b16 %v2074
      %v2439 = vunpack.c.l.b16 %v2088
      %v2440 = vunpack.c.l.b16 %v2098
      %v2441 = vunpack.c.l.b16 %v2112
      %v2442 = vunpack.c.l.b16 %v2122
      %v2443 = vunpack.c.l.b16 %v2136
      %v2444 = vunpack.c.l.b16 %v2146
      %v2445 = vunpack.c.l.b16 %v2160
      %v2446 = vunpack.c.l.b16 %v2170
      %v2447 = vunpack.c.l.b16 %v2184
      %v2448 = vunpack.c.l.b16 %v2194
      %v2449 = vunpack.c.l.b16 %v2208
      %v2450 = vunpack.c.l.b16 %v2218
      %v2451 = vunpack.c.l.b16 %v2232
      %v2452 = vunpack.c.l.b16 %v2242
      %v2453 = vunpack.c.l.b16 %v2256
      %v2454 = vunpack.c.l.b16 %v2266
      %v2455 = vunpack.c.l.b16 %v2280
      %v2456 = vunpack.c.l.b16 %v2290
      %v2457 = vunpack.c.l.b16 %v2304
      %v2458 = vunpack.c.l.b16 %v2314
      %v2459 = vunpack.c.l.b16 %v2328
      %v2460 = vunpack.c.l.b16 %v2338
      %v2461 = vunpack.c.l.b16 %v2352
      %v2462 = vunpack.c.l.b16 %v2362
      %v2463 = vunpack.c.l.b16 %v2376
      %v2464 = vunpack.c.l.b16 %v2386
      %v2465 = vunpack.c.l.b16 %v2400
      %v2466 = vunpack.c.l.b16 %v2410
      %v2467 = vunpack.c.l.b16 %v2424
      %v2468 = vunpack.c.l.b16 %v2434
      %v2469 = vpack.c.b16 %v2438, %v2437
      %v2470 = vpack.c.b16 %v2440, %v2439
      %v2471 = vpack.c.b16 %v2442, %v2441
      %v2472 = vpack.c.b16 %v2444, %v2443
      %v2473 = vpack.c.b16 %v2446, %v2445
      %v2474 = vpack.c.b16 %v2448, %v2447
      %v2475 = vpack.c.b16 %v2450, %v2449
      %v2476 = vpack.c.b16 %v2452, %v2451
      %v2477 = vpack.c.b16 %v2454, %v2453
      %v2478 = vpack.c.b16 %v2456, %v2455
      %v2479 = vpack.c.b16 %v2458, %v2457
      %v2480 = vpack.c.b16 %v2460, %v2459
      %v2481 = vpack.c.b16 %v2462, %v2461
      %v2482 = vpack.c.b16 %v2464, %v2463
      %v2483 = vpack.c.b16 %v2466, %v2465
      %v2484 = vpack.c.b16 %v2468, %v2467
      %v2486 = vsel %vm847, %v2469, 0
      %v2489 = vsel %vm847, %v2470, 0
      %v2492 = vsel %vm847, %v2471, 0
      %v2495 = vsel %vm847, %v2472, 0
      %v2498 = vsel %vm847, %v2473, 0
      %v2501 = vsel %vm847, %v2474, 0
      %v2504 = vsel %vm847, %v2475, 0
      %v2507 = vsel %vm847, %v2476, 0
      %v2510 = vsel %vm847, %v2477, 0
      %v2513 = vsel %vm847, %v2478, 0
      %v2516 = vsel %vm847, %v2479, 0
      %v2519 = vsel %vm847, %v2480, 0
      %v2522 = vsel %vm847, %v2481, 0
      %v2525 = vsel %vm847, %v2482, 0
      %v2528 = vsel %vm847, %v2483, 0
      %v2531 = vsel %vm847, %v2484, 0
      %v2534 = vsel %vm896, %v2436, 0
      %2536 = vmatprep.subr.bf16.mxu0 0
      %2537 = vmatpush1.bf16.msra.mxu0 %v2534
      %2538 = vmatprep.subr.bf16.mxu0 0
      %2539 = vmatpush1.bf16.msra.mxu0 0
      %2540 = vmatprep.subr.bf16.mxu0 0
      %2541 = vmatpush1.bf16.msra.mxu0 0
      %2542 = vmatprep.subr.bf16.mxu0 0
      %2543 = vmatpush1.bf16.msra.mxu0 0
      %2544 = vmatprep.subr.bf16.mxu0 0
      %2545 = vmatpush1.bf16.msra.mxu0 0
      %2546 = vmatprep.subr.bf16.mxu0 0
      %2547 = vmatpush1.bf16.msra.mxu0 0
      %2548 = vmatprep.subr.bf16.mxu0 0
      %2549 = vmatpush1.bf16.msra.mxu0 0
      %2550 = vmatprep.subr.bf16.mxu0 0
      %2551 = vmatpush1.bf16.msra.mxu0 0
      %2552 = vmatprep.subr.bf16.mxu0 0
      %2553 = vmatpush1.bf16.msra.mxu0 0
      %2554 = vmatprep.subr.bf16.mxu0 0
      %2555 = vmatpush1.bf16.msra.mxu0 0
      %2556 = vmatprep.subr.bf16.mxu0 0
      %2557 = vmatpush1.bf16.msra.mxu0 0
      %2558 = vmatprep.subr.bf16.mxu0 0
      %2559 = vmatpush1.bf16.msra.mxu0 0
      %2560 = vmatprep.subr.bf16.mxu0 0
      %2561 = vmatpush1.bf16.msra.mxu0 0
      %2562 = vmatprep.subr.bf16.mxu0 0
      %2563 = vmatpush1.bf16.msra.mxu0 0
      %2564 = vmatprep.subr.bf16.mxu0 0
      %2565 = vmatpush1.bf16.msra.mxu0 0
      %2566 = vmatprep.subr.bf16.mxu0 0
      %2567 = vmatpush1.bf16.msra.mxu0 0
      %2568 = vmatprep.mubr.bf16.mxu0 0
      %2569 = vmatmul.mubr.bf16.gmra.mrb[0].mxu0 %v2486
      %v2570 = vpop.f32.mrb[0].mxu0
      %v2571 = vadd.f32 0.0, %v2570
      %v2572 = vpop.f32.mrb[0].mxu0
      %v2573 = vpop.f32.mrb[0].mxu0
      %v2574 = vadd.f32 0.0, %v2573
      %v2575 = vpop.f32.mrb[0].mxu0
      %2576 = vmatprep.mubr.bf16.mxu0 0
      %2577 = vmatmul.mubr.bf16.gmra.mrb[0].mxu0 %v2489
      %v2578 = vpop.f32.mrb[0].mxu0
      %v2579 = vadd.f32 0.0, %v2578
      %v2580 = vpop.f32.mrb[0].mxu0
      %v2581 = vpop.f32.mrb[0].mxu0
      %v2582 = vadd.f32 0.0, %v2581
      %v2583 = vpop.f32.mrb[0].mxu0
      %2584 = vmatprep.mubr.bf16.mxu0 0
      %2585 = vmatmul.mubr.bf16.gmra.mrb[0].mxu0 %v2492
      %v2586 = vpop.f32.mrb[0].mxu0
      %v2587 = vadd.f32 0.0, %v2586
      %v2588 = vpop.f32.mrb[0].mxu0
      %v2589 = vpop.f32.mrb[0].mxu0
      %v2590 = vadd.f32 0.0, %v2589
      %v2591 = vpop.f32.mrb[0].mxu0
      %2592 = vmatprep.mubr.bf16.mxu0 0
      %2593 = vmatmul.mubr.bf16.gmra.mrb[0].mxu0 %v2495
      %v2594 = vpop.f32.mrb[0].mxu0
      %v2595 = vadd.f32 0.0, %v2594
      %v2596 = vpop.f32.mrb[0].mxu0
      %v2597 = vpop.f32.mrb[0].mxu0
      %v2598 = vadd.f32 0.0, %v2597
      %v2599 = vpop.f32.mrb[0].mxu0
      %2600 = vmatprep.mubr.bf16.mxu0 0
      %2601 = vmatmul.mubr.bf16.gmra.mrb[0].mxu0 %v2498
      %v2602 = vpop.f32.mrb[0].mxu0
      %v2603 = vadd.f32 0.0, %v2602
      %v2604 = vpop.f32.mrb[0].mxu0
      %v2605 = vpop.f32.mrb[0].mxu0
      %v2606 = vadd.f32 0.0, %v2605
      %v2607 = vpop.f32.mrb[0].mxu0
      %2608 = vmatprep.mubr.bf16.mxu0 0
      %2609 = vmatmul.mubr.bf16.gmra.mrb[0].mxu0 %v2501
      %v2610 = vpop.f32.mrb[0].mxu0
      %v2611 = vadd.f32 0.0, %v2610
      %v2612 = vpop.f32.mrb[0].mxu0
      %v2613 = vpop.f32.mrb[0].mxu0
      %v2614 = vadd.f32 0.0, %v2613
      %v2615 = vpop.f32.mrb[0].mxu0
      %2616 = vmatprep.mubr.bf16.mxu0 0
      %2617 = vmatmul.mubr.bf16.gmra.mrb[0].mxu0 %v2504
      %v2618 = vpop.f32.mrb[0].mxu0
      %v2619 = vadd.f32 0.0, %v2618
      %v2620 = vpop.f32.mrb[0].mxu0
      %v2621 = vpop.f32.mrb[0].mxu0
      %v2622 = vadd.f32 0.0, %v2621
      %v2623 = vpop.f32.mrb[0].mxu0
      %2624 = vmatprep.mubr.bf16.mxu0 0
      %2625 = vmatmul.mubr.bf16.gmra.mrb[0].mxu0 %v2507
      %v2626 = vpop.f32.mrb[0].mxu0
      %v2627 = vadd.f32 0.0, %v2626
      %v2628 = vpop.f32.mrb[0].mxu0
      %v2629 = vpop.f32.mrb[0].mxu0
      %v2630 = vadd.f32 0.0, %v2629
      %v2631 = vpop.f32.mrb[0].mxu0
      %2632 = vmatprep.mubr.bf16.mxu0 0
      %2633 = vmatmul.mubr.bf16.gmra.mrb[0].mxu0 %v2510
      %v2634 = vpop.f32.mrb[0].mxu0
      %v2635 = vadd.f32 0.0, %v2634
      %v2636 = vpop.f32.mrb[0].mxu0
      %v2637 = vpop.f32.mrb[0].mxu0
      %v2638 = vadd.f32 0.0, %v2637
      %v2639 = vpop.f32.mrb[0].mxu0
      %2640 = vmatprep.mubr.bf16.mxu0 0
      %2641 = vmatmul.mubr.bf16.gmra.mrb[0].mxu0 %v2513
      %v2642 = vpop.f32.mrb[0].mxu0
      %v2643 = vadd.f32 0.0, %v2642
      %v2644 = vpop.f32.mrb[0].mxu0
      %v2645 = vpop.f32.mrb[0].mxu0
      %v2646 = vadd.f32 0.0, %v2645
      %v2647 = vpop.f32.mrb[0].mxu0
      %2648 = vmatprep.mubr.bf16.mxu0 0
      %2649 = vmatmul.mubr.bf16.gmra.mrb[0].mxu0 %v2516
      %v2650 = vpop.f32.mrb[0].mxu0
      %v2651 = vadd.f32 0.0, %v2650
      %v2652 = vpop.f32.mrb[0].mxu0
      %v2653 = vpop.f32.mrb[0].mxu0
      %v2654 = vadd.f32 0.0, %v2653
      %v2655 = vpop.f32.mrb[0].mxu0
      %2656 = vmatprep.mubr.bf16.mxu0 0
      %2657 = vmatmul.mubr.bf16.gmra.mrb[0].mxu0 %v2519
      %v2658 = vpop.f32.mrb[0].mxu0
      %v2659 = vadd.f32 0.0, %v2658
      %v2660 = vpop.f32.mrb[0].mxu0
      %v2661 = vpop.f32.mrb[0].mxu0
      %v2662 = vadd.f32 0.0, %v2661
      %v2663 = vpop.f32.mrb[0].mxu0
      %2664 = vmatprep.mubr.bf16.mxu0 0
      %2665 = vmatmul.mubr.bf16.gmra.mrb[0].mxu0 %v2522
      %v2666 = vpop.f32.mrb[0].mxu0
      %v2667 = vadd.f32 0.0, %v2666
      %v2668 = vpop.f32.mrb[0].mxu0
      %v2669 = vpop.f32.mrb[0].mxu0
      %v2670 = vadd.f32 0.0, %v2669
      %v2671 = vpop.f32.mrb[0].mxu0
      %2672 = vmatprep.mubr.bf16.mxu0 0
      %2673 = vmatmul.mubr.bf16.gmra.mrb[0].mxu0 %v2525
      %v2674 = vpop.f32.mrb[0].mxu0
      %v2675 = vadd.f32 0.0, %v2674
      %v2676 = vpop.f32.mrb[0].mxu0
      %v2677 = vpop.f32.mrb[0].mxu0
      %v2678 = vadd.f32 0.0, %v2677
      %v2679 = vpop.f32.mrb[0].mxu0
      %2680 = vmatprep.mubr.bf16.mxu0 0
      %2681 = vmatmul.mubr.bf16.gmra.mrb[0].mxu0 %v2528
      %v2682 = vpop.f32.mrb[0].mxu0
      %v2683 = vadd.f32 0.0, %v2682
      %v2684 = vpop.f32.mrb[0].mxu0
      %v2685 = vpop.f32.mrb[0].mxu0
      %v2686 = vadd.f32 0.0, %v2685
      %v2687 = vpop.f32.mrb[0].mxu0
      %2688 = vmatprep.mubr.bf16.mxu0 0
      %2689 = vmatmul.mubr.bf16.gmra.mrb[0].mxu0 %v2531
      %v2690 = vpop.f32.mrb[0].mxu0
      %v2691 = vadd.f32 0.0, %v2690
      %v2692 = vpop.f32.mrb[0].mxu0
      %v2693 = vpop.f32.mrb[0].mxu0
      %v2694 = vadd.f32 0.0, %v2693
      %v2695 = vpop.f32.mrb[0].mxu0
      %2696 = vdwg.mxu0
      %v2697 = vadd.f32 %v1970, %v2571
      %v2698 = vadd.f32 %v1971, %v2574
      %v2699 = vadd.f32 %v1972, %v2579
      %v2700 = vadd.f32 %v1973, %v2582
      %v2701 = vadd.f32 %v1974, %v2587
      %v2702 = vadd.f32 %v1975, %v2590
      %v2703 = vadd.f32 %v1976, %v2595
      %v2704 = vadd.f32 %v1977, %v2598
      %v2705 = vadd.f32 %v1978, %v2603
      %v2706 = vadd.f32 %v1979, %v2606
      %v2707 = vadd.f32 %v1980, %v2611
      %v2708 = vadd.f32 %v1981, %v2614
      %v2709 = vadd.f32 %v1982, %v2619
      %v2710 = vadd.f32 %v1983, %v2622
      %v2711 = vadd.f32 %v1984, %v2627
      %v2712 = vadd.f32 %v1985, %v2630
      %v2713 = vadd.f32 %v1986, %v2635
      %v2714 = vadd.f32 %v1987, %v2638
      %v2715 = vadd.f32 %v1988, %v2643
      %v2716 = vadd.f32 %v1989, %v2646
      %v2717 = vadd.f32 %v1990, %v2651
      %v2718 = vadd.f32 %v1991, %v2654
      %v2719 = vadd.f32 %v1992, %v2659
      %v2720 = vadd.f32 %v1993, %v2662
      %v2721 = vadd.f32 %v1994, %v2667
      %v2722 = vadd.f32 %v1995, %v2670
      %v2723 = vadd.f32 %v1996, %v2675
      %v2724 = vadd.f32 %v1997, %v2678
      %v2725 = vadd.f32 %v1998, %v2683
      %v2726 = vadd.f32 %v1999, %v2686
      %v2727 = vadd.f32 %v2000, %v2691
      %v2728 = vadd.f32 %v2001, %v2694
      %v2729 = vld [vmem:[%s2002] sm:$0xe]
      %v2730 = vld [vmem:[%s2002 + $0xc] sm:$0xe]
      %v2731 = vld [vmem:[%s2002 + $0x18] sm:$0xe]
      %v2732 = vld [vmem:[%s2002 + $0x24] sm:$0xe]
      %v2733 = vld [vmem:[%s2002 + $0x30] sm:$0xe]
      %v2734 = vld [vmem:[%s2002 + $0x3c] sm:$0xe]
      %v2735 = vld [vmem:[%s2002 + $0x48] sm:$0xe]
      %v2736 = vld [vmem:[%s2002 + $0x54] sm:$0xe]
      %v2737 = vld [vmem:[%s2002 + $0x60] sm:$0xe]
      %v2738 = vld [vmem:[%s2002 + $0x6c] sm:$0xe]
      %v2739 = vld [vmem:[%s2002 + $0x78] sm:$0xe]
      %v2740 = vld [vmem:[%s2002 + $0x84] sm:$0xe]
      %v2741 = vld [vmem:[%s2002 + $0x90] sm:$0xe]
      %v2742 = vld [vmem:[%s2002 + $0x9c] sm:$0xe]
      %v2743 = vld [vmem:[%s2002 + $0xa8] sm:$0xe]
      %v2744 = vld [vmem:[%s2002 + $0xb4] sm:$0xe]
      %v2793 = vrot.slane %v2729, 5
      %v2794 = vrot.slane %v2793, 4
      %v2795 = vrot.slane %v2004, 5
      %v2796 = vsel %vm684, %v2794, %v2795
      %v2797 = vrot.slane %v2795, 4
      %v2798 = vrot.slane %v2005, 5
      %v2799 = vsel %vm684, %v2797, %v2798
      %v2800 = vrot.slane %v2730, 5
      %v2801 = vrot.slane %v2800, 4
      %v2802 = vrot.slane %v2007, 5
      %v2803 = vsel %vm684, %v2801, %v2802
      %v2804 = vrot.slane %v2802, 4
      %v2805 = vrot.slane %v2008, 5
      %v2806 = vsel %vm684, %v2804, %v2805
      %v2807 = vrot.slane %v2731, 5
      %v2808 = vrot.slane %v2807, 4
      %v2809 = vrot.slane %v2010, 5
      %v2810 = vsel %vm684, %v2808, %v2809
      %v2811 = vrot.slane %v2809, 4
      %v2812 = vrot.slane %v2011, 5
      %v2813 = vsel %vm684, %v2811, %v2812
      %v2814 = vrot.slane %v2732, 5
      %v2815 = vrot.slane %v2814, 4
      %v2816 = vrot.slane %v2013, 5
      %v2817 = vsel %vm684, %v2815, %v2816
      %v2818 = vrot.slane %v2816, 4
      %v2819 = vrot.slane %v2014, 5
      %v2820 = vsel %vm684, %v2818, %v2819
      %v2821 = vrot.slane %v2733, 5
      %v2822 = vrot.slane %v2821, 4
      %v2823 = vrot.slane %v2016, 5
      %v2824 = vsel %vm684, %v2822, %v2823
      %v2825 = vrot.slane %v2823, 4
      %v2826 = vrot.slane %v2017, 5
      %v2827 = vsel %vm684, %v2825, %v2826
      %v2828 = vrot.slane %v2734, 5
      %v2829 = vrot.slane %v2828, 4
      %v2830 = vrot.slane %v2019, 5
      %v2831 = vsel %vm684, %v2829, %v2830
      %v2832 = vrot.slane %v2830, 4
      %v2833 = vrot.slane %v2020, 5
      %v2834 = vsel %vm684, %v2832, %v2833
      %v2835 = vrot.slane %v2735, 5
      %v2836 = vrot.slane %v2835, 4
      %v2837 = vrot.slane %v2022, 5
      %v2838 = vsel %vm684, %v2836, %v2837
      %v2839 = vrot.slane %v2837, 4
      %v2840 = vrot.slane %v2023, 5
      %v2841 = vsel %vm684, %v2839, %v2840
      %v2842 = vrot.slane %v2736, 5
      %v2843 = vrot.slane %v2842, 4
      %v2844 = vrot.slane %v2025, 5
      %v2845 = vsel %vm684, %v2843, %v2844
      %v2846 = vrot.slane %v2844, 4
      %v2847 = vrot.slane %v2026, 5
      %v2848 = vsel %vm684, %v2846, %v2847
      %v2849 = vrot.slane %v2737, 5
      %v2850 = vrot.slane %v2849, 4
      %v2851 = vrot.slane %v2028, 5
      %v2852 = vsel %vm684, %v2850, %v2851
      %v2853 = vrot.slane %v2851, 4
      %v2854 = vrot.slane %v2029, 5
      %v2855 = vsel %vm684, %v2853, %v2854
      %v2856 = vrot.slane %v2738, 5
      %v2857 = vrot.slane %v2856, 4
      %v2858 = vrot.slane %v2031, 5
      %v2859 = vsel %vm684, %v2857, %v2858
      %v2860 = vrot.slane %v2858, 4
      %v2861 = vrot.slane %v2032, 5
      %v2862 = vsel %vm684, %v2860, %v2861
      %v2863 = vrot.slane %v2739, 5
      %v2864 = vrot.slane %v2863, 4
      %v2865 = vrot.slane %v2034, 5
      %v2866 = vsel %vm684, %v2864, %v2865
      %v2867 = vrot.slane %v2865, 4
      %v2868 = vrot.slane %v2035, 5
      %v2869 = vsel %vm684, %v2867, %v2868
      %v2870 = vrot.slane %v2740, 5
      %v2871 = vrot.slane %v2870, 4
      %v2872 = vrot.slane %v2037, 5
      %v2873 = vsel %vm684, %v2871, %v2872
      %v2874 = vrot.slane %v2872, 4
      %v2875 = vrot.slane %v2038, 5
      %v2876 = vsel %vm684, %v2874, %v2875
      %v2877 = vrot.slane %v2741, 5
      %v2878 = vrot.slane %v2877, 4
      %v2879 = vrot.slane %v2040, 5
      %v2880 = vsel %vm684, %v2878, %v2879
      %v2881 = vrot.slane %v2879, 4
      %v2882 = vrot.slane %v2041, 5
      %v2883 = vsel %vm684, %v2881, %v2882
      %v2884 = vrot.slane %v2742, 5
      %v2885 = vrot.slane %v2884, 4
      %v2886 = vrot.slane %v2043, 5
      %v2887 = vsel %vm684, %v2885, %v2886
      %v2888 = vrot.slane %v2886, 4
      %v2889 = vrot.slane %v2044, 5
      %v2890 = vsel %vm684, %v2888, %v2889
      %v2891 = vrot.slane %v2743, 5
      %v2892 = vrot.slane %v2891, 4
      %v2893 = vrot.slane %v2046, 5
      %v2894 = vsel %vm684, %v2892, %v2893
      %v2895 = vrot.slane %v2893, 4
      %v2896 = vrot.slane %v2047, 5
      %v2897 = vsel %vm684, %v2895, %v2896
      %v2898 = vrot.slane %v2744, 5
      %v2899 = vrot.slane %v2898, 4
      %v2900 = vrot.slane %v2049, 5
      %v2901 = vsel %vm684, %v2899, %v2900
      %v2902 = vrot.slane %v2900, 4
      %v2903 = vrot.slane %v2050, 5
      %v2904 = vsel %vm684, %v2902, %v2903
      %s2905 = scalar_lea.vmem %s1, 16
      %v2906 = vld [vmem:[%s2905] sm:$0xf]
      %v2907 = vunpack.c.l.b16 %v2796
      %v2908 = vunpack.c.l.b16 %v2799
      %v2909 = vunpack.c.l.b16 %v2803
      %v2910 = vunpack.c.l.b16 %v2806
      %v2911 = vunpack.c.l.b16 %v2810
      %v2912 = vunpack.c.l.b16 %v2813
      %v2913 = vunpack.c.l.b16 %v2817
      %v2914 = vunpack.c.l.b16 %v2820
      %v2915 = vunpack.c.l.b16 %v2824
      %v2916 = vunpack.c.l.b16 %v2827
      %v2917 = vunpack.c.l.b16 %v2831
      %v2918 = vunpack.c.l.b16 %v2834
      %v2919 = vunpack.c.l.b16 %v2838
      %v2920 = vunpack.c.l.b16 %v2841
      %v2921 = vunpack.c.l.b16 %v2845
      %v2922 = vunpack.c.l.b16 %v2848
      %v2923 = vunpack.c.l.b16 %v2852
      %v2924 = vunpack.c.l.b16 %v2855
      %v2925 = vunpack.c.l.b16 %v2859
      %v2926 = vunpack.c.l.b16 %v2862
      %v2927 = vunpack.c.l.b16 %v2866
      %v2928 = vunpack.c.l.b16 %v2869
      %v2929 = vunpack.c.l.b16 %v2873
      %v2930 = vunpack.c.l.b16 %v2876
      %v2931 = vunpack.c.l.b16 %v2880
      %v2932 = vunpack.c.l.b16 %v2883
      %v2933 = vunpack.c.l.b16 %v2887
      %v2934 = vunpack.c.l.b16 %v2890
      %v2935 = vunpack.c.l.b16 %v2894
      %v2936 = vunpack.c.l.b16 %v2897
      %v2937 = vunpack.c.l.b16 %v2901
      %v2938 = vunpack.c.l.b16 %v2904
      %v2939 = vpack.c.b16 %v2908, %v2907
      %v2940 = vpack.c.b16 %v2910, %v2909
      %v2941 = vpack.c.b16 %v2912, %v2911
      %v2942 = vpack.c.b16 %v2914, %v2913
      %v2943 = vpack.c.b16 %v2916, %v2915
      %v2944 = vpack.c.b16 %v2918, %v2917
      %v2945 = vpack.c.b16 %v2920, %v2919
      %v2946 = vpack.c.b16 %v2922, %v2921
      %v2947 = vpack.c.b16 %v2924, %v2923
      %v2948 = vpack.c.b16 %v2926, %v2925
      %v2949 = vpack.c.b16 %v2928, %v2927
      %v2950 = vpack.c.b16 %v2930, %v2929
      %v2951 = vpack.c.b16 %v2932, %v2931
      %v2952 = vpack.c.b16 %v2934, %v2933
      %v2953 = vpack.c.b16 %v2936, %v2935
      %v2954 = vpack.c.b16 %v2938, %v2937
      %v2956 = vsel %vm847, %v2939, 0
      %v2959 = vsel %vm847, %v2940, 0
      %v2962 = vsel %vm847, %v2941, 0
      %v2965 = vsel %vm847, %v2942, 0
      %v2968 = vsel %vm847, %v2943, 0
      %v2971 = vsel %vm847, %v2944, 0
      %v2974 = vsel %vm847, %v2945, 0
      %v2977 = vsel %vm847, %v2946, 0
      %v2980 = vsel %vm847, %v2947, 0
      %v2983 = vsel %vm847, %v2948, 0
      %v2986 = vsel %vm847, %v2949, 0
      %v2989 = vsel %vm847, %v2950, 0
      %v2992 = vsel %vm847, %v2951, 0
      %v2995 = vsel %vm847, %v2952, 0
      %v2998 = vsel %vm847, %v2953, 0
      %v3001 = vsel %vm847, %v2954, 0
      %v3004 = vsel %vm896, %v2906, 0
      %3006 = vmatprep.subr.bf16.mxu0 0
      %3007 = vmatpush1.bf16.msra.mxu0 %v3004
      %3008 = vmatprep.subr.bf16.mxu0 0
      %3009 = vmatpush1.bf16.msra.mxu0 0
      %3010 = vmatprep.subr.bf16.mxu0 0
      %3011 = vmatpush1.bf16.msra.mxu0 0
      %3012 = vmatprep.subr.bf16.mxu0 0
      %3013 = vmatpush1.bf16.msra.mxu0 0
      %3014 = vmatprep.subr.bf16.mxu0 0
      %3015 = vmatpush1.bf16.msra.mxu0 0
      %3016 = vmatprep.subr.bf16.mxu0 0
      %3017 = vmatpush1.bf16.msra.mxu0 0
      %3018 = vmatprep.subr.bf16.mxu0 0
      %3019 = vmatpush1.bf16.msra.mxu0 0
      %3020 = vmatprep.subr.bf16.mxu0 0
      %3021 = vmatpush1.bf16.msra.mxu0 0
      %3022 = vmatprep.subr.bf16.mxu0 0
      %3023 = vmatpush1.bf16.msra.mxu0 0
      %3024 = vmatprep.subr.bf16.mxu0 0
      %3025 = vmatpush1.bf16.msra.mxu0 0
      %3026 = vmatprep.subr.bf16.mxu0 0
      %3027 = vmatpush1.bf16.msra.mxu0 0
      %3028 = vmatprep.subr.bf16.mxu0 0
      %3029 = vmatpush1.bf16.msra.mxu0 0
      %3030 = vmatprep.subr.bf16.mxu0 0
      %3031 = vmatpush1.bf16.msra.mxu0 0
      %3032 = vmatprep.subr.bf16.mxu0 0
      %3033 = vmatpush1.bf16.msra.mxu0 0
      %3034 = vmatprep.subr.bf16.mxu0 0
      %3035 = vmatpush1.bf16.msra.mxu0 0
      %3036 = vmatprep.subr.bf16.mxu0 0
      %3037 = vmatpush1.bf16.msra.mxu0 0
      %3038 = vmatprep.mubr.bf16.mxu0 0
      %3039 = vmatmul.mubr.bf16.gmra.mrb[0].mxu0 %v2956
      %v3040 = vpop.f32.mrb[0].mxu0
      %v3041 = vadd.f32 0.0, %v3040
      %v3042 = vpop.f32.mrb[0].mxu0
      %v3043 = vpop.f32.mrb[0].mxu0
      %v3044 = vadd.f32 0.0, %v3043
      %v3045 = vpop.f32.mrb[0].mxu0
      %3046 = vmatprep.mubr.bf16.mxu0 0
      %3047 = vmatmul.mubr.bf16.gmra.mrb[0].mxu0 %v2959
      %v3048 = vpop.f32.mrb[0].mxu0
      %v3049 = vadd.f32 0.0, %v3048
      %v3050 = vpop.f32.mrb[0].mxu0
      %v3051 = vpop.f32.mrb[0].mxu0
      %v3052 = vadd.f32 0.0, %v3051
      %v3053 = vpop.f32.mrb[0].mxu0
      %3054 = vmatprep.mubr.bf16.mxu0 0
      %3055 = vmatmul.mubr.bf16.gmra.mrb[0].mxu0 %v2962
      %v3056 = vpop.f32.mrb[0].mxu0
      %v3057 = vadd.f32 0.0, %v3056
      %v3058 = vpop.f32.mrb[0].mxu0
      %v3059 = vpop.f32.mrb[0].mxu0
      %v3060 = vadd.f32 0.0, %v3059
      %v3061 = vpop.f32.mrb[0].mxu0
      %3062 = vmatprep.mubr.bf16.mxu0 0
      %3063 = vmatmul.mubr.bf16.gmra.mrb[0].mxu0 %v2965
      %v3064 = vpop.f32.mrb[0].mxu0
      %v3065 = vadd.f32 0.0, %v3064
      %v3066 = vpop.f32.mrb[0].mxu0
      %v3067 = vpop.f32.mrb[0].mxu0
      %v3068 = vadd.f32 0.0, %v3067
      %v3069 = vpop.f32.mrb[0].mxu0
      %3070 = vmatprep.mubr.bf16.mxu0 0
      %3071 = vmatmul.mubr.bf16.gmra.mrb[0].mxu0 %v2968
      %v3072 = vpop.f32.mrb[0].mxu0
      %v3073 = vadd.f32 0.0, %v3072
      %v3074 = vpop.f32.mrb[0].mxu0
      %v3075 = vpop.f32.mrb[0].mxu0
      %v3076 = vadd.f32 0.0, %v3075
      %v3077 = vpop.f32.mrb[0].mxu0
      %3078 = vmatprep.mubr.bf16.mxu0 0
      %3079 = vmatmul.mubr.bf16.gmra.mrb[0].mxu0 %v2971
      %v3080 = vpop.f32.mrb[0].mxu0
      %v3081 = vadd.f32 0.0, %v3080
      %v3082 = vpop.f32.mrb[0].mxu0
      %v3083 = vpop.f32.mrb[0].mxu0
      %v3084 = vadd.f32 0.0, %v3083
      %v3085 = vpop.f32.mrb[0].mxu0
      %3086 = vmatprep.mubr.bf16.mxu0 0
      %3087 = vmatmul.mubr.bf16.gmra.mrb[0].mxu0 %v2974
      %v3088 = vpop.f32.mrb[0].mxu0
      %v3089 = vadd.f32 0.0, %v3088
      %v3090 = vpop.f32.mrb[0].mxu0
      %v3091 = vpop.f32.mrb[0].mxu0
      %v3092 = vadd.f32 0.0, %v3091
      %v3093 = vpop.f32.mrb[0].mxu0
      %3094 = vmatprep.mubr.bf16.mxu0 0
      %3095 = vmatmul.mubr.bf16.gmra.mrb[0].mxu0 %v2977
      %v3096 = vpop.f32.mrb[0].mxu0
      %v3097 = vadd.f32 0.0, %v3096
      %v3098 = vpop.f32.mrb[0].mxu0
      %v3099 = vpop.f32.mrb[0].mxu0
      %v3100 = vadd.f32 0.0, %v3099
      %v3101 = vpop.f32.mrb[0].mxu0
      %3102 = vmatprep.mubr.bf16.mxu0 0
      %3103 = vmatmul.mubr.bf16.gmra.mrb[0].mxu0 %v2980
      %v3104 = vpop.f32.mrb[0].mxu0
      %v3105 = vadd.f32 0.0, %v3104
      %v3106 = vpop.f32.mrb[0].mxu0
      %v3107 = vpop.f32.mrb[0].mxu0
      %v3108 = vadd.f32 0.0, %v3107
      %v3109 = vpop.f32.mrb[0].mxu0
      %3110 = vmatprep.mubr.bf16.mxu0 0
      %3111 = vmatmul.mubr.bf16.gmra.mrb[0].mxu0 %v2983
      %v3112 = vpop.f32.mrb[0].mxu0
      %v3113 = vadd.f32 0.0, %v3112
      %v3114 = vpop.f32.mrb[0].mxu0
      %v3115 = vpop.f32.mrb[0].mxu0
      %v3116 = vadd.f32 0.0, %v3115
      %v3117 = vpop.f32.mrb[0].mxu0
      %3118 = vmatprep.mubr.bf16.mxu0 0
      %3119 = vmatmul.mubr.bf16.gmra.mrb[0].mxu0 %v2986
      %v3120 = vpop.f32.mrb[0].mxu0
      %v3121 = vadd.f32 0.0, %v3120
      %v3122 = vpop.f32.mrb[0].mxu0
      %v3123 = vpop.f32.mrb[0].mxu0
      %v3124 = vadd.f32 0.0, %v3123
      %v3125 = vpop.f32.mrb[0].mxu0
      %3126 = vmatprep.mubr.bf16.mxu0 0
      %3127 = vmatmul.mubr.bf16.gmra.mrb[0].mxu0 %v2989
      %v3128 = vpop.f32.mrb[0].mxu0
      %v3129 = vadd.f32 0.0, %v3128
      %v3130 = vpop.f32.mrb[0].mxu0
      %v3131 = vpop.f32.mrb[0].mxu0
      %v3132 = vadd.f32 0.0, %v3131
      %v3133 = vpop.f32.mrb[0].mxu0
      %3134 = vmatprep.mubr.bf16.mxu0 0
      %3135 = vmatmul.mubr.bf16.gmra.mrb[0].mxu0 %v2992
      %v3136 = vpop.f32.mrb[0].mxu0
      %v3137 = vadd.f32 0.0, %v3136
      %v3138 = vpop.f32.mrb[0].mxu0
      %v3139 = vpop.f32.mrb[0].mxu0
      %v3140 = vadd.f32 0.0, %v3139
      %v3141 = vpop.f32.mrb[0].mxu0
      %3142 = vmatprep.mubr.bf16.mxu0 0
      %3143 = vmatmul.mubr.bf16.gmra.mrb[0].mxu0 %v2995
      %v3144 = vpop.f32.mrb[0].mxu0
      %v3145 = vadd.f32 0.0, %v3144
      %v3146 = vpop.f32.mrb[0].mxu0
      %v3147 = vpop.f32.mrb[0].mxu0
      %v3148 = vadd.f32 0.0, %v3147
      %v3149 = vpop.f32.mrb[0].mxu0
      %3150 = vmatprep.mubr.bf16.mxu0 0
      %3151 = vmatmul.mubr.bf16.gmra.mrb[0].mxu0 %v2998
      %v3152 = vpop.f32.mrb[0].mxu0
      %v3153 = vadd.f32 0.0, %v3152
      %v3154 = vpop.f32.mrb[0].mxu0
      %v3155 = vpop.f32.mrb[0].mxu0
      %v3156 = vadd.f32 0.0, %v3155
      %v3157 = vpop.f32.mrb[0].mxu0
      %3158 = vmatprep.mubr.bf16.mxu0 0
      %3159 = vmatmul.mubr.bf16.gmra.mrb[0].mxu0 %v3001
      %v3160 = vpop.f32.mrb[0].mxu0
      %v3161 = vadd.f32 0.0, %v3160
      %v3162 = vpop.f32.mrb[0].mxu0
      %v3163 = vpop.f32.mrb[0].mxu0
      %v3164 = vadd.f32 0.0, %v3163
      %v3165 = vpop.f32.mrb[0].mxu0
      %3166 = vdwg.mxu0
      %v3167 = vadd.f32 %v2697, %v3041
      %v3168 = vadd.f32 %v2698, %v3044
      %v3169 = vadd.f32 %v2699, %v3049
      %v3170 = vadd.f32 %v2700, %v3052
      %v3171 = vadd.f32 %v2701, %v3057
      %v3172 = vadd.f32 %v2702, %v3060
      %v3173 = vadd.f32 %v2703, %v3065
      %v3174 = vadd.f32 %v2704, %v3068
      %v3175 = vadd.f32 %v2705, %v3073
      %v3176 = vadd.f32 %v2706, %v3076
      %v3177 = vadd.f32 %v2707, %v3081
      %v3178 = vadd.f32 %v2708, %v3084
      %v3179 = vadd.f32 %v2709, %v3089
      %v3180 = vadd.f32 %v2710, %v3092
      %v3181 = vadd.f32 %v2711, %v3097
      %v3182 = vadd.f32 %v2712, %v3100
      %v3183 = vadd.f32 %v2713, %v3105
      %v3184 = vadd.f32 %v2714, %v3108
      %v3185 = vadd.f32 %v2715, %v3113
      %v3186 = vadd.f32 %v2716, %v3116
      %v3187 = vadd.f32 %v2717, %v3121
      %v3188 = vadd.f32 %v2718, %v3124
      %v3189 = vadd.f32 %v2719, %v3129
      %v3190 = vadd.f32 %v2720, %v3132
      %v3191 = vadd.f32 %v2721, %v3137
      %v3192 = vadd.f32 %v2722, %v3140
      %v3193 = vadd.f32 %v2723, %v3145
      %v3194 = vadd.f32 %v2724, %v3148
      %v3195 = vadd.f32 %v2725, %v3153
      %v3196 = vadd.f32 %v2726, %v3156
      %v3197 = vadd.f32 %v2727, %v3161
      %v3198 = vadd.f32 %v2728, %v3164
      %v3199 = vld [vmem:[%s2002 + $0x8] sm:$0x3]
      %v3200 = vld [vmem:[%s2002 + $0x14] sm:$0x3]
      %v3201 = vld [vmem:[%s2002 + $0x20] sm:$0x3]
      %v3202 = vld [vmem:[%s2002 + $0x2c] sm:$0x3]
      %v3203 = vld [vmem:[%s2002 + $0x38] sm:$0x3]
      %v3204 = vld [vmem:[%s2002 + $0x44] sm:$0x3]
      %v3205 = vld [vmem:[%s2002 + $0x50] sm:$0x3]
      %v3206 = vld [vmem:[%s2002 + $0x5c] sm:$0x3]
      %v3207 = vld [vmem:[%s2002 + $0x68] sm:$0x3]
      %v3208 = vld [vmem:[%s2002 + $0x74] sm:$0x3]
      %v3209 = vld [vmem:[%s2002 + $0x80] sm:$0x3]
      %v3210 = vld [vmem:[%s2002 + $0x8c] sm:$0x3]
      %v3211 = vld [vmem:[%s2002 + $0x98] sm:$0x3]
      %v3212 = vld [vmem:[%s2002 + $0xa4] sm:$0x3]
      %v3213 = vld [vmem:[%s2002 + $0xb0] sm:$0x3]
      %v3214 = vld [vmem:[%s2002 + $0xbc] sm:$0x3]
      %v3216 = vshrl.u32 %v2729, 16
      %v3218 = vrot.slane %v3216, 5
      %v3219 = vshll.u32 %v2729, 16
      %v3221 = vrot.slane %v3219, 6
      %v3222 = vor.u32 %v3218, %v3221
      %v3223 = vrot.slane %v3222, 4
      %v3224 = vrot.slane %v2065, 5
      %v3225 = vrot.slane %v2061, 6
      %v3226 = vor.u32 %v3224, %v3225
      %v3227 = vsel %vm1339, %v3223, %v3226
      %v3228 = vrot.slane %v3226, 4
      %v3230 = vshrl.u32 %v3199, 16
      %v3232 = vrot.slane %v3230, 5
      %v3233 = vshll.u32 %v3199, 16
      %v3235 = vrot.slane %v3233, 6
      %v3236 = vor.u32 %v3232, %v3235
      %v3237 = vsel %vm1339, %v3228, %v3236
      %v3239 = vshrl.u32 %v2730, 16
      %v3241 = vrot.slane %v3239, 5
      %v3242 = vshll.u32 %v2730, 16
      %v3244 = vrot.slane %v3242, 6
      %v3245 = vor.u32 %v3241, %v3244
      %v3246 = vrot.slane %v3245, 4
      %v3247 = vrot.slane %v2089, 5
      %v3248 = vrot.slane %v2085, 6
      %v3249 = vor.u32 %v3247, %v3248
      %v3250 = vsel %vm1339, %v3246, %v3249
      %v3251 = vrot.slane %v3249, 4
      %v3253 = vshrl.u32 %v3200, 16
      %v3255 = vrot.slane %v3253, 5
      %v3256 = vshll.u32 %v3200, 16
      %v3258 = vrot.slane %v3256, 6
      %v3259 = vor.u32 %v3255, %v3258
      %v3260 = vsel %vm1339, %v3251, %v3259
      %v3262 = vshrl.u32 %v2731, 16
      %v3264 = vrot.slane %v3262, 5
      %v3265 = vshll.u32 %v2731, 16
      %v3267 = vrot.slane %v3265, 6
      %v3268 = vor.u32 %v3264, %v3267
      %v3269 = vrot.slane %v3268, 4
      %v3270 = vrot.slane %v2113, 5
      %v3271 = vrot.slane %v2109, 6
      %v3272 = vor.u32 %v3270, %v3271
      %v3273 = vsel %vm1339, %v3269, %v3272
      %v3274 = vrot.slane %v3272, 4
      %v3276 = vshrl.u32 %v3201, 16
      %v3278 = vrot.slane %v3276, 5
      %v3279 = vshll.u32 %v3201, 16
      %v3281 = vrot.slane %v3279, 6
      %v3282 = vor.u32 %v3278, %v3281
      %v3283 = vsel %vm1339, %v3274, %v3282
      %v3285 = vshrl.u32 %v2732, 16
      %v3287 = vrot.slane %v3285, 5
      %v3288 = vshll.u32 %v2732, 16
      %v3290 = vrot.slane %v3288, 6
      %v3291 = vor.u32 %v3287, %v3290
      %v3292 = vrot.slane %v3291, 4
      %v3293 = vrot.slane %v2137, 5
      %v3294 = vrot.slane %v2133, 6
      %v3295 = vor.u32 %v3293, %v3294
      %v3296 = vsel %vm1339, %v3292, %v3295
      %v3297 = vrot.slane %v3295, 4
      %v3299 = vshrl.u32 %v3202, 16
      %v3301 = vrot.slane %v3299, 5
      %v3302 = vshll.u32 %v3202, 16
      %v3304 = vrot.slane %v3302, 6
      %v3305 = vor.u32 %v3301, %v3304
      %v3306 = vsel %vm1339, %v3297, %v3305
      %v3308 = vshrl.u32 %v2733, 16
      %v3310 = vrot.slane %v3308, 5
      %v3311 = vshll.u32 %v2733, 16
      %v3313 = vrot.slane %v3311, 6
      %v3314 = vor.u32 %v3310, %v3313
      %v3315 = vrot.slane %v3314, 4
      %v3316 = vrot.slane %v2161, 5
      %v3317 = vrot.slane %v2157, 6
      %v3318 = vor.u32 %v3316, %v3317
      %v3319 = vsel %vm1339, %v3315, %v3318
      %v3320 = vrot.slane %v3318, 4
      %v3322 = vshrl.u32 %v3203, 16
      %v3324 = vrot.slane %v3322, 5
      %v3325 = vshll.u32 %v3203, 16
      %v3327 = vrot.slane %v3325, 6
      %v3328 = vor.u32 %v3324, %v3327
      %v3329 = vsel %vm1339, %v3320, %v3328
      %v3331 = vshrl.u32 %v2734, 16
      %v3333 = vrot.slane %v3331, 5
      %v3334 = vshll.u32 %v2734, 16
      %v3336 = vrot.slane %v3334, 6
      %v3337 = vor.u32 %v3333, %v3336
      %v3338 = vrot.slane %v3337, 4
      %v3339 = vrot.slane %v2185, 5
      %v3340 = vrot.slane %v2181, 6
      %v3341 = vor.u32 %v3339, %v3340
      %v3342 = vsel %vm1339, %v3338, %v3341
      %v3343 = vrot.slane %v3341, 4
      %v3345 = vshrl.u32 %v3204, 16
      %v3347 = vrot.slane %v3345, 5
      %v3348 = vshll.u32 %v3204, 16
      %v3350 = vrot.slane %v3348, 6
      %v3351 = vor.u32 %v3347, %v3350
      %v3352 = vsel %vm1339, %v3343, %v3351
      %v3354 = vshrl.u32 %v2735, 16
      %v3356 = vrot.slane %v3354, 5
      %v3357 = vshll.u32 %v2735, 16
      %v3359 = vrot.slane %v3357, 6
      %v3360 = vor.u32 %v3356, %v3359
      %v3361 = vrot.slane %v3360, 4
      %v3362 = vrot.slane %v2209, 5
      %v3363 = vrot.slane %v2205, 6
      %v3364 = vor.u32 %v3362, %v3363
      %v3365 = vsel %vm1339, %v3361, %v3364
      %v3366 = vrot.slane %v3364, 4
      %v3368 = vshrl.u32 %v3205, 16
      %v3370 = vrot.slane %v3368, 5
      %v3371 = vshll.u32 %v3205, 16
      %v3373 = vrot.slane %v3371, 6
      %v3374 = vor.u32 %v3370, %v3373
      %v3375 = vsel %vm1339, %v3366, %v3374
      %v3377 = vshrl.u32 %v2736, 16
      %v3379 = vrot.slane %v3377, 5
      %v3380 = vshll.u32 %v2736, 16
      %v3382 = vrot.slane %v3380, 6
      %v3383 = vor.u32 %v3379, %v3382
      %v3384 = vrot.slane %v3383, 4
      %v3385 = vrot.slane %v2233, 5
      %v3386 = vrot.slane %v2229, 6
      %v3387 = vor.u32 %v3385, %v3386
      %v3388 = vsel %vm1339, %v3384, %v3387
      %v3389 = vrot.slane %v3387, 4
      %v3391 = vshrl.u32 %v3206, 16
      %v3393 = vrot.slane %v3391, 5
      %v3394 = vshll.u32 %v3206, 16
      %v3396 = vrot.slane %v3394, 6
      %v3397 = vor.u32 %v3393, %v3396
      %v3398 = vsel %vm1339, %v3389, %v3397
      %v3400 = vshrl.u32 %v2737, 16
      %v3402 = vrot.slane %v3400, 5
      %v3403 = vshll.u32 %v2737, 16
      %v3405 = vrot.slane %v3403, 6
      %v3406 = vor.u32 %v3402, %v3405
      %v3407 = vrot.slane %v3406, 4
      %v3408 = vrot.slane %v2257, 5
      %v3409 = vrot.slane %v2253, 6
      %v3410 = vor.u32 %v3408, %v3409
      %v3411 = vsel %vm1339, %v3407, %v3410
      %v3412 = vrot.slane %v3410, 4
      %v3414 = vshrl.u32 %v3207, 16
      %v3416 = vrot.slane %v3414, 5
      %v3417 = vshll.u32 %v3207, 16
      %v3419 = vrot.slane %v3417, 6
      %v3420 = vor.u32 %v3416, %v3419
      %v3421 = vsel %vm1339, %v3412, %v3420
      %v3423 = vshrl.u32 %v2738, 16
      %v3425 = vrot.slane %v3423, 5
      %v3426 = vshll.u32 %v2738, 16
      %v3428 = vrot.slane %v3426, 6
      %v3429 = vor.u32 %v3425, %v3428
      %v3430 = vrot.slane %v3429, 4
      %v3431 = vrot.slane %v2281, 5
      %v3432 = vrot.slane %v2277, 6
      %v3433 = vor.u32 %v3431, %v3432
      %v3434 = vsel %vm1339, %v3430, %v3433
      %v3435 = vrot.slane %v3433, 4
      %v3437 = vshrl.u32 %v3208, 16
      %v3439 = vrot.slane %v3437, 5
      %v3440 = vshll.u32 %v3208, 16
      %v3442 = vrot.slane %v3440, 6
      %v3443 = vor.u32 %v3439, %v3442
      %v3444 = vsel %vm1339, %v3435, %v3443
      %v3446 = vshrl.u32 %v2739, 16
      %v3448 = vrot.slane %v3446, 5
      %v3449 = vshll.u32 %v2739, 16
      %v3451 = vrot.slane %v3449, 6
      %v3452 = vor.u32 %v3448, %v3451
      %v3453 = vrot.slane %v3452, 4
      %v3454 = vrot.slane %v2305, 5
      %v3455 = vrot.slane %v2301, 6
      %v3456 = vor.u32 %v3454, %v3455
      %v3457 = vsel %vm1339, %v3453, %v3456
      %v3458 = vrot.slane %v3456, 4
      %v3460 = vshrl.u32 %v3209, 16
      %v3462 = vrot.slane %v3460, 5
      %v3463 = vshll.u32 %v3209, 16
      %v3465 = vrot.slane %v3463, 6
      %v3466 = vor.u32 %v3462, %v3465
      %v3467 = vsel %vm1339, %v3458, %v3466
      %v3469 = vshrl.u32 %v2740, 16
      %v3471 = vrot.slane %v3469, 5
      %v3472 = vshll.u32 %v2740, 16
      %v3474 = vrot.slane %v3472, 6
      %v3475 = vor.u32 %v3471, %v3474
      %v3476 = vrot.slane %v3475, 4
      %v3477 = vrot.slane %v2329, 5
      %v3478 = vrot.slane %v2325, 6
      %v3479 = vor.u32 %v3477, %v3478
      %v3480 = vsel %vm1339, %v3476, %v3479
      %v3481 = vrot.slane %v3479, 4
      %v3483 = vshrl.u32 %v3210, 16
      %v3485 = vrot.slane %v3483, 5
      %v3486 = vshll.u32 %v3210, 16
      %v3488 = vrot.slane %v3486, 6
      %v3489 = vor.u32 %v3485, %v3488
      %v3490 = vsel %vm1339, %v3481, %v3489
      %v3492 = vshrl.u32 %v2741, 16
      %v3494 = vrot.slane %v3492, 5
      %v3495 = vshll.u32 %v2741, 16
      %v3497 = vrot.slane %v3495, 6
      %v3498 = vor.u32 %v3494, %v3497
      %v3499 = vrot.slane %v3498, 4
      %v3500 = vrot.slane %v2353, 5
      %v3501 = vrot.slane %v2349, 6
      %v3502 = vor.u32 %v3500, %v3501
      %v3503 = vsel %vm1339, %v3499, %v3502
      %v3504 = vrot.slane %v3502, 4
      %v3506 = vshrl.u32 %v3211, 16
      %v3508 = vrot.slane %v3506, 5
      %v3509 = vshll.u32 %v3211, 16
      %v3511 = vrot.slane %v3509, 6
      %v3512 = vor.u32 %v3508, %v3511
      %v3513 = vsel %vm1339, %v3504, %v3512
      %v3515 = vshrl.u32 %v2742, 16
      %v3517 = vrot.slane %v3515, 5
      %v3518 = vshll.u32 %v2742, 16
      %v3520 = vrot.slane %v3518, 6
      %v3521 = vor.u32 %v3517, %v3520
      %v3522 = vrot.slane %v3521, 4
      %v3523 = vrot.slane %v2377, 5
      %v3524 = vrot.slane %v2373, 6
      %v3525 = vor.u32 %v3523, %v3524
      %v3526 = vsel %vm1339, %v3522, %v3525
      %v3527 = vrot.slane %v3525, 4
      %v3529 = vshrl.u32 %v3212, 16
      %v3531 = vrot.slane %v3529, 5
      %v3532 = vshll.u32 %v3212, 16
      %v3534 = vrot.slane %v3532, 6
      %v3535 = vor.u32 %v3531, %v3534
      %v3536 = vsel %vm1339, %v3527, %v3535
      %v3538 = vshrl.u32 %v2743, 16
      %v3540 = vrot.slane %v3538, 5
      %v3541 = vshll.u32 %v2743, 16
      %v3543 = vrot.slane %v3541, 6
      %v3544 = vor.u32 %v3540, %v3543
      %v3545 = vrot.slane %v3544, 4
      %v3546 = vrot.slane %v2401, 5
      %v3547 = vrot.slane %v2397, 6
      %v3548 = vor.u32 %v3546, %v3547
      %v3549 = vsel %vm1339, %v3545, %v3548
      %v3550 = vrot.slane %v3548, 4
      %v3552 = vshrl.u32 %v3213, 16
      %v3554 = vrot.slane %v3552, 5
      %v3555 = vshll.u32 %v3213, 16
      %v3557 = vrot.slane %v3555, 6
      %v3558 = vor.u32 %v3554, %v3557
      %v3559 = vsel %vm1339, %v3550, %v3558
      %v3561 = vshrl.u32 %v2744, 16
      %v3563 = vrot.slane %v3561, 5
      %v3564 = vshll.u32 %v2744, 16
      %v3566 = vrot.slane %v3564, 6
      %v3567 = vor.u32 %v3563, %v3566
      %v3568 = vrot.slane %v3567, 4
      %v3569 = vrot.slane %v2425, 5
      %v3570 = vrot.slane %v2421, 6
      %v3571 = vor.u32 %v3569, %v3570
      %v3572 = vsel %vm1339, %v3568, %v3571
      %v3573 = vrot.slane %v3571, 4
      %v3575 = vshrl.u32 %v3214, 16
      %v3577 = vrot.slane %v3575, 5
      %v3578 = vshll.u32 %v3214, 16
      %v3580 = vrot.slane %v3578, 6
      %v3581 = vor.u32 %v3577, %v3580
      %v3582 = vsel %vm1339, %v3573, %v3581
      %s3583 = scalar_lea.vmem %s1, 20
      %v3584 = vld [vmem:[%s3583] sm:$0xf]
      %v3585 = vunpack.c.l.b16 %v3227
      %v3586 = vunpack.c.l.b16 %v3237
      %v3587 = vunpack.c.l.b16 %v3250
      %v3588 = vunpack.c.l.b16 %v3260
      %v3589 = vunpack.c.l.b16 %v3273
      %v3590 = vunpack.c.l.b16 %v3283
      %v3591 = vunpack.c.l.b16 %v3296
      %v3592 = vunpack.c.l.b16 %v3306
      %v3593 = vunpack.c.l.b16 %v3319
      %v3594 = vunpack.c.l.b16 %v3329
      %v3595 = vunpack.c.l.b16 %v3342
      %v3596 = vunpack.c.l.b16 %v3352
      %v3597 = vunpack.c.l.b16 %v3365
      %v3598 = vunpack.c.l.b16 %v3375
      %v3599 = vunpack.c.l.b16 %v3388
      %v3600 = vunpack.c.l.b16 %v3398
      %v3601 = vunpack.c.l.b16 %v3411
      %v3602 = vunpack.c.l.b16 %v3421
      %v3603 = vunpack.c.l.b16 %v3434
      %v3604 = vunpack.c.l.b16 %v3444
      %v3605 = vunpack.c.l.b16 %v3457
      %v3606 = vunpack.c.l.b16 %v3467
      %v3607 = vunpack.c.l.b16 %v3480
      %v3608 = vunpack.c.l.b16 %v3490
      %v3609 = vunpack.c.l.b16 %v3503
      %v3610 = vunpack.c.l.b16 %v3513
      %v3611 = vunpack.c.l.b16 %v3526
      %v3612 = vunpack.c.l.b16 %v3536
      %v3613 = vunpack.c.l.b16 %v3549
      %v3614 = vunpack.c.l.b16 %v3559
      %v3615 = vunpack.c.l.b16 %v3572
      %v3616 = vunpack.c.l.b16 %v3582
      %v3617 = vpack.c.b16 %v3586, %v3585
      %v3618 = vpack.c.b16 %v3588, %v3587
      %v3619 = vpack.c.b16 %v3590, %v3589
      %v3620 = vpack.c.b16 %v3592, %v3591
      %v3621 = vpack.c.b16 %v3594, %v3593
      %v3622 = vpack.c.b16 %v3596, %v3595
      %v3623 = vpack.c.b16 %v3598, %v3597
      %v3624 = vpack.c.b16 %v3600, %v3599
      %v3625 = vpack.c.b16 %v3602, %v3601
      %v3626 = vpack.c.b16 %v3604, %v3603
      %v3627 = vpack.c.b16 %v3606, %v3605
      %v3628 = vpack.c.b16 %v3608, %v3607
      %v3629 = vpack.c.b16 %v3610, %v3609
      %v3630 = vpack.c.b16 %v3612, %v3611
      %v3631 = vpack.c.b16 %v3614, %v3613
      %v3632 = vpack.c.b16 %v3616, %v3615
      %v3634 = vsel %vm847, %v3617, 0
      %v3637 = vsel %vm847, %v3618, 0
      %v3640 = vsel %vm847, %v3619, 0
      %v3643 = vsel %vm847, %v3620, 0
      %v3646 = vsel %vm847, %v3621, 0
      %v3649 = vsel %vm847, %v3622, 0
      %v3652 = vsel %vm847, %v3623, 0
      %v3655 = vsel %vm847, %v3624, 0
      %v3658 = vsel %vm847, %v3625, 0
      %v3661 = vsel %vm847, %v3626, 0
      %v3664 = vsel %vm847, %v3627, 0
      %v3667 = vsel %vm847, %v3628, 0
      %v3670 = vsel %vm847, %v3629, 0
      %v3673 = vsel %vm847, %v3630, 0
      %v3676 = vsel %vm847, %v3631, 0
      %v3679 = vsel %vm847, %v3632, 0
      %v3682 = vsel %vm896, %v3584, 0
      %3684 = vmatprep.subr.bf16.mxu0 0
      %3685 = vmatpush1.bf16.msra.mxu0 %v3682
      %3686 = vmatprep.subr.bf16.mxu0 0
      %3687 = vmatpush1.bf16.msra.mxu0 0
      %3688 = vmatprep.subr.bf16.mxu0 0
      %3689 = vmatpush1.bf16.msra.mxu0 0
      %3690 = vmatprep.subr.bf16.mxu0 0
      %3691 = vmatpush1.bf16.msra.mxu0 0
      %3692 = vmatprep.subr.bf16.mxu0 0
      %3693 = vmatpush1.bf16.msra.mxu0 0
      %3694 = vmatprep.subr.bf16.mxu0 0
      %3695 = vmatpush1.bf16.msra.mxu0 0
      %3696 = vmatprep.subr.bf16.mxu0 0
      %3697 = vmatpush1.bf16.msra.mxu0 0
      %3698 = vmatprep.subr.bf16.mxu0 0
      %3699 = vmatpush1.bf16.msra.mxu0 0
      %3700 = vmatprep.subr.bf16.mxu0 0
      %3701 = vmatpush1.bf16.msra.mxu0 0
      %3702 = vmatprep.subr.bf16.mxu0 0
      %3703 = vmatpush1.bf16.msra.mxu0 0
      %3704 = vmatprep.subr.bf16.mxu0 0
      %3705 = vmatpush1.bf16.msra.mxu0 0
      %3706 = vmatprep.subr.bf16.mxu0 0
      %3707 = vmatpush1.bf16.msra.mxu0 0
      %3708 = vmatprep.subr.bf16.mxu0 0
      %3709 = vmatpush1.bf16.msra.mxu0 0
      %3710 = vmatprep.subr.bf16.mxu0 0
      %3711 = vmatpush1.bf16.msra.mxu0 0
      %3712 = vmatprep.subr.bf16.mxu0 0
      %3713 = vmatpush1.bf16.msra.mxu0 0
      %3714 = vmatprep.subr.bf16.mxu0 0
      %3715 = vmatpush1.bf16.msra.mxu0 0
      %3716 = vmatprep.mubr.bf16.mxu0 0
      %3717 = vmatmul.mubr.bf16.gmra.mrb[0].mxu0 %v3634
      %v3718 = vpop.f32.mrb[0].mxu0
      %v3719 = vadd.f32 0.0, %v3718
      %v3720 = vpop.f32.mrb[0].mxu0
      %v3721 = vpop.f32.mrb[0].mxu0
      %v3722 = vadd.f32 0.0, %v3721
      %v3723 = vpop.f32.mrb[0].mxu0
      %3724 = vmatprep.mubr.bf16.mxu0 0
      %3725 = vmatmul.mubr.bf16.gmra.mrb[0].mxu0 %v3637
      %v3726 = vpop.f32.mrb[0].mxu0
      %v3727 = vadd.f32 0.0, %v3726
      %v3728 = vpop.f32.mrb[0].mxu0
      %v3729 = vpop.f32.mrb[0].mxu0
      %v3730 = vadd.f32 0.0, %v3729
      %v3731 = vpop.f32.mrb[0].mxu0
      %3732 = vmatprep.mubr.bf16.mxu0 0
      %3733 = vmatmul.mubr.bf16.gmra.mrb[0].mxu0 %v3640
      %v3734 = vpop.f32.mrb[0].mxu0
      %v3735 = vadd.f32 0.0, %v3734
      %v3736 = vpop.f32.mrb[0].mxu0
      %v3737 = vpop.f32.mrb[0].mxu0
      %v3738 = vadd.f32 0.0, %v3737
      %v3739 = vpop.f32.mrb[0].mxu0
      %3740 = vmatprep.mubr.bf16.mxu0 0
      %3741 = vmatmul.mubr.bf16.gmra.mrb[0].mxu0 %v3643
      %v3742 = vpop.f32.mrb[0].mxu0
      %v3743 = vadd.f32 0.0, %v3742
      %v3744 = vpop.f32.mrb[0].mxu0
      %v3745 = vpop.f32.mrb[0].mxu0
      %v3746 = vadd.f32 0.0, %v3745
      %v3747 = vpop.f32.mrb[0].mxu0
      %3748 = vmatprep.mubr.bf16.mxu0 0
      %3749 = vmatmul.mubr.bf16.gmra.mrb[0].mxu0 %v3646
      %v3750 = vpop.f32.mrb[0].mxu0
      %v3751 = vadd.f32 0.0, %v3750
      %v3752 = vpop.f32.mrb[0].mxu0
      %v3753 = vpop.f32.mrb[0].mxu0
      %v3754 = vadd.f32 0.0, %v3753
      %v3755 = vpop.f32.mrb[0].mxu0
      %3756 = vmatprep.mubr.bf16.mxu0 0
      %3757 = vmatmul.mubr.bf16.gmra.mrb[0].mxu0 %v3649
      %v3758 = vpop.f32.mrb[0].mxu0
      %v3759 = vadd.f32 0.0, %v3758
      %v3760 = vpop.f32.mrb[0].mxu0
      %v3761 = vpop.f32.mrb[0].mxu0
      %v3762 = vadd.f32 0.0, %v3761
      %v3763 = vpop.f32.mrb[0].mxu0
      %3764 = vmatprep.mubr.bf16.mxu0 0
      %3765 = vmatmul.mubr.bf16.gmra.mrb[0].mxu0 %v3652
      %v3766 = vpop.f32.mrb[0].mxu0
      %v3767 = vadd.f32 0.0, %v3766
      %v3768 = vpop.f32.mrb[0].mxu0
      %v3769 = vpop.f32.mrb[0].mxu0
      %v3770 = vadd.f32 0.0, %v3769
      %v3771 = vpop.f32.mrb[0].mxu0
      %3772 = vmatprep.mubr.bf16.mxu0 0
      %3773 = vmatmul.mubr.bf16.gmra.mrb[0].mxu0 %v3655
      %v3774 = vpop.f32.mrb[0].mxu0
      %v3775 = vadd.f32 0.0, %v3774
      %v3776 = vpop.f32.mrb[0].mxu0
      %v3777 = vpop.f32.mrb[0].mxu0
      %v3778 = vadd.f32 0.0, %v3777
      %v3779 = vpop.f32.mrb[0].mxu0
      %3780 = vmatprep.mubr.bf16.mxu0 0
      %3781 = vmatmul.mubr.bf16.gmra.mrb[0].mxu0 %v3658
      %v3782 = vpop.f32.mrb[0].mxu0
      %v3783 = vadd.f32 0.0, %v3782
      %v3784 = vpop.f32.mrb[0].mxu0
      %v3785 = vpop.f32.mrb[0].mxu0
      %v3786 = vadd.f32 0.0, %v3785
      %v3787 = vpop.f32.mrb[0].mxu0
      %3788 = vmatprep.mubr.bf16.mxu0 0
      %3789 = vmatmul.mubr.bf16.gmra.mrb[0].mxu0 %v3661
      %v3790 = vpop.f32.mrb[0].mxu0
      %v3791 = vadd.f32 0.0, %v3790
      %v3792 = vpop.f32.mrb[0].mxu0
      %v3793 = vpop.f32.mrb[0].mxu0
      %v3794 = vadd.f32 0.0, %v3793
      %v3795 = vpop.f32.mrb[0].mxu0
      %3796 = vmatprep.mubr.bf16.mxu0 0
      %3797 = vmatmul.mubr.bf16.gmra.mrb[0].mxu0 %v3664
      %v3798 = vpop.f32.mrb[0].mxu0
      %v3799 = vadd.f32 0.0, %v3798
      %v3800 = vpop.f32.mrb[0].mxu0
      %v3801 = vpop.f32.mrb[0].mxu0
      %v3802 = vadd.f32 0.0, %v3801
      %v3803 = vpop.f32.mrb[0].mxu0
      %3804 = vmatprep.mubr.bf16.mxu0 0
      %3805 = vmatmul.mubr.bf16.gmra.mrb[0].mxu0 %v3667
      %v3806 = vpop.f32.mrb[0].mxu0
      %v3807 = vadd.f32 0.0, %v3806
      %v3808 = vpop.f32.mrb[0].mxu0
      %v3809 = vpop.f32.mrb[0].mxu0
      %v3810 = vadd.f32 0.0, %v3809
      %v3811 = vpop.f32.mrb[0].mxu0
      %3812 = vmatprep.mubr.bf16.mxu0 0
      %3813 = vmatmul.mubr.bf16.gmra.mrb[0].mxu0 %v3670
      %v3814 = vpop.f32.mrb[0].mxu0
      %v3815 = vadd.f32 0.0, %v3814
      %v3816 = vpop.f32.mrb[0].mxu0
      %v3817 = vpop.f32.mrb[0].mxu0
      %v3818 = vadd.f32 0.0, %v3817
      %v3819 = vpop.f32.mrb[0].mxu0
      %3820 = vmatprep.mubr.bf16.mxu0 0
      %3821 = vmatmul.mubr.bf16.gmra.mrb[0].mxu0 %v3673
      %v3822 = vpop.f32.mrb[0].mxu0
      %v3823 = vadd.f32 0.0, %v3822
      %v3824 = vpop.f32.mrb[0].mxu0
      %v3825 = vpop.f32.mrb[0].mxu0
      %v3826 = vadd.f32 0.0, %v3825
      %v3827 = vpop.f32.mrb[0].mxu0
      %3828 = vmatprep.mubr.bf16.mxu0 0
      %3829 = vmatmul.mubr.bf16.gmra.mrb[0].mxu0 %v3676
      %v3830 = vpop.f32.mrb[0].mxu0
      %v3831 = vadd.f32 0.0, %v3830
      %v3832 = vpop.f32.mrb[0].mxu0
      %v3833 = vpop.f32.mrb[0].mxu0
      %v3834 = vadd.f32 0.0, %v3833
      %v3835 = vpop.f32.mrb[0].mxu0
      %3836 = vmatprep.mubr.bf16.mxu0 0
      %3837 = vmatmul.mubr.bf16.gmra.mrb[0].mxu0 %v3679
      %v3838 = vpop.f32.mrb[0].mxu0
      %v3839 = vadd.f32 0.0, %v3838
      %v3840 = vpop.f32.mrb[0].mxu0
      %v3841 = vpop.f32.mrb[0].mxu0
      %v3842 = vadd.f32 0.0, %v3841
      %v3843 = vpop.f32.mrb[0].mxu0
      %3844 = vdwg.mxu0
      %v3845 = vadd.f32 %v3167, %v3719
      %v3846 = vadd.f32 %v3168, %v3722
      %v3847 = vadd.f32 %v3169, %v3727
      %v3848 = vadd.f32 %v3170, %v3730
      %v3849 = vadd.f32 %v3171, %v3735
      %v3850 = vadd.f32 %v3172, %v3738
      %v3851 = vadd.f32 %v3173, %v3743
      %v3852 = vadd.f32 %v3174, %v3746
      %v3853 = vadd.f32 %v3175, %v3751
      %v3854 = vadd.f32 %v3176, %v3754
      %v3855 = vadd.f32 %v3177, %v3759
      %v3856 = vadd.f32 %v3178, %v3762
      %v3857 = vadd.f32 %v3179, %v3767
      %v3858 = vadd.f32 %v3180, %v3770
      %v3859 = vadd.f32 %v3181, %v3775
      %v3860 = vadd.f32 %v3182, %v3778
      %v3861 = vadd.f32 %v3183, %v3783
      %v3862 = vadd.f32 %v3184, %v3786
      %v3863 = vadd.f32 %v3185, %v3791
      %v3864 = vadd.f32 %v3186, %v3794
      %v3865 = vadd.f32 %v3187, %v3799
      %v3866 = vadd.f32 %v3188, %v3802
      %v3867 = vadd.f32 %v3189, %v3807
      %v3868 = vadd.f32 %v3190, %v3810
      %v3869 = vadd.f32 %v3191, %v3815
      %v3870 = vadd.f32 %v3192, %v3818
      %v3871 = vadd.f32 %v3193, %v3823
      %v3872 = vadd.f32 %v3194, %v3826
      %v3873 = vadd.f32 %v3195, %v3831
      %v3874 = vadd.f32 %v3196, %v3834
      %v3875 = vadd.f32 %v3197, %v3839
      %v3876 = vadd.f32 %v3198, %v3842
      %s3877 = scalar_lea.vmem %s170, 36
      %v3878 = vld [vmem:[%s3877] sm:$0xf]
      %v3879 = vld [vmem:[%s3877 + $0x4] sm:$0xf]
      %v3880 = vld [vmem:[%s3877 + $0x8] sm:$0x1]
      %v3881 = vld [vmem:[%s3877 + $0xc] sm:$0xf]
      %v3882 = vld [vmem:[%s3877 + $0x10] sm:$0xf]
      %v3883 = vld [vmem:[%s3877 + $0x14] sm:$0x1]
      %v3884 = vld [vmem:[%s3877 + $0x18] sm:$0xf]
      %v3885 = vld [vmem:[%s3877 + $0x1c] sm:$0xf]
      %v3886 = vld [vmem:[%s3877 + $0x20] sm:$0x1]
      %v3887 = vld [vmem:[%s3877 + $0x24] sm:$0xf]
      %v3888 = vld [vmem:[%s3877 + $0x28] sm:$0xf]
      %v3889 = vld [vmem:[%s3877 + $0x2c] sm:$0x1]
      %v3890 = vld [vmem:[%s3877 + $0x30] sm:$0xf]
      %v3891 = vld [vmem:[%s3877 + $0x34] sm:$0xf]
      %v3892 = vld [vmem:[%s3877 + $0x38] sm:$0x1]
      %v3893 = vld [vmem:[%s3877 + $0x3c] sm:$0xf]
      %v3894 = vld [vmem:[%s3877 + $0x40] sm:$0xf]
      %v3895 = vld [vmem:[%s3877 + $0x44] sm:$0x1]
      %v3896 = vld [vmem:[%s3877 + $0x48] sm:$0xf]
      %v3897 = vld [vmem:[%s3877 + $0x4c] sm:$0xf]
      %v3898 = vld [vmem:[%s3877 + $0x50] sm:$0x1]
      %v3899 = vld [vmem:[%s3877 + $0x54] sm:$0xf]
      %v3900 = vld [vmem:[%s3877 + $0x58] sm:$0xf]
      %v3901 = vld [vmem:[%s3877 + $0x5c] sm:$0x1]
      %v3902 = vld [vmem:[%s3877 + $0x60] sm:$0xf]
      %v3903 = vld [vmem:[%s3877 + $0x64] sm:$0xf]
      %v3904 = vld [vmem:[%s3877 + $0x68] sm:$0x1]
      %v3905 = vld [vmem:[%s3877 + $0x6c] sm:$0xf]
      %v3906 = vld [vmem:[%s3877 + $0x70] sm:$0xf]
      %v3907 = vld [vmem:[%s3877 + $0x74] sm:$0x1]
      %v3908 = vld [vmem:[%s3877 + $0x78] sm:$0xf]
      %v3909 = vld [vmem:[%s3877 + $0x7c] sm:$0xf]
      %v3910 = vld [vmem:[%s3877 + $0x80] sm:$0x1]
      %v3911 = vld [vmem:[%s3877 + $0x84] sm:$0xf]
      %v3912 = vld [vmem:[%s3877 + $0x88] sm:$0xf]
      %v3913 = vld [vmem:[%s3877 + $0x8c] sm:$0x1]
      %v3914 = vld [vmem:[%s3877 + $0x90] sm:$0xf]
      %v3915 = vld [vmem:[%s3877 + $0x94] sm:$0xf]
      %v3916 = vld [vmem:[%s3877 + $0x98] sm:$0x1]
      %v3917 = vld [vmem:[%s3877 + $0x9c] sm:$0xf]
      %v3918 = vld [vmem:[%s3877 + $0xa0] sm:$0xf]
      %v3919 = vld [vmem:[%s3877 + $0xa4] sm:$0x1]
      %v3920 = vld [vmem:[%s3877 + $0xa8] sm:$0xf]
      %v3921 = vld [vmem:[%s3877 + $0xac] sm:$0xf]
      %v3922 = vld [vmem:[%s3877 + $0xb0] sm:$0x1]
      %v3923 = vld [vmem:[%s3877 + $0xb4] sm:$0xf]
      %v3924 = vld [vmem:[%s3877 + $0xb8] sm:$0xf]
      %v3925 = vld [vmem:[%s3877 + $0xbc] sm:$0x1]
      %v3927 = vshrl.u32 %v3878, 16
      %v3929 = vrot.slane %v3927, 4
      %v3930 = vshll.u32 %v3878, 16
      %v3932 = vrot.slane %v3930, 5
      %v3933 = vor.u32 %v3929, %v3932
      %v3934 = vrot.slane %v3933, 4
      %v3936 = vshll.u32 %v3879, 16
      %v3938 = vrot.slane %v3936, 5
      %v3939 = vsel %vm232, %v3934, %v3938
      %v3940 = vshrl.u32 %v3879, 16
      %v3942 = vrot.slane %v3940, 4
      %v3943 = vor.u32 %v3942, %v3938
      %v3944 = vrot.slane %v3943, 4
      %v3946 = vshll.u32 %v3880, 16
      %v3948 = vrot.slane %v3946, 5
      %v3949 = vsel %vm232, %v3944, %v3948
      %v3951 = vshrl.u32 %v3881, 16
      %v3953 = vrot.slane %v3951, 4
      %v3954 = vshll.u32 %v3881, 16
      %v3956 = vrot.slane %v3954, 5
      %v3957 = vor.u32 %v3953, %v3956
      %v3958 = vrot.slane %v3957, 4
      %v3960 = vshll.u32 %v3882, 16
      %v3962 = vrot.slane %v3960, 5
      %v3963 = vsel %vm232, %v3958, %v3962
      %v3964 = vshrl.u32 %v3882, 16
      %v3966 = vrot.slane %v3964, 4
      %v3967 = vor.u32 %v3966, %v3962
      %v3968 = vrot.slane %v3967, 4
      %v3970 = vshll.u32 %v3883, 16
      %v3972 = vrot.slane %v3970, 5
      %v3973 = vsel %vm232, %v3968, %v3972
      %v3975 = vshrl.u32 %v3884, 16
      %v3977 = vrot.slane %v3975, 4
      %v3978 = vshll.u32 %v3884, 16
      %v3980 = vrot.slane %v3978, 5
      %v3981 = vor.u32 %v3977, %v3980
      %v3982 = vrot.slane %v3981, 4
      %v3984 = vshll.u32 %v3885, 16
      %v3986 = vrot.slane %v3984, 5
      %v3987 = vsel %vm232, %v3982, %v3986
      %v3988 = vshrl.u32 %v3885, 16
      %v3990 = vrot.slane %v3988, 4
      %v3991 = vor.u32 %v3990, %v3986
      %v3992 = vrot.slane %v3991, 4
      %v3994 = vshll.u32 %v3886, 16
      %v3996 = vrot.slane %v3994, 5
      %v3997 = vsel %vm232, %v3992, %v3996
      %v3999 = vshrl.u32 %v3887, 16
      %v4001 = vrot.slane %v3999, 4
      %v4002 = vshll.u32 %v3887, 16
      %v4004 = vrot.slane %v4002, 5
      %v4005 = vor.u32 %v4001, %v4004
      %v4006 = vrot.slane %v4005, 4
      %v4008 = vshll.u32 %v3888, 16
      %v4010 = vrot.slane %v4008, 5
      %v4011 = vsel %vm232, %v4006, %v4010
      %v4012 = vshrl.u32 %v3888, 16
      %v4014 = vrot.slane %v4012, 4
      %v4015 = vor.u32 %v4014, %v4010
      %v4016 = vrot.slane %v4015, 4
      %v4018 = vshll.u32 %v3889, 16
      %v4020 = vrot.slane %v4018, 5
      %v4021 = vsel %vm232, %v4016, %v4020
      %v4023 = vshrl.u32 %v3890, 16
      %v4025 = vrot.slane %v4023, 4
      %v4026 = vshll.u32 %v3890, 16
      %v4028 = vrot.slane %v4026, 5
      %v4029 = vor.u32 %v4025, %v4028
      %v4030 = vrot.slane %v4029, 4
      %v4032 = vshll.u32 %v3891, 16
      %v4034 = vrot.slane %v4032, 5
      %v4035 = vsel %vm232, %v4030, %v4034
      %v4036 = vshrl.u32 %v3891, 16
      %v4038 = vrot.slane %v4036, 4
      %v4039 = vor.u32 %v4038, %v4034
      %v4040 = vrot.slane %v4039, 4
      %v4042 = vshll.u32 %v3892, 16
      %v4044 = vrot.slane %v4042, 5
      %v4045 = vsel %vm232, %v4040, %v4044
      %v4047 = vshrl.u32 %v3893, 16
      %v4049 = vrot.slane %v4047, 4
      %v4050 = vshll.u32 %v3893, 16
      %v4052 = vrot.slane %v4050, 5
      %v4053 = vor.u32 %v4049, %v4052
      %v4054 = vrot.slane %v4053, 4
      %v4056 = vshll.u32 %v3894, 16
      %v4058 = vrot.slane %v4056, 5
      %v4059 = vsel %vm232, %v4054, %v4058
      %v4060 = vshrl.u32 %v3894, 16
      %v4062 = vrot.slane %v4060, 4
      %v4063 = vor.u32 %v4062, %v4058
      %v4064 = vrot.slane %v4063, 4
      %v4066 = vshll.u32 %v3895, 16
      %v4068 = vrot.slane %v4066, 5
      %v4069 = vsel %vm232, %v4064, %v4068
      %v4071 = vshrl.u32 %v3896, 16
      %v4073 = vrot.slane %v4071, 4
      %v4074 = vshll.u32 %v3896, 16
      %v4076 = vrot.slane %v4074, 5
      %v4077 = vor.u32 %v4073, %v4076
      %v4078 = vrot.slane %v4077, 4
      %v4080 = vshll.u32 %v3897, 16
      %v4082 = vrot.slane %v4080, 5
      %v4083 = vsel %vm232, %v4078, %v4082
      %v4084 = vshrl.u32 %v3897, 16
      %v4086 = vrot.slane %v4084, 4
      %v4087 = vor.u32 %v4086, %v4082
      %v4088 = vrot.slane %v4087, 4
      %v4090 = vshll.u32 %v3898, 16
      %v4092 = vrot.slane %v4090, 5
      %v4093 = vsel %vm232, %v4088, %v4092
      %v4095 = vshrl.u32 %v3899, 16
      %v4097 = vrot.slane %v4095, 4
      %v4098 = vshll.u32 %v3899, 16
      %v4100 = vrot.slane %v4098, 5
      %v4101 = vor.u32 %v4097, %v4100
      %v4102 = vrot.slane %v4101, 4
      %v4104 = vshll.u32 %v3900, 16
      %v4106 = vrot.slane %v4104, 5
      %v4107 = vsel %vm232, %v4102, %v4106
      %v4108 = vshrl.u32 %v3900, 16
      %v4110 = vrot.slane %v4108, 4
      %v4111 = vor.u32 %v4110, %v4106
      %v4112 = vrot.slane %v4111, 4
      %v4114 = vshll.u32 %v3901, 16
      %v4116 = vrot.slane %v4114, 5
      %v4117 = vsel %vm232, %v4112, %v4116
      %v4119 = vshrl.u32 %v3902, 16
      %v4121 = vrot.slane %v4119, 4
      %v4122 = vshll.u32 %v3902, 16
      %v4124 = vrot.slane %v4122, 5
      %v4125 = vor.u32 %v4121, %v4124
      %v4126 = vrot.slane %v4125, 4
      %v4128 = vshll.u32 %v3903, 16
      %v4130 = vrot.slane %v4128, 5
      %v4131 = vsel %vm232, %v4126, %v4130
      %v4132 = vshrl.u32 %v3903, 16
      %v4134 = vrot.slane %v4132, 4
      %v4135 = vor.u32 %v4134, %v4130
      %v4136 = vrot.slane %v4135, 4
      %v4138 = vshll.u32 %v3904, 16
      %v4140 = vrot.slane %v4138, 5
      %v4141 = vsel %vm232, %v4136, %v4140
      %v4143 = vshrl.u32 %v3905, 16
      %v4145 = vrot.slane %v4143, 4
      %v4146 = vshll.u32 %v3905, 16
      %v4148 = vrot.slane %v4146, 5
      %v4149 = vor.u32 %v4145, %v4148
      %v4150 = vrot.slane %v4149, 4
      %v4152 = vshll.u32 %v3906, 16
      %v4154 = vrot.slane %v4152, 5
      %v4155 = vsel %vm232, %v4150, %v4154
      %v4156 = vshrl.u32 %v3906, 16
      %v4158 = vrot.slane %v4156, 4
      %v4159 = vor.u32 %v4158, %v4154
      %v4160 = vrot.slane %v4159, 4
      %v4162 = vshll.u32 %v3907, 16
      %v4164 = vrot.slane %v4162, 5
      %v4165 = vsel %vm232, %v4160, %v4164
      %v4167 = vshrl.u32 %v3908, 16
      %v4169 = vrot.slane %v4167, 4
      %v4170 = vshll.u32 %v3908, 16
      %v4172 = vrot.slane %v4170, 5
      %v4173 = vor.u32 %v4169, %v4172
      %v4174 = vrot.slane %v4173, 4
      %v4176 = vshll.u32 %v3909, 16
      %v4178 = vrot.slane %v4176, 5
      %v4179 = vsel %vm232, %v4174, %v4178
      %v4180 = vshrl.u32 %v3909, 16
      %v4182 = vrot.slane %v4180, 4
      %v4183 = vor.u32 %v4182, %v4178
      %v4184 = vrot.slane %v4183, 4
      %v4186 = vshll.u32 %v3910, 16
      %v4188 = vrot.slane %v4186, 5
      %v4189 = vsel %vm232, %v4184, %v4188
      %v4191 = vshrl.u32 %v3911, 16
      %v4193 = vrot.slane %v4191, 4
      %v4194 = vshll.u32 %v3911, 16
      %v4196 = vrot.slane %v4194, 5
      %v4197 = vor.u32 %v4193, %v4196
      %v4198 = vrot.slane %v4197, 4
      %v4200 = vshll.u32 %v3912, 16
      %v4202 = vrot.slane %v4200, 5
      %v4203 = vsel %vm232, %v4198, %v4202
      %v4204 = vshrl.u32 %v3912, 16
      %v4206 = vrot.slane %v4204, 4
      %v4207 = vor.u32 %v4206, %v4202
      %v4208 = vrot.slane %v4207, 4
      %v4210 = vshll.u32 %v3913, 16
      %v4212 = vrot.slane %v4210, 5
      %v4213 = vsel %vm232, %v4208, %v4212
      %v4215 = vshrl.u32 %v3914, 16
      %v4217 = vrot.slane %v4215, 4
      %v4218 = vshll.u32 %v3914, 16
      %v4220 = vrot.slane %v4218, 5
      %v4221 = vor.u32 %v4217, %v4220
      %v4222 = vrot.slane %v4221, 4
      %v4224 = vshll.u32 %v3915, 16
      %v4226 = vrot.slane %v4224, 5
      %v4227 = vsel %vm232, %v4222, %v4226
      %v4228 = vshrl.u32 %v3915, 16
      %v4230 = vrot.slane %v4228, 4
      %v4231 = vor.u32 %v4230, %v4226
      %v4232 = vrot.slane %v4231, 4
      %v4234 = vshll.u32 %v3916, 16
      %v4236 = vrot.slane %v4234, 5
      %v4237 = vsel %vm232, %v4232, %v4236
      %v4239 = vshrl.u32 %v3917, 16
      %v4241 = vrot.slane %v4239, 4
      %v4242 = vshll.u32 %v3917, 16
      %v4244 = vrot.slane %v4242, 5
      %v4245 = vor.u32 %v4241, %v4244
      %v4246 = vrot.slane %v4245, 4
      %v4248 = vshll.u32 %v3918, 16
      %v4250 = vrot.slane %v4248, 5
      %v4251 = vsel %vm232, %v4246, %v4250
      %v4252 = vshrl.u32 %v3918, 16
      %v4254 = vrot.slane %v4252, 4
      %v4255 = vor.u32 %v4254, %v4250
      %v4256 = vrot.slane %v4255, 4
      %v4258 = vshll.u32 %v3919, 16
      %v4260 = vrot.slane %v4258, 5
      %v4261 = vsel %vm232, %v4256, %v4260
      %v4263 = vshrl.u32 %v3920, 16
      %v4265 = vrot.slane %v4263, 4
      %v4266 = vshll.u32 %v3920, 16
      %v4268 = vrot.slane %v4266, 5
      %v4269 = vor.u32 %v4265, %v4268
      %v4270 = vrot.slane %v4269, 4
      %v4272 = vshll.u32 %v3921, 16
      %v4274 = vrot.slane %v4272, 5
      %v4275 = vsel %vm232, %v4270, %v4274
      %v4276 = vshrl.u32 %v3921, 16
      %v4278 = vrot.slane %v4276, 4
      %v4279 = vor.u32 %v4278, %v4274
      %v4280 = vrot.slane %v4279, 4
      %v4282 = vshll.u32 %v3922, 16
      %v4284 = vrot.slane %v4282, 5
      %v4285 = vsel %vm232, %v4280, %v4284
      %v4287 = vshrl.u32 %v3923, 16
      %v4289 = vrot.slane %v4287, 4
      %v4290 = vshll.u32 %v3923, 16
      %v4292 = vrot.slane %v4290, 5
      %v4293 = vor.u32 %v4289, %v4292
      %v4294 = vrot.slane %v4293, 4
      %v4296 = vshll.u32 %v3924, 16
      %v4298 = vrot.slane %v4296, 5
      %v4299 = vsel %vm232, %v4294, %v4298
      %v4300 = vshrl.u32 %v3924, 16
      %v4302 = vrot.slane %v4300, 4
      %v4303 = vor.u32 %v4302, %v4298
      %v4304 = vrot.slane %v4303, 4
      %v4306 = vshll.u32 %v3925, 16
      %v4308 = vrot.slane %v4306, 5
      %v4309 = vsel %vm232, %v4304, %v4308
      %s4310 = scalar_lea.vmem %s1, 24
      %v4311 = vld [vmem:[%s4310] sm:$0xf]
      %v4312 = vunpack.c.l.b16 %v3939
      %v4313 = vunpack.c.l.b16 %v3949
      %v4314 = vunpack.c.l.b16 %v3963
      %v4315 = vunpack.c.l.b16 %v3973
      %v4316 = vunpack.c.l.b16 %v3987
      %v4317 = vunpack.c.l.b16 %v3997
      %v4318 = vunpack.c.l.b16 %v4011
      %v4319 = vunpack.c.l.b16 %v4021
      %v4320 = vunpack.c.l.b16 %v4035
      %v4321 = vunpack.c.l.b16 %v4045
      %v4322 = vunpack.c.l.b16 %v4059
      %v4323 = vunpack.c.l.b16 %v4069
      %v4324 = vunpack.c.l.b16 %v4083
      %v4325 = vunpack.c.l.b16 %v4093
      %v4326 = vunpack.c.l.b16 %v4107
      %v4327 = vunpack.c.l.b16 %v4117
      %v4328 = vunpack.c.l.b16 %v4131
      %v4329 = vunpack.c.l.b16 %v4141
      %v4330 = vunpack.c.l.b16 %v4155
      %v4331 = vunpack.c.l.b16 %v4165
      %v4332 = vunpack.c.l.b16 %v4179
      %v4333 = vunpack.c.l.b16 %v4189
      %v4334 = vunpack.c.l.b16 %v4203
      %v4335 = vunpack.c.l.b16 %v4213
      %v4336 = vunpack.c.l.b16 %v4227
      %v4337 = vunpack.c.l.b16 %v4237
      %v4338 = vunpack.c.l.b16 %v4251
      %v4339 = vunpack.c.l.b16 %v4261
      %v4340 = vunpack.c.l.b16 %v4275
      %v4341 = vunpack.c.l.b16 %v4285
      %v4342 = vunpack.c.l.b16 %v4299
      %v4343 = vunpack.c.l.b16 %v4309
      %v4344 = vpack.c.b16 %v4313, %v4312
      %v4345 = vpack.c.b16 %v4315, %v4314
      %v4346 = vpack.c.b16 %v4317, %v4316
      %v4347 = vpack.c.b16 %v4319, %v4318
      %v4348 = vpack.c.b16 %v4321, %v4320
      %v4349 = vpack.c.b16 %v4323, %v4322
      %v4350 = vpack.c.b16 %v4325, %v4324
      %v4351 = vpack.c.b16 %v4327, %v4326
      %v4352 = vpack.c.b16 %v4329, %v4328
      %v4353 = vpack.c.b16 %v4331, %v4330
      %v4354 = vpack.c.b16 %v4333, %v4332
      %v4355 = vpack.c.b16 %v4335, %v4334
      %v4356 = vpack.c.b16 %v4337, %v4336
      %v4357 = vpack.c.b16 %v4339, %v4338
      %v4358 = vpack.c.b16 %v4341, %v4340
      %v4359 = vpack.c.b16 %v4343, %v4342
      %v4361 = vsel %vm847, %v4344, 0
      %v4364 = vsel %vm847, %v4345, 0
      %v4367 = vsel %vm847, %v4346, 0
      %v4370 = vsel %vm847, %v4347, 0
      %v4373 = vsel %vm847, %v4348, 0
      %v4376 = vsel %vm847, %v4349, 0
      %v4379 = vsel %vm847, %v4350, 0
      %v4382 = vsel %vm847, %v4351, 0
      %v4385 = vsel %vm847, %v4352, 0
      %v4388 = vsel %vm847, %v4353, 0
      %v4391 = vsel %vm847, %v4354, 0
      %v4394 = vsel %vm847, %v4355, 0
      %v4397 = vsel %vm847, %v4356, 0
      %v4400 = vsel %vm847, %v4357, 0
      %v4403 = vsel %vm847, %v4358, 0
      %v4406 = vsel %vm847, %v4359, 0
      %v4409 = vsel %vm896, %v4311, 0
      %4411 = vmatprep.subr.bf16.mxu0 0
      %4412 = vmatpush1.bf16.msra.mxu0 %v4409
      %4413 = vmatprep.subr.bf16.mxu0 0
      %4414 = vmatpush1.bf16.msra.mxu0 0
      %4415 = vmatprep.subr.bf16.mxu0 0
      %4416 = vmatpush1.bf16.msra.mxu0 0
      %4417 = vmatprep.subr.bf16.mxu0 0
      %4418 = vmatpush1.bf16.msra.mxu0 0
      %4419 = vmatprep.subr.bf16.mxu0 0
      %4420 = vmatpush1.bf16.msra.mxu0 0
      %4421 = vmatprep.subr.bf16.mxu0 0
      %4422 = vmatpush1.bf16.msra.mxu0 0
      %4423 = vmatprep.subr.bf16.mxu0 0
      %4424 = vmatpush1.bf16.msra.mxu0 0
      %4425 = vmatprep.subr.bf16.mxu0 0
      %4426 = vmatpush1.bf16.msra.mxu0 0
      %4427 = vmatprep.subr.bf16.mxu0 0
      %4428 = vmatpush1.bf16.msra.mxu0 0
      %4429 = vmatprep.subr.bf16.mxu0 0
      %4430 = vmatpush1.bf16.msra.mxu0 0
      %4431 = vmatprep.subr.bf16.mxu0 0
      %4432 = vmatpush1.bf16.msra.mxu0 0
      %4433 = vmatprep.subr.bf16.mxu0 0
      %4434 = vmatpush1.bf16.msra.mxu0 0
      %4435 = vmatprep.subr.bf16.mxu0 0
      %4436 = vmatpush1.bf16.msra.mxu0 0
      %4437 = vmatprep.subr.bf16.mxu0 0
      %4438 = vmatpush1.bf16.msra.mxu0 0
      %4439 = vmatprep.subr.bf16.mxu0 0
      %4440 = vmatpush1.bf16.msra.mxu0 0
      %4441 = vmatprep.subr.bf16.mxu0 0
      %4442 = vmatpush1.bf16.msra.mxu0 0
      %4443 = vmatprep.mubr.bf16.mxu0 0
      %4444 = vmatmul.mubr.bf16.gmra.mrb[0].mxu0 %v4361
      %v4445 = vpop.f32.mrb[0].mxu0
      %v4446 = vadd.f32 0.0, %v4445
      %v4447 = vpop.f32.mrb[0].mxu0
      %v4448 = vpop.f32.mrb[0].mxu0
      %v4449 = vadd.f32 0.0, %v4448
      %v4450 = vpop.f32.mrb[0].mxu0
      %4451 = vmatprep.mubr.bf16.mxu0 0
      %4452 = vmatmul.mubr.bf16.gmra.mrb[0].mxu0 %v4364
      %v4453 = vpop.f32.mrb[0].mxu0
      %v4454 = vadd.f32 0.0, %v4453
      %v4455 = vpop.f32.mrb[0].mxu0
      %v4456 = vpop.f32.mrb[0].mxu0
      %v4457 = vadd.f32 0.0, %v4456
      %v4458 = vpop.f32.mrb[0].mxu0
      %4459 = vmatprep.mubr.bf16.mxu0 0
      %4460 = vmatmul.mubr.bf16.gmra.mrb[0].mxu0 %v4367
      %v4461 = vpop.f32.mrb[0].mxu0
      %v4462 = vadd.f32 0.0, %v4461
      %v4463 = vpop.f32.mrb[0].mxu0
      %v4464 = vpop.f32.mrb[0].mxu0
      %v4465 = vadd.f32 0.0, %v4464
      %v4466 = vpop.f32.mrb[0].mxu0
      %4467 = vmatprep.mubr.bf16.mxu0 0
      %4468 = vmatmul.mubr.bf16.gmra.mrb[0].mxu0 %v4370
      %v4469 = vpop.f32.mrb[0].mxu0
      %v4470 = vadd.f32 0.0, %v4469
      %v4471 = vpop.f32.mrb[0].mxu0
      %v4472 = vpop.f32.mrb[0].mxu0
      %v4473 = vadd.f32 0.0, %v4472
      %v4474 = vpop.f32.mrb[0].mxu0
      %4475 = vmatprep.mubr.bf16.mxu0 0
      %4476 = vmatmul.mubr.bf16.gmra.mrb[0].mxu0 %v4373
      %v4477 = vpop.f32.mrb[0].mxu0
      %v4478 = vadd.f32 0.0, %v4477
      %v4479 = vpop.f32.mrb[0].mxu0
      %v4480 = vpop.f32.mrb[0].mxu0
      %v4481 = vadd.f32 0.0, %v4480
      %v4482 = vpop.f32.mrb[0].mxu0
      %4483 = vmatprep.mubr.bf16.mxu0 0
      %4484 = vmatmul.mubr.bf16.gmra.mrb[0].mxu0 %v4376
      %v4485 = vpop.f32.mrb[0].mxu0
      %v4486 = vadd.f32 0.0, %v4485
      %v4487 = vpop.f32.mrb[0].mxu0
      %v4488 = vpop.f32.mrb[0].mxu0
      %v4489 = vadd.f32 0.0, %v4488
      %v4490 = vpop.f32.mrb[0].mxu0
      %4491 = vmatprep.mubr.bf16.mxu0 0
      %4492 = vmatmul.mubr.bf16.gmra.mrb[0].mxu0 %v4379
      %v4493 = vpop.f32.mrb[0].mxu0
      %v4494 = vadd.f32 0.0, %v4493
      %v4495 = vpop.f32.mrb[0].mxu0
      %v4496 = vpop.f32.mrb[0].mxu0
      %v4497 = vadd.f32 0.0, %v4496
      %v4498 = vpop.f32.mrb[0].mxu0
      %4499 = vmatprep.mubr.bf16.mxu0 0
      %4500 = vmatmul.mubr.bf16.gmra.mrb[0].mxu0 %v4382
      %v4501 = vpop.f32.mrb[0].mxu0
      %v4502 = vadd.f32 0.0, %v4501
      %v4503 = vpop.f32.mrb[0].mxu0
      %v4504 = vpop.f32.mrb[0].mxu0
      %v4505 = vadd.f32 0.0, %v4504
      %v4506 = vpop.f32.mrb[0].mxu0
      %4507 = vmatprep.mubr.bf16.mxu0 0
      %4508 = vmatmul.mubr.bf16.gmra.mrb[0].mxu0 %v4385
      %v4509 = vpop.f32.mrb[0].mxu0
      %v4510 = vadd.f32 0.0, %v4509
      %v4511 = vpop.f32.mrb[0].mxu0
      %v4512 = vpop.f32.mrb[0].mxu0
      %v4513 = vadd.f32 0.0, %v4512
      %v4514 = vpop.f32.mrb[0].mxu0
      %4515 = vmatprep.mubr.bf16.mxu0 0
      %4516 = vmatmul.mubr.bf16.gmra.mrb[0].mxu0 %v4388
      %v4517 = vpop.f32.mrb[0].mxu0
      %v4518 = vadd.f32 0.0, %v4517
      %v4519 = vpop.f32.mrb[0].mxu0
      %v4520 = vpop.f32.mrb[0].mxu0
      %v4521 = vadd.f32 0.0, %v4520
      %v4522 = vpop.f32.mrb[0].mxu0
      %4523 = vmatprep.mubr.bf16.mxu0 0
      %4524 = vmatmul.mubr.bf16.gmra.mrb[0].mxu0 %v4391
      %v4525 = vpop.f32.mrb[0].mxu0
      %v4526 = vadd.f32 0.0, %v4525
      %v4527 = vpop.f32.mrb[0].mxu0
      %v4528 = vpop.f32.mrb[0].mxu0
      %v4529 = vadd.f32 0.0, %v4528
      %v4530 = vpop.f32.mrb[0].mxu0
      %4531 = vmatprep.mubr.bf16.mxu0 0
      %4532 = vmatmul.mubr.bf16.gmra.mrb[0].mxu0 %v4394
      %v4533 = vpop.f32.mrb[0].mxu0
      %v4534 = vadd.f32 0.0, %v4533
      %v4535 = vpop.f32.mrb[0].mxu0
      %v4536 = vpop.f32.mrb[0].mxu0
      %v4537 = vadd.f32 0.0, %v4536
      %v4538 = vpop.f32.mrb[0].mxu0
      %4539 = vmatprep.mubr.bf16.mxu0 0
      %4540 = vmatmul.mubr.bf16.gmra.mrb[0].mxu0 %v4397
      %v4541 = vpop.f32.mrb[0].mxu0
      %v4542 = vadd.f32 0.0, %v4541
      %v4543 = vpop.f32.mrb[0].mxu0
      %v4544 = vpop.f32.mrb[0].mxu0
      %v4545 = vadd.f32 0.0, %v4544
      %v4546 = vpop.f32.mrb[0].mxu0
      %4547 = vmatprep.mubr.bf16.mxu0 0
      %4548 = vmatmul.mubr.bf16.gmra.mrb[0].mxu0 %v4400
      %v4549 = vpop.f32.mrb[0].mxu0
      %v4550 = vadd.f32 0.0, %v4549
      %v4551 = vpop.f32.mrb[0].mxu0
      %v4552 = vpop.f32.mrb[0].mxu0
      %v4553 = vadd.f32 0.0, %v4552
      %v4554 = vpop.f32.mrb[0].mxu0
      %4555 = vmatprep.mubr.bf16.mxu0 0
      %4556 = vmatmul.mubr.bf16.gmra.mrb[0].mxu0 %v4403
      %v4557 = vpop.f32.mrb[0].mxu0
      %v4558 = vadd.f32 0.0, %v4557
      %v4559 = vpop.f32.mrb[0].mxu0
      %v4560 = vpop.f32.mrb[0].mxu0
      %v4561 = vadd.f32 0.0, %v4560
      %v4562 = vpop.f32.mrb[0].mxu0
      %4563 = vmatprep.mubr.bf16.mxu0 0
      %4564 = vmatmul.mubr.bf16.gmra.mrb[0].mxu0 %v4406
      %v4565 = vpop.f32.mrb[0].mxu0
      %v4566 = vadd.f32 0.0, %v4565
      %v4567 = vpop.f32.mrb[0].mxu0
      %v4568 = vpop.f32.mrb[0].mxu0
      %v4569 = vadd.f32 0.0, %v4568
      %v4570 = vpop.f32.mrb[0].mxu0
      %4571 = vdwg.mxu0
      %v4572 = vadd.f32 %v3845, %v4446
      %v4573 = vadd.f32 %v3846, %v4449
      %v4574 = vadd.f32 %v3847, %v4454
      %v4575 = vadd.f32 %v3848, %v4457
      %v4576 = vadd.f32 %v3849, %v4462
      %v4577 = vadd.f32 %v3850, %v4465
      %v4578 = vadd.f32 %v3851, %v4470
      %v4579 = vadd.f32 %v3852, %v4473
      %v4580 = vadd.f32 %v3853, %v4478
      %v4581 = vadd.f32 %v3854, %v4481
      %v4582 = vadd.f32 %v3855, %v4486
      %v4583 = vadd.f32 %v3856, %v4489
      %v4584 = vadd.f32 %v3857, %v4494
      %v4585 = vadd.f32 %v3858, %v4497
      %v4586 = vadd.f32 %v3859, %v4502
      %v4587 = vadd.f32 %v3860, %v4505
      %v4588 = vadd.f32 %v3861, %v4510
      %v4589 = vadd.f32 %v3862, %v4513
      %v4590 = vadd.f32 %v3863, %v4518
      %v4591 = vadd.f32 %v3864, %v4521
      %v4592 = vadd.f32 %v3865, %v4526
      %v4593 = vadd.f32 %v3866, %v4529
      %v4594 = vadd.f32 %v3867, %v4534
      %v4595 = vadd.f32 %v3868, %v4537
      %v4596 = vadd.f32 %v3869, %v4542
      %v4597 = vadd.f32 %v3870, %v4545
      %v4598 = vadd.f32 %v3871, %v4550
      %v4599 = vadd.f32 %v3872, %v4553
      %v4600 = vadd.f32 %v3873, %v4558
      %v4601 = vadd.f32 %v3874, %v4561
      %v4602 = vadd.f32 %v3875, %v4566
      %v4603 = vadd.f32 %v3876, %v4569
      %v4604 = vld [vmem:[%s3877] sm:$0xe]
      %v4605 = vld [vmem:[%s3877 + $0xc] sm:$0xe]
      %v4606 = vld [vmem:[%s3877 + $0x18] sm:$0xe]
      %v4607 = vld [vmem:[%s3877 + $0x24] sm:$0xe]
      %v4608 = vld [vmem:[%s3877 + $0x30] sm:$0xe]
      %v4609 = vld [vmem:[%s3877 + $0x3c] sm:$0xe]
      %v4610 = vld [vmem:[%s3877 + $0x48] sm:$0xe]
      %v4611 = vld [vmem:[%s3877 + $0x54] sm:$0xe]
      %v4612 = vld [vmem:[%s3877 + $0x60] sm:$0xe]
      %v4613 = vld [vmem:[%s3877 + $0x6c] sm:$0xe]
      %v4614 = vld [vmem:[%s3877 + $0x78] sm:$0xe]
      %v4615 = vld [vmem:[%s3877 + $0x84] sm:$0xe]
      %v4616 = vld [vmem:[%s3877 + $0x90] sm:$0xe]
      %v4617 = vld [vmem:[%s3877 + $0x9c] sm:$0xe]
      %v4618 = vld [vmem:[%s3877 + $0xa8] sm:$0xe]
      %v4619 = vld [vmem:[%s3877 + $0xb4] sm:$0xe]
      %v4668 = vrot.slane %v4604, 5
      %v4669 = vrot.slane %v4668, 4
      %v4670 = vrot.slane %v3879, 5
      %v4671 = vsel %vm684, %v4669, %v4670
      %v4672 = vrot.slane %v4670, 4
      %v4673 = vrot.slane %v3880, 5
      %v4674 = vsel %vm684, %v4672, %v4673
      %v4675 = vrot.slane %v4605, 5
      %v4676 = vrot.slane %v4675, 4
      %v4677 = vrot.slane %v3882, 5
      %v4678 = vsel %vm684, %v4676, %v4677
      %v4679 = vrot.slane %v4677, 4
      %v4680 = vrot.slane %v3883, 5
      %v4681 = vsel %vm684, %v4679, %v4680
      %v4682 = vrot.slane %v4606, 5
      %v4683 = vrot.slane %v4682, 4
      %v4684 = vrot.slane %v3885, 5
      %v4685 = vsel %vm684, %v4683, %v4684
      %v4686 = vrot.slane %v4684, 4
      %v4687 = vrot.slane %v3886, 5
      %v4688 = vsel %vm684, %v4686, %v4687
      %v4689 = vrot.slane %v4607, 5
      %v4690 = vrot.slane %v4689, 4
      %v4691 = vrot.slane %v3888, 5
      %v4692 = vsel %vm684, %v4690, %v4691
      %v4693 = vrot.slane %v4691, 4
      %v4694 = vrot.slane %v3889, 5
      %v4695 = vsel %vm684, %v4693, %v4694
      %v4696 = vrot.slane %v4608, 5
      %v4697 = vrot.slane %v4696, 4
      %v4698 = vrot.slane %v3891, 5
      %v4699 = vsel %vm684, %v4697, %v4698
      %v4700 = vrot.slane %v4698, 4
      %v4701 = vrot.slane %v3892, 5
      %v4702 = vsel %vm684, %v4700, %v4701
      %v4703 = vrot.slane %v4609, 5
      %v4704 = vrot.slane %v4703, 4
      %v4705 = vrot.slane %v3894, 5
      %v4706 = vsel %vm684, %v4704, %v4705
      %v4707 = vrot.slane %v4705, 4
      %v4708 = vrot.slane %v3895, 5
      %v4709 = vsel %vm684, %v4707, %v4708
      %v4710 = vrot.slane %v4610, 5
      %v4711 = vrot.slane %v4710, 4
      %v4712 = vrot.slane %v3897, 5
      %v4713 = vsel %vm684, %v4711, %v4712
      %v4714 = vrot.slane %v4712, 4
      %v4715 = vrot.slane %v3898, 5
      %v4716 = vsel %vm684, %v4714, %v4715
      %v4717 = vrot.slane %v4611, 5
      %v4718 = vrot.slane %v4717, 4
      %v4719 = vrot.slane %v3900, 5
      %v4720 = vsel %vm684, %v4718, %v4719
      %v4721 = vrot.slane %v4719, 4
      %v4722 = vrot.slane %v3901, 5
      %v4723 = vsel %vm684, %v4721, %v4722
      %v4724 = vrot.slane %v4612, 5
      %v4725 = vrot.slane %v4724, 4
      %v4726 = vrot.slane %v3903, 5
      %v4727 = vsel %vm684, %v4725, %v4726
      %v4728 = vrot.slane %v4726, 4
      %v4729 = vrot.slane %v3904, 5
      %v4730 = vsel %vm684, %v4728, %v4729
      %v4731 = vrot.slane %v4613, 5
      %v4732 = vrot.slane %v4731, 4
      %v4733 = vrot.slane %v3906, 5
      %v4734 = vsel %vm684, %v4732, %v4733
      %v4735 = vrot.slane %v4733, 4
      %v4736 = vrot.slane %v3907, 5
      %v4737 = vsel %vm684, %v4735, %v4736
      %v4738 = vrot.slane %v4614, 5
      %v4739 = vrot.slane %v4738, 4
      %v4740 = vrot.slane %v3909, 5
      %v4741 = vsel %vm684, %v4739, %v4740
      %v4742 = vrot.slane %v4740, 4
      %v4743 = vrot.slane %v3910, 5
      %v4744 = vsel %vm684, %v4742, %v4743
      %v4745 = vrot.slane %v4615, 5
      %v4746 = vrot.slane %v4745, 4
      %v4747 = vrot.slane %v3912, 5
      %v4748 = vsel %vm684, %v4746, %v4747
      %v4749 = vrot.slane %v4747, 4
      %v4750 = vrot.slane %v3913, 5
      %v4751 = vsel %vm684, %v4749, %v4750
      %v4752 = vrot.slane %v4616, 5
      %v4753 = vrot.slane %v4752, 4
      %v4754 = vrot.slane %v3915, 5
      %v4755 = vsel %vm684, %v4753, %v4754
      %v4756 = vrot.slane %v4754, 4
      %v4757 = vrot.slane %v3916, 5
      %v4758 = vsel %vm684, %v4756, %v4757
      %v4759 = vrot.slane %v4617, 5
      %v4760 = vrot.slane %v4759, 4
      %v4761 = vrot.slane %v3918, 5
      %v4762 = vsel %vm684, %v4760, %v4761
      %v4763 = vrot.slane %v4761, 4
      %v4764 = vrot.slane %v3919, 5
      %v4765 = vsel %vm684, %v4763, %v4764
      %v4766 = vrot.slane %v4618, 5
      %v4767 = vrot.slane %v4766, 4
      %v4768 = vrot.slane %v3921, 5
      %v4769 = vsel %vm684, %v4767, %v4768
      %v4770 = vrot.slane %v4768, 4
      %v4771 = vrot.slane %v3922, 5
      %v4772 = vsel %vm684, %v4770, %v4771
      %v4773 = vrot.slane %v4619, 5
      %v4774 = vrot.slane %v4773, 4
      %v4775 = vrot.slane %v3924, 5
      %v4776 = vsel %vm684, %v4774, %v4775
      %v4777 = vrot.slane %v4775, 4
      %v4778 = vrot.slane %v3925, 5
      %v4779 = vsel %vm684, %v4777, %v4778
      %s4780 = scalar_lea.vmem %s1, 28
      %v4781 = vld [vmem:[%s4780] sm:$0xf]
      %v4782 = vunpack.c.l.b16 %v4671
      %v4783 = vunpack.c.l.b16 %v4674
      %v4784 = vunpack.c.l.b16 %v4678
      %v4785 = vunpack.c.l.b16 %v4681
      %v4786 = vunpack.c.l.b16 %v4685
      %v4787 = vunpack.c.l.b16 %v4688
      %v4788 = vunpack.c.l.b16 %v4692
      %v4789 = vunpack.c.l.b16 %v4695
      %v4790 = vunpack.c.l.b16 %v4699
      %v4791 = vunpack.c.l.b16 %v4702
      %v4792 = vunpack.c.l.b16 %v4706
      %v4793 = vunpack.c.l.b16 %v4709
      %v4794 = vunpack.c.l.b16 %v4713
      %v4795 = vunpack.c.l.b16 %v4716
      %v4796 = vunpack.c.l.b16 %v4720
      %v4797 = vunpack.c.l.b16 %v4723
      %v4798 = vunpack.c.l.b16 %v4727
      %v4799 = vunpack.c.l.b16 %v4730
      %v4800 = vunpack.c.l.b16 %v4734
      %v4801 = vunpack.c.l.b16 %v4737
      %v4802 = vunpack.c.l.b16 %v4741
      %v4803 = vunpack.c.l.b16 %v4744
      %v4804 = vunpack.c.l.b16 %v4748
      %v4805 = vunpack.c.l.b16 %v4751
      %v4806 = vunpack.c.l.b16 %v4755
      %v4807 = vunpack.c.l.b16 %v4758
      %v4808 = vunpack.c.l.b16 %v4762
      %v4809 = vunpack.c.l.b16 %v4765
      %v4810 = vunpack.c.l.b16 %v4769
      %v4811 = vunpack.c.l.b16 %v4772
      %v4812 = vunpack.c.l.b16 %v4776
      %v4813 = vunpack.c.l.b16 %v4779
      %v4814 = vpack.c.b16 %v4783, %v4782
      %v4815 = vpack.c.b16 %v4785, %v4784
      %v4816 = vpack.c.b16 %v4787, %v4786
      %v4817 = vpack.c.b16 %v4789, %v4788
      %v4818 = vpack.c.b16 %v4791, %v4790
      %v4819 = vpack.c.b16 %v4793, %v4792
      %v4820 = vpack.c.b16 %v4795, %v4794
      %v4821 = vpack.c.b16 %v4797, %v4796
      %v4822 = vpack.c.b16 %v4799, %v4798
      %v4823 = vpack.c.b16 %v4801, %v4800
      %v4824 = vpack.c.b16 %v4803, %v4802
      %v4825 = vpack.c.b16 %v4805, %v4804
      %v4826 = vpack.c.b16 %v4807, %v4806
      %v4827 = vpack.c.b16 %v4809, %v4808
      %v4828 = vpack.c.b16 %v4811, %v4810
      %v4829 = vpack.c.b16 %v4813, %v4812
      %v4831 = vsel %vm847, %v4814, 0
      %v4834 = vsel %vm847, %v4815, 0
      %v4837 = vsel %vm847, %v4816, 0
      %v4840 = vsel %vm847, %v4817, 0
      %v4843 = vsel %vm847, %v4818, 0
      %v4846 = vsel %vm847, %v4819, 0
      %v4849 = vsel %vm847, %v4820, 0
      %v4852 = vsel %vm847, %v4821, 0
      %v4855 = vsel %vm847, %v4822, 0
      %v4858 = vsel %vm847, %v4823, 0
      %v4861 = vsel %vm847, %v4824, 0
      %v4864 = vsel %vm847, %v4825, 0
      %v4867 = vsel %vm847, %v4826, 0
      %v4870 = vsel %vm847, %v4827, 0
      %v4873 = vsel %vm847, %v4828, 0
      %v4876 = vsel %vm847, %v4829, 0
      %v4879 = vsel %vm896, %v4781, 0
      %4881 = vmatprep.subr.bf16.mxu0 0
      %4882 = vmatpush1.bf16.msra.mxu0 %v4879
      %4883 = vmatprep.subr.bf16.mxu0 0
      %4884 = vmatpush1.bf16.msra.mxu0 0
      %4885 = vmatprep.subr.bf16.mxu0 0
      %4886 = vmatpush1.bf16.msra.mxu0 0
      %4887 = vmatprep.subr.bf16.mxu0 0
      %4888 = vmatpush1.bf16.msra.mxu0 0
      %4889 = vmatprep.subr.bf16.mxu0 0
      %4890 = vmatpush1.bf16.msra.mxu0 0
      %4891 = vmatprep.subr.bf16.mxu0 0
      %4892 = vmatpush1.bf16.msra.mxu0 0
      %4893 = vmatprep.subr.bf16.mxu0 0
      %4894 = vmatpush1.bf16.msra.mxu0 0
      %4895 = vmatprep.subr.bf16.mxu0 0
      %4896 = vmatpush1.bf16.msra.mxu0 0
      %4897 = vmatprep.subr.bf16.mxu0 0
      %4898 = vmatpush1.bf16.msra.mxu0 0
      %4899 = vmatprep.subr.bf16.mxu0 0
      %4900 = vmatpush1.bf16.msra.mxu0 0
      %4901 = vmatprep.subr.bf16.mxu0 0
      %4902 = vmatpush1.bf16.msra.mxu0 0
      %4903 = vmatprep.subr.bf16.mxu0 0
      %4904 = vmatpush1.bf16.msra.mxu0 0
      %4905 = vmatprep.subr.bf16.mxu0 0
      %4906 = vmatpush1.bf16.msra.mxu0 0
      %4907 = vmatprep.subr.bf16.mxu0 0
      %4908 = vmatpush1.bf16.msra.mxu0 0
      %4909 = vmatprep.subr.bf16.mxu0 0
      %4910 = vmatpush1.bf16.msra.mxu0 0
      %4911 = vmatprep.subr.bf16.mxu0 0
      %4912 = vmatpush1.bf16.msra.mxu0 0
      %4913 = vmatprep.mubr.bf16.mxu0 0
      %4914 = vmatmul.mubr.bf16.gmra.mrb[0].mxu0 %v4831
      %v4915 = vpop.f32.mrb[0].mxu0
      %v4916 = vadd.f32 0.0, %v4915
      %v4917 = vpop.f32.mrb[0].mxu0
      %v4918 = vpop.f32.mrb[0].mxu0
      %v4919 = vadd.f32 0.0, %v4918
      %v4920 = vpop.f32.mrb[0].mxu0
      %4921 = vmatprep.mubr.bf16.mxu0 0
      %4922 = vmatmul.mubr.bf16.gmra.mrb[0].mxu0 %v4834
      %v4923 = vpop.f32.mrb[0].mxu0
      %v4924 = vadd.f32 0.0, %v4923
      %v4925 = vpop.f32.mrb[0].mxu0
      %v4926 = vpop.f32.mrb[0].mxu0
      %v4927 = vadd.f32 0.0, %v4926
      %v4928 = vpop.f32.mrb[0].mxu0
      %4929 = vmatprep.mubr.bf16.mxu0 0
      %4930 = vmatmul.mubr.bf16.gmra.mrb[0].mxu0 %v4837
      %v4931 = vpop.f32.mrb[0].mxu0
      %v4932 = vadd.f32 0.0, %v4931
      %v4933 = vpop.f32.mrb[0].mxu0
      %v4934 = vpop.f32.mrb[0].mxu0
      %v4935 = vadd.f32 0.0, %v4934
      %v4936 = vpop.f32.mrb[0].mxu0
      %4937 = vmatprep.mubr.bf16.mxu0 0
      %4938 = vmatmul.mubr.bf16.gmra.mrb[0].mxu0 %v4840
      %v4939 = vpop.f32.mrb[0].mxu0
      %v4940 = vadd.f32 0.0, %v4939
      %v4941 = vpop.f32.mrb[0].mxu0
      %v4942 = vpop.f32.mrb[0].mxu0
      %v4943 = vadd.f32 0.0, %v4942
      %v4944 = vpop.f32.mrb[0].mxu0
      %4945 = vmatprep.mubr.bf16.mxu0 0
      %4946 = vmatmul.mubr.bf16.gmra.mrb[0].mxu0 %v4843
      %v4947 = vpop.f32.mrb[0].mxu0
      %v4948 = vadd.f32 0.0, %v4947
      %v4949 = vpop.f32.mrb[0].mxu0
      %v4950 = vpop.f32.mrb[0].mxu0
      %v4951 = vadd.f32 0.0, %v4950
      %v4952 = vpop.f32.mrb[0].mxu0
      %4953 = vmatprep.mubr.bf16.mxu0 0
      %4954 = vmatmul.mubr.bf16.gmra.mrb[0].mxu0 %v4846
      %v4955 = vpop.f32.mrb[0].mxu0
      %v4956 = vadd.f32 0.0, %v4955
      %v4957 = vpop.f32.mrb[0].mxu0
      %v4958 = vpop.f32.mrb[0].mxu0
      %v4959 = vadd.f32 0.0, %v4958
      %v4960 = vpop.f32.mrb[0].mxu0
      %4961 = vmatprep.mubr.bf16.mxu0 0
      %4962 = vmatmul.mubr.bf16.gmra.mrb[0].mxu0 %v4849
      %v4963 = vpop.f32.mrb[0].mxu0
      %v4964 = vadd.f32 0.0, %v4963
      %v4965 = vpop.f32.mrb[0].mxu0
      %v4966 = vpop.f32.mrb[0].mxu0
      %v4967 = vadd.f32 0.0, %v4966
      %v4968 = vpop.f32.mrb[0].mxu0
      %4969 = vmatprep.mubr.bf16.mxu0 0
      %4970 = vmatmul.mubr.bf16.gmra.mrb[0].mxu0 %v4852
      %v4971 = vpop.f32.mrb[0].mxu0
      %v4972 = vadd.f32 0.0, %v4971
      %v4973 = vpop.f32.mrb[0].mxu0
      %v4974 = vpop.f32.mrb[0].mxu0
      %v4975 = vadd.f32 0.0, %v4974
      %v4976 = vpop.f32.mrb[0].mxu0
      %4977 = vmatprep.mubr.bf16.mxu0 0
      %4978 = vmatmul.mubr.bf16.gmra.mrb[0].mxu0 %v4855
      %v4979 = vpop.f32.mrb[0].mxu0
      %v4980 = vadd.f32 0.0, %v4979
      %v4981 = vpop.f32.mrb[0].mxu0
      %v4982 = vpop.f32.mrb[0].mxu0
      %v4983 = vadd.f32 0.0, %v4982
      %v4984 = vpop.f32.mrb[0].mxu0
      %4985 = vmatprep.mubr.bf16.mxu0 0
      %4986 = vmatmul.mubr.bf16.gmra.mrb[0].mxu0 %v4858
      %v4987 = vpop.f32.mrb[0].mxu0
      %v4988 = vadd.f32 0.0, %v4987
      %v4989 = vpop.f32.mrb[0].mxu0
      %v4990 = vpop.f32.mrb[0].mxu0
      %v4991 = vadd.f32 0.0, %v4990
      %v4992 = vpop.f32.mrb[0].mxu0
      %4993 = vmatprep.mubr.bf16.mxu0 0
      %4994 = vmatmul.mubr.bf16.gmra.mrb[0].mxu0 %v4861
      %v4995 = vpop.f32.mrb[0].mxu0
      %v4996 = vadd.f32 0.0, %v4995
      %v4997 = vpop.f32.mrb[0].mxu0
      %v4998 = vpop.f32.mrb[0].mxu0
      %v4999 = vadd.f32 0.0, %v4998
      %v5000 = vpop.f32.mrb[0].mxu0
      %5001 = vmatprep.mubr.bf16.mxu0 0
      %5002 = vmatmul.mubr.bf16.gmra.mrb[0].mxu0 %v4864
      %v5003 = vpop.f32.mrb[0].mxu0
      %v5004 = vadd.f32 0.0, %v5003
      %v5005 = vpop.f32.mrb[0].mxu0
      %v5006 = vpop.f32.mrb[0].mxu0
      %v5007 = vadd.f32 0.0, %v5006
      %v5008 = vpop.f32.mrb[0].mxu0
      %5009 = vmatprep.mubr.bf16.mxu0 0
      %5010 = vmatmul.mubr.bf16.gmra.mrb[0].mxu0 %v4867
      %v5011 = vpop.f32.mrb[0].mxu0
      %v5012 = vadd.f32 0.0, %v5011
      %v5013 = vpop.f32.mrb[0].mxu0
      %v5014 = vpop.f32.mrb[0].mxu0
      %v5015 = vadd.f32 0.0, %v5014
      %v5016 = vpop.f32.mrb[0].mxu0
      %5017 = vmatprep.mubr.bf16.mxu0 0
      %5018 = vmatmul.mubr.bf16.gmra.mrb[0].mxu0 %v4870
      %v5019 = vpop.f32.mrb[0].mxu0
      %v5020 = vadd.f32 0.0, %v5019
      %v5021 = vpop.f32.mrb[0].mxu0
      %v5022 = vpop.f32.mrb[0].mxu0
      %v5023 = vadd.f32 0.0, %v5022
      %v5024 = vpop.f32.mrb[0].mxu0
      %5025 = vmatprep.mubr.bf16.mxu0 0
      %5026 = vmatmul.mubr.bf16.gmra.mrb[0].mxu0 %v4873
      %v5027 = vpop.f32.mrb[0].mxu0
      %v5028 = vadd.f32 0.0, %v5027
      %v5029 = vpop.f32.mrb[0].mxu0
      %v5030 = vpop.f32.mrb[0].mxu0
      %v5031 = vadd.f32 0.0, %v5030
      %v5032 = vpop.f32.mrb[0].mxu0
      %5033 = vmatprep.mubr.bf16.mxu0 0
      %5034 = vmatmul.mubr.bf16.gmra.mrb[0].mxu0 %v4876
      %v5035 = vpop.f32.mrb[0].mxu0
      %v5036 = vadd.f32 0.0, %v5035
      %v5037 = vpop.f32.mrb[0].mxu0
      %v5038 = vpop.f32.mrb[0].mxu0
      %v5039 = vadd.f32 0.0, %v5038
      %v5040 = vpop.f32.mrb[0].mxu0
      %5041 = vdwg.mxu0
      %v5042 = vadd.f32 %v4572, %v4916
      %v5043 = vadd.f32 %v4573, %v4919
      %v5044 = vadd.f32 %v4574, %v4924
      %v5045 = vadd.f32 %v4575, %v4927
      %v5046 = vadd.f32 %v4576, %v4932
      %v5047 = vadd.f32 %v4577, %v4935
      %v5048 = vadd.f32 %v4578, %v4940
      %v5049 = vadd.f32 %v4579, %v4943
      %v5050 = vadd.f32 %v4580, %v4948
      %v5051 = vadd.f32 %v4581, %v4951
      %v5052 = vadd.f32 %v4582, %v4956
      %v5053 = vadd.f32 %v4583, %v4959
      %v5054 = vadd.f32 %v4584, %v4964
      %v5055 = vadd.f32 %v4585, %v4967
      %v5056 = vadd.f32 %v4586, %v4972
      %v5057 = vadd.f32 %v4587, %v4975
      %v5058 = vadd.f32 %v4588, %v4980
      %v5059 = vadd.f32 %v4589, %v4983
      %v5060 = vadd.f32 %v4590, %v4988
      %v5061 = vadd.f32 %v4591, %v4991
      %v5062 = vadd.f32 %v4592, %v4996
      %v5063 = vadd.f32 %v4593, %v4999
      %v5064 = vadd.f32 %v4594, %v5004
      %v5065 = vadd.f32 %v4595, %v5007
      %v5066 = vadd.f32 %v4596, %v5012
      %v5067 = vadd.f32 %v4597, %v5015
      %v5068 = vadd.f32 %v4598, %v5020
      %v5069 = vadd.f32 %v4599, %v5023
      %v5070 = vadd.f32 %v4600, %v5028
      %v5071 = vadd.f32 %v4601, %v5031
      %v5072 = vadd.f32 %v4602, %v5036
      %v5073 = vadd.f32 %v4603, %v5039
      %v5074 = vld [vmem:[%s3877 + $0x8] sm:$0x3]
      %v5075 = vld [vmem:[%s3877 + $0x14] sm:$0x3]
      %v5076 = vld [vmem:[%s3877 + $0x20] sm:$0x3]
      %v5077 = vld [vmem:[%s3877 + $0x2c] sm:$0x3]
      %v5078 = vld [vmem:[%s3877 + $0x38] sm:$0x3]
      %v5079 = vld [vmem:[%s3877 + $0x44] sm:$0x3]
      %v5080 = vld [vmem:[%s3877 + $0x50] sm:$0x3]
      %v5081 = vld [vmem:[%s3877 + $0x5c] sm:$0x3]
      %v5082 = vld [vmem:[%s3877 + $0x68] sm:$0x3]
      %v5083 = vld [vmem:[%s3877 + $0x74] sm:$0x3]
      %v5084 = vld [vmem:[%s3877 + $0x80] sm:$0x3]
      %v5085 = vld [vmem:[%s3877 + $0x8c] sm:$0x3]
      %v5086 = vld [vmem:[%s3877 + $0x98] sm:$0x3]
      %v5087 = vld [vmem:[%s3877 + $0xa4] sm:$0x3]
      %v5088 = vld [vmem:[%s3877 + $0xb0] sm:$0x3]
      %v5089 = vld [vmem:[%s3877 + $0xbc] sm:$0x3]
      %v5091 = vshrl.u32 %v4604, 16
      %v5093 = vrot.slane %v5091, 5
      %v5094 = vshll.u32 %v4604, 16
      %v5096 = vrot.slane %v5094, 6
      %v5097 = vor.u32 %v5093, %v5096
      %v5098 = vrot.slane %v5097, 4
      %v5099 = vrot.slane %v3940, 5
      %v5100 = vrot.slane %v3936, 6
      %v5101 = vor.u32 %v5099, %v5100
      %v5102 = vsel %vm1339, %v5098, %v5101
      %v5103 = vrot.slane %v5101, 4
      %v5105 = vshrl.u32 %v5074, 16
      %v5107 = vrot.slane %v5105, 5
      %v5108 = vshll.u32 %v5074, 16
      %v5110 = vrot.slane %v5108, 6
      %v5111 = vor.u32 %v5107, %v5110
      %v5112 = vsel %vm1339, %v5103, %v5111
      %v5114 = vshrl.u32 %v4605, 16
      %v5116 = vrot.slane %v5114, 5
      %v5117 = vshll.u32 %v4605, 16
      %v5119 = vrot.slane %v5117, 6
      %v5120 = vor.u32 %v5116, %v5119
      %v5121 = vrot.slane %v5120, 4
      %v5122 = vrot.slane %v3964, 5
      %v5123 = vrot.slane %v3960, 6
      %v5124 = vor.u32 %v5122, %v5123
      %v5125 = vsel %vm1339, %v5121, %v5124
      %v5126 = vrot.slane %v5124, 4
      %v5128 = vshrl.u32 %v5075, 16
      %v5130 = vrot.slane %v5128, 5
      %v5131 = vshll.u32 %v5075, 16
      %v5133 = vrot.slane %v5131, 6
      %v5134 = vor.u32 %v5130, %v5133
      %v5135 = vsel %vm1339, %v5126, %v5134
      %v5137 = vshrl.u32 %v4606, 16
      %v5139 = vrot.slane %v5137, 5
      %v5140 = vshll.u32 %v4606, 16
      %v5142 = vrot.slane %v5140, 6
      %v5143 = vor.u32 %v5139, %v5142
      %v5144 = vrot.slane %v5143, 4
      %v5145 = vrot.slane %v3988, 5
      %v5146 = vrot.slane %v3984, 6
      %v5147 = vor.u32 %v5145, %v5146
      %v5148 = vsel %vm1339, %v5144, %v5147
      %v5149 = vrot.slane %v5147, 4
      %v5151 = vshrl.u32 %v5076, 16
      %v5153 = vrot.slane %v5151, 5
      %v5154 = vshll.u32 %v5076, 16
      %v5156 = vrot.slane %v5154, 6
      %v5157 = vor.u32 %v5153, %v5156
      %v5158 = vsel %vm1339, %v5149, %v5157
      %v5160 = vshrl.u32 %v4607, 16
      %v5162 = vrot.slane %v5160, 5
      %v5163 = vshll.u32 %v4607, 16
      %v5165 = vrot.slane %v5163, 6
      %v5166 = vor.u32 %v5162, %v5165
      %v5167 = vrot.slane %v5166, 4
      %v5168 = vrot.slane %v4012, 5
      %v5169 = vrot.slane %v4008, 6
      %v5170 = vor.u32 %v5168, %v5169
      %v5171 = vsel %vm1339, %v5167, %v5170
      %v5172 = vrot.slane %v5170, 4
      %v5174 = vshrl.u32 %v5077, 16
      %v5176 = vrot.slane %v5174, 5
      %v5177 = vshll.u32 %v5077, 16
      %v5179 = vrot.slane %v5177, 6
      %v5180 = vor.u32 %v5176, %v5179
      %v5181 = vsel %vm1339, %v5172, %v5180
      %v5183 = vshrl.u32 %v4608, 16
      %v5185 = vrot.slane %v5183, 5
      %v5186 = vshll.u32 %v4608, 16
      %v5188 = vrot.slane %v5186, 6
      %v5189 = vor.u32 %v5185, %v5188
      %v5190 = vrot.slane %v5189, 4
      %v5191 = vrot.slane %v4036, 5
      %v5192 = vrot.slane %v4032, 6
      %v5193 = vor.u32 %v5191, %v5192
      %v5194 = vsel %vm1339, %v5190, %v5193
      %v5195 = vrot.slane %v5193, 4
      %v5197 = vshrl.u32 %v5078, 16
      %v5199 = vrot.slane %v5197, 5
      %v5200 = vshll.u32 %v5078, 16
      %v5202 = vrot.slane %v5200, 6
      %v5203 = vor.u32 %v5199, %v5202
      %v5204 = vsel %vm1339, %v5195, %v5203
      %v5206 = vshrl.u32 %v4609, 16
      %v5208 = vrot.slane %v5206, 5
      %v5209 = vshll.u32 %v4609, 16
      %v5211 = vrot.slane %v5209, 6
      %v5212 = vor.u32 %v5208, %v5211
      %v5213 = vrot.slane %v5212, 4
      %v5214 = vrot.slane %v4060, 5
      %v5215 = vrot.slane %v4056, 6
      %v5216 = vor.u32 %v5214, %v5215
      %v5217 = vsel %vm1339, %v5213, %v5216
      %v5218 = vrot.slane %v5216, 4
      %v5220 = vshrl.u32 %v5079, 16
      %v5222 = vrot.slane %v5220, 5
      %v5223 = vshll.u32 %v5079, 16
      %v5225 = vrot.slane %v5223, 6
      %v5226 = vor.u32 %v5222, %v5225
      %v5227 = vsel %vm1339, %v5218, %v5226
      %v5229 = vshrl.u32 %v4610, 16
      %v5231 = vrot.slane %v5229, 5
      %v5232 = vshll.u32 %v4610, 16
      %v5234 = vrot.slane %v5232, 6
      %v5235 = vor.u32 %v5231, %v5234
      %v5236 = vrot.slane %v5235, 4
      %v5237 = vrot.slane %v4084, 5
      %v5238 = vrot.slane %v4080, 6
      %v5239 = vor.u32 %v5237, %v5238
      %v5240 = vsel %vm1339, %v5236, %v5239
      %v5241 = vrot.slane %v5239, 4
      %v5243 = vshrl.u32 %v5080, 16
      %v5245 = vrot.slane %v5243, 5
      %v5246 = vshll.u32 %v5080, 16
      %v5248 = vrot.slane %v5246, 6
      %v5249 = vor.u32 %v5245, %v5248
      %v5250 = vsel %vm1339, %v5241, %v5249
      %v5252 = vshrl.u32 %v4611, 16
      %v5254 = vrot.slane %v5252, 5
      %v5255 = vshll.u32 %v4611, 16
      %v5257 = vrot.slane %v5255, 6
      %v5258 = vor.u32 %v5254, %v5257
      %v5259 = vrot.slane %v5258, 4
      %v5260 = vrot.slane %v4108, 5
      %v5261 = vrot.slane %v4104, 6
      %v5262 = vor.u32 %v5260, %v5261
      %v5263 = vsel %vm1339, %v5259, %v5262
      %v5264 = vrot.slane %v5262, 4
      %v5266 = vshrl.u32 %v5081, 16
      %v5268 = vrot.slane %v5266, 5
      %v5269 = vshll.u32 %v5081, 16
      %v5271 = vrot.slane %v5269, 6
      %v5272 = vor.u32 %v5268, %v5271
      %v5273 = vsel %vm1339, %v5264, %v5272
      %v5275 = vshrl.u32 %v4612, 16
      %v5277 = vrot.slane %v5275, 5
      %v5278 = vshll.u32 %v4612, 16
      %v5280 = vrot.slane %v5278, 6
      %v5281 = vor.u32 %v5277, %v5280
      %v5282 = vrot.slane %v5281, 4
      %v5283 = vrot.slane %v4132, 5
      %v5284 = vrot.slane %v4128, 6
      %v5285 = vor.u32 %v5283, %v5284
      %v5286 = vsel %vm1339, %v5282, %v5285
      %v5287 = vrot.slane %v5285, 4
      %v5289 = vshrl.u32 %v5082, 16
      %v5291 = vrot.slane %v5289, 5
      %v5292 = vshll.u32 %v5082, 16
      %v5294 = vrot.slane %v5292, 6
      %v5295 = vor.u32 %v5291, %v5294
      %v5296 = vsel %vm1339, %v5287, %v5295
      %v5298 = vshrl.u32 %v4613, 16
      %v5300 = vrot.slane %v5298, 5
      %v5301 = vshll.u32 %v4613, 16
      %v5303 = vrot.slane %v5301, 6
      %v5304 = vor.u32 %v5300, %v5303
      %v5305 = vrot.slane %v5304, 4
      %v5306 = vrot.slane %v4156, 5
      %v5307 = vrot.slane %v4152, 6
      %v5308 = vor.u32 %v5306, %v5307
      %v5309 = vsel %vm1339, %v5305, %v5308
      %v5310 = vrot.slane %v5308, 4
      %v5312 = vshrl.u32 %v5083, 16
      %v5314 = vrot.slane %v5312, 5
      %v5315 = vshll.u32 %v5083, 16
      %v5317 = vrot.slane %v5315, 6
      %v5318 = vor.u32 %v5314, %v5317
      %v5319 = vsel %vm1339, %v5310, %v5318
      %v5321 = vshrl.u32 %v4614, 16
      %v5323 = vrot.slane %v5321, 5
      %v5324 = vshll.u32 %v4614, 16
      %v5326 = vrot.slane %v5324, 6
      %v5327 = vor.u32 %v5323, %v5326
      %v5328 = vrot.slane %v5327, 4
      %v5329 = vrot.slane %v4180, 5
      %v5330 = vrot.slane %v4176, 6
      %v5331 = vor.u32 %v5329, %v5330
      %v5332 = vsel %vm1339, %v5328, %v5331
      %v5333 = vrot.slane %v5331, 4
      %v5335 = vshrl.u32 %v5084, 16
      %v5337 = vrot.slane %v5335, 5
      %v5338 = vshll.u32 %v5084, 16
      %v5340 = vrot.slane %v5338, 6
      %v5341 = vor.u32 %v5337, %v5340
      %v5342 = vsel %vm1339, %v5333, %v5341
      %v5344 = vshrl.u32 %v4615, 16
      %v5346 = vrot.slane %v5344, 5
      %v5347 = vshll.u32 %v4615, 16
      %v5349 = vrot.slane %v5347, 6
      %v5350 = vor.u32 %v5346, %v5349
      %v5351 = vrot.slane %v5350, 4
      %v5352 = vrot.slane %v4204, 5
      %v5353 = vrot.slane %v4200, 6
      %v5354 = vor.u32 %v5352, %v5353
      %v5355 = vsel %vm1339, %v5351, %v5354
      %v5356 = vrot.slane %v5354, 4
      %v5358 = vshrl.u32 %v5085, 16
      %v5360 = vrot.slane %v5358, 5
      %v5361 = vshll.u32 %v5085, 16
      %v5363 = vrot.slane %v5361, 6
      %v5364 = vor.u32 %v5360, %v5363
      %v5365 = vsel %vm1339, %v5356, %v5364
      %v5367 = vshrl.u32 %v4616, 16
      %v5369 = vrot.slane %v5367, 5
      %v5370 = vshll.u32 %v4616, 16
      %v5372 = vrot.slane %v5370, 6
      %v5373 = vor.u32 %v5369, %v5372
      %v5374 = vrot.slane %v5373, 4
      %v5375 = vrot.slane %v4228, 5
      %v5376 = vrot.slane %v4224, 6
      %v5377 = vor.u32 %v5375, %v5376
      %v5378 = vsel %vm1339, %v5374, %v5377
      %v5379 = vrot.slane %v5377, 4
      %v5381 = vshrl.u32 %v5086, 16
      %v5383 = vrot.slane %v5381, 5
      %v5384 = vshll.u32 %v5086, 16
      %v5386 = vrot.slane %v5384, 6
      %v5387 = vor.u32 %v5383, %v5386
      %v5388 = vsel %vm1339, %v5379, %v5387
      %v5390 = vshrl.u32 %v4617, 16
      %v5392 = vrot.slane %v5390, 5
      %v5393 = vshll.u32 %v4617, 16
      %v5395 = vrot.slane %v5393, 6
      %v5396 = vor.u32 %v5392, %v5395
      %v5397 = vrot.slane %v5396, 4
      %v5398 = vrot.slane %v4252, 5
      %v5399 = vrot.slane %v4248, 6
      %v5400 = vor.u32 %v5398, %v5399
      %v5401 = vsel %vm1339, %v5397, %v5400
      %v5402 = vrot.slane %v5400, 4
      %v5404 = vshrl.u32 %v5087, 16
      %v5406 = vrot.slane %v5404, 5
      %v5407 = vshll.u32 %v5087, 16
      %v5409 = vrot.slane %v5407, 6
      %v5410 = vor.u32 %v5406, %v5409
      %v5411 = vsel %vm1339, %v5402, %v5410
      %v5413 = vshrl.u32 %v4618, 16
      %v5415 = vrot.slane %v5413, 5
      %v5416 = vshll.u32 %v4618, 16
      %v5418 = vrot.slane %v5416, 6
      %v5419 = vor.u32 %v5415, %v5418
      %v5420 = vrot.slane %v5419, 4
      %v5421 = vrot.slane %v4276, 5
      %v5422 = vrot.slane %v4272, 6
      %v5423 = vor.u32 %v5421, %v5422
      %v5424 = vsel %vm1339, %v5420, %v5423
      %v5425 = vrot.slane %v5423, 4
      %v5427 = vshrl.u32 %v5088, 16
      %v5429 = vrot.slane %v5427, 5
      %v5430 = vshll.u32 %v5088, 16
      %v5432 = vrot.slane %v5430, 6
      %v5433 = vor.u32 %v5429, %v5432
      %v5434 = vsel %vm1339, %v5425, %v5433
      %v5436 = vshrl.u32 %v4619, 16
      %v5438 = vrot.slane %v5436, 5
      %v5439 = vshll.u32 %v4619, 16
      %v5441 = vrot.slane %v5439, 6
      %v5442 = vor.u32 %v5438, %v5441
      %v5443 = vrot.slane %v5442, 4
      %v5444 = vrot.slane %v4300, 5
      %v5445 = vrot.slane %v4296, 6
      %v5446 = vor.u32 %v5444, %v5445
      %v5447 = vsel %vm1339, %v5443, %v5446
      %v5448 = vrot.slane %v5446, 4
      %v5450 = vshrl.u32 %v5089, 16
      %v5452 = vrot.slane %v5450, 5
      %v5453 = vshll.u32 %v5089, 16
      %v5455 = vrot.slane %v5453, 6
      %v5456 = vor.u32 %v5452, %v5455
      %v5457 = vsel %vm1339, %v5448, %v5456
      %s5458 = scalar_lea.vmem %s1, 32
      %v5459 = vld [vmem:[%s5458] sm:$0xf]
      %v5460 = vunpack.c.l.b16 %v5102
      %v5461 = vunpack.c.l.b16 %v5112
      %v5462 = vunpack.c.l.b16 %v5125
      %v5463 = vunpack.c.l.b16 %v5135
      %v5464 = vunpack.c.l.b16 %v5148
      %v5465 = vunpack.c.l.b16 %v5158
      %v5466 = vunpack.c.l.b16 %v5171
      %v5467 = vunpack.c.l.b16 %v5181
      %v5468 = vunpack.c.l.b16 %v5194
      %v5469 = vunpack.c.l.b16 %v5204
      %v5470 = vunpack.c.l.b16 %v5217
      %v5471 = vunpack.c.l.b16 %v5227
      %v5472 = vunpack.c.l.b16 %v5240
      %v5473 = vunpack.c.l.b16 %v5250
      %v5474 = vunpack.c.l.b16 %v5263
      %v5475 = vunpack.c.l.b16 %v5273
      %v5476 = vunpack.c.l.b16 %v5286
      %v5477 = vunpack.c.l.b16 %v5296
      %v5478 = vunpack.c.l.b16 %v5309
      %v5479 = vunpack.c.l.b16 %v5319
      %v5480 = vunpack.c.l.b16 %v5332
      %v5481 = vunpack.c.l.b16 %v5342
      %v5482 = vunpack.c.l.b16 %v5355
      %v5483 = vunpack.c.l.b16 %v5365
      %v5484 = vunpack.c.l.b16 %v5378
      %v5485 = vunpack.c.l.b16 %v5388
      %v5486 = vunpack.c.l.b16 %v5401
      %v5487 = vunpack.c.l.b16 %v5411
      %v5488 = vunpack.c.l.b16 %v5424
      %v5489 = vunpack.c.l.b16 %v5434
      %v5490 = vunpack.c.l.b16 %v5447
      %v5491 = vunpack.c.l.b16 %v5457
      %v5492 = vpack.c.b16 %v5461, %v5460
      %v5493 = vpack.c.b16 %v5463, %v5462
      %v5494 = vpack.c.b16 %v5465, %v5464
      %v5495 = vpack.c.b16 %v5467, %v5466
      %v5496 = vpack.c.b16 %v5469, %v5468
      %v5497 = vpack.c.b16 %v5471, %v5470
      %v5498 = vpack.c.b16 %v5473, %v5472
      %v5499 = vpack.c.b16 %v5475, %v5474
      %v5500 = vpack.c.b16 %v5477, %v5476
      %v5501 = vpack.c.b16 %v5479, %v5478
      %v5502 = vpack.c.b16 %v5481, %v5480
      %v5503 = vpack.c.b16 %v5483, %v5482
      %v5504 = vpack.c.b16 %v5485, %v5484
      %v5505 = vpack.c.b16 %v5487, %v5486
      %v5506 = vpack.c.b16 %v5489, %v5488
      %v5507 = vpack.c.b16 %v5491, %v5490
      %v5509 = vsel %vm847, %v5492, 0
      %v5512 = vsel %vm847, %v5493, 0
      %v5515 = vsel %vm847, %v5494, 0
      %v5518 = vsel %vm847, %v5495, 0
      %v5521 = vsel %vm847, %v5496, 0
      %v5524 = vsel %vm847, %v5497, 0
      %v5527 = vsel %vm847, %v5498, 0
      %v5530 = vsel %vm847, %v5499, 0
      %v5533 = vsel %vm847, %v5500, 0
      %v5536 = vsel %vm847, %v5501, 0
      %v5539 = vsel %vm847, %v5502, 0
      %v5542 = vsel %vm847, %v5503, 0
      %v5545 = vsel %vm847, %v5504, 0
      %v5548 = vsel %vm847, %v5505, 0
      %v5551 = vsel %vm847, %v5506, 0
      %v5554 = vsel %vm847, %v5507, 0
      %v5557 = vsel %vm896, %v5459, 0
      %5559 = vmatprep.subr.bf16.mxu0 0
      %5560 = vmatpush1.bf16.msra.mxu0 %v5557
      %5561 = vmatprep.subr.bf16.mxu0 0
      %5562 = vmatpush1.bf16.msra.mxu0 0
      %5563 = vmatprep.subr.bf16.mxu0 0
      %5564 = vmatpush1.bf16.msra.mxu0 0
      %5565 = vmatprep.subr.bf16.mxu0 0
      %5566 = vmatpush1.bf16.msra.mxu0 0
      %5567 = vmatprep.subr.bf16.mxu0 0
      %5568 = vmatpush1.bf16.msra.mxu0 0
      %5569 = vmatprep.subr.bf16.mxu0 0
      %5570 = vmatpush1.bf16.msra.mxu0 0
      %5571 = vmatprep.subr.bf16.mxu0 0
      %5572 = vmatpush1.bf16.msra.mxu0 0
      %5573 = vmatprep.subr.bf16.mxu0 0
      %5574 = vmatpush1.bf16.msra.mxu0 0
      %5575 = vmatprep.subr.bf16.mxu0 0
      %5576 = vmatpush1.bf16.msra.mxu0 0
      %5577 = vmatprep.subr.bf16.mxu0 0
      %5578 = vmatpush1.bf16.msra.mxu0 0
      %5579 = vmatprep.subr.bf16.mxu0 0
      %5580 = vmatpush1.bf16.msra.mxu0 0
      %5581 = vmatprep.subr.bf16.mxu0 0
      %5582 = vmatpush1.bf16.msra.mxu0 0
      %5583 = vmatprep.subr.bf16.mxu0 0
      %5584 = vmatpush1.bf16.msra.mxu0 0
      %5585 = vmatprep.subr.bf16.mxu0 0
      %5586 = vmatpush1.bf16.msra.mxu0 0
      %5587 = vmatprep.subr.bf16.mxu0 0
      %5588 = vmatpush1.bf16.msra.mxu0 0
      %5589 = vmatprep.subr.bf16.mxu0 0
      %5590 = vmatpush1.bf16.msra.mxu0 0
      %5591 = vmatprep.mubr.bf16.mxu0 0
      %5592 = vmatmul.mubr.bf16.gmra.mrb[0].mxu0 %v5509
      %v5593 = vpop.f32.mrb[0].mxu0
      %v5594 = vadd.f32 0.0, %v5593
      %v5595 = vpop.f32.mrb[0].mxu0
      %v5596 = vpop.f32.mrb[0].mxu0
      %v5597 = vadd.f32 0.0, %v5596
      %v5598 = vpop.f32.mrb[0].mxu0
      %5599 = vmatprep.mubr.bf16.mxu0 0
      %5600 = vmatmul.mubr.bf16.gmra.mrb[0].mxu0 %v5512
      %v5601 = vpop.f32.mrb[0].mxu0
      %v5602 = vadd.f32 0.0, %v5601
      %v5603 = vpop.f32.mrb[0].mxu0
      %v5604 = vpop.f32.mrb[0].mxu0
      %v5605 = vadd.f32 0.0, %v5604
      %v5606 = vpop.f32.mrb[0].mxu0
      %5607 = vmatprep.mubr.bf16.mxu0 0
      %5608 = vmatmul.mubr.bf16.gmra.mrb[0].mxu0 %v5515
      %v5609 = vpop.f32.mrb[0].mxu0
      %v5610 = vadd.f32 0.0, %v5609
      %v5611 = vpop.f32.mrb[0].mxu0
      %v5612 = vpop.f32.mrb[0].mxu0
      %v5613 = vadd.f32 0.0, %v5612
      %v5614 = vpop.f32.mrb[0].mxu0
      %5615 = vmatprep.mubr.bf16.mxu0 0
      %5616 = vmatmul.mubr.bf16.gmra.mrb[0].mxu0 %v5518
      %v5617 = vpop.f32.mrb[0].mxu0
      %v5618 = vadd.f32 0.0, %v5617
      %v5619 = vpop.f32.mrb[0].mxu0
      %v5620 = vpop.f32.mrb[0].mxu0
      %v5621 = vadd.f32 0.0, %v5620
      %v5622 = vpop.f32.mrb[0].mxu0
      %5623 = vmatprep.mubr.bf16.mxu0 0
      %5624 = vmatmul.mubr.bf16.gmra.mrb[0].mxu0 %v5521
      %v5625 = vpop.f32.mrb[0].mxu0
      %v5626 = vadd.f32 0.0, %v5625
      %v5627 = vpop.f32.mrb[0].mxu0
      %v5628 = vpop.f32.mrb[0].mxu0
      %v5629 = vadd.f32 0.0, %v5628
      %v5630 = vpop.f32.mrb[0].mxu0
      %5631 = vmatprep.mubr.bf16.mxu0 0
      %5632 = vmatmul.mubr.bf16.gmra.mrb[0].mxu0 %v5524
      %v5633 = vpop.f32.mrb[0].mxu0
      %v5634 = vadd.f32 0.0, %v5633
      %v5635 = vpop.f32.mrb[0].mxu0
      %v5636 = vpop.f32.mrb[0].mxu0
      %v5637 = vadd.f32 0.0, %v5636
      %v5638 = vpop.f32.mrb[0].mxu0
      %5639 = vmatprep.mubr.bf16.mxu0 0
      %5640 = vmatmul.mubr.bf16.gmra.mrb[0].mxu0 %v5527
      %v5641 = vpop.f32.mrb[0].mxu0
      %v5642 = vadd.f32 0.0, %v5641
      %v5643 = vpop.f32.mrb[0].mxu0
      %v5644 = vpop.f32.mrb[0].mxu0
      %v5645 = vadd.f32 0.0, %v5644
      %v5646 = vpop.f32.mrb[0].mxu0
      %5647 = vmatprep.mubr.bf16.mxu0 0
      %5648 = vmatmul.mubr.bf16.gmra.mrb[0].mxu0 %v5530
      %v5649 = vpop.f32.mrb[0].mxu0
      %v5650 = vadd.f32 0.0, %v5649
      %v5651 = vpop.f32.mrb[0].mxu0
      %v5652 = vpop.f32.mrb[0].mxu0
      %v5653 = vadd.f32 0.0, %v5652
      %v5654 = vpop.f32.mrb[0].mxu0
      %5655 = vmatprep.mubr.bf16.mxu0 0
      %5656 = vmatmul.mubr.bf16.gmra.mrb[0].mxu0 %v5533
      %v5657 = vpop.f32.mrb[0].mxu0
      %v5658 = vadd.f32 0.0, %v5657
      %v5659 = vpop.f32.mrb[0].mxu0
      %v5660 = vpop.f32.mrb[0].mxu0
      %v5661 = vadd.f32 0.0, %v5660
      %v5662 = vpop.f32.mrb[0].mxu0
      %5663 = vmatprep.mubr.bf16.mxu0 0
      %5664 = vmatmul.mubr.bf16.gmra.mrb[0].mxu0 %v5536
      %v5665 = vpop.f32.mrb[0].mxu0
      %v5666 = vadd.f32 0.0, %v5665
      %v5667 = vpop.f32.mrb[0].mxu0
      %v5668 = vpop.f32.mrb[0].mxu0
      %v5669 = vadd.f32 0.0, %v5668
      %v5670 = vpop.f32.mrb[0].mxu0
      %5671 = vmatprep.mubr.bf16.mxu0 0
      %5672 = vmatmul.mubr.bf16.gmra.mrb[0].mxu0 %v5539
      %v5673 = vpop.f32.mrb[0].mxu0
      %v5674 = vadd.f32 0.0, %v5673
      %v5675 = vpop.f32.mrb[0].mxu0
      %v5676 = vpop.f32.mrb[0].mxu0
      %v5677 = vadd.f32 0.0, %v5676
      %v5678 = vpop.f32.mrb[0].mxu0
      %5679 = vmatprep.mubr.bf16.mxu0 0
      %5680 = vmatmul.mubr.bf16.gmra.mrb[0].mxu0 %v5542
      %v5681 = vpop.f32.mrb[0].mxu0
      %v5682 = vadd.f32 0.0, %v5681
      %v5683 = vpop.f32.mrb[0].mxu0
      %v5684 = vpop.f32.mrb[0].mxu0
      %v5685 = vadd.f32 0.0, %v5684
      %v5686 = vpop.f32.mrb[0].mxu0
      %5687 = vmatprep.mubr.bf16.mxu0 0
      %5688 = vmatmul.mubr.bf16.gmra.mrb[0].mxu0 %v5545
      %v5689 = vpop.f32.mrb[0].mxu0
      %v5690 = vadd.f32 0.0, %v5689
      %v5691 = vpop.f32.mrb[0].mxu0
      %v5692 = vpop.f32.mrb[0].mxu0
      %v5693 = vadd.f32 0.0, %v5692
      %v5694 = vpop.f32.mrb[0].mxu0
      %5695 = vmatprep.mubr.bf16.mxu0 0
      %5696 = vmatmul.mubr.bf16.gmra.mrb[0].mxu0 %v5548
      %v5697 = vpop.f32.mrb[0].mxu0
      %v5698 = vadd.f32 0.0, %v5697
      %v5699 = vpop.f32.mrb[0].mxu0
      %v5700 = vpop.f32.mrb[0].mxu0
      %v5701 = vadd.f32 0.0, %v5700
      %v5702 = vpop.f32.mrb[0].mxu0
      %5703 = vmatprep.mubr.bf16.mxu0 0
      %5704 = vmatmul.mubr.bf16.gmra.mrb[0].mxu0 %v5551
      %v5705 = vpop.f32.mrb[0].mxu0
      %v5706 = vadd.f32 0.0, %v5705
      %v5707 = vpop.f32.mrb[0].mxu0
      %v5708 = vpop.f32.mrb[0].mxu0
      %v5709 = vadd.f32 0.0, %v5708
      %v5710 = vpop.f32.mrb[0].mxu0
      %5711 = vmatprep.mubr.bf16.mxu0 0
      %5712 = vmatmul.mubr.bf16.gmra.mrb[0].mxu0 %v5554
      %v5713 = vpop.f32.mrb[0].mxu0
      %v5714 = vadd.f32 0.0, %v5713
      %v5715 = vpop.f32.mrb[0].mxu0
      %v5716 = vpop.f32.mrb[0].mxu0
      %v5717 = vadd.f32 0.0, %v5716
      %v5718 = vpop.f32.mrb[0].mxu0
      %5719 = vdwg.mxu0
      %v5720 = vadd.f32 %v5042, %v5594
      %v5721 = vadd.f32 %v5043, %v5597
      %v5722 = vadd.f32 %v5044, %v5602
      %v5723 = vadd.f32 %v5045, %v5605
      %v5724 = vadd.f32 %v5046, %v5610
      %v5725 = vadd.f32 %v5047, %v5613
      %v5726 = vadd.f32 %v5048, %v5618
      %v5727 = vadd.f32 %v5049, %v5621
      %v5728 = vadd.f32 %v5050, %v5626
      %v5729 = vadd.f32 %v5051, %v5629
      %v5730 = vadd.f32 %v5052, %v5634
      %v5731 = vadd.f32 %v5053, %v5637
      %v5732 = vadd.f32 %v5054, %v5642
      %v5733 = vadd.f32 %v5055, %v5645
      %v5734 = vadd.f32 %v5056, %v5650
      %v5735 = vadd.f32 %v5057, %v5653
      %v5736 = vadd.f32 %v5058, %v5658
      %v5737 = vadd.f32 %v5059, %v5661
      %v5738 = vadd.f32 %v5060, %v5666
      %v5739 = vadd.f32 %v5061, %v5669
      %v5740 = vadd.f32 %v5062, %v5674
      %v5741 = vadd.f32 %v5063, %v5677
      %v5742 = vadd.f32 %v5064, %v5682
      %v5743 = vadd.f32 %v5065, %v5685
      %v5744 = vadd.f32 %v5066, %v5690
      %v5745 = vadd.f32 %v5067, %v5693
      %v5746 = vadd.f32 %v5068, %v5698
      %v5747 = vadd.f32 %v5069, %v5701
      %v5748 = vadd.f32 %v5070, %v5706
      %v5749 = vadd.f32 %v5071, %v5709
      %v5750 = vadd.f32 %v5072, %v5714
      %v5751 = vadd.f32 %v5073, %v5717
      %v5752 = vld [vmem:[%s170] sm:$0xf]
      %v5753 = vld [vmem:[%s170 + $0x4] sm:$0xf]
      %v5754 = vld [vmem:[%s170 + $0xc] sm:$0xf]
      %v5755 = vld [vmem:[%s170 + $0x10] sm:$0xf]
      %v5756 = vld [vmem:[%s170 + $0x18] sm:$0xf]
      %v5757 = vld [vmem:[%s170 + $0x1c] sm:$0xf]
      %v5758 = vld [vmem:[%s170 + $0x24] sm:$0xf]
      %v5759 = vld [vmem:[%s170 + $0x28] sm:$0xf]
      %v5760 = vld [vmem:[%s170 + $0x30] sm:$0xf]
      %v5761 = vld [vmem:[%s170 + $0x34] sm:$0xf]
      %v5762 = vld [vmem:[%s170 + $0x3c] sm:$0xf]
      %v5763 = vld [vmem:[%s170 + $0x40] sm:$0xf]
      %v5764 = vld [vmem:[%s170 + $0x48] sm:$0xf]
      %v5765 = vld [vmem:[%s170 + $0x4c] sm:$0xf]
      %v5766 = vld [vmem:[%s170 + $0x54] sm:$0xf]
      %v5767 = vld [vmem:[%s170 + $0x58] sm:$0xf]
      %v5768 = vld [vmem:[%s170 + $0x60] sm:$0xf]
      %v5769 = vld [vmem:[%s170 + $0x64] sm:$0xf]
      %v5770 = vld [vmem:[%s170 + $0x6c] sm:$0xf]
      %v5771 = vld [vmem:[%s170 + $0x70] sm:$0xf]
      %v5772 = vld [vmem:[%s170 + $0x78] sm:$0xf]
      %v5773 = vld [vmem:[%s170 + $0x7c] sm:$0xf]
      %v5774 = vld [vmem:[%s170 + $0x84] sm:$0xf]
      %v5775 = vld [vmem:[%s170 + $0x88] sm:$0xf]
      %v5776 = vld [vmem:[%s170 + $0x90] sm:$0xf]
      %v5777 = vld [vmem:[%s170 + $0x94] sm:$0xf]
      %v5778 = vld [vmem:[%s170 + $0x9c] sm:$0xf]
      %v5779 = vld [vmem:[%s170 + $0xa0] sm:$0xf]
      %v5780 = vld [vmem:[%s170 + $0xa8] sm:$0xf]
      %v5781 = vld [vmem:[%s170 + $0xac] sm:$0xf]
      %v5782 = vld [vmem:[%s170 + $0xb4] sm:$0xf]
      %v5783 = vld [vmem:[%s170 + $0xb8] sm:$0xf]
      %s5784 = scalar_lea.vmem %s1, 36
      %v5785 = vld [vmem:[%s5784] sm:$0xf]
      %v5818 = vunpack.c.l.b16 %v5752
      %v5819 = vunpack.c.l.b16 %v5753
      %v5820 = vunpack.c.l.b16 %v5754
      %v5821 = vunpack.c.l.b16 %v5755
      %v5822 = vunpack.c.l.b16 %v5756
      %v5823 = vunpack.c.l.b16 %v5757
      %v5824 = vunpack.c.l.b16 %v5758
      %v5825 = vunpack.c.l.b16 %v5759
      %v5826 = vunpack.c.l.b16 %v5760
      %v5827 = vunpack.c.l.b16 %v5761
      %v5828 = vunpack.c.l.b16 %v5762
      %v5829 = vunpack.c.l.b16 %v5763
      %v5830 = vunpack.c.l.b16 %v5764
      %v5831 = vunpack.c.l.b16 %v5765
      %v5832 = vunpack.c.l.b16 %v5766
      %v5833 = vunpack.c.l.b16 %v5767
      %v5834 = vunpack.c.l.b16 %v5768
      %v5835 = vunpack.c.l.b16 %v5769
      %v5836 = vunpack.c.l.b16 %v5770
      %v5837 = vunpack.c.l.b16 %v5771
      %v5838 = vunpack.c.l.b16 %v5772
      %v5839 = vunpack.c.l.b16 %v5773
      %v5840 = vunpack.c.l.b16 %v5774
      %v5841 = vunpack.c.l.b16 %v5775
      %v5842 = vunpack.c.l.b16 %v5776
      %v5843 = vunpack.c.l.b16 %v5777
      %v5844 = vunpack.c.l.b16 %v5778
      %v5845 = vunpack.c.l.b16 %v5779
      %v5846 = vunpack.c.l.b16 %v5780
      %v5847 = vunpack.c.l.b16 %v5781
      %v5848 = vunpack.c.l.b16 %v5782
      %v5849 = vunpack.c.l.b16 %v5783
      %v5850 = vpack.c.b16 %v5819, %v5818
      %v5851 = vpack.c.b16 %v5821, %v5820
      %v5852 = vpack.c.b16 %v5823, %v5822
      %v5853 = vpack.c.b16 %v5825, %v5824
      %v5854 = vpack.c.b16 %v5827, %v5826
      %v5855 = vpack.c.b16 %v5829, %v5828
      %v5856 = vpack.c.b16 %v5831, %v5830
      %v5857 = vpack.c.b16 %v5833, %v5832
      %v5858 = vpack.c.b16 %v5835, %v5834
      %v5859 = vpack.c.b16 %v5837, %v5836
      %v5860 = vpack.c.b16 %v5839, %v5838
      %v5861 = vpack.c.b16 %v5841, %v5840
      %v5862 = vpack.c.b16 %v5843, %v5842
      %v5863 = vpack.c.b16 %v5845, %v5844
      %v5864 = vpack.c.b16 %v5847, %v5846
      %v5865 = vpack.c.b16 %v5849, %v5848
      %v5867 = vsel %vm847, %v5850, 0
      %v5870 = vsel %vm847, %v5851, 0
      %v5873 = vsel %vm847, %v5852, 0
      %v5876 = vsel %vm847, %v5853, 0
      %v5879 = vsel %vm847, %v5854, 0
      %v5882 = vsel %vm847, %v5855, 0
      %v5885 = vsel %vm847, %v5856, 0
      %v5888 = vsel %vm847, %v5857, 0
      %v5891 = vsel %vm847, %v5858, 0
      %v5894 = vsel %vm847, %v5859, 0
      %v5897 = vsel %vm847, %v5860, 0
      %v5900 = vsel %vm847, %v5861, 0
      %v5903 = vsel %vm847, %v5862, 0
      %v5906 = vsel %vm847, %v5863, 0
      %v5909 = vsel %vm847, %v5864, 0
      %v5912 = vsel %vm847, %v5865, 0
      %v5915 = vsel %vm896, %v5785, 0
      %5917 = vmatprep.subr.bf16.mxu0 0
      %5918 = vmatpush1.bf16.msra.mxu0 %v5915
      %5919 = vmatprep.subr.bf16.mxu0 0
      %5920 = vmatpush1.bf16.msra.mxu0 0
      %5921 = vmatprep.subr.bf16.mxu0 0
      %5922 = vmatpush1.bf16.msra.mxu0 0
      %5923 = vmatprep.subr.bf16.mxu0 0
      %5924 = vmatpush1.bf16.msra.mxu0 0
      %5925 = vmatprep.subr.bf16.mxu0 0
      %5926 = vmatpush1.bf16.msra.mxu0 0
      %5927 = vmatprep.subr.bf16.mxu0 0
      %5928 = vmatpush1.bf16.msra.mxu0 0
      %5929 = vmatprep.subr.bf16.mxu0 0
      %5930 = vmatpush1.bf16.msra.mxu0 0
      %5931 = vmatprep.subr.bf16.mxu0 0
      %5932 = vmatpush1.bf16.msra.mxu0 0
      %5933 = vmatprep.subr.bf16.mxu0 0
      %5934 = vmatpush1.bf16.msra.mxu0 0
      %5935 = vmatprep.subr.bf16.mxu0 0
      %5936 = vmatpush1.bf16.msra.mxu0 0
      %5937 = vmatprep.subr.bf16.mxu0 0
      %5938 = vmatpush1.bf16.msra.mxu0 0
      %5939 = vmatprep.subr.bf16.mxu0 0
      %5940 = vmatpush1.bf16.msra.mxu0 0
      %5941 = vmatprep.subr.bf16.mxu0 0
      %5942 = vmatpush1.bf16.msra.mxu0 0
      %5943 = vmatprep.subr.bf16.mxu0 0
      %5944 = vmatpush1.bf16.msra.mxu0 0
      %5945 = vmatprep.subr.bf16.mxu0 0
      %5946 = vmatpush1.bf16.msra.mxu0 0
      %5947 = vmatprep.subr.bf16.mxu0 0
      %5948 = vmatpush1.bf16.msra.mxu0 0
      %5949 = vmatprep.mubr.bf16.mxu0 0
      %5950 = vmatmul.mubr.bf16.gmra.mrb[0].mxu0 %v5867
      %v5951 = vpop.f32.mrb[0].mxu0
      %v5952 = vadd.f32 0.0, %v5951
      %v5953 = vpop.f32.mrb[0].mxu0
      %v5954 = vpop.f32.mrb[0].mxu0
      %v5955 = vadd.f32 0.0, %v5954
      %v5956 = vpop.f32.mrb[0].mxu0
      %5957 = vmatprep.mubr.bf16.mxu0 0
      %5958 = vmatmul.mubr.bf16.gmra.mrb[0].mxu0 %v5870
      %v5959 = vpop.f32.mrb[0].mxu0
      %v5960 = vadd.f32 0.0, %v5959
      %v5961 = vpop.f32.mrb[0].mxu0
      %v5962 = vpop.f32.mrb[0].mxu0
      %v5963 = vadd.f32 0.0, %v5962
      %v5964 = vpop.f32.mrb[0].mxu0
      %5965 = vmatprep.mubr.bf16.mxu0 0
      %5966 = vmatmul.mubr.bf16.gmra.mrb[0].mxu0 %v5873
      %v5967 = vpop.f32.mrb[0].mxu0
      %v5968 = vadd.f32 0.0, %v5967
      %v5969 = vpop.f32.mrb[0].mxu0
      %v5970 = vpop.f32.mrb[0].mxu0
      %v5971 = vadd.f32 0.0, %v5970
      %v5972 = vpop.f32.mrb[0].mxu0
      %5973 = vmatprep.mubr.bf16.mxu0 0
      %5974 = vmatmul.mubr.bf16.gmra.mrb[0].mxu0 %v5876
      %v5975 = vpop.f32.mrb[0].mxu0
      %v5976 = vadd.f32 0.0, %v5975
      %v5977 = vpop.f32.mrb[0].mxu0
      %v5978 = vpop.f32.mrb[0].mxu0
      %v5979 = vadd.f32 0.0, %v5978
      %v5980 = vpop.f32.mrb[0].mxu0
      %5981 = vmatprep.mubr.bf16.mxu0 0
      %5982 = vmatmul.mubr.bf16.gmra.mrb[0].mxu0 %v5879
      %v5983 = vpop.f32.mrb[0].mxu0
      %v5984 = vadd.f32 0.0, %v5983
      %v5985 = vpop.f32.mrb[0].mxu0
      %v5986 = vpop.f32.mrb[0].mxu0
      %v5987 = vadd.f32 0.0, %v5986
      %v5988 = vpop.f32.mrb[0].mxu0
      %5989 = vmatprep.mubr.bf16.mxu0 0
      %5990 = vmatmul.mubr.bf16.gmra.mrb[0].mxu0 %v5882
      %v5991 = vpop.f32.mrb[0].mxu0
      %v5992 = vadd.f32 0.0, %v5991
      %v5993 = vpop.f32.mrb[0].mxu0
      %v5994 = vpop.f32.mrb[0].mxu0
      %v5995 = vadd.f32 0.0, %v5994
      %v5996 = vpop.f32.mrb[0].mxu0
      %5997 = vmatprep.mubr.bf16.mxu0 0
      %5998 = vmatmul.mubr.bf16.gmra.mrb[0].mxu0 %v5885
      %v5999 = vpop.f32.mrb[0].mxu0
      %v6000 = vadd.f32 0.0, %v5999
      %v6001 = vpop.f32.mrb[0].mxu0
      %v6002 = vpop.f32.mrb[0].mxu0
      %v6003 = vadd.f32 0.0, %v6002
      %v6004 = vpop.f32.mrb[0].mxu0
      %6005 = vmatprep.mubr.bf16.mxu0 0
      %6006 = vmatmul.mubr.bf16.gmra.mrb[0].mxu0 %v5888
      %v6007 = vpop.f32.mrb[0].mxu0
      %v6008 = vadd.f32 0.0, %v6007
      %v6009 = vpop.f32.mrb[0].mxu0
      %v6010 = vpop.f32.mrb[0].mxu0
      %v6011 = vadd.f32 0.0, %v6010
      %v6012 = vpop.f32.mrb[0].mxu0
      %6013 = vmatprep.mubr.bf16.mxu0 0
      %6014 = vmatmul.mubr.bf16.gmra.mrb[0].mxu0 %v5891
      %v6015 = vpop.f32.mrb[0].mxu0
      %v6016 = vadd.f32 0.0, %v6015
      %v6017 = vpop.f32.mrb[0].mxu0
      %v6018 = vpop.f32.mrb[0].mxu0
      %v6019 = vadd.f32 0.0, %v6018
      %v6020 = vpop.f32.mrb[0].mxu0
      %6021 = vmatprep.mubr.bf16.mxu0 0
      %6022 = vmatmul.mubr.bf16.gmra.mrb[0].mxu0 %v5894
      %v6023 = vpop.f32.mrb[0].mxu0
      %v6024 = vadd.f32 0.0, %v6023
      %v6025 = vpop.f32.mrb[0].mxu0
      %v6026 = vpop.f32.mrb[0].mxu0
      %v6027 = vadd.f32 0.0, %v6026
      %v6028 = vpop.f32.mrb[0].mxu0
      %6029 = vmatprep.mubr.bf16.mxu0 0
      %6030 = vmatmul.mubr.bf16.gmra.mrb[0].mxu0 %v5897
      %v6031 = vpop.f32.mrb[0].mxu0
      %v6032 = vadd.f32 0.0, %v6031
      %v6033 = vpop.f32.mrb[0].mxu0
      %v6034 = vpop.f32.mrb[0].mxu0
      %v6035 = vadd.f32 0.0, %v6034
      %v6036 = vpop.f32.mrb[0].mxu0
      %6037 = vmatprep.mubr.bf16.mxu0 0
      %6038 = vmatmul.mubr.bf16.gmra.mrb[0].mxu0 %v5900
      %v6039 = vpop.f32.mrb[0].mxu0
      %v6040 = vadd.f32 0.0, %v6039
      %v6041 = vpop.f32.mrb[0].mxu0
      %v6042 = vpop.f32.mrb[0].mxu0
      %v6043 = vadd.f32 0.0, %v6042
      %v6044 = vpop.f32.mrb[0].mxu0
      %6045 = vmatprep.mubr.bf16.mxu0 0
      %6046 = vmatmul.mubr.bf16.gmra.mrb[0].mxu0 %v5903
      %v6047 = vpop.f32.mrb[0].mxu0
      %v6048 = vadd.f32 0.0, %v6047
      %v6049 = vpop.f32.mrb[0].mxu0
      %v6050 = vpop.f32.mrb[0].mxu0
      %v6051 = vadd.f32 0.0, %v6050
      %v6052 = vpop.f32.mrb[0].mxu0
      %6053 = vmatprep.mubr.bf16.mxu0 0
      %6054 = vmatmul.mubr.bf16.gmra.mrb[0].mxu0 %v5906
      %v6055 = vpop.f32.mrb[0].mxu0
      %v6056 = vadd.f32 0.0, %v6055
      %v6057 = vpop.f32.mrb[0].mxu0
      %v6058 = vpop.f32.mrb[0].mxu0
      %v6059 = vadd.f32 0.0, %v6058
      %v6060 = vpop.f32.mrb[0].mxu0
      %6061 = vmatprep.mubr.bf16.mxu0 0
      %6062 = vmatmul.mubr.bf16.gmra.mrb[0].mxu0 %v5909
      %v6063 = vpop.f32.mrb[0].mxu0
      %v6064 = vadd.f32 0.0, %v6063
      %v6065 = vpop.f32.mrb[0].mxu0
      %v6066 = vpop.f32.mrb[0].mxu0
      %v6067 = vadd.f32 0.0, %v6066
      %v6068 = vpop.f32.mrb[0].mxu0
      %6069 = vmatprep.mubr.bf16.mxu0 0
      %6070 = vmatmul.mubr.bf16.gmra.mrb[0].mxu0 %v5912
      %v6071 = vpop.f32.mrb[0].mxu0
      %v6072 = vadd.f32 0.0, %v6071
      %v6073 = vpop.f32.mrb[0].mxu0
      %v6074 = vpop.f32.mrb[0].mxu0
      %v6075 = vadd.f32 0.0, %v6074
      %v6076 = vpop.f32.mrb[0].mxu0
      %6077 = vdwg.mxu0
      %v6078 = vadd.f32 %v5720, %v5952
      %v6079 = vadd.f32 %v5721, %v5955
      %v6080 = vadd.f32 %v5722, %v5960
      %v6081 = vadd.f32 %v5723, %v5963
      %v6082 = vadd.f32 %v5724, %v5968
      %v6083 = vadd.f32 %v5725, %v5971
      %v6084 = vadd.f32 %v5726, %v5976
      %v6085 = vadd.f32 %v5727, %v5979
      %v6086 = vadd.f32 %v5728, %v5984
      %v6087 = vadd.f32 %v5729, %v5987
      %v6088 = vadd.f32 %v5730, %v5992
      %v6089 = vadd.f32 %v5731, %v5995
      %v6090 = vadd.f32 %v5732, %v6000
      %v6091 = vadd.f32 %v5733, %v6003
      %v6092 = vadd.f32 %v5734, %v6008
      %v6093 = vadd.f32 %v5735, %v6011
      %v6094 = vadd.f32 %v5736, %v6016
      %v6095 = vadd.f32 %v5737, %v6019
      %v6096 = vadd.f32 %v5738, %v6024
      %v6097 = vadd.f32 %v5739, %v6027
      %v6098 = vadd.f32 %v5740, %v6032
      %v6099 = vadd.f32 %v5741, %v6035
      %v6100 = vadd.f32 %v5742, %v6040
      %v6101 = vadd.f32 %v5743, %v6043
      %v6102 = vadd.f32 %v5744, %v6048
      %v6103 = vadd.f32 %v5745, %v6051
      %v6104 = vadd.f32 %v5746, %v6056
      %v6105 = vadd.f32 %v5747, %v6059
      %v6106 = vadd.f32 %v5748, %v6064
      %v6107 = vadd.f32 %v5749, %v6067
      %v6108 = vadd.f32 %v5750, %v6072
      %v6109 = vadd.f32 %v5751, %v6075
      %v6110 = vld [vmem:[%s170] sm:$0xe]
      %v6111 = vld [vmem:[%s170 + $0x4] sm:$0xf]
      %v6112 = vld [vmem:[%s170 + $0x8] sm:$0x1]
      %v6113 = vld [vmem:[%s170 + $0xc] sm:$0xe]
      %v6114 = vld [vmem:[%s170 + $0x10] sm:$0xf]
      %v6115 = vld [vmem:[%s170 + $0x14] sm:$0x1]
      %v6116 = vld [vmem:[%s170 + $0x18] sm:$0xe]
      %v6117 = vld [vmem:[%s170 + $0x1c] sm:$0xf]
      %v6118 = vld [vmem:[%s170 + $0x20] sm:$0x1]
      %v6119 = vld [vmem:[%s170 + $0x24] sm:$0xe]
      %v6120 = vld [vmem:[%s170 + $0x28] sm:$0xf]
      %v6121 = vld [vmem:[%s170 + $0x2c] sm:$0x1]
      %v6122 = vld [vmem:[%s170 + $0x30] sm:$0xe]
      %v6123 = vld [vmem:[%s170 + $0x34] sm:$0xf]
      %v6124 = vld [vmem:[%s170 + $0x38] sm:$0x1]
      %v6125 = vld [vmem:[%s170 + $0x3c] sm:$0xe]
      %v6126 = vld [vmem:[%s170 + $0x40] sm:$0xf]
      %v6127 = vld [vmem:[%s170 + $0x44] sm:$0x1]
      %v6128 = vld [vmem:[%s170 + $0x48] sm:$0xe]
      %v6129 = vld [vmem:[%s170 + $0x4c] sm:$0xf]
      %v6130 = vld [vmem:[%s170 + $0x50] sm:$0x1]
      %v6131 = vld [vmem:[%s170 + $0x54] sm:$0xe]
      %v6132 = vld [vmem:[%s170 + $0x58] sm:$0xf]
      %v6133 = vld [vmem:[%s170 + $0x5c] sm:$0x1]
      %v6134 = vld [vmem:[%s170 + $0x60] sm:$0xe]
      %v6135 = vld [vmem:[%s170 + $0x64] sm:$0xf]
      %v6136 = vld [vmem:[%s170 + $0x68] sm:$0x1]
      %v6137 = vld [vmem:[%s170 + $0x6c] sm:$0xe]
      %v6138 = vld [vmem:[%s170 + $0x70] sm:$0xf]
      %v6139 = vld [vmem:[%s170 + $0x74] sm:$0x1]
      %v6140 = vld [vmem:[%s170 + $0x78] sm:$0xe]
      %v6141 = vld [vmem:[%s170 + $0x7c] sm:$0xf]
      %v6142 = vld [vmem:[%s170 + $0x80] sm:$0x1]
      %v6143 = vld [vmem:[%s170 + $0x84] sm:$0xe]
      %v6144 = vld [vmem:[%s170 + $0x88] sm:$0xf]
      %v6145 = vld [vmem:[%s170 + $0x8c] sm:$0x1]
      %v6146 = vld [vmem:[%s170 + $0x90] sm:$0xe]
      %v6147 = vld [vmem:[%s170 + $0x94] sm:$0xf]
      %v6148 = vld [vmem:[%s170 + $0x98] sm:$0x1]
      %v6149 = vld [vmem:[%s170 + $0x9c] sm:$0xe]
      %v6150 = vld [vmem:[%s170 + $0xa0] sm:$0xf]
      %v6151 = vld [vmem:[%s170 + $0xa4] sm:$0x1]
      %v6152 = vld [vmem:[%s170 + $0xa8] sm:$0xe]
      %v6153 = vld [vmem:[%s170 + $0xac] sm:$0xf]
      %v6154 = vld [vmem:[%s170 + $0xb0] sm:$0x1]
      %v6155 = vld [vmem:[%s170 + $0xb4] sm:$0xe]
      %v6156 = vld [vmem:[%s170 + $0xb8] sm:$0xf]
      %v6157 = vld [vmem:[%s170 + $0xbc] sm:$0x1]
      %v6206 = vrot.slane %v6110, 5
      %v6207 = vrot.slane %v6206, 4
      %v6208 = vrot.slane %v6111, 5
      %v6209 = vsel %vm684, %v6207, %v6208
      %v6210 = vrot.slane %v6208, 4
      %v6211 = vrot.slane %v6112, 5
      %v6212 = vsel %vm684, %v6210, %v6211
      %v6213 = vrot.slane %v6113, 5
      %v6214 = vrot.slane %v6213, 4
      %v6215 = vrot.slane %v6114, 5
      %v6216 = vsel %vm684, %v6214, %v6215
      %v6217 = vrot.slane %v6215, 4
      %v6218 = vrot.slane %v6115, 5
      %v6219 = vsel %vm684, %v6217, %v6218
      %v6220 = vrot.slane %v6116, 5
      %v6221 = vrot.slane %v6220, 4
      %v6222 = vrot.slane %v6117, 5
      %v6223 = vsel %vm684, %v6221, %v6222
      %v6224 = vrot.slane %v6222, 4
      %v6225 = vrot.slane %v6118, 5
      %v6226 = vsel %vm684, %v6224, %v6225
      %v6227 = vrot.slane %v6119, 5
      %v6228 = vrot.slane %v6227, 4
      %v6229 = vrot.slane %v6120, 5
      %v6230 = vsel %vm684, %v6228, %v6229
      %v6231 = vrot.slane %v6229, 4
      %v6232 = vrot.slane %v6121, 5
      %v6233 = vsel %vm684, %v6231, %v6232
      %v6234 = vrot.slane %v6122, 5
      %v6235 = vrot.slane %v6234, 4
      %v6236 = vrot.slane %v6123, 5
      %v6237 = vsel %vm684, %v6235, %v6236
      %v6238 = vrot.slane %v6236, 4
      %v6239 = vrot.slane %v6124, 5
      %v6240 = vsel %vm684, %v6238, %v6239
      %v6241 = vrot.slane %v6125, 5
      %v6242 = vrot.slane %v6241, 4
      %v6243 = vrot.slane %v6126, 5
      %v6244 = vsel %vm684, %v6242, %v6243
      %v6245 = vrot.slane %v6243, 4
      %v6246 = vrot.slane %v6127, 5
      %v6247 = vsel %vm684, %v6245, %v6246
      %v6248 = vrot.slane %v6128, 5
      %v6249 = vrot.slane %v6248, 4
      %v6250 = vrot.slane %v6129, 5
      %v6251 = vsel %vm684, %v6249, %v6250
      %v6252 = vrot.slane %v6250, 4
      %v6253 = vrot.slane %v6130, 5
      %v6254 = vsel %vm684, %v6252, %v6253
      %v6255 = vrot.slane %v6131, 5
      %v6256 = vrot.slane %v6255, 4
      %v6257 = vrot.slane %v6132, 5
      %v6258 = vsel %vm684, %v6256, %v6257
      %v6259 = vrot.slane %v6257, 4
      %v6260 = vrot.slane %v6133, 5
      %v6261 = vsel %vm684, %v6259, %v6260
      %v6262 = vrot.slane %v6134, 5
      %v6263 = vrot.slane %v6262, 4
      %v6264 = vrot.slane %v6135, 5
      %v6265 = vsel %vm684, %v6263, %v6264
      %v6266 = vrot.slane %v6264, 4
      %v6267 = vrot.slane %v6136, 5
      %v6268 = vsel %vm684, %v6266, %v6267
      %v6269 = vrot.slane %v6137, 5
      %v6270 = vrot.slane %v6269, 4
      %v6271 = vrot.slane %v6138, 5
      %v6272 = vsel %vm684, %v6270, %v6271
      %v6273 = vrot.slane %v6271, 4
      %v6274 = vrot.slane %v6139, 5
      %v6275 = vsel %vm684, %v6273, %v6274
      %v6276 = vrot.slane %v6140, 5
      %v6277 = vrot.slane %v6276, 4
      %v6278 = vrot.slane %v6141, 5
      %v6279 = vsel %vm684, %v6277, %v6278
      %v6280 = vrot.slane %v6278, 4
      %v6281 = vrot.slane %v6142, 5
      %v6282 = vsel %vm684, %v6280, %v6281
      %v6283 = vrot.slane %v6143, 5
      %v6284 = vrot.slane %v6283, 4
      %v6285 = vrot.slane %v6144, 5
      %v6286 = vsel %vm684, %v6284, %v6285
      %v6287 = vrot.slane %v6285, 4
      %v6288 = vrot.slane %v6145, 5
      %v6289 = vsel %vm684, %v6287, %v6288
      %v6290 = vrot.slane %v6146, 5
      %v6291 = vrot.slane %v6290, 4
      %v6292 = vrot.slane %v6147, 5
      %v6293 = vsel %vm684, %v6291, %v6292
      %v6294 = vrot.slane %v6292, 4
      %v6295 = vrot.slane %v6148, 5
      %v6296 = vsel %vm684, %v6294, %v6295
      %v6297 = vrot.slane %v6149, 5
      %v6298 = vrot.slane %v6297, 4
      %v6299 = vrot.slane %v6150, 5
      %v6300 = vsel %vm684, %v6298, %v6299
      %v6301 = vrot.slane %v6299, 4
      %v6302 = vrot.slane %v6151, 5
      %v6303 = vsel %vm684, %v6301, %v6302
      %v6304 = vrot.slane %v6152, 5
      %v6305 = vrot.slane %v6304, 4
      %v6306 = vrot.slane %v6153, 5
      %v6307 = vsel %vm684, %v6305, %v6306
      %v6308 = vrot.slane %v6306, 4
      %v6309 = vrot.slane %v6154, 5
      %v6310 = vsel %vm684, %v6308, %v6309
      %v6311 = vrot.slane %v6155, 5
      %v6312 = vrot.slane %v6311, 4
      %v6313 = vrot.slane %v6156, 5
      %v6314 = vsel %vm684, %v6312, %v6313
      %v6315 = vrot.slane %v6313, 4
      %v6316 = vrot.slane %v6157, 5
      %v6317 = vsel %vm684, %v6315, %v6316
      %s6318 = scalar_lea.vmem %s1, 40
      %v6319 = vld [vmem:[%s6318] sm:$0xf]
      %v6320 = vunpack.c.l.b16 %v6209
      %v6321 = vunpack.c.l.b16 %v6212
      %v6322 = vunpack.c.l.b16 %v6216
      %v6323 = vunpack.c.l.b16 %v6219
      %v6324 = vunpack.c.l.b16 %v6223
      %v6325 = vunpack.c.l.b16 %v6226
      %v6326 = vunpack.c.l.b16 %v6230
      %v6327 = vunpack.c.l.b16 %v6233
      %v6328 = vunpack.c.l.b16 %v6237
      %v6329 = vunpack.c.l.b16 %v6240
      %v6330 = vunpack.c.l.b16 %v6244
      %v6331 = vunpack.c.l.b16 %v6247
      %v6332 = vunpack.c.l.b16 %v6251
      %v6333 = vunpack.c.l.b16 %v6254
      %v6334 = vunpack.c.l.b16 %v6258
      %v6335 = vunpack.c.l.b16 %v6261
      %v6336 = vunpack.c.l.b16 %v6265
      %v6337 = vunpack.c.l.b16 %v6268
      %v6338 = vunpack.c.l.b16 %v6272
      %v6339 = vunpack.c.l.b16 %v6275
      %v6340 = vunpack.c.l.b16 %v6279
      %v6341 = vunpack.c.l.b16 %v6282
      %v6342 = vunpack.c.l.b16 %v6286
      %v6343 = vunpack.c.l.b16 %v6289
      %v6344 = vunpack.c.l.b16 %v6293
      %v6345 = vunpack.c.l.b16 %v6296
      %v6346 = vunpack.c.l.b16 %v6300
      %v6347 = vunpack.c.l.b16 %v6303
      %v6348 = vunpack.c.l.b16 %v6307
      %v6349 = vunpack.c.l.b16 %v6310
      %v6350 = vunpack.c.l.b16 %v6314
      %v6351 = vunpack.c.l.b16 %v6317
      %v6352 = vpack.c.b16 %v6321, %v6320
      %v6353 = vpack.c.b16 %v6323, %v6322
      %v6354 = vpack.c.b16 %v6325, %v6324
      %v6355 = vpack.c.b16 %v6327, %v6326
      %v6356 = vpack.c.b16 %v6329, %v6328
      %v6357 = vpack.c.b16 %v6331, %v6330
      %v6358 = vpack.c.b16 %v6333, %v6332
      %v6359 = vpack.c.b16 %v6335, %v6334
      %v6360 = vpack.c.b16 %v6337, %v6336
      %v6361 = vpack.c.b16 %v6339, %v6338
      %v6362 = vpack.c.b16 %v6341, %v6340
      %v6363 = vpack.c.b16 %v6343, %v6342
      %v6364 = vpack.c.b16 %v6345, %v6344
      %v6365 = vpack.c.b16 %v6347, %v6346
      %v6366 = vpack.c.b16 %v6349, %v6348
      %v6367 = vpack.c.b16 %v6351, %v6350
      %v6369 = vsel %vm847, %v6352, 0
      %v6372 = vsel %vm847, %v6353, 0
      %v6375 = vsel %vm847, %v6354, 0
      %v6378 = vsel %vm847, %v6355, 0
      %v6381 = vsel %vm847, %v6356, 0
      %v6384 = vsel %vm847, %v6357, 0
      %v6387 = vsel %vm847, %v6358, 0
      %v6390 = vsel %vm847, %v6359, 0
      %v6393 = vsel %vm847, %v6360, 0
      %v6396 = vsel %vm847, %v6361, 0
      %v6399 = vsel %vm847, %v6362, 0
      %v6402 = vsel %vm847, %v6363, 0
      %v6405 = vsel %vm847, %v6364, 0
      %v6408 = vsel %vm847, %v6365, 0
      %v6411 = vsel %vm847, %v6366, 0
      %v6414 = vsel %vm847, %v6367, 0
      %v6417 = vsel %vm896, %v6319, 0
      %6419 = vmatprep.subr.bf16.mxu0 0
      %6420 = vmatpush1.bf16.msra.mxu0 %v6417
      %6421 = vmatprep.subr.bf16.mxu0 0
      %6422 = vmatpush1.bf16.msra.mxu0 0
      %6423 = vmatprep.subr.bf16.mxu0 0
      %6424 = vmatpush1.bf16.msra.mxu0 0
      %6425 = vmatprep.subr.bf16.mxu0 0
      %6426 = vmatpush1.bf16.msra.mxu0 0
      %6427 = vmatprep.subr.bf16.mxu0 0
      %6428 = vmatpush1.bf16.msra.mxu0 0
      %6429 = vmatprep.subr.bf16.mxu0 0
      %6430 = vmatpush1.bf16.msra.mxu0 0
      %6431 = vmatprep.subr.bf16.mxu0 0
      %6432 = vmatpush1.bf16.msra.mxu0 0
      %6433 = vmatprep.subr.bf16.mxu0 0
      %6434 = vmatpush1.bf16.msra.mxu0 0
      %6435 = vmatprep.subr.bf16.mxu0 0
      %6436 = vmatpush1.bf16.msra.mxu0 0
      %6437 = vmatprep.subr.bf16.mxu0 0
      %6438 = vmatpush1.bf16.msra.mxu0 0
      %6439 = vmatprep.subr.bf16.mxu0 0
      %6440 = vmatpush1.bf16.msra.mxu0 0
      %6441 = vmatprep.subr.bf16.mxu0 0
      %6442 = vmatpush1.bf16.msra.mxu0 0
      %6443 = vmatprep.subr.bf16.mxu0 0
      %6444 = vmatpush1.bf16.msra.mxu0 0
      %6445 = vmatprep.subr.bf16.mxu0 0
      %6446 = vmatpush1.bf16.msra.mxu0 0
      %6447 = vmatprep.subr.bf16.mxu0 0
      %6448 = vmatpush1.bf16.msra.mxu0 0
      %6449 = vmatprep.subr.bf16.mxu0 0
      %6450 = vmatpush1.bf16.msra.mxu0 0
      %6451 = vmatprep.mubr.bf16.mxu0 0
      %6452 = vmatmul.mubr.bf16.gmra.mrb[0].mxu0 %v6369
      %v6453 = vpop.f32.mrb[0].mxu0
      %v6454 = vadd.f32 0.0, %v6453
      %v6455 = vpop.f32.mrb[0].mxu0
      %v6456 = vpop.f32.mrb[0].mxu0
      %v6457 = vadd.f32 0.0, %v6456
      %v6458 = vpop.f32.mrb[0].mxu0
      %6459 = vmatprep.mubr.bf16.mxu0 0
      %6460 = vmatmul.mubr.bf16.gmra.mrb[0].mxu0 %v6372
      %v6461 = vpop.f32.mrb[0].mxu0
      %v6462 = vadd.f32 0.0, %v6461
      %v6463 = vpop.f32.mrb[0].mxu0
      %v6464 = vpop.f32.mrb[0].mxu0
      %v6465 = vadd.f32 0.0, %v6464
      %v6466 = vpop.f32.mrb[0].mxu0
      %6467 = vmatprep.mubr.bf16.mxu0 0
      %6468 = vmatmul.mubr.bf16.gmra.mrb[0].mxu0 %v6375
      %v6469 = vpop.f32.mrb[0].mxu0
      %v6470 = vadd.f32 0.0, %v6469
      %v6471 = vpop.f32.mrb[0].mxu0
      %v6472 = vpop.f32.mrb[0].mxu0
      %v6473 = vadd.f32 0.0, %v6472
      %v6474 = vpop.f32.mrb[0].mxu0
      %6475 = vmatprep.mubr.bf16.mxu0 0
      %6476 = vmatmul.mubr.bf16.gmra.mrb[0].mxu0 %v6378
      %v6477 = vpop.f32.mrb[0].mxu0
      %v6478 = vadd.f32 0.0, %v6477
      %v6479 = vpop.f32.mrb[0].mxu0
      %v6480 = vpop.f32.mrb[0].mxu0
      %v6481 = vadd.f32 0.0, %v6480
      %v6482 = vpop.f32.mrb[0].mxu0
      %6483 = vmatprep.mubr.bf16.mxu0 0
      %6484 = vmatmul.mubr.bf16.gmra.mrb[0].mxu0 %v6381
      %v6485 = vpop.f32.mrb[0].mxu0
      %v6486 = vadd.f32 0.0, %v6485
      %v6487 = vpop.f32.mrb[0].mxu0
      %v6488 = vpop.f32.mrb[0].mxu0
      %v6489 = vadd.f32 0.0, %v6488
      %v6490 = vpop.f32.mrb[0].mxu0
      %6491 = vmatprep.mubr.bf16.mxu0 0
      %6492 = vmatmul.mubr.bf16.gmra.mrb[0].mxu0 %v6384
      %v6493 = vpop.f32.mrb[0].mxu0
      %v6494 = vadd.f32 0.0, %v6493
      %v6495 = vpop.f32.mrb[0].mxu0
      %v6496 = vpop.f32.mrb[0].mxu0
      %v6497 = vadd.f32 0.0, %v6496
      %v6498 = vpop.f32.mrb[0].mxu0
      %6499 = vmatprep.mubr.bf16.mxu0 0
      %6500 = vmatmul.mubr.bf16.gmra.mrb[0].mxu0 %v6387
      %v6501 = vpop.f32.mrb[0].mxu0
      %v6502 = vadd.f32 0.0, %v6501
      %v6503 = vpop.f32.mrb[0].mxu0
      %v6504 = vpop.f32.mrb[0].mxu0
      %v6505 = vadd.f32 0.0, %v6504
      %v6506 = vpop.f32.mrb[0].mxu0
      %6507 = vmatprep.mubr.bf16.mxu0 0
      %6508 = vmatmul.mubr.bf16.gmra.mrb[0].mxu0 %v6390
      %v6509 = vpop.f32.mrb[0].mxu0
      %v6510 = vadd.f32 0.0, %v6509
      %v6511 = vpop.f32.mrb[0].mxu0
      %v6512 = vpop.f32.mrb[0].mxu0
      %v6513 = vadd.f32 0.0, %v6512
      %v6514 = vpop.f32.mrb[0].mxu0
      %6515 = vmatprep.mubr.bf16.mxu0 0
      %6516 = vmatmul.mubr.bf16.gmra.mrb[0].mxu0 %v6393
      %v6517 = vpop.f32.mrb[0].mxu0
      %v6518 = vadd.f32 0.0, %v6517
      %v6519 = vpop.f32.mrb[0].mxu0
      %v6520 = vpop.f32.mrb[0].mxu0
      %v6521 = vadd.f32 0.0, %v6520
      %v6522 = vpop.f32.mrb[0].mxu0
      %6523 = vmatprep.mubr.bf16.mxu0 0
      %6524 = vmatmul.mubr.bf16.gmra.mrb[0].mxu0 %v6396
      %v6525 = vpop.f32.mrb[0].mxu0
      %v6526 = vadd.f32 0.0, %v6525
      %v6527 = vpop.f32.mrb[0].mxu0
      %v6528 = vpop.f32.mrb[0].mxu0
      %v6529 = vadd.f32 0.0, %v6528
      %v6530 = vpop.f32.mrb[0].mxu0
      %6531 = vmatprep.mubr.bf16.mxu0 0
      %6532 = vmatmul.mubr.bf16.gmra.mrb[0].mxu0 %v6399
      %v6533 = vpop.f32.mrb[0].mxu0
      %v6534 = vadd.f32 0.0, %v6533
      %v6535 = vpop.f32.mrb[0].mxu0
      %v6536 = vpop.f32.mrb[0].mxu0
      %v6537 = vadd.f32 0.0, %v6536
      %v6538 = vpop.f32.mrb[0].mxu0
      %6539 = vmatprep.mubr.bf16.mxu0 0
      %6540 = vmatmul.mubr.bf16.gmra.mrb[0].mxu0 %v6402
      %v6541 = vpop.f32.mrb[0].mxu0
      %v6542 = vadd.f32 0.0, %v6541
      %v6543 = vpop.f32.mrb[0].mxu0
      %v6544 = vpop.f32.mrb[0].mxu0
      %v6545 = vadd.f32 0.0, %v6544
      %v6546 = vpop.f32.mrb[0].mxu0
      %6547 = vmatprep.mubr.bf16.mxu0 0
      %6548 = vmatmul.mubr.bf16.gmra.mrb[0].mxu0 %v6405
      %v6549 = vpop.f32.mrb[0].mxu0
      %v6550 = vadd.f32 0.0, %v6549
      %v6551 = vpop.f32.mrb[0].mxu0
      %v6552 = vpop.f32.mrb[0].mxu0
      %v6553 = vadd.f32 0.0, %v6552
      %v6554 = vpop.f32.mrb[0].mxu0
      %6555 = vmatprep.mubr.bf16.mxu0 0
      %6556 = vmatmul.mubr.bf16.gmra.mrb[0].mxu0 %v6408
      %v6557 = vpop.f32.mrb[0].mxu0
      %v6558 = vadd.f32 0.0, %v6557
      %v6559 = vpop.f32.mrb[0].mxu0
      %v6560 = vpop.f32.mrb[0].mxu0
      %v6561 = vadd.f32 0.0, %v6560
      %v6562 = vpop.f32.mrb[0].mxu0
      %6563 = vmatprep.mubr.bf16.mxu0 0
      %6564 = vmatmul.mubr.bf16.gmra.mrb[0].mxu0 %v6411
      %v6565 = vpop.f32.mrb[0].mxu0
      %v6566 = vadd.f32 0.0, %v6565
      %v6567 = vpop.f32.mrb[0].mxu0
      %v6568 = vpop.f32.mrb[0].mxu0
      %v6569 = vadd.f32 0.0, %v6568
      %v6570 = vpop.f32.mrb[0].mxu0
      %6571 = vmatprep.mubr.bf16.mxu0 0
      %6572 = vmatmul.mubr.bf16.gmra.mrb[0].mxu0 %v6414
      %v6573 = vpop.f32.mrb[0].mxu0
      %v6574 = vadd.f32 0.0, %v6573
      %v6575 = vpop.f32.mrb[0].mxu0
      %v6576 = vpop.f32.mrb[0].mxu0
      %v6577 = vadd.f32 0.0, %v6576
      %v6578 = vpop.f32.mrb[0].mxu0
      %6579 = vdwg.mxu0
      %v6580 = vadd.f32 %v6078, %v6454
      %v6581 = vadd.f32 %v6079, %v6457
      %v6582 = vadd.f32 %v6080, %v6462
      %v6583 = vadd.f32 %v6081, %v6465
      %v6584 = vadd.f32 %v6082, %v6470
      %v6585 = vadd.f32 %v6083, %v6473
      %v6586 = vadd.f32 %v6084, %v6478
      %v6587 = vadd.f32 %v6085, %v6481
      %v6588 = vadd.f32 %v6086, %v6486
      %v6589 = vadd.f32 %v6087, %v6489
      %v6590 = vadd.f32 %v6088, %v6494
      %v6591 = vadd.f32 %v6089, %v6497
      %v6592 = vadd.f32 %v6090, %v6502
      %v6593 = vadd.f32 %v6091, %v6505
      %v6594 = vadd.f32 %v6092, %v6510
      %v6595 = vadd.f32 %v6093, %v6513
      %v6596 = vadd.f32 %v6094, %v6518
      %v6597 = vadd.f32 %v6095, %v6521
      %v6598 = vadd.f32 %v6096, %v6526
      %v6599 = vadd.f32 %v6097, %v6529
      %v6600 = vadd.f32 %v6098, %v6534
      %v6601 = vadd.f32 %v6099, %v6537
      %v6602 = vadd.f32 %v6100, %v6542
      %v6603 = vadd.f32 %v6101, %v6545
      %v6604 = vadd.f32 %v6102, %v6550
      %v6605 = vadd.f32 %v6103, %v6553
      %v6606 = vadd.f32 %v6104, %v6558
      %v6607 = vadd.f32 %v6105, %v6561
      %v6608 = vadd.f32 %v6106, %v6566
      %v6609 = vadd.f32 %v6107, %v6569
      %v6610 = vadd.f32 %v6108, %v6574
      %v6611 = vadd.f32 %v6109, %v6577
      %v6612 = vld [vmem:[%s170] sm:$0xc]
      %v6613 = vld [vmem:[%s170 + $0x8] sm:$0x3]
      %v6614 = vld [vmem:[%s170 + $0xc] sm:$0xc]
      %v6615 = vld [vmem:[%s170 + $0x14] sm:$0x3]
      %v6616 = vld [vmem:[%s170 + $0x18] sm:$0xc]
      %v6617 = vld [vmem:[%s170 + $0x20] sm:$0x3]
      %v6618 = vld [vmem:[%s170 + $0x24] sm:$0xc]
      %v6619 = vld [vmem:[%s170 + $0x2c] sm:$0x3]
      %v6620 = vld [vmem:[%s170 + $0x30] sm:$0xc]
      %v6621 = vld [vmem:[%s170 + $0x38] sm:$0x3]
      %v6622 = vld [vmem:[%s170 + $0x3c] sm:$0xc]
      %v6623 = vld [vmem:[%s170 + $0x44] sm:$0x3]
      %v6624 = vld [vmem:[%s170 + $0x48] sm:$0xc]
      %v6625 = vld [vmem:[%s170 + $0x50] sm:$0x3]
      %v6626 = vld [vmem:[%s170 + $0x54] sm:$0xc]
      %v6627 = vld [vmem:[%s170 + $0x5c] sm:$0x3]
      %v6628 = vld [vmem:[%s170 + $0x60] sm:$0xc]
      %v6629 = vld [vmem:[%s170 + $0x68] sm:$0x3]
      %v6630 = vld [vmem:[%s170 + $0x6c] sm:$0xc]
      %v6631 = vld [vmem:[%s170 + $0x74] sm:$0x3]
      %v6632 = vld [vmem:[%s170 + $0x78] sm:$0xc]
      %v6633 = vld [vmem:[%s170 + $0x80] sm:$0x3]
      %v6634 = vld [vmem:[%s170 + $0x84] sm:$0xc]
      %v6635 = vld [vmem:[%s170 + $0x8c] sm:$0x3]
      %v6636 = vld [vmem:[%s170 + $0x90] sm:$0xc]
      %v6637 = vld [vmem:[%s170 + $0x98] sm:$0x3]
      %v6638 = vld [vmem:[%s170 + $0x9c] sm:$0xc]
      %v6639 = vld [vmem:[%s170 + $0xa4] sm:$0x3]
      %v6640 = vld [vmem:[%s170 + $0xa8] sm:$0xc]
      %v6641 = vld [vmem:[%s170 + $0xb0] sm:$0x3]
      %v6642 = vld [vmem:[%s170 + $0xb4] sm:$0xc]
      %v6643 = vld [vmem:[%s170 + $0xbc] sm:$0x3]
      %vm6676 = vcmask 1041408
      %vm6677 = vcmask 1045508
      %vm6678 = vmor %vm6676, %vm6677
      %v6679 = vrot.slane %v6612, 6
      %v6680 = vrot.slane %v6679, 4
      %v6681 = vrot.slane %v6111, 6
      %v6682 = vsel %vm6678, %v6680, %v6681
      %v6683 = vrot.slane %v6681, 4
      %v6684 = vrot.slane %v6613, 6
      %v6685 = vsel %vm6678, %v6683, %v6684
      %v6686 = vrot.slane %v6614, 6
      %v6687 = vrot.slane %v6686, 4
      %v6688 = vrot.slane %v6114, 6
      %v6689 = vsel %vm6678, %v6687, %v6688
      %v6690 = vrot.slane %v6688, 4
      %v6691 = vrot.slane %v6615, 6
      %v6692 = vsel %vm6678, %v6690, %v6691
      %v6693 = vrot.slane %v6616, 6
      %v6694 = vrot.slane %v6693, 4
      %v6695 = vrot.slane %v6117, 6
      %v6696 = vsel %vm6678, %v6694, %v6695
      %v6697 = vrot.slane %v6695, 4
      %v6698 = vrot.slane %v6617, 6
      %v6699 = vsel %vm6678, %v6697, %v6698
      %v6700 = vrot.slane %v6618, 6
      %v6701 = vrot.slane %v6700, 4
      %v6702 = vrot.slane %v6120, 6
      %v6703 = vsel %vm6678, %v6701, %v6702
      %v6704 = vrot.slane %v6702, 4
      %v6705 = vrot.slane %v6619, 6
      %v6706 = vsel %vm6678, %v6704, %v6705
      %v6707 = vrot.slane %v6620, 6
      %v6708 = vrot.slane %v6707, 4
      %v6709 = vrot.slane %v6123, 6
      %v6710 = vsel %vm6678, %v6708, %v6709
      %v6711 = vrot.slane %v6709, 4
      %v6712 = vrot.slane %v6621, 6
      %v6713 = vsel %vm6678, %v6711, %v6712
      %v6714 = vrot.slane %v6622, 6
      %v6715 = vrot.slane %v6714, 4
      %v6716 = vrot.slane %v6126, 6
      %v6717 = vsel %vm6678, %v6715, %v6716
      %v6718 = vrot.slane %v6716, 4
      %v6719 = vrot.slane %v6623, 6
      %v6720 = vsel %vm6678, %v6718, %v6719
      %v6721 = vrot.slane %v6624, 6
      %v6722 = vrot.slane %v6721, 4
      %v6723 = vrot.slane %v6129, 6
      %v6724 = vsel %vm6678, %v6722, %v6723
      %v6725 = vrot.slane %v6723, 4
      %v6726 = vrot.slane %v6625, 6
      %v6727 = vsel %vm6678, %v6725, %v6726
      %v6728 = vrot.slane %v6626, 6
      %v6729 = vrot.slane %v6728, 4
      %v6730 = vrot.slane %v6132, 6
      %v6731 = vsel %vm6678, %v6729, %v6730
      %v6732 = vrot.slane %v6730, 4
      %v6733 = vrot.slane %v6627, 6
      %v6734 = vsel %vm6678, %v6732, %v6733
      %v6735 = vrot.slane %v6628, 6
      %v6736 = vrot.slane %v6735, 4
      %v6737 = vrot.slane %v6135, 6
      %v6738 = vsel %vm6678, %v6736, %v6737
      %v6739 = vrot.slane %v6737, 4
      %v6740 = vrot.slane %v6629, 6
      %v6741 = vsel %vm6678, %v6739, %v6740
      %v6742 = vrot.slane %v6630, 6
      %v6743 = vrot.slane %v6742, 4
      %v6744 = vrot.slane %v6138, 6
      %v6745 = vsel %vm6678, %v6743, %v6744
      %v6746 = vrot.slane %v6744, 4
      %v6747 = vrot.slane %v6631, 6
      %v6748 = vsel %vm6678, %v6746, %v6747
      %v6749 = vrot.slane %v6632, 6
      %v6750 = vrot.slane %v6749, 4
      %v6751 = vrot.slane %v6141, 6
      %v6752 = vsel %vm6678, %v6750, %v6751
      %v6753 = vrot.slane %v6751, 4
      %v6754 = vrot.slane %v6633, 6
      %v6755 = vsel %vm6678, %v6753, %v6754
      %v6756 = vrot.slane %v6634, 6
      %v6757 = vrot.slane %v6756, 4
      %v6758 = vrot.slane %v6144, 6
      %v6759 = vsel %vm6678, %v6757, %v6758
      %v6760 = vrot.slane %v6758, 4
      %v6761 = vrot.slane %v6635, 6
      %v6762 = vsel %vm6678, %v6760, %v6761
      %v6763 = vrot.slane %v6636, 6
      %v6764 = vrot.slane %v6763, 4
      %v6765 = vrot.slane %v6147, 6
      %v6766 = vsel %vm6678, %v6764, %v6765
      %v6767 = vrot.slane %v6765, 4
      %v6768 = vrot.slane %v6637, 6
      %v6769 = vsel %vm6678, %v6767, %v6768
      %v6770 = vrot.slane %v6638, 6
      %v6771 = vrot.slane %v6770, 4
      %v6772 = vrot.slane %v6150, 6
      %v6773 = vsel %vm6678, %v6771, %v6772
      %v6774 = vrot.slane %v6772, 4
      %v6775 = vrot.slane %v6639, 6
      %v6776 = vsel %vm6678, %v6774, %v6775
      %v6777 = vrot.slane %v6640, 6
      %v6778 = vrot.slane %v6777, 4
      %v6779 = vrot.slane %v6153, 6
      %v6780 = vsel %vm6678, %v6778, %v6779
      %v6781 = vrot.slane %v6779, 4
      %v6782 = vrot.slane %v6641, 6
      %v6783 = vsel %vm6678, %v6781, %v6782
      %v6784 = vrot.slane %v6642, 6
      %v6785 = vrot.slane %v6784, 4
      %v6786 = vrot.slane %v6156, 6
      %v6787 = vsel %vm6678, %v6785, %v6786
      %v6788 = vrot.slane %v6786, 4
      %v6789 = vrot.slane %v6643, 6
      %v6790 = vsel %vm6678, %v6788, %v6789
      %s6791 = scalar_lea.vmem %s1, 44
      %v6792 = vld [vmem:[%s6791] sm:$0xf]
      %v6793 = vunpack.c.l.b16 %v6682
      %v6794 = vunpack.c.l.b16 %v6685
      %v6795 = vunpack.c.l.b16 %v6689
      %v6796 = vunpack.c.l.b16 %v6692
      %v6797 = vunpack.c.l.b16 %v6696
      %v6798 = vunpack.c.l.b16 %v6699
      %v6799 = vunpack.c.l.b16 %v6703
      %v6800 = vunpack.c.l.b16 %v6706
      %v6801 = vunpack.c.l.b16 %v6710
      %v6802 = vunpack.c.l.b16 %v6713
      %v6803 = vunpack.c.l.b16 %v6717
      %v6804 = vunpack.c.l.b16 %v6720
      %v6805 = vunpack.c.l.b16 %v6724
      %v6806 = vunpack.c.l.b16 %v6727
      %v6807 = vunpack.c.l.b16 %v6731
      %v6808 = vunpack.c.l.b16 %v6734
      %v6809 = vunpack.c.l.b16 %v6738
      %v6810 = vunpack.c.l.b16 %v6741
      %v6811 = vunpack.c.l.b16 %v6745
      %v6812 = vunpack.c.l.b16 %v6748
      %v6813 = vunpack.c.l.b16 %v6752
      %v6814 = vunpack.c.l.b16 %v6755
      %v6815 = vunpack.c.l.b16 %v6759
      %v6816 = vunpack.c.l.b16 %v6762
      %v6817 = vunpack.c.l.b16 %v6766
      %v6818 = vunpack.c.l.b16 %v6769
      %v6819 = vunpack.c.l.b16 %v6773
      %v6820 = vunpack.c.l.b16 %v6776
      %v6821 = vunpack.c.l.b16 %v6780
      %v6822 = vunpack.c.l.b16 %v6783
      %v6823 = vunpack.c.l.b16 %v6787
      %v6824 = vunpack.c.l.b16 %v6790
      %v6825 = vpack.c.b16 %v6794, %v6793
      %v6826 = vpack.c.b16 %v6796, %v6795
      %v6827 = vpack.c.b16 %v6798, %v6797
      %v6828 = vpack.c.b16 %v6800, %v6799
      %v6829 = vpack.c.b16 %v6802, %v6801
      %v6830 = vpack.c.b16 %v6804, %v6803
      %v6831 = vpack.c.b16 %v6806, %v6805
      %v6832 = vpack.c.b16 %v6808, %v6807
      %v6833 = vpack.c.b16 %v6810, %v6809
      %v6834 = vpack.c.b16 %v6812, %v6811
      %v6835 = vpack.c.b16 %v6814, %v6813
      %v6836 = vpack.c.b16 %v6816, %v6815
      %v6837 = vpack.c.b16 %v6818, %v6817
      %v6838 = vpack.c.b16 %v6820, %v6819
      %v6839 = vpack.c.b16 %v6822, %v6821
      %v6840 = vpack.c.b16 %v6824, %v6823
      %v6842 = vsel %vm847, %v6825, 0
      %v6845 = vsel %vm847, %v6826, 0
      %v6848 = vsel %vm847, %v6827, 0
      %v6851 = vsel %vm847, %v6828, 0
      %v6854 = vsel %vm847, %v6829, 0
      %v6857 = vsel %vm847, %v6830, 0
      %v6860 = vsel %vm847, %v6831, 0
      %v6863 = vsel %vm847, %v6832, 0
      %v6866 = vsel %vm847, %v6833, 0
      %v6869 = vsel %vm847, %v6834, 0
      %v6872 = vsel %vm847, %v6835, 0
      %v6875 = vsel %vm847, %v6836, 0
      %v6878 = vsel %vm847, %v6837, 0
      %v6881 = vsel %vm847, %v6838, 0
      %v6884 = vsel %vm847, %v6839, 0
      %v6887 = vsel %vm847, %v6840, 0
      %v6890 = vsel %vm896, %v6792, 0
      %6892 = vmatprep.subr.bf16.mxu0 0
      %6893 = vmatpush1.bf16.msra.mxu0 %v6890
      %6894 = vmatprep.subr.bf16.mxu0 0
      %6895 = vmatpush1.bf16.msra.mxu0 0
      %6896 = vmatprep.subr.bf16.mxu0 0
      %6897 = vmatpush1.bf16.msra.mxu0 0
      %6898 = vmatprep.subr.bf16.mxu0 0
      %6899 = vmatpush1.bf16.msra.mxu0 0
      %6900 = vmatprep.subr.bf16.mxu0 0
      %6901 = vmatpush1.bf16.msra.mxu0 0
      %6902 = vmatprep.subr.bf16.mxu0 0
      %6903 = vmatpush1.bf16.msra.mxu0 0
      %6904 = vmatprep.subr.bf16.mxu0 0
      %6905 = vmatpush1.bf16.msra.mxu0 0
      %6906 = vmatprep.subr.bf16.mxu0 0
      %6907 = vmatpush1.bf16.msra.mxu0 0
      %6908 = vmatprep.subr.bf16.mxu0 0
      %6909 = vmatpush1.bf16.msra.mxu0 0
      %6910 = vmatprep.subr.bf16.mxu0 0
      %6911 = vmatpush1.bf16.msra.mxu0 0
      %6912 = vmatprep.subr.bf16.mxu0 0
      %6913 = vmatpush1.bf16.msra.mxu0 0
      %6914 = vmatprep.subr.bf16.mxu0 0
      %6915 = vmatpush1.bf16.msra.mxu0 0
      %6916 = vmatprep.subr.bf16.mxu0 0
      %6917 = vmatpush1.bf16.msra.mxu0 0
      %6918 = vmatprep.subr.bf16.mxu0 0
      %6919 = vmatpush1.bf16.msra.mxu0 0
      %6920 = vmatprep.subr.bf16.mxu0 0
      %6921 = vmatpush1.bf16.msra.mxu0 0
      %6922 = vmatprep.subr.bf16.mxu0 0
      %6923 = vmatpush1.bf16.msra.mxu0 0
      %6924 = vmatprep.mubr.bf16.mxu0 0
      %6925 = vmatmul.mubr.bf16.gmra.mrb[0].mxu0 %v6842
      %v6926 = vpop.f32.mrb[0].mxu0
      %v6927 = vadd.f32 0.0, %v6926
      %v6928 = vpop.f32.mrb[0].mxu0
      %v6929 = vpop.f32.mrb[0].mxu0
      %v6930 = vadd.f32 0.0, %v6929
      %v6931 = vpop.f32.mrb[0].mxu0
      %6932 = vmatprep.mubr.bf16.mxu0 0
      %6933 = vmatmul.mubr.bf16.gmra.mrb[0].mxu0 %v6845
      %v6934 = vpop.f32.mrb[0].mxu0
      %v6935 = vadd.f32 0.0, %v6934
      %v6936 = vpop.f32.mrb[0].mxu0
      %v6937 = vpop.f32.mrb[0].mxu0
      %v6938 = vadd.f32 0.0, %v6937
      %v6939 = vpop.f32.mrb[0].mxu0
      %6940 = vmatprep.mubr.bf16.mxu0 0
      %6941 = vmatmul.mubr.bf16.gmra.mrb[0].mxu0 %v6848
      %v6942 = vpop.f32.mrb[0].mxu0
      %v6943 = vadd.f32 0.0, %v6942
      %v6944 = vpop.f32.mrb[0].mxu0
      %v6945 = vpop.f32.mrb[0].mxu0
      %v6946 = vadd.f32 0.0, %v6945
      %v6947 = vpop.f32.mrb[0].mxu0
      %6948 = vmatprep.mubr.bf16.mxu0 0
      %6949 = vmatmul.mubr.bf16.gmra.mrb[0].mxu0 %v6851
      %v6950 = vpop.f32.mrb[0].mxu0
      %v6951 = vadd.f32 0.0, %v6950
      %v6952 = vpop.f32.mrb[0].mxu0
      %v6953 = vpop.f32.mrb[0].mxu0
      %v6954 = vadd.f32 0.0, %v6953
      %v6955 = vpop.f32.mrb[0].mxu0
      %6956 = vmatprep.mubr.bf16.mxu0 0
      %6957 = vmatmul.mubr.bf16.gmra.mrb[0].mxu0 %v6854
      %v6958 = vpop.f32.mrb[0].mxu0
      %v6959 = vadd.f32 0.0, %v6958
      %v6960 = vpop.f32.mrb[0].mxu0
      %v6961 = vpop.f32.mrb[0].mxu0
      %v6962 = vadd.f32 0.0, %v6961
      %v6963 = vpop.f32.mrb[0].mxu0
      %6964 = vmatprep.mubr.bf16.mxu0 0
      %6965 = vmatmul.mubr.bf16.gmra.mrb[0].mxu0 %v6857
      %v6966 = vpop.f32.mrb[0].mxu0
      %v6967 = vadd.f32 0.0, %v6966
      %v6968 = vpop.f32.mrb[0].mxu0
      %v6969 = vpop.f32.mrb[0].mxu0
      %v6970 = vadd.f32 0.0, %v6969
      %v6971 = vpop.f32.mrb[0].mxu0
      %6972 = vmatprep.mubr.bf16.mxu0 0
      %6973 = vmatmul.mubr.bf16.gmra.mrb[0].mxu0 %v6860
      %v6974 = vpop.f32.mrb[0].mxu0
      %v6975 = vadd.f32 0.0, %v6974
      %v6976 = vpop.f32.mrb[0].mxu0
      %v6977 = vpop.f32.mrb[0].mxu0
      %v6978 = vadd.f32 0.0, %v6977
      %v6979 = vpop.f32.mrb[0].mxu0
      %6980 = vmatprep.mubr.bf16.mxu0 0
      %6981 = vmatmul.mubr.bf16.gmra.mrb[0].mxu0 %v6863
      %v6982 = vpop.f32.mrb[0].mxu0
      %v6983 = vadd.f32 0.0, %v6982
      %v6984 = vpop.f32.mrb[0].mxu0
      %v6985 = vpop.f32.mrb[0].mxu0
      %v6986 = vadd.f32 0.0, %v6985
      %v6987 = vpop.f32.mrb[0].mxu0
      %6988 = vmatprep.mubr.bf16.mxu0 0
      %6989 = vmatmul.mubr.bf16.gmra.mrb[0].mxu0 %v6866
      %v6990 = vpop.f32.mrb[0].mxu0
      %v6991 = vadd.f32 0.0, %v6990
      %v6992 = vpop.f32.mrb[0].mxu0
      %v6993 = vpop.f32.mrb[0].mxu0
      %v6994 = vadd.f32 0.0, %v6993
      %v6995 = vpop.f32.mrb[0].mxu0
      %6996 = vmatprep.mubr.bf16.mxu0 0
      %6997 = vmatmul.mubr.bf16.gmra.mrb[0].mxu0 %v6869
      %v6998 = vpop.f32.mrb[0].mxu0
      %v6999 = vadd.f32 0.0, %v6998
      %v7000 = vpop.f32.mrb[0].mxu0
      %v7001 = vpop.f32.mrb[0].mxu0
      %v7002 = vadd.f32 0.0, %v7001
      %v7003 = vpop.f32.mrb[0].mxu0
      %7004 = vmatprep.mubr.bf16.mxu0 0
      %7005 = vmatmul.mubr.bf16.gmra.mrb[0].mxu0 %v6872
      %v7006 = vpop.f32.mrb[0].mxu0
      %v7007 = vadd.f32 0.0, %v7006
      %v7008 = vpop.f32.mrb[0].mxu0
      %v7009 = vpop.f32.mrb[0].mxu0
      %v7010 = vadd.f32 0.0, %v7009
      %v7011 = vpop.f32.mrb[0].mxu0
      %7012 = vmatprep.mubr.bf16.mxu0 0
      %7013 = vmatmul.mubr.bf16.gmra.mrb[0].mxu0 %v6875
      %v7014 = vpop.f32.mrb[0].mxu0
      %v7015 = vadd.f32 0.0, %v7014
      %v7016 = vpop.f32.mrb[0].mxu0
      %v7017 = vpop.f32.mrb[0].mxu0
      %v7018 = vadd.f32 0.0, %v7017
      %v7019 = vpop.f32.mrb[0].mxu0
      %7020 = vmatprep.mubr.bf16.mxu0 0
      %7021 = vmatmul.mubr.bf16.gmra.mrb[0].mxu0 %v6878
      %v7022 = vpop.f32.mrb[0].mxu0
      %v7023 = vadd.f32 0.0, %v7022
      %v7024 = vpop.f32.mrb[0].mxu0
      %v7025 = vpop.f32.mrb[0].mxu0
      %v7026 = vadd.f32 0.0, %v7025
      %v7027 = vpop.f32.mrb[0].mxu0
      %7028 = vmatprep.mubr.bf16.mxu0 0
      %7029 = vmatmul.mubr.bf16.gmra.mrb[0].mxu0 %v6881
      %v7030 = vpop.f32.mrb[0].mxu0
      %v7031 = vadd.f32 0.0, %v7030
      %v7032 = vpop.f32.mrb[0].mxu0
      %v7033 = vpop.f32.mrb[0].mxu0
      %v7034 = vadd.f32 0.0, %v7033
      %v7035 = vpop.f32.mrb[0].mxu0
      %7036 = vmatprep.mubr.bf16.mxu0 0
      %7037 = vmatmul.mubr.bf16.gmra.mrb[0].mxu0 %v6884
      %v7038 = vpop.f32.mrb[0].mxu0
      %v7039 = vadd.f32 0.0, %v7038
      %v7040 = vpop.f32.mrb[0].mxu0
      %v7041 = vpop.f32.mrb[0].mxu0
      %v7042 = vadd.f32 0.0, %v7041
      %v7043 = vpop.f32.mrb[0].mxu0
      %7044 = vmatprep.mubr.bf16.mxu0 0
      %7045 = vmatmul.mubr.bf16.gmra.mrb[0].mxu0 %v6887
      %v7046 = vpop.f32.mrb[0].mxu0
      %v7047 = vadd.f32 0.0, %v7046
      %v7048 = vpop.f32.mrb[0].mxu0
      %v7049 = vpop.f32.mrb[0].mxu0
      %v7050 = vadd.f32 0.0, %v7049
      %v7051 = vpop.f32.mrb[0].mxu0
      %7052 = vdwg.mxu0
      %v7053 = vadd.f32 %v6580, %v6927
      %v7054 = vadd.f32 %v6581, %v6930
      %v7055 = vadd.f32 %v6582, %v6935
      %v7056 = vadd.f32 %v6583, %v6938
      %v7057 = vadd.f32 %v6584, %v6943
      %v7058 = vadd.f32 %v6585, %v6946
      %v7059 = vadd.f32 %v6586, %v6951
      %v7060 = vadd.f32 %v6587, %v6954
      %v7061 = vadd.f32 %v6588, %v6959
      %v7062 = vadd.f32 %v6589, %v6962
      %v7063 = vadd.f32 %v6590, %v6967
      %v7064 = vadd.f32 %v6591, %v6970
      %v7065 = vadd.f32 %v6592, %v6975
      %v7066 = vadd.f32 %v6593, %v6978
      %v7067 = vadd.f32 %v6594, %v6983
      %v7068 = vadd.f32 %v6595, %v6986
      %v7069 = vadd.f32 %v6596, %v6991
      %v7070 = vadd.f32 %v6597, %v6994
      %v7071 = vadd.f32 %v6598, %v6999
      %v7072 = vadd.f32 %v6599, %v7002
      %v7073 = vadd.f32 %v6600, %v7007
      %v7074 = vadd.f32 %v6601, %v7010
      %v7075 = vadd.f32 %v6602, %v7015
      %v7076 = vadd.f32 %v6603, %v7018
      %v7077 = vadd.f32 %v6604, %v7023
      %v7078 = vadd.f32 %v6605, %v7026
      %v7079 = vadd.f32 %v6606, %v7031
      %v7080 = vadd.f32 %v6607, %v7034
      %v7081 = vadd.f32 %v6608, %v7039
      %v7082 = vadd.f32 %v6609, %v7042
      %v7083 = vadd.f32 %v6610, %v7047
      %v7084 = vadd.f32 %v6611, %v7050
      %v7085 = vld [vmem:[%s2002] sm:$0xf]
      %v7086 = vld [vmem:[%s2002 + $0x4] sm:$0xf]
      %v7087 = vld [vmem:[%s2002 + $0xc] sm:$0xf]
      %v7088 = vld [vmem:[%s2002 + $0x10] sm:$0xf]
      %v7089 = vld [vmem:[%s2002 + $0x18] sm:$0xf]
      %v7090 = vld [vmem:[%s2002 + $0x1c] sm:$0xf]
      %v7091 = vld [vmem:[%s2002 + $0x24] sm:$0xf]
      %v7092 = vld [vmem:[%s2002 + $0x28] sm:$0xf]
      %v7093 = vld [vmem:[%s2002 + $0x30] sm:$0xf]
      %v7094 = vld [vmem:[%s2002 + $0x34] sm:$0xf]
      %v7095 = vld [vmem:[%s2002 + $0x3c] sm:$0xf]
      %v7096 = vld [vmem:[%s2002 + $0x40] sm:$0xf]
      %v7097 = vld [vmem:[%s2002 + $0x48] sm:$0xf]
      %v7098 = vld [vmem:[%s2002 + $0x4c] sm:$0xf]
      %v7099 = vld [vmem:[%s2002 + $0x54] sm:$0xf]
      %v7100 = vld [vmem:[%s2002 + $0x58] sm:$0xf]
      %v7101 = vld [vmem:[%s2002 + $0x60] sm:$0xf]
      %v7102 = vld [vmem:[%s2002 + $0x64] sm:$0xf]
      %v7103 = vld [vmem:[%s2002 + $0x6c] sm:$0xf]
      %v7104 = vld [vmem:[%s2002 + $0x70] sm:$0xf]
      %v7105 = vld [vmem:[%s2002 + $0x78] sm:$0xf]
      %v7106 = vld [vmem:[%s2002 + $0x7c] sm:$0xf]
      %v7107 = vld [vmem:[%s2002 + $0x84] sm:$0xf]
      %v7108 = vld [vmem:[%s2002 + $0x88] sm:$0xf]
      %v7109 = vld [vmem:[%s2002 + $0x90] sm:$0xf]
      %v7110 = vld [vmem:[%s2002 + $0x94] sm:$0xf]
      %v7111 = vld [vmem:[%s2002 + $0x9c] sm:$0xf]
      %v7112 = vld [vmem:[%s2002 + $0xa0] sm:$0xf]
      %v7113 = vld [vmem:[%s2002 + $0xa8] sm:$0xf]
      %v7114 = vld [vmem:[%s2002 + $0xac] sm:$0xf]
      %v7115 = vld [vmem:[%s2002 + $0xb4] sm:$0xf]
      %v7116 = vld [vmem:[%s2002 + $0xb8] sm:$0xf]
      %s7117 = scalar_lea.vmem %s1, 48
      %v7118 = vld [vmem:[%s7117] sm:$0xf]
      %v7151 = vunpack.c.l.b16 %v7085
      %v7152 = vunpack.c.l.b16 %v7086
      %v7153 = vunpack.c.l.b16 %v7087
      %v7154 = vunpack.c.l.b16 %v7088
      %v7155 = vunpack.c.l.b16 %v7089
      %v7156 = vunpack.c.l.b16 %v7090
      %v7157 = vunpack.c.l.b16 %v7091
      %v7158 = vunpack.c.l.b16 %v7092
      %v7159 = vunpack.c.l.b16 %v7093
      %v7160 = vunpack.c.l.b16 %v7094
      %v7161 = vunpack.c.l.b16 %v7095
      %v7162 = vunpack.c.l.b16 %v7096
      %v7163 = vunpack.c.l.b16 %v7097
      %v7164 = vunpack.c.l.b16 %v7098
      %v7165 = vunpack.c.l.b16 %v7099
      %v7166 = vunpack.c.l.b16 %v7100
      %v7167 = vunpack.c.l.b16 %v7101
      %v7168 = vunpack.c.l.b16 %v7102
      %v7169 = vunpack.c.l.b16 %v7103
      %v7170 = vunpack.c.l.b16 %v7104
      %v7171 = vunpack.c.l.b16 %v7105
      %v7172 = vunpack.c.l.b16 %v7106
      %v7173 = vunpack.c.l.b16 %v7107
      %v7174 = vunpack.c.l.b16 %v7108
      %v7175 = vunpack.c.l.b16 %v7109
      %v7176 = vunpack.c.l.b16 %v7110
      %v7177 = vunpack.c.l.b16 %v7111
      %v7178 = vunpack.c.l.b16 %v7112
      %v7179 = vunpack.c.l.b16 %v7113
      %v7180 = vunpack.c.l.b16 %v7114
      %v7181 = vunpack.c.l.b16 %v7115
      %v7182 = vunpack.c.l.b16 %v7116
      %v7183 = vpack.c.b16 %v7152, %v7151
      %v7184 = vpack.c.b16 %v7154, %v7153
      %v7185 = vpack.c.b16 %v7156, %v7155
      %v7186 = vpack.c.b16 %v7158, %v7157
      %v7187 = vpack.c.b16 %v7160, %v7159
      %v7188 = vpack.c.b16 %v7162, %v7161
      %v7189 = vpack.c.b16 %v7164, %v7163
      %v7190 = vpack.c.b16 %v7166, %v7165
      %v7191 = vpack.c.b16 %v7168, %v7167
      %v7192 = vpack.c.b16 %v7170, %v7169
      %v7193 = vpack.c.b16 %v7172, %v7171
      %v7194 = vpack.c.b16 %v7174, %v7173
      %v7195 = vpack.c.b16 %v7176, %v7175
      %v7196 = vpack.c.b16 %v7178, %v7177
      %v7197 = vpack.c.b16 %v7180, %v7179
      %v7198 = vpack.c.b16 %v7182, %v7181
      %v7200 = vsel %vm847, %v7183, 0
      %v7203 = vsel %vm847, %v7184, 0
      %v7206 = vsel %vm847, %v7185, 0
      %v7209 = vsel %vm847, %v7186, 0
      %v7212 = vsel %vm847, %v7187, 0
      %v7215 = vsel %vm847, %v7188, 0
      %v7218 = vsel %vm847, %v7189, 0
      %v7221 = vsel %vm847, %v7190, 0
      %v7224 = vsel %vm847, %v7191, 0
      %v7227 = vsel %vm847, %v7192, 0
      %v7230 = vsel %vm847, %v7193, 0
      %v7233 = vsel %vm847, %v7194, 0
      %v7236 = vsel %vm847, %v7195, 0
      %v7239 = vsel %vm847, %v7196, 0
      %v7242 = vsel %vm847, %v7197, 0
      %v7245 = vsel %vm847, %v7198, 0
      %v7248 = vsel %vm896, %v7118, 0
      %7250 = vmatprep.subr.bf16.mxu0 0
      %7251 = vmatpush1.bf16.msra.mxu0 %v7248
      %7252 = vmatprep.subr.bf16.mxu0 0
      %7253 = vmatpush1.bf16.msra.mxu0 0
      %7254 = vmatprep.subr.bf16.mxu0 0
      %7255 = vmatpush1.bf16.msra.mxu0 0
      %7256 = vmatprep.subr.bf16.mxu0 0
      %7257 = vmatpush1.bf16.msra.mxu0 0
      %7258 = vmatprep.subr.bf16.mxu0 0
      %7259 = vmatpush1.bf16.msra.mxu0 0
      %7260 = vmatprep.subr.bf16.mxu0 0
      %7261 = vmatpush1.bf16.msra.mxu0 0
      %7262 = vmatprep.subr.bf16.mxu0 0
      %7263 = vmatpush1.bf16.msra.mxu0 0
      %7264 = vmatprep.subr.bf16.mxu0 0
      %7265 = vmatpush1.bf16.msra.mxu0 0
      %7266 = vmatprep.subr.bf16.mxu0 0
      %7267 = vmatpush1.bf16.msra.mxu0 0
      %7268 = vmatprep.subr.bf16.mxu0 0
      %7269 = vmatpush1.bf16.msra.mxu0 0
      %7270 = vmatprep.subr.bf16.mxu0 0
      %7271 = vmatpush1.bf16.msra.mxu0 0
      %7272 = vmatprep.subr.bf16.mxu0 0
      %7273 = vmatpush1.bf16.msra.mxu0 0
      %7274 = vmatprep.subr.bf16.mxu0 0
      %7275 = vmatpush1.bf16.msra.mxu0 0
      %7276 = vmatprep.subr.bf16.mxu0 0
      %7277 = vmatpush1.bf16.msra.mxu0 0
      %7278 = vmatprep.subr.bf16.mxu0 0
      %7279 = vmatpush1.bf16.msra.mxu0 0
      %7280 = vmatprep.subr.bf16.mxu0 0
      %7281 = vmatpush1.bf16.msra.mxu0 0
      %7282 = vmatprep.mubr.bf16.mxu0 0
      %7283 = vmatmul.mubr.bf16.gmra.mrb[0].mxu0 %v7200
      %v7284 = vpop.f32.mrb[0].mxu0
      %v7285 = vadd.f32 0.0, %v7284
      %v7286 = vpop.f32.mrb[0].mxu0
      %v7287 = vpop.f32.mrb[0].mxu0
      %v7288 = vadd.f32 0.0, %v7287
      %v7289 = vpop.f32.mrb[0].mxu0
      %7290 = vmatprep.mubr.bf16.mxu0 0
      %7291 = vmatmul.mubr.bf16.gmra.mrb[0].mxu0 %v7203
      %v7292 = vpop.f32.mrb[0].mxu0
      %v7293 = vadd.f32 0.0, %v7292
      %v7294 = vpop.f32.mrb[0].mxu0
      %v7295 = vpop.f32.mrb[0].mxu0
      %v7296 = vadd.f32 0.0, %v7295
      %v7297 = vpop.f32.mrb[0].mxu0
      %7298 = vmatprep.mubr.bf16.mxu0 0
      %7299 = vmatmul.mubr.bf16.gmra.mrb[0].mxu0 %v7206
      %v7300 = vpop.f32.mrb[0].mxu0
      %v7301 = vadd.f32 0.0, %v7300
      %v7302 = vpop.f32.mrb[0].mxu0
      %v7303 = vpop.f32.mrb[0].mxu0
      %v7304 = vadd.f32 0.0, %v7303
      %v7305 = vpop.f32.mrb[0].mxu0
      %7306 = vmatprep.mubr.bf16.mxu0 0
      %7307 = vmatmul.mubr.bf16.gmra.mrb[0].mxu0 %v7209
      %v7308 = vpop.f32.mrb[0].mxu0
      %v7309 = vadd.f32 0.0, %v7308
      %v7310 = vpop.f32.mrb[0].mxu0
      %v7311 = vpop.f32.mrb[0].mxu0
      %v7312 = vadd.f32 0.0, %v7311
      %v7313 = vpop.f32.mrb[0].mxu0
      %7314 = vmatprep.mubr.bf16.mxu0 0
      %7315 = vmatmul.mubr.bf16.gmra.mrb[0].mxu0 %v7212
      %v7316 = vpop.f32.mrb[0].mxu0
      %v7317 = vadd.f32 0.0, %v7316
      %v7318 = vpop.f32.mrb[0].mxu0
      %v7319 = vpop.f32.mrb[0].mxu0
      %v7320 = vadd.f32 0.0, %v7319
      %v7321 = vpop.f32.mrb[0].mxu0
      %7322 = vmatprep.mubr.bf16.mxu0 0
      %7323 = vmatmul.mubr.bf16.gmra.mrb[0].mxu0 %v7215
      %v7324 = vpop.f32.mrb[0].mxu0
      %v7325 = vadd.f32 0.0, %v7324
      %v7326 = vpop.f32.mrb[0].mxu0
      %v7327 = vpop.f32.mrb[0].mxu0
      %v7328 = vadd.f32 0.0, %v7327
      %v7329 = vpop.f32.mrb[0].mxu0
      %7330 = vmatprep.mubr.bf16.mxu0 0
      %7331 = vmatmul.mubr.bf16.gmra.mrb[0].mxu0 %v7218
      %v7332 = vpop.f32.mrb[0].mxu0
      %v7333 = vadd.f32 0.0, %v7332
      %v7334 = vpop.f32.mrb[0].mxu0
      %v7335 = vpop.f32.mrb[0].mxu0
      %v7336 = vadd.f32 0.0, %v7335
      %v7337 = vpop.f32.mrb[0].mxu0
      %7338 = vmatprep.mubr.bf16.mxu0 0
      %7339 = vmatmul.mubr.bf16.gmra.mrb[0].mxu0 %v7221
      %v7340 = vpop.f32.mrb[0].mxu0
      %v7341 = vadd.f32 0.0, %v7340
      %v7342 = vpop.f32.mrb[0].mxu0
      %v7343 = vpop.f32.mrb[0].mxu0
      %v7344 = vadd.f32 0.0, %v7343
      %v7345 = vpop.f32.mrb[0].mxu0
      %7346 = vmatprep.mubr.bf16.mxu0 0
      %7347 = vmatmul.mubr.bf16.gmra.mrb[0].mxu0 %v7224
      %v7348 = vpop.f32.mrb[0].mxu0
      %v7349 = vadd.f32 0.0, %v7348
      %v7350 = vpop.f32.mrb[0].mxu0
      %v7351 = vpop.f32.mrb[0].mxu0
      %v7352 = vadd.f32 0.0, %v7351
      %v7353 = vpop.f32.mrb[0].mxu0
      %7354 = vmatprep.mubr.bf16.mxu0 0
      %7355 = vmatmul.mubr.bf16.gmra.mrb[0].mxu0 %v7227
      %v7356 = vpop.f32.mrb[0].mxu0
      %v7357 = vadd.f32 0.0, %v7356
      %v7358 = vpop.f32.mrb[0].mxu0
      %v7359 = vpop.f32.mrb[0].mxu0
      %v7360 = vadd.f32 0.0, %v7359
      %v7361 = vpop.f32.mrb[0].mxu0
      %7362 = vmatprep.mubr.bf16.mxu0 0
      %7363 = vmatmul.mubr.bf16.gmra.mrb[0].mxu0 %v7230
      %v7364 = vpop.f32.mrb[0].mxu0
      %v7365 = vadd.f32 0.0, %v7364
      %v7366 = vpop.f32.mrb[0].mxu0
      %v7367 = vpop.f32.mrb[0].mxu0
      %v7368 = vadd.f32 0.0, %v7367
      %v7369 = vpop.f32.mrb[0].mxu0
      %7370 = vmatprep.mubr.bf16.mxu0 0
      %7371 = vmatmul.mubr.bf16.gmra.mrb[0].mxu0 %v7233
      %v7372 = vpop.f32.mrb[0].mxu0
      %v7373 = vadd.f32 0.0, %v7372
      %v7374 = vpop.f32.mrb[0].mxu0
      %v7375 = vpop.f32.mrb[0].mxu0
      %v7376 = vadd.f32 0.0, %v7375
      %v7377 = vpop.f32.mrb[0].mxu0
      %7378 = vmatprep.mubr.bf16.mxu0 0
      %7379 = vmatmul.mubr.bf16.gmra.mrb[0].mxu0 %v7236
      %v7380 = vpop.f32.mrb[0].mxu0
      %v7381 = vadd.f32 0.0, %v7380
      %v7382 = vpop.f32.mrb[0].mxu0
      %v7383 = vpop.f32.mrb[0].mxu0
      %v7384 = vadd.f32 0.0, %v7383
      %v7385 = vpop.f32.mrb[0].mxu0
      %7386 = vmatprep.mubr.bf16.mxu0 0
      %7387 = vmatmul.mubr.bf16.gmra.mrb[0].mxu0 %v7239
      %v7388 = vpop.f32.mrb[0].mxu0
      %v7389 = vadd.f32 0.0, %v7388
      %v7390 = vpop.f32.mrb[0].mxu0
      %v7391 = vpop.f32.mrb[0].mxu0
      %v7392 = vadd.f32 0.0, %v7391
      %v7393 = vpop.f32.mrb[0].mxu0
      %7394 = vmatprep.mubr.bf16.mxu0 0
      %7395 = vmatmul.mubr.bf16.gmra.mrb[0].mxu0 %v7242
      %v7396 = vpop.f32.mrb[0].mxu0
      %v7397 = vadd.f32 0.0, %v7396
      %v7398 = vpop.f32.mrb[0].mxu0
      %v7399 = vpop.f32.mrb[0].mxu0
      %v7400 = vadd.f32 0.0, %v7399
      %v7401 = vpop.f32.mrb[0].mxu0
      %7402 = vmatprep.mubr.bf16.mxu0 0
      %7403 = vmatmul.mubr.bf16.gmra.mrb[0].mxu0 %v7245
      %v7404 = vpop.f32.mrb[0].mxu0
      %v7405 = vadd.f32 0.0, %v7404
      %v7406 = vpop.f32.mrb[0].mxu0
      %v7407 = vpop.f32.mrb[0].mxu0
      %v7408 = vadd.f32 0.0, %v7407
      %v7409 = vpop.f32.mrb[0].mxu0
      %7410 = vdwg.mxu0
      %v7411 = vadd.f32 %v7053, %v7285
      %v7412 = vadd.f32 %v7054, %v7288
      %v7413 = vadd.f32 %v7055, %v7293
      %v7414 = vadd.f32 %v7056, %v7296
      %v7415 = vadd.f32 %v7057, %v7301
      %v7416 = vadd.f32 %v7058, %v7304
      %v7417 = vadd.f32 %v7059, %v7309
      %v7418 = vadd.f32 %v7060, %v7312
      %v7419 = vadd.f32 %v7061, %v7317
      %v7420 = vadd.f32 %v7062, %v7320
      %v7421 = vadd.f32 %v7063, %v7325
      %v7422 = vadd.f32 %v7064, %v7328
      %v7423 = vadd.f32 %v7065, %v7333
      %v7424 = vadd.f32 %v7066, %v7336
      %v7425 = vadd.f32 %v7067, %v7341
      %v7426 = vadd.f32 %v7068, %v7344
      %v7427 = vadd.f32 %v7069, %v7349
      %v7428 = vadd.f32 %v7070, %v7352
      %v7429 = vadd.f32 %v7071, %v7357
      %v7430 = vadd.f32 %v7072, %v7360
      %v7431 = vadd.f32 %v7073, %v7365
      %v7432 = vadd.f32 %v7074, %v7368
      %v7433 = vadd.f32 %v7075, %v7373
      %v7434 = vadd.f32 %v7076, %v7376
      %v7435 = vadd.f32 %v7077, %v7381
      %v7436 = vadd.f32 %v7078, %v7384
      %v7437 = vadd.f32 %v7079, %v7389
      %v7438 = vadd.f32 %v7080, %v7392
      %v7439 = vadd.f32 %v7081, %v7397
      %v7440 = vadd.f32 %v7082, %v7400
      %v7441 = vadd.f32 %v7083, %v7405
      %v7442 = vadd.f32 %v7084, %v7408
      %s7443 = scalar_lea.vmem %s1, 52
      %v7444 = vld [vmem:[%s7443] sm:$0xf]
      %v7446 = vsel %vm896, %v7444, 0
      %7448 = vmatprep.subr.bf16.mxu0 0
      %7449 = vmatpush1.bf16.msra.mxu0 %v7446
      %7450 = vmatprep.subr.bf16.mxu0 0
      %7451 = vmatpush1.bf16.msra.mxu0 0
      %7452 = vmatprep.subr.bf16.mxu0 0
      %7453 = vmatpush1.bf16.msra.mxu0 0
      %7454 = vmatprep.subr.bf16.mxu0 0
      %7455 = vmatpush1.bf16.msra.mxu0 0
      %7456 = vmatprep.subr.bf16.mxu0 0
      %7457 = vmatpush1.bf16.msra.mxu0 0
      %7458 = vmatprep.subr.bf16.mxu0 0
      %7459 = vmatpush1.bf16.msra.mxu0 0
      %7460 = vmatprep.subr.bf16.mxu0 0
      %7461 = vmatpush1.bf16.msra.mxu0 0
      %7462 = vmatprep.subr.bf16.mxu0 0
      %7463 = vmatpush1.bf16.msra.mxu0 0
      %7464 = vmatprep.subr.bf16.mxu0 0
      %7465 = vmatpush1.bf16.msra.mxu0 0
      %7466 = vmatprep.subr.bf16.mxu0 0
      %7467 = vmatpush1.bf16.msra.mxu0 0
      %7468 = vmatprep.subr.bf16.mxu0 0
      %7469 = vmatpush1.bf16.msra.mxu0 0
      %7470 = vmatprep.subr.bf16.mxu0 0
      %7471 = vmatpush1.bf16.msra.mxu0 0
      %7472 = vmatprep.subr.bf16.mxu0 0
      %7473 = vmatpush1.bf16.msra.mxu0 0
      %7474 = vmatprep.subr.bf16.mxu0 0
      %7475 = vmatpush1.bf16.msra.mxu0 0
      %7476 = vmatprep.subr.bf16.mxu0 0
      %7477 = vmatpush1.bf16.msra.mxu0 0
      %7478 = vmatprep.subr.bf16.mxu0 0
      %7479 = vmatpush1.bf16.msra.mxu0 0
      %7480 = vmatprep.mubr.bf16.mxu0 0
      %7481 = vmatmul.mubr.bf16.gmra.mrb[0].mxu0 %v2956
      %v7482 = vpop.f32.mrb[0].mxu0
      %v7483 = vadd.f32 0.0, %v7482
      %v7484 = vpop.f32.mrb[0].mxu0
      %v7485 = vpop.f32.mrb[0].mxu0
      %v7486 = vadd.f32 0.0, %v7485
      %v7487 = vpop.f32.mrb[0].mxu0
      %7488 = vmatprep.mubr.bf16.mxu0 0
      %7489 = vmatmul.mubr.bf16.gmra.mrb[0].mxu0 %v2959
      %v7490 = vpop.f32.mrb[0].mxu0
      %v7491 = vadd.f32 0.0, %v7490
      %v7492 = vpop.f32.mrb[0].mxu0
      %v7493 = vpop.f32.mrb[0].mxu0
      %v7494 = vadd.f32 0.0, %v7493
      %v7495 = vpop.f32.mrb[0].mxu0
      %7496 = vmatprep.mubr.bf16.mxu0 0
      %7497 = vmatmul.mubr.bf16.gmra.mrb[0].mxu0 %v2962
      %v7498 = vpop.f32.mrb[0].mxu0
      %v7499 = vadd.f32 0.0, %v7498
      %v7500 = vpop.f32.mrb[0].mxu0
      %v7501 = vpop.f32.mrb[0].mxu0
      %v7502 = vadd.f32 0.0, %v7501
      %v7503 = vpop.f32.mrb[0].mxu0
      %7504 = vmatprep.mubr.bf16.mxu0 0
      %7505 = vmatmul.mubr.bf16.gmra.mrb[0].mxu0 %v2965
      %v7506 = vpop.f32.mrb[0].mxu0
      %v7507 = vadd.f32 0.0, %v7506
      %v7508 = vpop.f32.mrb[0].mxu0
      %v7509 = vpop.f32.mrb[0].mxu0
      %v7510 = vadd.f32 0.0, %v7509
      %v7511 = vpop.f32.mrb[0].mxu0
      %7512 = vmatprep.mubr.bf16.mxu0 0
      %7513 = vmatmul.mubr.bf16.gmra.mrb[0].mxu0 %v2968
      %v7514 = vpop.f32.mrb[0].mxu0
      %v7515 = vadd.f32 0.0, %v7514
      %v7516 = vpop.f32.mrb[0].mxu0
      %v7517 = vpop.f32.mrb[0].mxu0
      %v7518 = vadd.f32 0.0, %v7517
      %v7519 = vpop.f32.mrb[0].mxu0
      %7520 = vmatprep.mubr.bf16.mxu0 0
      %7521 = vmatmul.mubr.bf16.gmra.mrb[0].mxu0 %v2971
      %v7522 = vpop.f32.mrb[0].mxu0
      %v7523 = vadd.f32 0.0, %v7522
      %v7524 = vpop.f32.mrb[0].mxu0
      %v7525 = vpop.f32.mrb[0].mxu0
      %v7526 = vadd.f32 0.0, %v7525
      %v7527 = vpop.f32.mrb[0].mxu0
      %7528 = vmatprep.mubr.bf16.mxu0 0
      %7529 = vmatmul.mubr.bf16.gmra.mrb[0].mxu0 %v2974
      %v7530 = vpop.f32.mrb[0].mxu0
      %v7531 = vadd.f32 0.0, %v7530
      %v7532 = vpop.f32.mrb[0].mxu0
      %v7533 = vpop.f32.mrb[0].mxu0
      %v7534 = vadd.f32 0.0, %v7533
      %v7535 = vpop.f32.mrb[0].mxu0
      %7536 = vmatprep.mubr.bf16.mxu0 0
      %7537 = vmatmul.mubr.bf16.gmra.mrb[0].mxu0 %v2977
      %v7538 = vpop.f32.mrb[0].mxu0
      %v7539 = vadd.f32 0.0, %v7538
      %v7540 = vpop.f32.mrb[0].mxu0
      %v7541 = vpop.f32.mrb[0].mxu0
      %v7542 = vadd.f32 0.0, %v7541
      %v7543 = vpop.f32.mrb[0].mxu0
      %7544 = vmatprep.mubr.bf16.mxu0 0
      %7545 = vmatmul.mubr.bf16.gmra.mrb[0].mxu0 %v2980
      %v7546 = vpop.f32.mrb[0].mxu0
      %v7547 = vadd.f32 0.0, %v7546
      %v7548 = vpop.f32.mrb[0].mxu0
      %v7549 = vpop.f32.mrb[0].mxu0
      %v7550 = vadd.f32 0.0, %v7549
      %v7551 = vpop.f32.mrb[0].mxu0
      %7552 = vmatprep.mubr.bf16.mxu0 0
      %7553 = vmatmul.mubr.bf16.gmra.mrb[0].mxu0 %v2983
      %v7554 = vpop.f32.mrb[0].mxu0
      %v7555 = vadd.f32 0.0, %v7554
      %v7556 = vpop.f32.mrb[0].mxu0
      %v7557 = vpop.f32.mrb[0].mxu0
      %v7558 = vadd.f32 0.0, %v7557
      %v7559 = vpop.f32.mrb[0].mxu0
      %7560 = vmatprep.mubr.bf16.mxu0 0
      %7561 = vmatmul.mubr.bf16.gmra.mrb[0].mxu0 %v2986
      %v7562 = vpop.f32.mrb[0].mxu0
      %v7563 = vadd.f32 0.0, %v7562
      %v7564 = vpop.f32.mrb[0].mxu0
      %v7565 = vpop.f32.mrb[0].mxu0
      %v7566 = vadd.f32 0.0, %v7565
      %v7567 = vpop.f32.mrb[0].mxu0
      %7568 = vmatprep.mubr.bf16.mxu0 0
      %7569 = vmatmul.mubr.bf16.gmra.mrb[0].mxu0 %v2989
      %v7570 = vpop.f32.mrb[0].mxu0
      %v7571 = vadd.f32 0.0, %v7570
      %v7572 = vpop.f32.mrb[0].mxu0
      %v7573 = vpop.f32.mrb[0].mxu0
      %v7574 = vadd.f32 0.0, %v7573
      %v7575 = vpop.f32.mrb[0].mxu0
      %7576 = vmatprep.mubr.bf16.mxu0 0
      %7577 = vmatmul.mubr.bf16.gmra.mrb[0].mxu0 %v2992
      %v7578 = vpop.f32.mrb[0].mxu0
      %v7579 = vadd.f32 0.0, %v7578
      %v7580 = vpop.f32.mrb[0].mxu0
      %v7581 = vpop.f32.mrb[0].mxu0
      %v7582 = vadd.f32 0.0, %v7581
      %v7583 = vpop.f32.mrb[0].mxu0
      %7584 = vmatprep.mubr.bf16.mxu0 0
      %7585 = vmatmul.mubr.bf16.gmra.mrb[0].mxu0 %v2995
      %v7586 = vpop.f32.mrb[0].mxu0
      %v7587 = vadd.f32 0.0, %v7586
      %v7588 = vpop.f32.mrb[0].mxu0
      %v7589 = vpop.f32.mrb[0].mxu0
      %v7590 = vadd.f32 0.0, %v7589
      %v7591 = vpop.f32.mrb[0].mxu0
      %7592 = vmatprep.mubr.bf16.mxu0 0
      %7593 = vmatmul.mubr.bf16.gmra.mrb[0].mxu0 %v2998
      %v7594 = vpop.f32.mrb[0].mxu0
      %v7595 = vadd.f32 0.0, %v7594
      %v7596 = vpop.f32.mrb[0].mxu0
      %v7597 = vpop.f32.mrb[0].mxu0
      %v7598 = vadd.f32 0.0, %v7597
      %v7599 = vpop.f32.mrb[0].mxu0
      %7600 = vmatprep.mubr.bf16.mxu0 0
      %7601 = vmatmul.mubr.bf16.gmra.mrb[0].mxu0 %v3001
      %v7602 = vpop.f32.mrb[0].mxu0
      %v7603 = vadd.f32 0.0, %v7602
      %v7604 = vpop.f32.mrb[0].mxu0
      %v7605 = vpop.f32.mrb[0].mxu0
      %v7606 = vadd.f32 0.0, %v7605
      %v7607 = vpop.f32.mrb[0].mxu0
      %7608 = vdwg.mxu0
      %v7609 = vadd.f32 %v7411, %v7483
      %v7610 = vadd.f32 %v7412, %v7486
      %v7611 = vadd.f32 %v7413, %v7491
      %v7612 = vadd.f32 %v7414, %v7494
      %v7613 = vadd.f32 %v7415, %v7499
      %v7614 = vadd.f32 %v7416, %v7502
      %v7615 = vadd.f32 %v7417, %v7507
      %v7616 = vadd.f32 %v7418, %v7510
      %v7617 = vadd.f32 %v7419, %v7515
      %v7618 = vadd.f32 %v7420, %v7518
      %v7619 = vadd.f32 %v7421, %v7523
      %v7620 = vadd.f32 %v7422, %v7526
      %v7621 = vadd.f32 %v7423, %v7531
      %v7622 = vadd.f32 %v7424, %v7534
      %v7623 = vadd.f32 %v7425, %v7539
      %v7624 = vadd.f32 %v7426, %v7542
      %v7625 = vadd.f32 %v7427, %v7547
      %v7626 = vadd.f32 %v7428, %v7550
      %v7627 = vadd.f32 %v7429, %v7555
      %v7628 = vadd.f32 %v7430, %v7558
      %v7629 = vadd.f32 %v7431, %v7563
      %v7630 = vadd.f32 %v7432, %v7566
      %v7631 = vadd.f32 %v7433, %v7571
      %v7632 = vadd.f32 %v7434, %v7574
      %v7633 = vadd.f32 %v7435, %v7579
      %v7634 = vadd.f32 %v7436, %v7582
      %v7635 = vadd.f32 %v7437, %v7587
      %v7636 = vadd.f32 %v7438, %v7590
      %v7637 = vadd.f32 %v7439, %v7595
      %v7638 = vadd.f32 %v7440, %v7598
      %v7639 = vadd.f32 %v7441, %v7603
      %v7640 = vadd.f32 %v7442, %v7606
      %v7641 = vld [vmem:[%s2002] sm:$0xc]
      %v7642 = vld [vmem:[%s2002 + $0xc] sm:$0xc]
      %v7643 = vld [vmem:[%s2002 + $0x18] sm:$0xc]
      %v7644 = vld [vmem:[%s2002 + $0x24] sm:$0xc]
      %v7645 = vld [vmem:[%s2002 + $0x30] sm:$0xc]
      %v7646 = vld [vmem:[%s2002 + $0x3c] sm:$0xc]
      %v7647 = vld [vmem:[%s2002 + $0x48] sm:$0xc]
      %v7648 = vld [vmem:[%s2002 + $0x54] sm:$0xc]
      %v7649 = vld [vmem:[%s2002 + $0x60] sm:$0xc]
      %v7650 = vld [vmem:[%s2002 + $0x6c] sm:$0xc]
      %v7651 = vld [vmem:[%s2002 + $0x78] sm:$0xc]
      %v7652 = vld [vmem:[%s2002 + $0x84] sm:$0xc]
      %v7653 = vld [vmem:[%s2002 + $0x90] sm:$0xc]
      %v7654 = vld [vmem:[%s2002 + $0x9c] sm:$0xc]
      %v7655 = vld [vmem:[%s2002 + $0xa8] sm:$0xc]
      %v7656 = vld [vmem:[%s2002 + $0xb4] sm:$0xc]
      %v7689 = vrot.slane %v7641, 6
      %v7690 = vrot.slane %v7689, 4
      %v7691 = vrot.slane %v2004, 6
      %v7692 = vsel %vm6678, %v7690, %v7691
      %v7693 = vrot.slane %v7691, 4
      %v7694 = vrot.slane %v3199, 6
      %v7695 = vsel %vm6678, %v7693, %v7694
      %v7696 = vrot.slane %v7642, 6
      %v7697 = vrot.slane %v7696, 4
      %v7698 = vrot.slane %v2007, 6
      %v7699 = vsel %vm6678, %v7697, %v7698
      %v7700 = vrot.slane %v7698, 4
      %v7701 = vrot.slane %v3200, 6
      %v7702 = vsel %vm6678, %v7700, %v7701
      %v7703 = vrot.slane %v7643, 6
      %v7704 = vrot.slane %v7703, 4
      %v7705 = vrot.slane %v2010, 6
      %v7706 = vsel %vm6678, %v7704, %v7705
      %v7707 = vrot.slane %v7705, 4
      %v7708 = vrot.slane %v3201, 6
      %v7709 = vsel %vm6678, %v7707, %v7708
      %v7710 = vrot.slane %v7644, 6
      %v7711 = vrot.slane %v7710, 4
      %v7712 = vrot.slane %v2013, 6
      %v7713 = vsel %vm6678, %v7711, %v7712
      %v7714 = vrot.slane %v7712, 4
      %v7715 = vrot.slane %v3202, 6
      %v7716 = vsel %vm6678, %v7714, %v7715
      %v7717 = vrot.slane %v7645, 6
      %v7718 = vrot.slane %v7717, 4
      %v7719 = vrot.slane %v2016, 6
      %v7720 = vsel %vm6678, %v7718, %v7719
      %v7721 = vrot.slane %v7719, 4
      %v7722 = vrot.slane %v3203, 6
      %v7723 = vsel %vm6678, %v7721, %v7722
      %v7724 = vrot.slane %v7646, 6
      %v7725 = vrot.slane %v7724, 4
      %v7726 = vrot.slane %v2019, 6
      %v7727 = vsel %vm6678, %v7725, %v7726
      %v7728 = vrot.slane %v7726, 4
      %v7729 = vrot.slane %v3204, 6
      %v7730 = vsel %vm6678, %v7728, %v7729
      %v7731 = vrot.slane %v7647, 6
      %v7732 = vrot.slane %v7731, 4
      %v7733 = vrot.slane %v2022, 6
      %v7734 = vsel %vm6678, %v7732, %v7733
      %v7735 = vrot.slane %v7733, 4
      %v7736 = vrot.slane %v3205, 6
      %v7737 = vsel %vm6678, %v7735, %v7736
      %v7738 = vrot.slane %v7648, 6
      %v7739 = vrot.slane %v7738, 4
      %v7740 = vrot.slane %v2025, 6
      %v7741 = vsel %vm6678, %v7739, %v7740
      %v7742 = vrot.slane %v7740, 4
      %v7743 = vrot.slane %v3206, 6
      %v7744 = vsel %vm6678, %v7742, %v7743
      %v7745 = vrot.slane %v7649, 6
      %v7746 = vrot.slane %v7745, 4
      %v7747 = vrot.slane %v2028, 6
      %v7748 = vsel %vm6678, %v7746, %v7747
      %v7749 = vrot.slane %v7747, 4
      %v7750 = vrot.slane %v3207, 6
      %v7751 = vsel %vm6678, %v7749, %v7750
      %v7752 = vrot.slane %v7650, 6
      %v7753 = vrot.slane %v7752, 4
      %v7754 = vrot.slane %v2031, 6
      %v7755 = vsel %vm6678, %v7753, %v7754
      %v7756 = vrot.slane %v7754, 4
      %v7757 = vrot.slane %v3208, 6
      %v7758 = vsel %vm6678, %v7756, %v7757
      %v7759 = vrot.slane %v7651, 6
      %v7760 = vrot.slane %v7759, 4
      %v7761 = vrot.slane %v2034, 6
      %v7762 = vsel %vm6678, %v7760, %v7761
      %v7763 = vrot.slane %v7761, 4
      %v7764 = vrot.slane %v3209, 6
      %v7765 = vsel %vm6678, %v7763, %v7764
      %v7766 = vrot.slane %v7652, 6
      %v7767 = vrot.slane %v7766, 4
      %v7768 = vrot.slane %v2037, 6
      %v7769 = vsel %vm6678, %v7767, %v7768
      %v7770 = vrot.slane %v7768, 4
      %v7771 = vrot.slane %v3210, 6
      %v7772 = vsel %vm6678, %v7770, %v7771
      %v7773 = vrot.slane %v7653, 6
      %v7774 = vrot.slane %v7773, 4
      %v7775 = vrot.slane %v2040, 6
      %v7776 = vsel %vm6678, %v7774, %v7775
      %v7777 = vrot.slane %v7775, 4
      %v7778 = vrot.slane %v3211, 6
      %v7779 = vsel %vm6678, %v7777, %v7778
      %v7780 = vrot.slane %v7654, 6
      %v7781 = vrot.slane %v7780, 4
      %v7782 = vrot.slane %v2043, 6
      %v7783 = vsel %vm6678, %v7781, %v7782
      %v7784 = vrot.slane %v7782, 4
      %v7785 = vrot.slane %v3212, 6
      %v7786 = vsel %vm6678, %v7784, %v7785
      %v7787 = vrot.slane %v7655, 6
      %v7788 = vrot.slane %v7787, 4
      %v7789 = vrot.slane %v2046, 6
      %v7790 = vsel %vm6678, %v7788, %v7789
      %v7791 = vrot.slane %v7789, 4
      %v7792 = vrot.slane %v3213, 6
      %v7793 = vsel %vm6678, %v7791, %v7792
      %v7794 = vrot.slane %v7656, 6
      %v7795 = vrot.slane %v7794, 4
      %v7796 = vrot.slane %v2049, 6
      %v7797 = vsel %vm6678, %v7795, %v7796
      %v7798 = vrot.slane %v7796, 4
      %v7799 = vrot.slane %v3214, 6
      %v7800 = vsel %vm6678, %v7798, %v7799
      %s7801 = scalar_lea.vmem %s1, 56
      %v7802 = vld [vmem:[%s7801] sm:$0xf]
      %v7803 = vunpack.c.l.b16 %v7692
      %v7804 = vunpack.c.l.b16 %v7695
      %v7805 = vunpack.c.l.b16 %v7699
      %v7806 = vunpack.c.l.b16 %v7702
      %v7807 = vunpack.c.l.b16 %v7706
      %v7808 = vunpack.c.l.b16 %v7709
      %v7809 = vunpack.c.l.b16 %v7713
      %v7810 = vunpack.c.l.b16 %v7716
      %v7811 = vunpack.c.l.b16 %v7720
      %v7812 = vunpack.c.l.b16 %v7723
      %v7813 = vunpack.c.l.b16 %v7727
      %v7814 = vunpack.c.l.b16 %v7730
      %v7815 = vunpack.c.l.b16 %v7734
      %v7816 = vunpack.c.l.b16 %v7737
      %v7817 = vunpack.c.l.b16 %v7741
      %v7818 = vunpack.c.l.b16 %v7744
      %v7819 = vunpack.c.l.b16 %v7748
      %v7820 = vunpack.c.l.b16 %v7751
      %v7821 = vunpack.c.l.b16 %v7755
      %v7822 = vunpack.c.l.b16 %v7758
      %v7823 = vunpack.c.l.b16 %v7762
      %v7824 = vunpack.c.l.b16 %v7765
      %v7825 = vunpack.c.l.b16 %v7769
      %v7826 = vunpack.c.l.b16 %v7772
      %v7827 = vunpack.c.l.b16 %v7776
      %v7828 = vunpack.c.l.b16 %v7779
      %v7829 = vunpack.c.l.b16 %v7783
      %v7830 = vunpack.c.l.b16 %v7786
      %v7831 = vunpack.c.l.b16 %v7790
      %v7832 = vunpack.c.l.b16 %v7793
      %v7833 = vunpack.c.l.b16 %v7797
      %v7834 = vunpack.c.l.b16 %v7800
      %v7835 = vpack.c.b16 %v7804, %v7803
      %v7836 = vpack.c.b16 %v7806, %v7805
      %v7837 = vpack.c.b16 %v7808, %v7807
      %v7838 = vpack.c.b16 %v7810, %v7809
      %v7839 = vpack.c.b16 %v7812, %v7811
      %v7840 = vpack.c.b16 %v7814, %v7813
      %v7841 = vpack.c.b16 %v7816, %v7815
      %v7842 = vpack.c.b16 %v7818, %v7817
      %v7843 = vpack.c.b16 %v7820, %v7819
      %v7844 = vpack.c.b16 %v7822, %v7821
      %v7845 = vpack.c.b16 %v7824, %v7823
      %v7846 = vpack.c.b16 %v7826, %v7825
      %v7847 = vpack.c.b16 %v7828, %v7827
      %v7848 = vpack.c.b16 %v7830, %v7829
      %v7849 = vpack.c.b16 %v7832, %v7831
      %v7850 = vpack.c.b16 %v7834, %v7833
      %v7852 = vsel %vm847, %v7835, 0
      %v7855 = vsel %vm847, %v7836, 0
      %v7858 = vsel %vm847, %v7837, 0
      %v7861 = vsel %vm847, %v7838, 0
      %v7864 = vsel %vm847, %v7839, 0
      %v7867 = vsel %vm847, %v7840, 0
      %v7870 = vsel %vm847, %v7841, 0
      %v7873 = vsel %vm847, %v7842, 0
      %v7876 = vsel %vm847, %v7843, 0
      %v7879 = vsel %vm847, %v7844, 0
      %v7882 = vsel %vm847, %v7845, 0
      %v7885 = vsel %vm847, %v7846, 0
      %v7888 = vsel %vm847, %v7847, 0
      %v7891 = vsel %vm847, %v7848, 0
      %v7894 = vsel %vm847, %v7849, 0
      %v7897 = vsel %vm847, %v7850, 0
      %v7900 = vsel %vm896, %v7802, 0
      %7902 = vmatprep.subr.bf16.mxu0 0
      %7903 = vmatpush1.bf16.msra.mxu0 %v7900
      %7904 = vmatprep.subr.bf16.mxu0 0
      %7905 = vmatpush1.bf16.msra.mxu0 0
      %7906 = vmatprep.subr.bf16.mxu0 0
      %7907 = vmatpush1.bf16.msra.mxu0 0
      %7908 = vmatprep.subr.bf16.mxu0 0
      %7909 = vmatpush1.bf16.msra.mxu0 0
      %7910 = vmatprep.subr.bf16.mxu0 0
      %7911 = vmatpush1.bf16.msra.mxu0 0
      %7912 = vmatprep.subr.bf16.mxu0 0
      %7913 = vmatpush1.bf16.msra.mxu0 0
      %7914 = vmatprep.subr.bf16.mxu0 0
      %7915 = vmatpush1.bf16.msra.mxu0 0
      %7916 = vmatprep.subr.bf16.mxu0 0
      %7917 = vmatpush1.bf16.msra.mxu0 0
      %7918 = vmatprep.subr.bf16.mxu0 0
      %7919 = vmatpush1.bf16.msra.mxu0 0
      %7920 = vmatprep.subr.bf16.mxu0 0
      %7921 = vmatpush1.bf16.msra.mxu0 0
      %7922 = vmatprep.subr.bf16.mxu0 0
      %7923 = vmatpush1.bf16.msra.mxu0 0
      %7924 = vmatprep.subr.bf16.mxu0 0
      %7925 = vmatpush1.bf16.msra.mxu0 0
      %7926 = vmatprep.subr.bf16.mxu0 0
      %7927 = vmatpush1.bf16.msra.mxu0 0
      %7928 = vmatprep.subr.bf16.mxu0 0
      %7929 = vmatpush1.bf16.msra.mxu0 0
      %7930 = vmatprep.subr.bf16.mxu0 0
      %7931 = vmatpush1.bf16.msra.mxu0 0
      %7932 = vmatprep.subr.bf16.mxu0 0
      %7933 = vmatpush1.bf16.msra.mxu0 0
      %7934 = vmatprep.mubr.bf16.mxu0 0
      %7935 = vmatmul.mubr.bf16.gmra.mrb[0].mxu0 %v7852
      %v7936 = vpop.f32.mrb[0].mxu0
      %v7937 = vadd.f32 0.0, %v7936
      %v7938 = vpop.f32.mrb[0].mxu0
      %v7939 = vpop.f32.mrb[0].mxu0
      %v7940 = vadd.f32 0.0, %v7939
      %v7941 = vpop.f32.mrb[0].mxu0
      %7942 = vmatprep.mubr.bf16.mxu0 0
      %7943 = vmatmul.mubr.bf16.gmra.mrb[0].mxu0 %v7855
      %v7944 = vpop.f32.mrb[0].mxu0
      %v7945 = vadd.f32 0.0, %v7944
      %v7946 = vpop.f32.mrb[0].mxu0
      %v7947 = vpop.f32.mrb[0].mxu0
      %v7948 = vadd.f32 0.0, %v7947
      %v7949 = vpop.f32.mrb[0].mxu0
      %7950 = vmatprep.mubr.bf16.mxu0 0
      %7951 = vmatmul.mubr.bf16.gmra.mrb[0].mxu0 %v7858
      %v7952 = vpop.f32.mrb[0].mxu0
      %v7953 = vadd.f32 0.0, %v7952
      %v7954 = vpop.f32.mrb[0].mxu0
      %v7955 = vpop.f32.mrb[0].mxu0
      %v7956 = vadd.f32 0.0, %v7955
      %v7957 = vpop.f32.mrb[0].mxu0
      %7958 = vmatprep.mubr.bf16.mxu0 0
      %7959 = vmatmul.mubr.bf16.gmra.mrb[0].mxu0 %v7861
      %v7960 = vpop.f32.mrb[0].mxu0
      %v7961 = vadd.f32 0.0, %v7960
      %v7962 = vpop.f32.mrb[0].mxu0
      %v7963 = vpop.f32.mrb[0].mxu0
      %v7964 = vadd.f32 0.0, %v7963
      %v7965 = vpop.f32.mrb[0].mxu0
      %7966 = vmatprep.mubr.bf16.mxu0 0
      %7967 = vmatmul.mubr.bf16.gmra.mrb[0].mxu0 %v7864
      %v7968 = vpop.f32.mrb[0].mxu0
      %v7969 = vadd.f32 0.0, %v7968
      %v7970 = vpop.f32.mrb[0].mxu0
      %v7971 = vpop.f32.mrb[0].mxu0
      %v7972 = vadd.f32 0.0, %v7971
      %v7973 = vpop.f32.mrb[0].mxu0
      %7974 = vmatprep.mubr.bf16.mxu0 0
      %7975 = vmatmul.mubr.bf16.gmra.mrb[0].mxu0 %v7867
      %v7976 = vpop.f32.mrb[0].mxu0
      %v7977 = vadd.f32 0.0, %v7976
      %v7978 = vpop.f32.mrb[0].mxu0
      %v7979 = vpop.f32.mrb[0].mxu0
      %v7980 = vadd.f32 0.0, %v7979
      %v7981 = vpop.f32.mrb[0].mxu0
      %7982 = vmatprep.mubr.bf16.mxu0 0
      %7983 = vmatmul.mubr.bf16.gmra.mrb[0].mxu0 %v7870
      %v7984 = vpop.f32.mrb[0].mxu0
      %v7985 = vadd.f32 0.0, %v7984
      %v7986 = vpop.f32.mrb[0].mxu0
      %v7987 = vpop.f32.mrb[0].mxu0
      %v7988 = vadd.f32 0.0, %v7987
      %v7989 = vpop.f32.mrb[0].mxu0
      %7990 = vmatprep.mubr.bf16.mxu0 0
      %7991 = vmatmul.mubr.bf16.gmra.mrb[0].mxu0 %v7873
      %v7992 = vpop.f32.mrb[0].mxu0
      %v7993 = vadd.f32 0.0, %v7992
      %v7994 = vpop.f32.mrb[0].mxu0
      %v7995 = vpop.f32.mrb[0].mxu0
      %v7996 = vadd.f32 0.0, %v7995
      %v7997 = vpop.f32.mrb[0].mxu0
      %7998 = vmatprep.mubr.bf16.mxu0 0
      %7999 = vmatmul.mubr.bf16.gmra.mrb[0].mxu0 %v7876
      %v8000 = vpop.f32.mrb[0].mxu0
      %v8001 = vadd.f32 0.0, %v8000
      %v8002 = vpop.f32.mrb[0].mxu0
      %v8003 = vpop.f32.mrb[0].mxu0
      %v8004 = vadd.f32 0.0, %v8003
      %v8005 = vpop.f32.mrb[0].mxu0
      %8006 = vmatprep.mubr.bf16.mxu0 0
      %8007 = vmatmul.mubr.bf16.gmra.mrb[0].mxu0 %v7879
      %v8008 = vpop.f32.mrb[0].mxu0
      %v8009 = vadd.f32 0.0, %v8008
      %v8010 = vpop.f32.mrb[0].mxu0
      %v8011 = vpop.f32.mrb[0].mxu0
      %v8012 = vadd.f32 0.0, %v8011
      %v8013 = vpop.f32.mrb[0].mxu0
      %8014 = vmatprep.mubr.bf16.mxu0 0
      %8015 = vmatmul.mubr.bf16.gmra.mrb[0].mxu0 %v7882
      %v8016 = vpop.f32.mrb[0].mxu0
      %v8017 = vadd.f32 0.0, %v8016
      %v8018 = vpop.f32.mrb[0].mxu0
      %v8019 = vpop.f32.mrb[0].mxu0
      %v8020 = vadd.f32 0.0, %v8019
      %v8021 = vpop.f32.mrb[0].mxu0
      %8022 = vmatprep.mubr.bf16.mxu0 0
      %8023 = vmatmul.mubr.bf16.gmra.mrb[0].mxu0 %v7885
      %v8024 = vpop.f32.mrb[0].mxu0
      %v8025 = vadd.f32 0.0, %v8024
      %v8026 = vpop.f32.mrb[0].mxu0
      %v8027 = vpop.f32.mrb[0].mxu0
      %v8028 = vadd.f32 0.0, %v8027
      %v8029 = vpop.f32.mrb[0].mxu0
      %8030 = vmatprep.mubr.bf16.mxu0 0
      %8031 = vmatmul.mubr.bf16.gmra.mrb[0].mxu0 %v7888
      %v8032 = vpop.f32.mrb[0].mxu0
      %v8033 = vadd.f32 0.0, %v8032
      %v8034 = vpop.f32.mrb[0].mxu0
      %v8035 = vpop.f32.mrb[0].mxu0
      %v8036 = vadd.f32 0.0, %v8035
      %v8037 = vpop.f32.mrb[0].mxu0
      %8038 = vmatprep.mubr.bf16.mxu0 0
      %8039 = vmatmul.mubr.bf16.gmra.mrb[0].mxu0 %v7891
      %v8040 = vpop.f32.mrb[0].mxu0
      %v8041 = vadd.f32 0.0, %v8040
      %v8042 = vpop.f32.mrb[0].mxu0
      %v8043 = vpop.f32.mrb[0].mxu0
      %v8044 = vadd.f32 0.0, %v8043
      %v8045 = vpop.f32.mrb[0].mxu0
      %8046 = vmatprep.mubr.bf16.mxu0 0
      %8047 = vmatmul.mubr.bf16.gmra.mrb[0].mxu0 %v7894
      %v8048 = vpop.f32.mrb[0].mxu0
      %v8049 = vadd.f32 0.0, %v8048
      %v8050 = vpop.f32.mrb[0].mxu0
      %v8051 = vpop.f32.mrb[0].mxu0
      %v8052 = vadd.f32 0.0, %v8051
      %v8053 = vpop.f32.mrb[0].mxu0
      %8054 = vmatprep.mubr.bf16.mxu0 0
      %8055 = vmatmul.mubr.bf16.gmra.mrb[0].mxu0 %v7897
      %v8056 = vpop.f32.mrb[0].mxu0
      %v8057 = vadd.f32 0.0, %v8056
      %v8058 = vpop.f32.mrb[0].mxu0
      %v8059 = vpop.f32.mrb[0].mxu0
      %v8060 = vadd.f32 0.0, %v8059
      %v8061 = vpop.f32.mrb[0].mxu0
      %8062 = vdwg.mxu0
      %v8063 = vadd.f32 %v7609, %v7937
      %v8064 = vadd.f32 %v7610, %v7940
      %v8065 = vadd.f32 %v7611, %v7945
      %v8066 = vadd.f32 %v7612, %v7948
      %v8067 = vadd.f32 %v7613, %v7953
      %v8068 = vadd.f32 %v7614, %v7956
      %v8069 = vadd.f32 %v7615, %v7961
      %v8070 = vadd.f32 %v7616, %v7964
      %v8071 = vadd.f32 %v7617, %v7969
      %v8072 = vadd.f32 %v7618, %v7972
      %v8073 = vadd.f32 %v7619, %v7977
      %v8074 = vadd.f32 %v7620, %v7980
      %v8075 = vadd.f32 %v7621, %v7985
      %v8076 = vadd.f32 %v7622, %v7988
      %v8077 = vadd.f32 %v7623, %v7993
      %v8078 = vadd.f32 %v7624, %v7996
      %v8079 = vadd.f32 %v7625, %v8001
      %v8080 = vadd.f32 %v7626, %v8004
      %v8081 = vadd.f32 %v7627, %v8009
      %v8082 = vadd.f32 %v7628, %v8012
      %v8083 = vadd.f32 %v7629, %v8017
      %v8084 = vadd.f32 %v7630, %v8020
      %v8085 = vadd.f32 %v7631, %v8025
      %v8086 = vadd.f32 %v7632, %v8028
      %v8087 = vadd.f32 %v7633, %v8033
      %v8088 = vadd.f32 %v7634, %v8036
      %v8089 = vadd.f32 %v7635, %v8041
      %v8090 = vadd.f32 %v7636, %v8044
      %v8091 = vadd.f32 %v7637, %v8049
      %v8092 = vadd.f32 %v7638, %v8052
      %v8093 = vadd.f32 %v7639, %v8057
      %v8094 = vadd.f32 %v7640, %v8060
      %s8095 = scalar_lea.vmem %s170, 48
      %v8096 = vld [vmem:[%s8095] sm:$0xf]
      %v8097 = vld [vmem:[%s8095 + $0x4] sm:$0xf]
      %v8098 = vld [vmem:[%s8095 + $0xc] sm:$0xf]
      %v8099 = vld [vmem:[%s8095 + $0x10] sm:$0xf]
      %v8100 = vld [vmem:[%s8095 + $0x18] sm:$0xf]
      %v8101 = vld [vmem:[%s8095 + $0x1c] sm:$0xf]
      %v8102 = vld [vmem:[%s8095 + $0x24] sm:$0xf]
      %v8103 = vld [vmem:[%s8095 + $0x28] sm:$0xf]
      %v8104 = vld [vmem:[%s8095 + $0x30] sm:$0xf]
      %v8105 = vld [vmem:[%s8095 + $0x34] sm:$0xf]
      %v8106 = vld [vmem:[%s8095 + $0x3c] sm:$0xf]
      %v8107 = vld [vmem:[%s8095 + $0x40] sm:$0xf]
      %v8108 = vld [vmem:[%s8095 + $0x48] sm:$0xf]
      %v8109 = vld [vmem:[%s8095 + $0x4c] sm:$0xf]
      %v8110 = vld [vmem:[%s8095 + $0x54] sm:$0xf]
      %v8111 = vld [vmem:[%s8095 + $0x58] sm:$0xf]
      %v8112 = vld [vmem:[%s8095 + $0x60] sm:$0xf]
      %v8113 = vld [vmem:[%s8095 + $0x64] sm:$0xf]
      %v8114 = vld [vmem:[%s8095 + $0x6c] sm:$0xf]
      %v8115 = vld [vmem:[%s8095 + $0x70] sm:$0xf]
      %v8116 = vld [vmem:[%s8095 + $0x78] sm:$0xf]
      %v8117 = vld [vmem:[%s8095 + $0x7c] sm:$0xf]
      %v8118 = vld [vmem:[%s8095 + $0x84] sm:$0xf]
      %v8119 = vld [vmem:[%s8095 + $0x88] sm:$0xf]
      %v8120 = vld [vmem:[%s8095 + $0x90] sm:$0xf]
      %v8121 = vld [vmem:[%s8095 + $0x94] sm:$0xf]
      %v8122 = vld [vmem:[%s8095 + $0x9c] sm:$0xf]
      %v8123 = vld [vmem:[%s8095 + $0xa0] sm:$0xf]
      %v8124 = vld [vmem:[%s8095 + $0xa8] sm:$0xf]
      %v8125 = vld [vmem:[%s8095 + $0xac] sm:$0xf]
      %v8126 = vld [vmem:[%s8095 + $0xb4] sm:$0xf]
      %v8127 = vld [vmem:[%s8095 + $0xb8] sm:$0xf]
      %s8128 = scalar_lea.vmem %s1, 60
      %v8129 = vld [vmem:[%s8128] sm:$0xf]
      %v8162 = vunpack.c.l.b16 %v8096
      %v8163 = vunpack.c.l.b16 %v8097
      %v8164 = vunpack.c.l.b16 %v8098
      %v8165 = vunpack.c.l.b16 %v8099
      %v8166 = vunpack.c.l.b16 %v8100
      %v8167 = vunpack.c.l.b16 %v8101
      %v8168 = vunpack.c.l.b16 %v8102
      %v8169 = vunpack.c.l.b16 %v8103
      %v8170 = vunpack.c.l.b16 %v8104
      %v8171 = vunpack.c.l.b16 %v8105
      %v8172 = vunpack.c.l.b16 %v8106
      %v8173 = vunpack.c.l.b16 %v8107
      %v8174 = vunpack.c.l.b16 %v8108
      %v8175 = vunpack.c.l.b16 %v8109
      %v8176 = vunpack.c.l.b16 %v8110
      %v8177 = vunpack.c.l.b16 %v8111
      %v8178 = vunpack.c.l.b16 %v8112
      %v8179 = vunpack.c.l.b16 %v8113
      %v8180 = vunpack.c.l.b16 %v8114
      %v8181 = vunpack.c.l.b16 %v8115
      %v8182 = vunpack.c.l.b16 %v8116
      %v8183 = vunpack.c.l.b16 %v8117
      %v8184 = vunpack.c.l.b16 %v8118
      %v8185 = vunpack.c.l.b16 %v8119
      %v8186 = vunpack.c.l.b16 %v8120
      %v8187 = vunpack.c.l.b16 %v8121
      %v8188 = vunpack.c.l.b16 %v8122
      %v8189 = vunpack.c.l.b16 %v8123
      %v8190 = vunpack.c.l.b16 %v8124
      %v8191 = vunpack.c.l.b16 %v8125
      %v8192 = vunpack.c.l.b16 %v8126
      %v8193 = vunpack.c.l.b16 %v8127
      %v8194 = vpack.c.b16 %v8163, %v8162
      %v8195 = vpack.c.b16 %v8165, %v8164
      %v8196 = vpack.c.b16 %v8167, %v8166
      %v8197 = vpack.c.b16 %v8169, %v8168
      %v8198 = vpack.c.b16 %v8171, %v8170
      %v8199 = vpack.c.b16 %v8173, %v8172
      %v8200 = vpack.c.b16 %v8175, %v8174
      %v8201 = vpack.c.b16 %v8177, %v8176
      %v8202 = vpack.c.b16 %v8179, %v8178
      %v8203 = vpack.c.b16 %v8181, %v8180
      %v8204 = vpack.c.b16 %v8183, %v8182
      %v8205 = vpack.c.b16 %v8185, %v8184
      %v8206 = vpack.c.b16 %v8187, %v8186
      %v8207 = vpack.c.b16 %v8189, %v8188
      %v8208 = vpack.c.b16 %v8191, %v8190
      %v8209 = vpack.c.b16 %v8193, %v8192
      %v8211 = vsel %vm847, %v8194, 0
      %v8214 = vsel %vm847, %v8195, 0
      %v8217 = vsel %vm847, %v8196, 0
      %v8220 = vsel %vm847, %v8197, 0
      %v8223 = vsel %vm847, %v8198, 0
      %v8226 = vsel %vm847, %v8199, 0
      %v8229 = vsel %vm847, %v8200, 0
      %v8232 = vsel %vm847, %v8201, 0
      %v8235 = vsel %vm847, %v8202, 0
      %v8238 = vsel %vm847, %v8203, 0
      %v8241 = vsel %vm847, %v8204, 0
      %v8244 = vsel %vm847, %v8205, 0
      %v8247 = vsel %vm847, %v8206, 0
      %v8250 = vsel %vm847, %v8207, 0
      %v8253 = vsel %vm847, %v8208, 0
      %v8256 = vsel %vm847, %v8209, 0
      %v8259 = vsel %vm896, %v8129, 0
      %8261 = vmatprep.subr.bf16.mxu0 0
      %8262 = vmatpush1.bf16.msra.mxu0 %v8259
      %8263 = vmatprep.subr.bf16.mxu0 0
      %8264 = vmatpush1.bf16.msra.mxu0 0
      %8265 = vmatprep.subr.bf16.mxu0 0
      %8266 = vmatpush1.bf16.msra.mxu0 0
      %8267 = vmatprep.subr.bf16.mxu0 0
      %8268 = vmatpush1.bf16.msra.mxu0 0
      %8269 = vmatprep.subr.bf16.mxu0 0
      %8270 = vmatpush1.bf16.msra.mxu0 0
      %8271 = vmatprep.subr.bf16.mxu0 0
      %8272 = vmatpush1.bf16.msra.mxu0 0
      %8273 = vmatprep.subr.bf16.mxu0 0
      %8274 = vmatpush1.bf16.msra.mxu0 0
      %8275 = vmatprep.subr.bf16.mxu0 0
      %8276 = vmatpush1.bf16.msra.mxu0 0
      %8277 = vmatprep.subr.bf16.mxu0 0
      %8278 = vmatpush1.bf16.msra.mxu0 0
      %8279 = vmatprep.subr.bf16.mxu0 0
      %8280 = vmatpush1.bf16.msra.mxu0 0
      %8281 = vmatprep.subr.bf16.mxu0 0
      %8282 = vmatpush1.bf16.msra.mxu0 0
      %8283 = vmatprep.subr.bf16.mxu0 0
      %8284 = vmatpush1.bf16.msra.mxu0 0
      %8285 = vmatprep.subr.bf16.mxu0 0
      %8286 = vmatpush1.bf16.msra.mxu0 0
      %8287 = vmatprep.subr.bf16.mxu0 0
      %8288 = vmatpush1.bf16.msra.mxu0 0
      %8289 = vmatprep.subr.bf16.mxu0 0
      %8290 = vmatpush1.bf16.msra.mxu0 0
      %8291 = vmatprep.subr.bf16.mxu0 0
      %8292 = vmatpush1.bf16.msra.mxu0 0
      %8293 = vmatprep.mubr.bf16.mxu0 0
      %8294 = vmatmul.mubr.bf16.gmra.mrb[0].mxu0 %v8211
      %v8295 = vpop.f32.mrb[0].mxu0
      %v8296 = vadd.f32 0.0, %v8295
      %v8297 = vpop.f32.mrb[0].mxu0
      %v8298 = vpop.f32.mrb[0].mxu0
      %v8299 = vadd.f32 0.0, %v8298
      %v8300 = vpop.f32.mrb[0].mxu0
      %8301 = vmatprep.mubr.bf16.mxu0 0
      %8302 = vmatmul.mubr.bf16.gmra.mrb[0].mxu0 %v8214
      %v8303 = vpop.f32.mrb[0].mxu0
      %v8304 = vadd.f32 0.0, %v8303
      %v8305 = vpop.f32.mrb[0].mxu0
      %v8306 = vpop.f32.mrb[0].mxu0
      %v8307 = vadd.f32 0.0, %v8306
      %v8308 = vpop.f32.mrb[0].mxu0
      %8309 = vmatprep.mubr.bf16.mxu0 0
      %8310 = vmatmul.mubr.bf16.gmra.mrb[0].mxu0 %v8217
      %v8311 = vpop.f32.mrb[0].mxu0
      %v8312 = vadd.f32 0.0, %v8311
      %v8313 = vpop.f32.mrb[0].mxu0
      %v8314 = vpop.f32.mrb[0].mxu0
      %v8315 = vadd.f32 0.0, %v8314
      %v8316 = vpop.f32.mrb[0].mxu0
      %8317 = vmatprep.mubr.bf16.mxu0 0
      %8318 = vmatmul.mubr.bf16.gmra.mrb[0].mxu0 %v8220
      %v8319 = vpop.f32.mrb[0].mxu0
      %v8320 = vadd.f32 0.0, %v8319
      %v8321 = vpop.f32.mrb[0].mxu0
      %v8322 = vpop.f32.mrb[0].mxu0
      %v8323 = vadd.f32 0.0, %v8322
      %v8324 = vpop.f32.mrb[0].mxu0
      %8325 = vmatprep.mubr.bf16.mxu0 0
      %8326 = vmatmul.mubr.bf16.gmra.mrb[0].mxu0 %v8223
      %v8327 = vpop.f32.mrb[0].mxu0
      %v8328 = vadd.f32 0.0, %v8327
      %v8329 = vpop.f32.mrb[0].mxu0
      %v8330 = vpop.f32.mrb[0].mxu0
      %v8331 = vadd.f32 0.0, %v8330
      %v8332 = vpop.f32.mrb[0].mxu0
      %8333 = vmatprep.mubr.bf16.mxu0 0
      %8334 = vmatmul.mubr.bf16.gmra.mrb[0].mxu0 %v8226
      %v8335 = vpop.f32.mrb[0].mxu0
      %v8336 = vadd.f32 0.0, %v8335
      %v8337 = vpop.f32.mrb[0].mxu0
      %v8338 = vpop.f32.mrb[0].mxu0
      %v8339 = vadd.f32 0.0, %v8338
      %v8340 = vpop.f32.mrb[0].mxu0
      %8341 = vmatprep.mubr.bf16.mxu0 0
      %8342 = vmatmul.mubr.bf16.gmra.mrb[0].mxu0 %v8229
      %v8343 = vpop.f32.mrb[0].mxu0
      %v8344 = vadd.f32 0.0, %v8343
      %v8345 = vpop.f32.mrb[0].mxu0
      %v8346 = vpop.f32.mrb[0].mxu0
      %v8347 = vadd.f32 0.0, %v8346
      %v8348 = vpop.f32.mrb[0].mxu0
      %8349 = vmatprep.mubr.bf16.mxu0 0
      %8350 = vmatmul.mubr.bf16.gmra.mrb[0].mxu0 %v8232
      %v8351 = vpop.f32.mrb[0].mxu0
      %v8352 = vadd.f32 0.0, %v8351
      %v8353 = vpop.f32.mrb[0].mxu0
      %v8354 = vpop.f32.mrb[0].mxu0
      %v8355 = vadd.f32 0.0, %v8354
      %v8356 = vpop.f32.mrb[0].mxu0
      %8357 = vmatprep.mubr.bf16.mxu0 0
      %8358 = vmatmul.mubr.bf16.gmra.mrb[0].mxu0 %v8235
      %v8359 = vpop.f32.mrb[0].mxu0
      %v8360 = vadd.f32 0.0, %v8359
      %v8361 = vpop.f32.mrb[0].mxu0
      %v8362 = vpop.f32.mrb[0].mxu0
      %v8363 = vadd.f32 0.0, %v8362
      %v8364 = vpop.f32.mrb[0].mxu0
      %8365 = vmatprep.mubr.bf16.mxu0 0
      %8366 = vmatmul.mubr.bf16.gmra.mrb[0].mxu0 %v8238
      %v8367 = vpop.f32.mrb[0].mxu0
      %v8368 = vadd.f32 0.0, %v8367
      %v8369 = vpop.f32.mrb[0].mxu0
      %v8370 = vpop.f32.mrb[0].mxu0
      %v8371 = vadd.f32 0.0, %v8370
      %v8372 = vpop.f32.mrb[0].mxu0
      %8373 = vmatprep.mubr.bf16.mxu0 0
      %8374 = vmatmul.mubr.bf16.gmra.mrb[0].mxu0 %v8241
      %v8375 = vpop.f32.mrb[0].mxu0
      %v8376 = vadd.f32 0.0, %v8375
      %v8377 = vpop.f32.mrb[0].mxu0
      %v8378 = vpop.f32.mrb[0].mxu0
      %v8379 = vadd.f32 0.0, %v8378
      %v8380 = vpop.f32.mrb[0].mxu0
      %8381 = vmatprep.mubr.bf16.mxu0 0
      %8382 = vmatmul.mubr.bf16.gmra.mrb[0].mxu0 %v8244
      %v8383 = vpop.f32.mrb[0].mxu0
      %v8384 = vadd.f32 0.0, %v8383
      %v8385 = vpop.f32.mrb[0].mxu0
      %v8386 = vpop.f32.mrb[0].mxu0
      %v8387 = vadd.f32 0.0, %v8386
      %v8388 = vpop.f32.mrb[0].mxu0
      %8389 = vmatprep.mubr.bf16.mxu0 0
      %8390 = vmatmul.mubr.bf16.gmra.mrb[0].mxu0 %v8247
      %v8391 = vpop.f32.mrb[0].mxu0
      %v8392 = vadd.f32 0.0, %v8391
      %v8393 = vpop.f32.mrb[0].mxu0
      %v8394 = vpop.f32.mrb[0].mxu0
      %v8395 = vadd.f32 0.0, %v8394
      %v8396 = vpop.f32.mrb[0].mxu0
      %8397 = vmatprep.mubr.bf16.mxu0 0
      %8398 = vmatmul.mubr.bf16.gmra.mrb[0].mxu0 %v8250
      %v8399 = vpop.f32.mrb[0].mxu0
      %v8400 = vadd.f32 0.0, %v8399
      %v8401 = vpop.f32.mrb[0].mxu0
      %v8402 = vpop.f32.mrb[0].mxu0
      %v8403 = vadd.f32 0.0, %v8402
      %v8404 = vpop.f32.mrb[0].mxu0
      %8405 = vmatprep.mubr.bf16.mxu0 0
      %8406 = vmatmul.mubr.bf16.gmra.mrb[0].mxu0 %v8253
      %v8407 = vpop.f32.mrb[0].mxu0
      %v8408 = vadd.f32 0.0, %v8407
      %v8409 = vpop.f32.mrb[0].mxu0
      %v8410 = vpop.f32.mrb[0].mxu0
      %v8411 = vadd.f32 0.0, %v8410
      %v8412 = vpop.f32.mrb[0].mxu0
      %8413 = vmatprep.mubr.bf16.mxu0 0
      %8414 = vmatmul.mubr.bf16.gmra.mrb[0].mxu0 %v8256
      %v8415 = vpop.f32.mrb[0].mxu0
      %v8416 = vadd.f32 0.0, %v8415
      %v8417 = vpop.f32.mrb[0].mxu0
      %v8418 = vpop.f32.mrb[0].mxu0
      %v8419 = vadd.f32 0.0, %v8418
      %v8420 = vpop.f32.mrb[0].mxu0
      %8421 = vdwg.mxu0
      %v8422 = vadd.f32 %v8063, %v8296
      %v8423 = vadd.f32 %v8064, %v8299
      %v8424 = vadd.f32 %v8065, %v8304
      %v8425 = vadd.f32 %v8066, %v8307
      %v8426 = vadd.f32 %v8067, %v8312
      %v8427 = vadd.f32 %v8068, %v8315
      %v8428 = vadd.f32 %v8069, %v8320
      %v8429 = vadd.f32 %v8070, %v8323
      %v8430 = vadd.f32 %v8071, %v8328
      %v8431 = vadd.f32 %v8072, %v8331
      %v8432 = vadd.f32 %v8073, %v8336
      %v8433 = vadd.f32 %v8074, %v8339
      %v8434 = vadd.f32 %v8075, %v8344
      %v8435 = vadd.f32 %v8076, %v8347
      %v8436 = vadd.f32 %v8077, %v8352
      %v8437 = vadd.f32 %v8078, %v8355
      %v8438 = vadd.f32 %v8079, %v8360
      %v8439 = vadd.f32 %v8080, %v8363
      %v8440 = vadd.f32 %v8081, %v8368
      %v8441 = vadd.f32 %v8082, %v8371
      %v8442 = vadd.f32 %v8083, %v8376
      %v8443 = vadd.f32 %v8084, %v8379
      %v8444 = vadd.f32 %v8085, %v8384
      %v8445 = vadd.f32 %v8086, %v8387
      %v8446 = vadd.f32 %v8087, %v8392
      %v8447 = vadd.f32 %v8088, %v8395
      %v8448 = vadd.f32 %v8089, %v8400
      %v8449 = vadd.f32 %v8090, %v8403
      %v8450 = vadd.f32 %v8091, %v8408
      %v8451 = vadd.f32 %v8092, %v8411
      %v8452 = vadd.f32 %v8093, %v8416
      %v8453 = vadd.f32 %v8094, %v8419
      %v8454 = vld [vmem:[%s8095] sm:$0xe]
      %v8455 = vld [vmem:[%s8095 + $0x4] sm:$0xf]
      %v8456 = vld [vmem:[%s8095 + $0x8] sm:$0x1]
      %v8457 = vld [vmem:[%s8095 + $0xc] sm:$0xe]
      %v8458 = vld [vmem:[%s8095 + $0x10] sm:$0xf]
      %v8459 = vld [vmem:[%s8095 + $0x14] sm:$0x1]
      %v8460 = vld [vmem:[%s8095 + $0x18] sm:$0xe]
      %v8461 = vld [vmem:[%s8095 + $0x1c] sm:$0xf]
      %v8462 = vld [vmem:[%s8095 + $0x20] sm:$0x1]
      %v8463 = vld [vmem:[%s8095 + $0x24] sm:$0xe]
      %v8464 = vld [vmem:[%s8095 + $0x28] sm:$0xf]
      %v8465 = vld [vmem:[%s8095 + $0x2c] sm:$0x1]
      %v8466 = vld [vmem:[%s8095 + $0x30] sm:$0xe]
      %v8467 = vld [vmem:[%s8095 + $0x34] sm:$0xf]
      %v8468 = vld [vmem:[%s8095 + $0x38] sm:$0x1]
      %v8469 = vld [vmem:[%s8095 + $0x3c] sm:$0xe]
      %v8470 = vld [vmem:[%s8095 + $0x40] sm:$0xf]
      %v8471 = vld [vmem:[%s8095 + $0x44] sm:$0x1]
      %v8472 = vld [vmem:[%s8095 + $0x48] sm:$0xe]
      %v8473 = vld [vmem:[%s8095 + $0x4c] sm:$0xf]
      %v8474 = vld [vmem:[%s8095 + $0x50] sm:$0x1]
      %v8475 = vld [vmem:[%s8095 + $0x54] sm:$0xe]
      %v8476 = vld [vmem:[%s8095 + $0x58] sm:$0xf]
      %v8477 = vld [vmem:[%s8095 + $0x5c] sm:$0x1]
      %v8478 = vld [vmem:[%s8095 + $0x60] sm:$0xe]
      %v8479 = vld [vmem:[%s8095 + $0x64] sm:$0xf]
      %v8480 = vld [vmem:[%s8095 + $0x68] sm:$0x1]
      %v8481 = vld [vmem:[%s8095 + $0x6c] sm:$0xe]
      %v8482 = vld [vmem:[%s8095 + $0x70] sm:$0xf]
      %v8483 = vld [vmem:[%s8095 + $0x74] sm:$0x1]
      %v8484 = vld [vmem:[%s8095 + $0x78] sm:$0xe]
      %v8485 = vld [vmem:[%s8095 + $0x7c] sm:$0xf]
      %v8486 = vld [vmem:[%s8095 + $0x80] sm:$0x1]
      %v8487 = vld [vmem:[%s8095 + $0x84] sm:$0xe]
      %v8488 = vld [vmem:[%s8095 + $0x88] sm:$0xf]
      %v8489 = vld [vmem:[%s8095 + $0x8c] sm:$0x1]
      %v8490 = vld [vmem:[%s8095 + $0x90] sm:$0xe]
      %v8491 = vld [vmem:[%s8095 + $0x94] sm:$0xf]
      %v8492 = vld [vmem:[%s8095 + $0x98] sm:$0x1]
      %v8493 = vld [vmem:[%s8095 + $0x9c] sm:$0xe]
      %v8494 = vld [vmem:[%s8095 + $0xa0] sm:$0xf]
      %v8495 = vld [vmem:[%s8095 + $0xa4] sm:$0x1]
      %v8496 = vld [vmem:[%s8095 + $0xa8] sm:$0xe]
      %v8497 = vld [vmem:[%s8095 + $0xac] sm:$0xf]
      %v8498 = vld [vmem:[%s8095 + $0xb0] sm:$0x1]
      %v8499 = vld [vmem:[%s8095 + $0xb4] sm:$0xe]
      %v8500 = vld [vmem:[%s8095 + $0xb8] sm:$0xf]
      %v8501 = vld [vmem:[%s8095 + $0xbc] sm:$0x1]
      %v8550 = vrot.slane %v8454, 5
      %v8551 = vrot.slane %v8550, 4
      %v8552 = vrot.slane %v8455, 5
      %v8553 = vsel %vm684, %v8551, %v8552
      %v8554 = vrot.slane %v8552, 4
      %v8555 = vrot.slane %v8456, 5
      %v8556 = vsel %vm684, %v8554, %v8555
      %v8557 = vrot.slane %v8457, 5
      %v8558 = vrot.slane %v8557, 4
      %v8559 = vrot.slane %v8458, 5
      %v8560 = vsel %vm684, %v8558, %v8559
      %v8561 = vrot.slane %v8559, 4
      %v8562 = vrot.slane %v8459, 5
      %v8563 = vsel %vm684, %v8561, %v8562
      %v8564 = vrot.slane %v8460, 5
      %v8565 = vrot.slane %v8564, 4
      %v8566 = vrot.slane %v8461, 5
      %v8567 = vsel %vm684, %v8565, %v8566
      %v8568 = vrot.slane %v8566, 4
      %v8569 = vrot.slane %v8462, 5
      %v8570 = vsel %vm684, %v8568, %v8569
      %v8571 = vrot.slane %v8463, 5
      %v8572 = vrot.slane %v8571, 4
      %v8573 = vrot.slane %v8464, 5
      %v8574 = vsel %vm684, %v8572, %v8573
      %v8575 = vrot.slane %v8573, 4
      %v8576 = vrot.slane %v8465, 5
      %v8577 = vsel %vm684, %v8575, %v8576
      %v8578 = vrot.slane %v8466, 5
      %v8579 = vrot.slane %v8578, 4
      %v8580 = vrot.slane %v8467, 5
      %v8581 = vsel %vm684, %v8579, %v8580
      %v8582 = vrot.slane %v8580, 4
      %v8583 = vrot.slane %v8468, 5
      %v8584 = vsel %vm684, %v8582, %v8583
      %v8585 = vrot.slane %v8469, 5
      %v8586 = vrot.slane %v8585, 4
      %v8587 = vrot.slane %v8470, 5
      %v8588 = vsel %vm684, %v8586, %v8587
      %v8589 = vrot.slane %v8587, 4
      %v8590 = vrot.slane %v8471, 5
      %v8591 = vsel %vm684, %v8589, %v8590
      %v8592 = vrot.slane %v8472, 5
      %v8593 = vrot.slane %v8592, 4
      %v8594 = vrot.slane %v8473, 5
      %v8595 = vsel %vm684, %v8593, %v8594
      %v8596 = vrot.slane %v8594, 4
      %v8597 = vrot.slane %v8474, 5
      %v8598 = vsel %vm684, %v8596, %v8597
      %v8599 = vrot.slane %v8475, 5
      %v8600 = vrot.slane %v8599, 4
      %v8601 = vrot.slane %v8476, 5
      %v8602 = vsel %vm684, %v8600, %v8601
      %v8603 = vrot.slane %v8601, 4
      %v8604 = vrot.slane %v8477, 5
      %v8605 = vsel %vm684, %v8603, %v8604
      %v8606 = vrot.slane %v8478, 5
      %v8607 = vrot.slane %v8606, 4
      %v8608 = vrot.slane %v8479, 5
      %v8609 = vsel %vm684, %v8607, %v8608
      %v8610 = vrot.slane %v8608, 4
      %v8611 = vrot.slane %v8480, 5
      %v8612 = vsel %vm684, %v8610, %v8611
      %v8613 = vrot.slane %v8481, 5
      %v8614 = vrot.slane %v8613, 4
      %v8615 = vrot.slane %v8482, 5
      %v8616 = vsel %vm684, %v8614, %v8615
      %v8617 = vrot.slane %v8615, 4
      %v8618 = vrot.slane %v8483, 5
      %v8619 = vsel %vm684, %v8617, %v8618
      %v8620 = vrot.slane %v8484, 5
      %v8621 = vrot.slane %v8620, 4
      %v8622 = vrot.slane %v8485, 5
      %v8623 = vsel %vm684, %v8621, %v8622
      %v8624 = vrot.slane %v8622, 4
      %v8625 = vrot.slane %v8486, 5
      %v8626 = vsel %vm684, %v8624, %v8625
      %v8627 = vrot.slane %v8487, 5
      %v8628 = vrot.slane %v8627, 4
      %v8629 = vrot.slane %v8488, 5
      %v8630 = vsel %vm684, %v8628, %v8629
      %v8631 = vrot.slane %v8629, 4
      %v8632 = vrot.slane %v8489, 5
      %v8633 = vsel %vm684, %v8631, %v8632
      %v8634 = vrot.slane %v8490, 5
      %v8635 = vrot.slane %v8634, 4
      %v8636 = vrot.slane %v8491, 5
      %v8637 = vsel %vm684, %v8635, %v8636
      %v8638 = vrot.slane %v8636, 4
      %v8639 = vrot.slane %v8492, 5
      %v8640 = vsel %vm684, %v8638, %v8639
      %v8641 = vrot.slane %v8493, 5
      %v8642 = vrot.slane %v8641, 4
      %v8643 = vrot.slane %v8494, 5
      %v8644 = vsel %vm684, %v8642, %v8643
      %v8645 = vrot.slane %v8643, 4
      %v8646 = vrot.slane %v8495, 5
      %v8647 = vsel %vm684, %v8645, %v8646
      %v8648 = vrot.slane %v8496, 5
      %v8649 = vrot.slane %v8648, 4
      %v8650 = vrot.slane %v8497, 5
      %v8651 = vsel %vm684, %v8649, %v8650
      %v8652 = vrot.slane %v8650, 4
      %v8653 = vrot.slane %v8498, 5
      %v8654 = vsel %vm684, %v8652, %v8653
      %v8655 = vrot.slane %v8499, 5
      %v8656 = vrot.slane %v8655, 4
      %v8657 = vrot.slane %v8500, 5
      %v8658 = vsel %vm684, %v8656, %v8657
      %v8659 = vrot.slane %v8657, 4
      %v8660 = vrot.slane %v8501, 5
      %v8661 = vsel %vm684, %v8659, %v8660
      %s8662 = scalar_lea.vmem %s1, 64
      %v8663 = vld [vmem:[%s8662] sm:$0xf]
      %v8664 = vunpack.c.l.b16 %v8553
      %v8665 = vunpack.c.l.b16 %v8556
      %v8666 = vunpack.c.l.b16 %v8560
      %v8667 = vunpack.c.l.b16 %v8563
      %v8668 = vunpack.c.l.b16 %v8567
      %v8669 = vunpack.c.l.b16 %v8570
      %v8670 = vunpack.c.l.b16 %v8574
      %v8671 = vunpack.c.l.b16 %v8577
      %v8672 = vunpack.c.l.b16 %v8581
      %v8673 = vunpack.c.l.b16 %v8584
      %v8674 = vunpack.c.l.b16 %v8588
      %v8675 = vunpack.c.l.b16 %v8591
      %v8676 = vunpack.c.l.b16 %v8595
      %v8677 = vunpack.c.l.b16 %v8598
      %v8678 = vunpack.c.l.b16 %v8602
      %v8679 = vunpack.c.l.b16 %v8605
      %v8680 = vunpack.c.l.b16 %v8609
      %v8681 = vunpack.c.l.b16 %v8612
      %v8682 = vunpack.c.l.b16 %v8616
      %v8683 = vunpack.c.l.b16 %v8619
      %v8684 = vunpack.c.l.b16 %v8623
      %v8685 = vunpack.c.l.b16 %v8626
      %v8686 = vunpack.c.l.b16 %v8630
      %v8687 = vunpack.c.l.b16 %v8633
      %v8688 = vunpack.c.l.b16 %v8637
      %v8689 = vunpack.c.l.b16 %v8640
      %v8690 = vunpack.c.l.b16 %v8644
      %v8691 = vunpack.c.l.b16 %v8647
      %v8692 = vunpack.c.l.b16 %v8651
      %v8693 = vunpack.c.l.b16 %v8654
      %v8694 = vunpack.c.l.b16 %v8658
      %v8695 = vunpack.c.l.b16 %v8661
      %v8696 = vpack.c.b16 %v8665, %v8664
      %v8697 = vpack.c.b16 %v8667, %v8666
      %v8698 = vpack.c.b16 %v8669, %v8668
      %v8699 = vpack.c.b16 %v8671, %v8670
      %v8700 = vpack.c.b16 %v8673, %v8672
      %v8701 = vpack.c.b16 %v8675, %v8674
      %v8702 = vpack.c.b16 %v8677, %v8676
      %v8703 = vpack.c.b16 %v8679, %v8678
      %v8704 = vpack.c.b16 %v8681, %v8680
      %v8705 = vpack.c.b16 %v8683, %v8682
      %v8706 = vpack.c.b16 %v8685, %v8684
      %v8707 = vpack.c.b16 %v8687, %v8686
      %v8708 = vpack.c.b16 %v8689, %v8688
      %v8709 = vpack.c.b16 %v8691, %v8690
      %v8710 = vpack.c.b16 %v8693, %v8692
      %v8711 = vpack.c.b16 %v8695, %v8694
      %v8713 = vsel %vm847, %v8696, 0
      %v8716 = vsel %vm847, %v8697, 0
      %v8719 = vsel %vm847, %v8698, 0
      %v8722 = vsel %vm847, %v8699, 0
      %v8725 = vsel %vm847, %v8700, 0
      %v8728 = vsel %vm847, %v8701, 0
      %v8731 = vsel %vm847, %v8702, 0
      %v8734 = vsel %vm847, %v8703, 0
      %v8737 = vsel %vm847, %v8704, 0
      %v8740 = vsel %vm847, %v8705, 0
      %v8743 = vsel %vm847, %v8706, 0
      %v8746 = vsel %vm847, %v8707, 0
      %v8749 = vsel %vm847, %v8708, 0
      %v8752 = vsel %vm847, %v8709, 0
      %v8755 = vsel %vm847, %v8710, 0
      %v8758 = vsel %vm847, %v8711, 0
      %v8761 = vsel %vm896, %v8663, 0
      %8763 = vmatprep.subr.bf16.mxu0 0
      %8764 = vmatpush1.bf16.msra.mxu0 %v8761
      %8765 = vmatprep.subr.bf16.mxu0 0
      %8766 = vmatpush1.bf16.msra.mxu0 0
      %8767 = vmatprep.subr.bf16.mxu0 0
      %8768 = vmatpush1.bf16.msra.mxu0 0
      %8769 = vmatprep.subr.bf16.mxu0 0
      %8770 = vmatpush1.bf16.msra.mxu0 0
      %8771 = vmatprep.subr.bf16.mxu0 0
      %8772 = vmatpush1.bf16.msra.mxu0 0
      %8773 = vmatprep.subr.bf16.mxu0 0
      %8774 = vmatpush1.bf16.msra.mxu0 0
      %8775 = vmatprep.subr.bf16.mxu0 0
      %8776 = vmatpush1.bf16.msra.mxu0 0
      %8777 = vmatprep.subr.bf16.mxu0 0
      %8778 = vmatpush1.bf16.msra.mxu0 0
      %8779 = vmatprep.subr.bf16.mxu0 0
      %8780 = vmatpush1.bf16.msra.mxu0 0
      %8781 = vmatprep.subr.bf16.mxu0 0
      %8782 = vmatpush1.bf16.msra.mxu0 0
      %8783 = vmatprep.subr.bf16.mxu0 0
      %8784 = vmatpush1.bf16.msra.mxu0 0
      %8785 = vmatprep.subr.bf16.mxu0 0
      %8786 = vmatpush1.bf16.msra.mxu0 0
      %8787 = vmatprep.subr.bf16.mxu0 0
      %8788 = vmatpush1.bf16.msra.mxu0 0
      %8789 = vmatprep.subr.bf16.mxu0 0
      %8790 = vmatpush1.bf16.msra.mxu0 0
      %8791 = vmatprep.subr.bf16.mxu0 0
      %8792 = vmatpush1.bf16.msra.mxu0 0
      %8793 = vmatprep.subr.bf16.mxu0 0
      %8794 = vmatpush1.bf16.msra.mxu0 0
      %8795 = vmatprep.mubr.bf16.mxu0 0
      %8796 = vmatmul.mubr.bf16.gmra.mrb[0].mxu0 %v8713
      %v8797 = vpop.f32.mrb[0].mxu0
      %v8798 = vadd.f32 0.0, %v8797
      %v8799 = vpop.f32.mrb[0].mxu0
      %v8800 = vpop.f32.mrb[0].mxu0
      %v8801 = vadd.f32 0.0, %v8800
      %v8802 = vpop.f32.mrb[0].mxu0
      %8803 = vmatprep.mubr.bf16.mxu0 0
      %8804 = vmatmul.mubr.bf16.gmra.mrb[0].mxu0 %v8716
      %v8805 = vpop.f32.mrb[0].mxu0
      %v8806 = vadd.f32 0.0, %v8805
      %v8807 = vpop.f32.mrb[0].mxu0
      %v8808 = vpop.f32.mrb[0].mxu0
      %v8809 = vadd.f32 0.0, %v8808
      %v8810 = vpop.f32.mrb[0].mxu0
      %8811 = vmatprep.mubr.bf16.mxu0 0
      %8812 = vmatmul.mubr.bf16.gmra.mrb[0].mxu0 %v8719
      %v8813 = vpop.f32.mrb[0].mxu0
      %v8814 = vadd.f32 0.0, %v8813
      %v8815 = vpop.f32.mrb[0].mxu0
      %v8816 = vpop.f32.mrb[0].mxu0
      %v8817 = vadd.f32 0.0, %v8816
      %v8818 = vpop.f32.mrb[0].mxu0
      %8819 = vmatprep.mubr.bf16.mxu0 0
      %8820 = vmatmul.mubr.bf16.gmra.mrb[0].mxu0 %v8722
      %v8821 = vpop.f32.mrb[0].mxu0
      %v8822 = vadd.f32 0.0, %v8821
      %v8823 = vpop.f32.mrb[0].mxu0
      %v8824 = vpop.f32.mrb[0].mxu0
      %v8825 = vadd.f32 0.0, %v8824
      %v8826 = vpop.f32.mrb[0].mxu0
      %8827 = vmatprep.mubr.bf16.mxu0 0
      %8828 = vmatmul.mubr.bf16.gmra.mrb[0].mxu0 %v8725
      %v8829 = vpop.f32.mrb[0].mxu0
      %v8830 = vadd.f32 0.0, %v8829
      %v8831 = vpop.f32.mrb[0].mxu0
      %v8832 = vpop.f32.mrb[0].mxu0
      %v8833 = vadd.f32 0.0, %v8832
      %v8834 = vpop.f32.mrb[0].mxu0
      %8835 = vmatprep.mubr.bf16.mxu0 0
      %8836 = vmatmul.mubr.bf16.gmra.mrb[0].mxu0 %v8728
      %v8837 = vpop.f32.mrb[0].mxu0
      %v8838 = vadd.f32 0.0, %v8837
      %v8839 = vpop.f32.mrb[0].mxu0
      %v8840 = vpop.f32.mrb[0].mxu0
      %v8841 = vadd.f32 0.0, %v8840
      %v8842 = vpop.f32.mrb[0].mxu0
      %8843 = vmatprep.mubr.bf16.mxu0 0
      %8844 = vmatmul.mubr.bf16.gmra.mrb[0].mxu0 %v8731
      %v8845 = vpop.f32.mrb[0].mxu0
      %v8846 = vadd.f32 0.0, %v8845
      %v8847 = vpop.f32.mrb[0].mxu0
      %v8848 = vpop.f32.mrb[0].mxu0
      %v8849 = vadd.f32 0.0, %v8848
      %v8850 = vpop.f32.mrb[0].mxu0
      %8851 = vmatprep.mubr.bf16.mxu0 0
      %8852 = vmatmul.mubr.bf16.gmra.mrb[0].mxu0 %v8734
      %v8853 = vpop.f32.mrb[0].mxu0
      %v8854 = vadd.f32 0.0, %v8853
      %v8855 = vpop.f32.mrb[0].mxu0
      %v8856 = vpop.f32.mrb[0].mxu0
      %v8857 = vadd.f32 0.0, %v8856
      %v8858 = vpop.f32.mrb[0].mxu0
      %8859 = vmatprep.mubr.bf16.mxu0 0
      %8860 = vmatmul.mubr.bf16.gmra.mrb[0].mxu0 %v8737
      %v8861 = vpop.f32.mrb[0].mxu0
      %v8862 = vadd.f32 0.0, %v8861
      %v8863 = vpop.f32.mrb[0].mxu0
      %v8864 = vpop.f32.mrb[0].mxu0
      %v8865 = vadd.f32 0.0, %v8864
      %v8866 = vpop.f32.mrb[0].mxu0
      %8867 = vmatprep.mubr.bf16.mxu0 0
      %8868 = vmatmul.mubr.bf16.gmra.mrb[0].mxu0 %v8740
      %v8869 = vpop.f32.mrb[0].mxu0
      %v8870 = vadd.f32 0.0, %v8869
      %v8871 = vpop.f32.mrb[0].mxu0
      %v8872 = vpop.f32.mrb[0].mxu0
      %v8873 = vadd.f32 0.0, %v8872
      %v8874 = vpop.f32.mrb[0].mxu0
      %8875 = vmatprep.mubr.bf16.mxu0 0
      %8876 = vmatmul.mubr.bf16.gmra.mrb[0].mxu0 %v8743
      %v8877 = vpop.f32.mrb[0].mxu0
      %v8878 = vadd.f32 0.0, %v8877
      %v8879 = vpop.f32.mrb[0].mxu0
      %v8880 = vpop.f32.mrb[0].mxu0
      %v8881 = vadd.f32 0.0, %v8880
      %v8882 = vpop.f32.mrb[0].mxu0
      %8883 = vmatprep.mubr.bf16.mxu0 0
      %8884 = vmatmul.mubr.bf16.gmra.mrb[0].mxu0 %v8746
      %v8885 = vpop.f32.mrb[0].mxu0
      %v8886 = vadd.f32 0.0, %v8885
      %v8887 = vpop.f32.mrb[0].mxu0
      %v8888 = vpop.f32.mrb[0].mxu0
      %v8889 = vadd.f32 0.0, %v8888
      %v8890 = vpop.f32.mrb[0].mxu0
      %8891 = vmatprep.mubr.bf16.mxu0 0
      %8892 = vmatmul.mubr.bf16.gmra.mrb[0].mxu0 %v8749
      %v8893 = vpop.f32.mrb[0].mxu0
      %v8894 = vadd.f32 0.0, %v8893
      %v8895 = vpop.f32.mrb[0].mxu0
      %v8896 = vpop.f32.mrb[0].mxu0
      %v8897 = vadd.f32 0.0, %v8896
      %v8898 = vpop.f32.mrb[0].mxu0
      %8899 = vmatprep.mubr.bf16.mxu0 0
      %8900 = vmatmul.mubr.bf16.gmra.mrb[0].mxu0 %v8752
      %v8901 = vpop.f32.mrb[0].mxu0
      %v8902 = vadd.f32 0.0, %v8901
      %v8903 = vpop.f32.mrb[0].mxu0
      %v8904 = vpop.f32.mrb[0].mxu0
      %v8905 = vadd.f32 0.0, %v8904
      %v8906 = vpop.f32.mrb[0].mxu0
      %8907 = vmatprep.mubr.bf16.mxu0 0
      %8908 = vmatmul.mubr.bf16.gmra.mrb[0].mxu0 %v8755
      %v8909 = vpop.f32.mrb[0].mxu0
      %v8910 = vadd.f32 0.0, %v8909
      %v8911 = vpop.f32.mrb[0].mxu0
      %v8912 = vpop.f32.mrb[0].mxu0
      %v8913 = vadd.f32 0.0, %v8912
      %v8914 = vpop.f32.mrb[0].mxu0
      %8915 = vmatprep.mubr.bf16.mxu0 0
      %8916 = vmatmul.mubr.bf16.gmra.mrb[0].mxu0 %v8758
      %v8917 = vpop.f32.mrb[0].mxu0
      %v8918 = vadd.f32 0.0, %v8917
      %v8919 = vpop.f32.mrb[0].mxu0
      %v8920 = vpop.f32.mrb[0].mxu0
      %v8921 = vadd.f32 0.0, %v8920
      %v8922 = vpop.f32.mrb[0].mxu0
      %8923 = vdwg.mxu0
      %v8924 = vadd.f32 %v8422, %v8798
      %v8925 = vadd.f32 %v8423, %v8801
      %v8926 = vadd.f32 %v8424, %v8806
      %v8927 = vadd.f32 %v8425, %v8809
      %v8928 = vadd.f32 %v8426, %v8814
      %v8929 = vadd.f32 %v8427, %v8817
      %v8930 = vadd.f32 %v8428, %v8822
      %v8931 = vadd.f32 %v8429, %v8825
      %v8932 = vadd.f32 %v8430, %v8830
      %v8933 = vadd.f32 %v8431, %v8833
      %v8934 = vadd.f32 %v8432, %v8838
      %v8935 = vadd.f32 %v8433, %v8841
      %v8936 = vadd.f32 %v8434, %v8846
      %v8937 = vadd.f32 %v8435, %v8849
      %v8938 = vadd.f32 %v8436, %v8854
      %v8939 = vadd.f32 %v8437, %v8857
      %v8940 = vadd.f32 %v8438, %v8862
      %v8941 = vadd.f32 %v8439, %v8865
      %v8942 = vadd.f32 %v8440, %v8870
      %v8943 = vadd.f32 %v8441, %v8873
      %v8944 = vadd.f32 %v8442, %v8878
      %v8945 = vadd.f32 %v8443, %v8881
      %v8946 = vadd.f32 %v8444, %v8886
      %v8947 = vadd.f32 %v8445, %v8889
      %v8948 = vadd.f32 %v8446, %v8894
      %v8949 = vadd.f32 %v8447, %v8897
      %v8950 = vadd.f32 %v8448, %v8902
      %v8951 = vadd.f32 %v8449, %v8905
      %v8952 = vadd.f32 %v8450, %v8910
      %v8953 = vadd.f32 %v8451, %v8913
      %v8954 = vadd.f32 %v8452, %v8918
      %v8955 = vadd.f32 %v8453, %v8921
      %v8956 = vld [vmem:[%s8095] sm:$0xc]
      %v8957 = vld [vmem:[%s8095 + $0x8] sm:$0x3]
      %v8958 = vld [vmem:[%s8095 + $0xc] sm:$0xc]
      %v8959 = vld [vmem:[%s8095 + $0x14] sm:$0x3]
      %v8960 = vld [vmem:[%s8095 + $0x18] sm:$0xc]
      %v8961 = vld [vmem:[%s8095 + $0x20] sm:$0x3]
      %v8962 = vld [vmem:[%s8095 + $0x24] sm:$0xc]
      %v8963 = vld [vmem:[%s8095 + $0x2c] sm:$0x3]
      %v8964 = vld [vmem:[%s8095 + $0x30] sm:$0xc]
      %v8965 = vld [vmem:[%s8095 + $0x38] sm:$0x3]
      %v8966 = vld [vmem:[%s8095 + $0x3c] sm:$0xc]
      %v8967 = vld [vmem:[%s8095 + $0x44] sm:$0x3]
      %v8968 = vld [vmem:[%s8095 + $0x48] sm:$0xc]
      %v8969 = vld [vmem:[%s8095 + $0x50] sm:$0x3]
      %v8970 = vld [vmem:[%s8095 + $0x54] sm:$0xc]
      %v8971 = vld [vmem:[%s8095 + $0x5c] sm:$0x3]
      %v8972 = vld [vmem:[%s8095 + $0x60] sm:$0xc]
      %v8973 = vld [vmem:[%s8095 + $0x68] sm:$0x3]
      %v8974 = vld [vmem:[%s8095 + $0x6c] sm:$0xc]
      %v8975 = vld [vmem:[%s8095 + $0x74] sm:$0x3]
      %v8976 = vld [vmem:[%s8095 + $0x78] sm:$0xc]
      %v8977 = vld [vmem:[%s8095 + $0x80] sm:$0x3]
      %v8978 = vld [vmem:[%s8095 + $0x84] sm:$0xc]
      %v8979 = vld [vmem:[%s8095 + $0x8c] sm:$0x3]
      %v8980 = vld [vmem:[%s8095 + $0x90] sm:$0xc]
      %v8981 = vld [vmem:[%s8095 + $0x98] sm:$0x3]
      %v8982 = vld [vmem:[%s8095 + $0x9c] sm:$0xc]
      %v8983 = vld [vmem:[%s8095 + $0xa4] sm:$0x3]
      %v8984 = vld [vmem:[%s8095 + $0xa8] sm:$0xc]
      %v8985 = vld [vmem:[%s8095 + $0xb0] sm:$0x3]
      %v8986 = vld [vmem:[%s8095 + $0xb4] sm:$0xc]
      %v8987 = vld [vmem:[%s8095 + $0xbc] sm:$0x3]
      %v9020 = vrot.slane %v8956, 6
      %v9021 = vrot.slane %v9020, 4
      %v9022 = vrot.slane %v8455, 6
      %v9023 = vsel %vm6678, %v9021, %v9022
      %v9024 = vrot.slane %v9022, 4
      %v9025 = vrot.slane %v8957, 6
      %v9026 = vsel %vm6678, %v9024, %v9025
      %v9027 = vrot.slane %v8958, 6
      %v9028 = vrot.slane %v9027, 4
      %v9029 = vrot.slane %v8458, 6
      %v9030 = vsel %vm6678, %v9028, %v9029
      %v9031 = vrot.slane %v9029, 4
      %v9032 = vrot.slane %v8959, 6
      %v9033 = vsel %vm6678, %v9031, %v9032
      %v9034 = vrot.slane %v8960, 6
      %v9035 = vrot.slane %v9034, 4
      %v9036 = vrot.slane %v8461, 6
      %v9037 = vsel %vm6678, %v9035, %v9036
      %v9038 = vrot.slane %v9036, 4
      %v9039 = vrot.slane %v8961, 6
      %v9040 = vsel %vm6678, %v9038, %v9039
      %v9041 = vrot.slane %v8962, 6
      %v9042 = vrot.slane %v9041, 4
      %v9043 = vrot.slane %v8464, 6
      %v9044 = vsel %vm6678, %v9042, %v9043
      %v9045 = vrot.slane %v9043, 4
      %v9046 = vrot.slane %v8963, 6
      %v9047 = vsel %vm6678, %v9045, %v9046
      %v9048 = vrot.slane %v8964, 6
      %v9049 = vrot.slane %v9048, 4
      %v9050 = vrot.slane %v8467, 6
      %v9051 = vsel %vm6678, %v9049, %v9050
      %v9052 = vrot.slane %v9050, 4
      %v9053 = vrot.slane %v8965, 6
      %v9054 = vsel %vm6678, %v9052, %v9053
      %v9055 = vrot.slane %v8966, 6
      %v9056 = vrot.slane %v9055, 4
      %v9057 = vrot.slane %v8470, 6
      %v9058 = vsel %vm6678, %v9056, %v9057
      %v9059 = vrot.slane %v9057, 4
      %v9060 = vrot.slane %v8967, 6
      %v9061 = vsel %vm6678, %v9059, %v9060
      %v9062 = vrot.slane %v8968, 6
      %v9063 = vrot.slane %v9062, 4
      %v9064 = vrot.slane %v8473, 6
      %v9065 = vsel %vm6678, %v9063, %v9064
      %v9066 = vrot.slane %v9064, 4
      %v9067 = vrot.slane %v8969, 6
      %v9068 = vsel %vm6678, %v9066, %v9067
      %v9069 = vrot.slane %v8970, 6
      %v9070 = vrot.slane %v9069, 4
      %v9071 = vrot.slane %v8476, 6
      %v9072 = vsel %vm6678, %v9070, %v9071
      %v9073 = vrot.slane %v9071, 4
      %v9074 = vrot.slane %v8971, 6
      %v9075 = vsel %vm6678, %v9073, %v9074
      %v9076 = vrot.slane %v8972, 6
      %v9077 = vrot.slane %v9076, 4
      %v9078 = vrot.slane %v8479, 6
      %v9079 = vsel %vm6678, %v9077, %v9078
      %v9080 = vrot.slane %v9078, 4
      %v9081 = vrot.slane %v8973, 6
      %v9082 = vsel %vm6678, %v9080, %v9081
      %v9083 = vrot.slane %v8974, 6
      %v9084 = vrot.slane %v9083, 4
      %v9085 = vrot.slane %v8482, 6
      %v9086 = vsel %vm6678, %v9084, %v9085
      %v9087 = vrot.slane %v9085, 4
      %v9088 = vrot.slane %v8975, 6
      %v9089 = vsel %vm6678, %v9087, %v9088
      %v9090 = vrot.slane %v8976, 6
      %v9091 = vrot.slane %v9090, 4
      %v9092 = vrot.slane %v8485, 6
      %v9093 = vsel %vm6678, %v9091, %v9092
      %v9094 = vrot.slane %v9092, 4
      %v9095 = vrot.slane %v8977, 6
      %v9096 = vsel %vm6678, %v9094, %v9095
      %v9097 = vrot.slane %v8978, 6
      %v9098 = vrot.slane %v9097, 4
      %v9099 = vrot.slane %v8488, 6
      %v9100 = vsel %vm6678, %v9098, %v9099
      %v9101 = vrot.slane %v9099, 4
      %v9102 = vrot.slane %v8979, 6
      %v9103 = vsel %vm6678, %v9101, %v9102
      %v9104 = vrot.slane %v8980, 6
      %v9105 = vrot.slane %v9104, 4
      %v9106 = vrot.slane %v8491, 6
      %v9107 = vsel %vm6678, %v9105, %v9106
      %v9108 = vrot.slane %v9106, 4
      %v9109 = vrot.slane %v8981, 6
      %v9110 = vsel %vm6678, %v9108, %v9109
      %v9111 = vrot.slane %v8982, 6
      %v9112 = vrot.slane %v9111, 4
      %v9113 = vrot.slane %v8494, 6
      %v9114 = vsel %vm6678, %v9112, %v9113
      %v9115 = vrot.slane %v9113, 4
      %v9116 = vrot.slane %v8983, 6
      %v9117 = vsel %vm6678, %v9115, %v9116
      %v9118 = vrot.slane %v8984, 6
      %v9119 = vrot.slane %v9118, 4
      %v9120 = vrot.slane %v8497, 6
      %v9121 = vsel %vm6678, %v9119, %v9120
      %v9122 = vrot.slane %v9120, 4
      %v9123 = vrot.slane %v8985, 6
      %v9124 = vsel %vm6678, %v9122, %v9123
      %v9125 = vrot.slane %v8986, 6
      %v9126 = vrot.slane %v9125, 4
      %v9127 = vrot.slane %v8500, 6
      %v9128 = vsel %vm6678, %v9126, %v9127
      %v9129 = vrot.slane %v9127, 4
      %v9130 = vrot.slane %v8987, 6
      %v9131 = vsel %vm6678, %v9129, %v9130
      %s9132 = scalar_lea.vmem %s1, 68
      %v9133 = vld [vmem:[%s9132] sm:$0xf]
      %v9134 = vunpack.c.l.b16 %v9023
      %v9135 = vunpack.c.l.b16 %v9026
      %v9136 = vunpack.c.l.b16 %v9030
      %v9137 = vunpack.c.l.b16 %v9033
      %v9138 = vunpack.c.l.b16 %v9037
      %v9139 = vunpack.c.l.b16 %v9040
      %v9140 = vunpack.c.l.b16 %v9044
      %v9141 = vunpack.c.l.b16 %v9047
      %v9142 = vunpack.c.l.b16 %v9051
      %v9143 = vunpack.c.l.b16 %v9054
      %v9144 = vunpack.c.l.b16 %v9058
      %v9145 = vunpack.c.l.b16 %v9061
      %v9146 = vunpack.c.l.b16 %v9065
      %v9147 = vunpack.c.l.b16 %v9068
      %v9148 = vunpack.c.l.b16 %v9072
      %v9149 = vunpack.c.l.b16 %v9075
      %v9150 = vunpack.c.l.b16 %v9079
      %v9151 = vunpack.c.l.b16 %v9082
      %v9152 = vunpack.c.l.b16 %v9086
      %v9153 = vunpack.c.l.b16 %v9089
      %v9154 = vunpack.c.l.b16 %v9093
      %v9155 = vunpack.c.l.b16 %v9096
      %v9156 = vunpack.c.l.b16 %v9100
      %v9157 = vunpack.c.l.b16 %v9103
      %v9158 = vunpack.c.l.b16 %v9107
      %v9159 = vunpack.c.l.b16 %v9110
      %v9160 = vunpack.c.l.b16 %v9114
      %v9161 = vunpack.c.l.b16 %v9117
      %v9162 = vunpack.c.l.b16 %v9121
      %v9163 = vunpack.c.l.b16 %v9124
      %v9164 = vunpack.c.l.b16 %v9128
      %v9165 = vunpack.c.l.b16 %v9131
      %v9166 = vpack.c.b16 %v9135, %v9134
      %v9167 = vpack.c.b16 %v9137, %v9136
      %v9168 = vpack.c.b16 %v9139, %v9138
      %v9169 = vpack.c.b16 %v9141, %v9140
      %v9170 = vpack.c.b16 %v9143, %v9142
      %v9171 = vpack.c.b16 %v9145, %v9144
      %v9172 = vpack.c.b16 %v9147, %v9146
      %v9173 = vpack.c.b16 %v9149, %v9148
      %v9174 = vpack.c.b16 %v9151, %v9150
      %v9175 = vpack.c.b16 %v9153, %v9152
      %v9176 = vpack.c.b16 %v9155, %v9154
      %v9177 = vpack.c.b16 %v9157, %v9156
      %v9178 = vpack.c.b16 %v9159, %v9158
      %v9179 = vpack.c.b16 %v9161, %v9160
      %v9180 = vpack.c.b16 %v9163, %v9162
      %v9181 = vpack.c.b16 %v9165, %v9164
      %v9183 = vsel %vm847, %v9166, 0
      %v9186 = vsel %vm847, %v9167, 0
      %v9189 = vsel %vm847, %v9168, 0
      %v9192 = vsel %vm847, %v9169, 0
      %v9195 = vsel %vm847, %v9170, 0
      %v9198 = vsel %vm847, %v9171, 0
      %v9201 = vsel %vm847, %v9172, 0
      %v9204 = vsel %vm847, %v9173, 0
      %v9207 = vsel %vm847, %v9174, 0
      %v9210 = vsel %vm847, %v9175, 0
      %v9213 = vsel %vm847, %v9176, 0
      %v9216 = vsel %vm847, %v9177, 0
      %v9219 = vsel %vm847, %v9178, 0
      %v9222 = vsel %vm847, %v9179, 0
      %v9225 = vsel %vm847, %v9180, 0
      %v9228 = vsel %vm847, %v9181, 0
      %v9231 = vsel %vm896, %v9133, 0
      %9233 = vmatprep.subr.bf16.mxu0 0
      %9234 = vmatpush1.bf16.msra.mxu0 %v9231
      %9235 = vmatprep.subr.bf16.mxu0 0
      %9236 = vmatpush1.bf16.msra.mxu0 0
      %9237 = vmatprep.subr.bf16.mxu0 0
      %9238 = vmatpush1.bf16.msra.mxu0 0
      %9239 = vmatprep.subr.bf16.mxu0 0
      %9240 = vmatpush1.bf16.msra.mxu0 0
      %9241 = vmatprep.subr.bf16.mxu0 0
      %9242 = vmatpush1.bf16.msra.mxu0 0
      %9243 = vmatprep.subr.bf16.mxu0 0
      %9244 = vmatpush1.bf16.msra.mxu0 0
      %9245 = vmatprep.subr.bf16.mxu0 0
      %9246 = vmatpush1.bf16.msra.mxu0 0
      %9247 = vmatprep.subr.bf16.mxu0 0
      %9248 = vmatpush1.bf16.msra.mxu0 0
      %9249 = vmatprep.subr.bf16.mxu0 0
      %9250 = vmatpush1.bf16.msra.mxu0 0
      %9251 = vmatprep.subr.bf16.mxu0 0
      %9252 = vmatpush1.bf16.msra.mxu0 0
      %9253 = vmatprep.subr.bf16.mxu0 0
      %9254 = vmatpush1.bf16.msra.mxu0 0
      %9255 = vmatprep.subr.bf16.mxu0 0
      %9256 = vmatpush1.bf16.msra.mxu0 0
      %9257 = vmatprep.subr.bf16.mxu0 0
      %9258 = vmatpush1.bf16.msra.mxu0 0
      %9259 = vmatprep.subr.bf16.mxu0 0
      %9260 = vmatpush1.bf16.msra.mxu0 0
      %9261 = vmatprep.subr.bf16.mxu0 0
      %9262 = vmatpush1.bf16.msra.mxu0 0
      %9263 = vmatprep.subr.bf16.mxu0 0
      %9264 = vmatpush1.bf16.msra.mxu0 0
      %9265 = vmatprep.mubr.bf16.mxu0 0
      %9266 = vmatmul.mubr.bf16.gmra.mrb[0].mxu0 %v9183
      %v9267 = vpop.f32.mrb[0].mxu0
      %v9268 = vadd.f32 0.0, %v9267
      %v9269 = vpop.f32.mrb[0].mxu0
      %v9270 = vpop.f32.mrb[0].mxu0
      %v9271 = vadd.f32 0.0, %v9270
      %v9272 = vpop.f32.mrb[0].mxu0
      %9273 = vmatprep.mubr.bf16.mxu0 0
      %9274 = vmatmul.mubr.bf16.gmra.mrb[0].mxu0 %v9186
      %v9275 = vpop.f32.mrb[0].mxu0
      %v9276 = vadd.f32 0.0, %v9275
      %v9277 = vpop.f32.mrb[0].mxu0
      %v9278 = vpop.f32.mrb[0].mxu0
      %v9279 = vadd.f32 0.0, %v9278
      %v9280 = vpop.f32.mrb[0].mxu0
      %9281 = vmatprep.mubr.bf16.mxu0 0
      %9282 = vmatmul.mubr.bf16.gmra.mrb[0].mxu0 %v9189
      %v9283 = vpop.f32.mrb[0].mxu0
      %v9284 = vadd.f32 0.0, %v9283
      %v9285 = vpop.f32.mrb[0].mxu0
      %v9286 = vpop.f32.mrb[0].mxu0
      %v9287 = vadd.f32 0.0, %v9286
      %v9288 = vpop.f32.mrb[0].mxu0
      %9289 = vmatprep.mubr.bf16.mxu0 0
      %9290 = vmatmul.mubr.bf16.gmra.mrb[0].mxu0 %v9192
      %v9291 = vpop.f32.mrb[0].mxu0
      %v9292 = vadd.f32 0.0, %v9291
      %v9293 = vpop.f32.mrb[0].mxu0
      %v9294 = vpop.f32.mrb[0].mxu0
      %v9295 = vadd.f32 0.0, %v9294
      %v9296 = vpop.f32.mrb[0].mxu0
      %9297 = vmatprep.mubr.bf16.mxu0 0
      %9298 = vmatmul.mubr.bf16.gmra.mrb[0].mxu0 %v9195
      %v9299 = vpop.f32.mrb[0].mxu0
      %v9300 = vadd.f32 0.0, %v9299
      %v9301 = vpop.f32.mrb[0].mxu0
      %v9302 = vpop.f32.mrb[0].mxu0
      %v9303 = vadd.f32 0.0, %v9302
      %v9304 = vpop.f32.mrb[0].mxu0
      %9305 = vmatprep.mubr.bf16.mxu0 0
      %9306 = vmatmul.mubr.bf16.gmra.mrb[0].mxu0 %v9198
      %v9307 = vpop.f32.mrb[0].mxu0
      %v9308 = vadd.f32 0.0, %v9307
      %v9309 = vpop.f32.mrb[0].mxu0
      %v9310 = vpop.f32.mrb[0].mxu0
      %v9311 = vadd.f32 0.0, %v9310
      %v9312 = vpop.f32.mrb[0].mxu0
      %9313 = vmatprep.mubr.bf16.mxu0 0
      %9314 = vmatmul.mubr.bf16.gmra.mrb[0].mxu0 %v9201
      %v9315 = vpop.f32.mrb[0].mxu0
      %v9316 = vadd.f32 0.0, %v9315
      %v9317 = vpop.f32.mrb[0].mxu0
      %v9318 = vpop.f32.mrb[0].mxu0
      %v9319 = vadd.f32 0.0, %v9318
      %v9320 = vpop.f32.mrb[0].mxu0
      %9321 = vmatprep.mubr.bf16.mxu0 0
      %9322 = vmatmul.mubr.bf16.gmra.mrb[0].mxu0 %v9204
      %v9323 = vpop.f32.mrb[0].mxu0
      %v9324 = vadd.f32 0.0, %v9323
      %v9325 = vpop.f32.mrb[0].mxu0
      %v9326 = vpop.f32.mrb[0].mxu0
      %v9327 = vadd.f32 0.0, %v9326
      %v9328 = vpop.f32.mrb[0].mxu0
      %9329 = vmatprep.mubr.bf16.mxu0 0
      %9330 = vmatmul.mubr.bf16.gmra.mrb[0].mxu0 %v9207
      %v9331 = vpop.f32.mrb[0].mxu0
      %v9332 = vadd.f32 0.0, %v9331
      %v9333 = vpop.f32.mrb[0].mxu0
      %v9334 = vpop.f32.mrb[0].mxu0
      %v9335 = vadd.f32 0.0, %v9334
      %v9336 = vpop.f32.mrb[0].mxu0
      %9337 = vmatprep.mubr.bf16.mxu0 0
      %9338 = vmatmul.mubr.bf16.gmra.mrb[0].mxu0 %v9210
      %v9339 = vpop.f32.mrb[0].mxu0
      %v9340 = vadd.f32 0.0, %v9339
      %v9341 = vpop.f32.mrb[0].mxu0
      %v9342 = vpop.f32.mrb[0].mxu0
      %v9343 = vadd.f32 0.0, %v9342
      %v9344 = vpop.f32.mrb[0].mxu0
      %9345 = vmatprep.mubr.bf16.mxu0 0
      %9346 = vmatmul.mubr.bf16.gmra.mrb[0].mxu0 %v9213
      %v9347 = vpop.f32.mrb[0].mxu0
      %v9348 = vadd.f32 0.0, %v9347
      %v9349 = vpop.f32.mrb[0].mxu0
      %v9350 = vpop.f32.mrb[0].mxu0
      %v9351 = vadd.f32 0.0, %v9350
      %v9352 = vpop.f32.mrb[0].mxu0
      %9353 = vmatprep.mubr.bf16.mxu0 0
      %9354 = vmatmul.mubr.bf16.gmra.mrb[0].mxu0 %v9216
      %v9355 = vpop.f32.mrb[0].mxu0
      %v9356 = vadd.f32 0.0, %v9355
      %v9357 = vpop.f32.mrb[0].mxu0
      %v9358 = vpop.f32.mrb[0].mxu0
      %v9359 = vadd.f32 0.0, %v9358
      %v9360 = vpop.f32.mrb[0].mxu0
      %9361 = vmatprep.mubr.bf16.mxu0 0
      %9362 = vmatmul.mubr.bf16.gmra.mrb[0].mxu0 %v9219
      %v9363 = vpop.f32.mrb[0].mxu0
      %v9364 = vadd.f32 0.0, %v9363
      %v9365 = vpop.f32.mrb[0].mxu0
      %v9366 = vpop.f32.mrb[0].mxu0
      %v9367 = vadd.f32 0.0, %v9366
      %v9368 = vpop.f32.mrb[0].mxu0
      %9369 = vmatprep.mubr.bf16.mxu0 0
      %9370 = vmatmul.mubr.bf16.gmra.mrb[0].mxu0 %v9222
      %v9371 = vpop.f32.mrb[0].mxu0
      %v9372 = vadd.f32 0.0, %v9371
      %v9373 = vpop.f32.mrb[0].mxu0
      %v9374 = vpop.f32.mrb[0].mxu0
      %v9375 = vadd.f32 0.0, %v9374
      %v9376 = vpop.f32.mrb[0].mxu0
      %9377 = vmatprep.mubr.bf16.mxu0 0
      %9378 = vmatmul.mubr.bf16.gmra.mrb[0].mxu0 %v9225
      %v9379 = vpop.f32.mrb[0].mxu0
      %v9380 = vadd.f32 0.0, %v9379
      %v9381 = vpop.f32.mrb[0].mxu0
      %v9382 = vpop.f32.mrb[0].mxu0
      %v9383 = vadd.f32 0.0, %v9382
      %v9384 = vpop.f32.mrb[0].mxu0
      %9385 = vmatprep.mubr.bf16.mxu0 0
      %9386 = vmatmul.mubr.bf16.gmra.mrb[0].mxu0 %v9228
      %v9387 = vpop.f32.mrb[0].mxu0
      %v9388 = vadd.f32 0.0, %v9387
      %v9389 = vpop.f32.mrb[0].mxu0
      %v9390 = vpop.f32.mrb[0].mxu0
      %v9391 = vadd.f32 0.0, %v9390
      %v9392 = vpop.f32.mrb[0].mxu0
      %9393 = vdwg.mxu0
      %v9394 = vadd.f32 %v8924, %v9268
      %v9395 = vadd.f32 %v8925, %v9271
      %v9396 = vadd.f32 %v8926, %v9276
      %v9397 = vadd.f32 %v8927, %v9279
      %v9398 = vadd.f32 %v8928, %v9284
      %v9399 = vadd.f32 %v8929, %v9287
      %v9400 = vadd.f32 %v8930, %v9292
      %v9401 = vadd.f32 %v8931, %v9295
      %v9402 = vadd.f32 %v8932, %v9300
      %v9403 = vadd.f32 %v8933, %v9303
      %v9404 = vadd.f32 %v8934, %v9308
      %v9405 = vadd.f32 %v8935, %v9311
      %v9406 = vadd.f32 %v8936, %v9316
      %v9407 = vadd.f32 %v8937, %v9319
      %v9408 = vadd.f32 %v8938, %v9324
      %v9409 = vadd.f32 %v8939, %v9327
      %v9410 = vadd.f32 %v8940, %v9332
      %v9411 = vadd.f32 %v8941, %v9335
      %v9412 = vadd.f32 %v8942, %v9340
      %v9413 = vadd.f32 %v8943, %v9343
      %v9414 = vadd.f32 %v8944, %v9348
      %v9415 = vadd.f32 %v8945, %v9351
      %v9416 = vadd.f32 %v8946, %v9356
      %v9417 = vadd.f32 %v8947, %v9359
      %v9418 = vadd.f32 %v8948, %v9364
      %v9419 = vadd.f32 %v8949, %v9367
      %v9420 = vadd.f32 %v8950, %v9372
      %v9421 = vadd.f32 %v8951, %v9375
      %v9422 = vadd.f32 %v8952, %v9380
      %v9423 = vadd.f32 %v8953, %v9383
      %v9424 = vadd.f32 %v8954, %v9388
      %v9425 = vadd.f32 %v8955, %v9391
      %v9426 = vmax.f32 %v9394, 0.0
      %v9427 = vmax.f32 %v9395, 0.0
      %v9428 = vmax.f32 %v9396, 0.0
      %v9429 = vmax.f32 %v9397, 0.0
      %v9430 = vmax.f32 %v9398, 0.0
      %v9431 = vmax.f32 %v9399, 0.0
      %v9432 = vmax.f32 %v9400, 0.0
      %v9433 = vmax.f32 %v9401, 0.0
      %v9434 = vmax.f32 %v9402, 0.0
      %v9435 = vmax.f32 %v9403, 0.0
      %v9436 = vmax.f32 %v9404, 0.0
      %v9437 = vmax.f32 %v9405, 0.0
      %v9438 = vmax.f32 %v9406, 0.0
      %v9439 = vmax.f32 %v9407, 0.0
      %v9440 = vmax.f32 %v9408, 0.0
      %v9441 = vmax.f32 %v9409, 0.0
      %v9442 = vmax.f32 %v9410, 0.0
      %v9443 = vmax.f32 %v9411, 0.0
      %v9444 = vmax.f32 %v9412, 0.0
      %v9445 = vmax.f32 %v9413, 0.0
      %v9446 = vmax.f32 %v9414, 0.0
      %v9447 = vmax.f32 %v9415, 0.0
      %v9448 = vmax.f32 %v9416, 0.0
      %v9449 = vmax.f32 %v9417, 0.0
      %v9450 = vmax.f32 %v9418, 0.0
      %v9451 = vmax.f32 %v9419, 0.0
      %v9452 = vmax.f32 %v9420, 0.0
      %v9453 = vmax.f32 %v9421, 0.0
      %v9454 = vmax.f32 %v9422, 0.0
      %v9455 = vmax.f32 %v9423, 0.0
      %v9456 = vmax.f32 %v9424, 0.0
      %v9457 = vmax.f32 %v9425, 0.0
      %v9458 = vpack.c.bf16 %v9427, %v9426
      %v9459 = vpack.c.bf16 %v9429, %v9428
      %v9460 = vpack.c.bf16 %v9431, %v9430
      %v9461 = vpack.c.bf16 %v9433, %v9432
      %v9462 = vpack.c.bf16 %v9435, %v9434
      %v9463 = vpack.c.bf16 %v9437, %v9436
      %v9464 = vpack.c.bf16 %v9439, %v9438
      %v9465 = vpack.c.bf16 %v9441, %v9440
      %v9466 = vpack.c.bf16 %v9443, %v9442
      %v9467 = vpack.c.bf16 %v9445, %v9444
      %v9468 = vpack.c.bf16 %v9447, %v9446
      %v9469 = vpack.c.bf16 %v9449, %v9448
      %v9470 = vpack.c.bf16 %v9451, %v9450
      %v9471 = vpack.c.bf16 %v9453, %v9452
      %v9472 = vpack.c.bf16 %v9455, %v9454
      %v9473 = vpack.c.bf16 %v9457, %v9456
      %v9490 = vunpack.c.l.b16 %v9458
      %v9491 = vunpack.c.h.b16 %v9458
      %v9492 = vunpack.c.l.b16 %v9459
      %v9493 = vunpack.c.h.b16 %v9459
      %v9494 = vunpack.c.l.b16 %v9460
      %v9495 = vunpack.c.h.b16 %v9460
      %v9496 = vunpack.c.l.b16 %v9461
      %v9497 = vunpack.c.h.b16 %v9461
      %v9498 = vunpack.c.l.b16 %v9462
      %v9499 = vunpack.c.h.b16 %v9462
      %v9500 = vunpack.c.l.b16 %v9463
      %v9501 = vunpack.c.h.b16 %v9463
      %v9502 = vunpack.c.l.b16 %v9464
      %v9503 = vunpack.c.h.b16 %v9464
      %v9504 = vunpack.c.l.b16 %v9465
      %v9505 = vunpack.c.h.b16 %v9465
      %v9506 = vunpack.c.l.b16 %v9466
      %v9507 = vunpack.c.h.b16 %v9466
      %v9508 = vunpack.c.l.b16 %v9467
      %v9509 = vunpack.c.h.b16 %v9467
      %v9510 = vunpack.c.l.b16 %v9468
      %v9511 = vunpack.c.h.b16 %v9468
      %v9512 = vunpack.c.l.b16 %v9469
      %v9513 = vunpack.c.h.b16 %v9469
      %v9514 = vunpack.c.l.b16 %v9470
      %v9515 = vunpack.c.h.b16 %v9470
      %v9516 = vunpack.c.l.b16 %v9471
      %v9517 = vunpack.c.h.b16 %v9471
      %v9518 = vunpack.c.l.b16 %v9472
      %v9519 = vunpack.c.h.b16 %v9472
      %v9520 = vunpack.c.l.b16 %v9473
      %v9521 = vunpack.c.h.b16 %v9473
      %v9522 = vpack.c.b16 %v9490, %v9490
      %v9523 = vpack.c.b16 %v9491, %v9491
      %v9524 = vpack.c.b16 %v9492, %v9492
      %v9525 = vpack.c.b16 %v9493, %v9493
      %v9526 = vpack.c.b16 %v9494, %v9494
      %v9527 = vpack.c.b16 %v9495, %v9495
      %v9528 = vpack.c.b16 %v9496, %v9496
      %v9529 = vpack.c.b16 %v9497, %v9497
      %v9530 = vpack.c.b16 %v9498, %v9498
      %v9531 = vpack.c.b16 %v9499, %v9499
      %v9532 = vpack.c.b16 %v9500, %v9500
      %v9533 = vpack.c.b16 %v9501, %v9501
      %v9534 = vpack.c.b16 %v9502, %v9502
      %v9535 = vpack.c.b16 %v9503, %v9503
      %v9536 = vpack.c.b16 %v9504, %v9504
      %v9537 = vpack.c.b16 %v9505, %v9505
      %v9538 = vpack.c.b16 %v9506, %v9506
      %v9539 = vpack.c.b16 %v9507, %v9507
      %v9540 = vpack.c.b16 %v9508, %v9508
      %v9541 = vpack.c.b16 %v9509, %v9509
      %v9542 = vpack.c.b16 %v9510, %v9510
      %v9543 = vpack.c.b16 %v9511, %v9511
      %v9544 = vpack.c.b16 %v9512, %v9512
      %v9545 = vpack.c.b16 %v9513, %v9513
      %v9546 = vpack.c.b16 %v9514, %v9514
      %v9547 = vpack.c.b16 %v9515, %v9515
      %v9548 = vpack.c.b16 %v9516, %v9516
      %v9549 = vpack.c.b16 %v9517, %v9517
      %v9550 = vpack.c.b16 %v9518, %v9518
      %v9551 = vpack.c.b16 %v9519, %v9519
      %v9552 = vpack.c.b16 %v9520, %v9520
      %v9553 = vpack.c.b16 %v9521, %v9521
      %vm9586 = vcmask 60416
      %9587 = vst.msk [vmem:[%s179] sm:$0xf] %vm9586, %v9522
      %9588 = vst.msk [vmem:[%s179 + $0x4] sm:$0xf] %vm9586, %v9523
      %9589 = vst.msk [vmem:[%s179 + $0x8] sm:$0xf] %vm9586, %v9524
      %9590 = vst.msk [vmem:[%s179 + $0xc] sm:$0xf] %vm9586, %v9525
      %9591 = vst.msk [vmem:[%s179 + $0x10] sm:$0xf] %vm9586, %v9526
      %9592 = vst.msk [vmem:[%s179 + $0x14] sm:$0xf] %vm9586, %v9527
      %9593 = vst.msk [vmem:[%s179 + $0x18] sm:$0xf] %vm9586, %v9528
      %9594 = vst.msk [vmem:[%s179 + $0x1c] sm:$0xf] %vm9586, %v9529
      %9595 = vst.msk [vmem:[%s179 + $0x20] sm:$0xf] %vm9586, %v9530
      %9596 = vst.msk [vmem:[%s179 + $0x24] sm:$0xf] %vm9586, %v9531
      %9597 = vst.msk [vmem:[%s179 + $0x28] sm:$0xf] %vm9586, %v9532
      %9598 = vst.msk [vmem:[%s179 + $0x2c] sm:$0xf] %vm9586, %v9533
      %9599 = vst.msk [vmem:[%s179 + $0x30] sm:$0xf] %vm9586, %v9534
      %9600 = vst.msk [vmem:[%s179 + $0x34] sm:$0xf] %vm9586, %v9535
      %9601 = vst.msk [vmem:[%s179 + $0x38] sm:$0xf] %vm9586, %v9536
      %9602 = vst.msk [vmem:[%s179 + $0x3c] sm:$0xf] %vm9586, %v9537
      %9603 = vst.msk [vmem:[%s179 + $0x40] sm:$0xf] %vm9586, %v9538
      %9604 = vst.msk [vmem:[%s179 + $0x44] sm:$0xf] %vm9586, %v9539
      %9605 = vst.msk [vmem:[%s179 + $0x48] sm:$0xf] %vm9586, %v9540
      %9606 = vst.msk [vmem:[%s179 + $0x4c] sm:$0xf] %vm9586, %v9541
      %9607 = vst.msk [vmem:[%s179 + $0x50] sm:$0xf] %vm9586, %v9542
      %9608 = vst.msk [vmem:[%s179 + $0x54] sm:$0xf] %vm9586, %v9543
      %9609 = vst.msk [vmem:[%s179 + $0x58] sm:$0xf] %vm9586, %v9544
      %9610 = vst.msk [vmem:[%s179 + $0x5c] sm:$0xf] %vm9586, %v9545
      %9611 = vst.msk [vmem:[%s179 + $0x60] sm:$0xf] %vm9586, %v9546
      %9612 = vst.msk [vmem:[%s179 + $0x64] sm:$0xf] %vm9586, %v9547
      %9613 = vst.msk [vmem:[%s179 + $0x68] sm:$0xf] %vm9586, %v9548
      %9614 = vst.msk [vmem:[%s179 + $0x6c] sm:$0xf] %vm9586, %v9549
      %9615 = vst.msk [vmem:[%s179 + $0x70] sm:$0xf] %vm9586, %v9550
      %9616 = vst.msk [vmem:[%s179 + $0x74] sm:$0xf] %vm9586, %v9551
      %9617 = vst.msk [vmem:[%s179 + $0x78] sm:$0xf] %vm9586, %v9552
      %9618 = vst.msk [vmem:[%s179 + $0x7c] sm:$0xf] %vm9586, %v9553
      %p9619 = scmp.lt.s32.totalorder %s17, 1
      %s9620 = scalar_select %p9619, %s17, 1
      %p9621 = scmp.lt.s32.totalorder %s18, 0
      %s9622 = scalar_select %p9621, %s18, 0
      %s9623 = smul.addr %s9622, 32
      %s9624 = smul.addr %s9620, 32
      %s9625 = sadd.s32 %s9623, %s9624
      %s9626 = smul.addr %s9625, 4
      %s9627 = scalar_lea.vmem %s2, %s9626
      // Predicated region
      $region29: #{ccnet_forward.1} parent=27 // pred_check
        %p9628 = pneg %p94
      $region30: #{ccnet_forward.1} parent=27 // pred_check_branch
        %9630 = sbr.rel (%p9628) target = $region32
      $region31: #{ccnet_forward.1} parent=27 // pred_region
        _
      $region32: #{ccnet_forward.1} parent=27 // pred_fallthru
        _
    $region28: #{ccnet_forward.1} parent=5 // pred_fallthru
      _
    %p9631 = scmp.le.s32.totalorder 2, %s8
    // Predicated region
    $region33: #{ccnet_forward.1} parent=5 // pred_check
      %p9632 = pneg %p9631
    $region34: #{ccnet_forward.1} parent=5 // pred_check_branch
      %9634 = sbr.rel (%p9632) target = $region36
    $region35: #{ccnet_forward.1} parent=5 // pred_region
      %s9635 = ssub.s32 %s8, 2
      // Predicated region
      $region37: #{ccnet_forward.1} parent=35 // pred_check
        %p9636 = pneg %p100
      $region38: #{ccnet_forward.1} parent=35 // pred_check_branch
        %9638 = sbr.rel (%p9636) target = $region40
      $region39: #{ccnet_forward.1} parent=35 // pred_region
        %p9639 = scmp.lt.s32.totalorder %s19, 1
        %s9640 = scalar_select %p9639, %s19, 1
        %p9641 = scmp.lt.s32.totalorder %s20, 0
        %s9642 = scalar_select %p9641, %s20, 0
        %s9643 = smul.addr %s9642, 32
        %s9644 = smul.addr %s9640, 32
        %s9645 = sadd.s32 %s9643, %s9644
        %s9646 = smul.addr %s9645, 4
        %s9647 = scalar_lea.vmem %s2, %s9646
      $region40: #{ccnet_forward.1} parent=35 // pred_fallthru
        _
    $region36: #{ccnet_forward.1} parent=5 // pred_fallthru
      _
  $region6: #{ccnet_forward.1} parent=0 // loop_footer
    %s12 = sadd.s32 1, %s8
  $region7: #{ccnet_forward.1} parent=0 // loop_footer_branch
    %7 = sbr.rel target = $region3
  $region8: #{ccnet_forward.1} parent=0 // loop_exit
    _

</llo_original>
